<compile_context>
chip_gen: v6e
topology: v6e:2x2x1
jax: 0.10.0
libtpu: 0.0.40
codegen_flags: <defaults>
</compile_context>

<pallas_src>
import functools

import jax
import jax.numpy as jnp
from jax.experimental import pallas as pl
from jax.experimental.pallas import tpu as pltpu


# ----------------------------------------------------------------------------
# exact-GELU helper (erf via Abramowitz&Stegun 7.1.26, |err| < 1.5e-7 ~ f32 eps)
# (used identically in the kernel and in the pure-JAX reference)
# ----------------------------------------------------------------------------
def _erf(x):
    a1, a2, a3, a4, a5 = (0.254829592, -0.284496736, 1.421413741,
                          -1.453152027, 1.061405429)
    p = 0.3275911
    sgn = jnp.where(x >= 0.0, 1.0, -1.0)
    ax = jnp.abs(x)
    t = 1.0 / (1.0 + p * ax)
    poly = ((((a5 * t + a4) * t + a3) * t + a2) * t + a1) * t
    return sgn * (1.0 - poly * jnp.exp(-ax * ax))


def _gelu(x):
    # PyTorch nn.GELU() default (approximate='none'): 0.5*x*(1+erf(x/sqrt(2)))
    return 0.5 * x * (1.0 + _erf(x * 0.7071067811865476))


def _shift(x, s, axis):
    """out[i] = x[(i + s) mod N] along `axis`; s is a static python int."""
    if s == 0:
        return x
    return jnp.roll(x, -s, axis=axis)


# ----------------------------------------------------------------------------
# Pallas kernel: whole forward pass for one batch block (Bt samples)
# Lane index l = b_local * W + w  (lane-dense: L = Bt * W, 128 in the demo).
# Row layout of conv activations: r = hc * C + c  (matches torch reshape(B,-1,W)).
# ----------------------------------------------------------------------------
def autoencoder_kernel(
    x_ref,                          # (1, C, L)
    lane_pos_ref,                   # (1, L)   int32  (= l % W)
    row_pos_ref,                    # (HC*C,1) int32  (= r % C)
    gseg_ref,                       # (L, L)   per-batch-segment sum matrix
    ln1_w_ref, ln1_b_ref,           # (C, L)            (tiled over batch)
    w1big_ref, b1e_ref,             # (HC*C, K*K*CP), (HC*C, 1)   im2col conv1
    w2e_ref, b2e_ref,               # (K*K, HC*C, 1), (HC*C, 1)   depthwise conv2
    fc1_w_ref, fc1_b_ref,           # (D_mid, HC*C), (D_mid, 1)
    fc2_w_ref, fc2_b_ref,           # (OC, D_mid), (OC, 1)
    ln2_w_ref, ln2_b_ref,           # (OC, L)           (transposed + tiled)
    o_ref,                          # (1, OC, L)
    patches_ref,                    # scratch (K*K*CP, L) f32
    *, C, W, K, HC, CP, eps,
):
    P = K // 2
    L = x_ref.shape[-1]
    HCC = HC * C
    OC = fc2_w_ref.shape[0]
    prec = jax.lax.Precision.HIGHEST

    x0 = x_ref[0]                                    # (C, L)
    gseg = gseg_ref[...]                             # (L, L)
    lane_pos = lane_pos_ref[...]                     # (1, L)
    row_pos = row_pos_ref[...]                       # (HCC, 1)

    # ---- LayerNorm([C, W]): per-sample stats via one MXU matmul ------------
    inv_n1 = 1.0 / (C * W)
    mu = jnp.sum(jnp.dot(x0, gseg, precision=prec,
                         preferred_element_type=jnp.float32),
                 axis=0, keepdims=True) * inv_n1                  # (1, L)
    d = x0 - mu
    var = jnp.sum(jnp.dot(d * d, gseg, precision=prec,
                          preferred_element_type=jnp.float32),
                  axis=0, keepdims=True) * inv_n1
    xn = d * jax.lax.rsqrt(var + eps) * ln1_w_ref[...] + ln1_b_ref[...]

    # ---- Conv2d(1 -> HC, kernel K, pad K//2): im2col + one MXU matmul ------
    # Rows C..CP-1 of xn_p are zero; since CP >= C + P, the row shift wraps
    # out-of-range rows onto these zeros, so they double as the C-direction
    # zero padding.  Lane shifts wrap across batch segments, so lanes outside
    # [0, W) of their own segment are masked to zero explicitly.
    xn_p = jnp.concatenate(
        [xn, jnp.zeros((CP - C, L), jnp.float32)], axis=0)        # (CP, L)

    lane_ok = []
    for dj in range(K):
        sj = dj - P
        lane_ok.append(jnp.logical_and(lane_pos + sj >= 0, lane_pos + sj < W))

    for dj in range(K):
        sj = dj - P
        shifted = jnp.where(lane_ok[dj], _shift(xn_p, sj, axis=1), 0.0)
        for di in range(K):
            si = di - P
            blk = _shift(shifted, si, axis=0)                     # (CP, L)
            base = (di * K + dj) * CP
            patches_ref[base:base + CP, :] = blk   # aligned full-tile stores

    a1 = jnp.dot(w1big_ref[...], patches_ref[...], precision=prec,
                 preferred_element_type=jnp.float32) + b1e_ref[...]   # (HCC, L)

    # ---- depthwise Conv2d(HC -> HC, groups=HC): shift + mask + MAC ---------
    acc2 = jnp.zeros((HCC, L), jnp.float32)
    for di in range(K):
        si = di - P
        row_ok = jnp.logical_and(row_pos + si >= 0, row_pos + si < C)  # (HCC,1)
        rolled_r = _shift(a1, si, axis=0)
        for dj in range(K):
            sj = dj - P
            rolled = _shift(rolled_r, sj, axis=1)
            term = jnp.where(jnp.logical_and(row_ok, lane_ok[dj]), rolled, 0.0)
            acc2 = acc2 + term * w2e_ref[di * K + dj]             # (HCC,1) bcast
    h = _gelu(acc2 + b2e_ref[...])                                # (HCC, L)

    # ---- FFN (fc1 weight already ordered hc*C + c -> no reshuffle) ---------
    # TODO(synk): nn.Dropout(0.1) is the identity in eval mode; not implemented.
    z = jnp.dot(fc1_w_ref[...], h, precision=prec,
                preferred_element_type=jnp.float32) + fc1_b_ref[...]   # (D_mid, L)
    z = _gelu(z)
    y = jnp.dot(fc2_w_ref[...], z, precision=prec,
                preferred_element_type=jnp.float32) + fc2_b_ref[...]   # (OC, L)

    # ---- LayerNorm([W, OC]): same per-sample element set, transposed layout
    inv_n2 = 1.0 / (OC * W)
    mu2 = jnp.sum(jnp.dot(y, gseg, precision=prec,
                          preferred_element_type=jnp.float32),
                  axis=0, keepdims=True) * inv_n2
    d2 = y - mu2
    var2 = jnp.sum(jnp.dot(d2 * d2, gseg, precision=prec,
                           preferred_element_type=jnp.float32),
                   axis=0, keepdims=True) * inv_n2
    o_ref[0] = d2 * jax.lax.rsqrt(var2 + eps) * ln2_w_ref[...] + ln2_b_ref[...]


# ----------------------------------------------------------------------------
# wrapper: layout plumbing + pallas_call
# ----------------------------------------------------------------------------
def autoencoder_forward(x, params, *, hidden_channels, out_channels,
                        batch_block=None, eps=1e-5):
    B, C, W = x.shape
    K, P = C, C // 2
    HC, OC = hidden_channels, out_channels
    D_in = HC * C
    D_mid = D_in // 3

    Bt = B if batch_block is None else batch_block
    assert B % Bt == 0, "batch must be divisible by the batch block"
    Gb = B // Bt
    L = Bt * W
    KK = K * K
    CP = max(8, -(-(C + P) // 8) * 8)     # padded patch-block rows (>= C + P)

    # lane-dense input layout: (Gb, C, Bt*W), lane index = b_local*W + w
    x3 = x.reshape(Gb, Bt, C, W).transpose(0, 2, 1, 3).reshape(Gb, C, L)

    # ---- parameter re-layout (small, one-time XLA work) --------------------
    ln1_w = jnp.tile(params["ln1_w"], (1, Bt))                   # (C, L)
    ln1_b = jnp.tile(params["ln1_b"], (1, Bt))
    ln2_w = jnp.tile(params["ln2_w"].T, (1, Bt))                 # (OC, L)
    ln2_b = jnp.tile(params["ln2_b"].T, (1, Bt))

    w1 = params["c1_w"][:, 0]                                    # (HC, K, K)
    eye_cp = jnp.eye(C, CP, dtype=jnp.float32)                   # (C, CP)
    w1big = (w1[:, None, :, :, None] *
             eye_cp[None, :, None, None, :]).reshape(HC * C, KK * CP)
    b1e = jnp.repeat(params["c1_b"], C).reshape(HC * C, 1)

    w2 = params["c2_w"][:, 0]                                    # (HC, K, K)
    w2e = jnp.repeat(jnp.transpose(w2, (1, 2, 0)).reshape(KK, HC),
                     C, axis=1).reshape(KK, HC * C, 1)
    b2e = jnp.repeat(params["c2_b"], C).reshape(HC * C, 1)

    fc1_w = params["fc1_w"]                                      # (D_mid, HC*C)
    fc1_b = params["fc1_b"].reshape(D_mid, 1)
    fc2_w = params["fc2_w"]                                      # (OC, D_mid)
    fc2_b = params["fc2_b"].reshape(OC, 1)

    # block-diagonal segment-sum matrix for per-sample LayerNorm stats
    gseg = jnp.kron(jnp.eye(Bt, dtype=jnp.float32),
                    jnp.ones((W, W), jnp.float32))               # (L, L)
    lane_pos = (jnp.arange(L, dtype=jnp.int32) % W).reshape(1, L)
    row_pos = (jnp.arange(HC * C, dtype=jnp.int32) % C).reshape(HC * C, 1)

    kernel = functools.partial(autoencoder_kernel,
                               C=C, W=W, K=K, HC=HC, CP=CP, eps=eps)

    def full(shape):
        n = len(shape)
        return pl.BlockSpec(shape, lambda g, _n=n: (0,) * _n)

    in_specs = [
        pl.BlockSpec((1, C, L), lambda g: (g, 0, 0)),            # x (batch block)
        full((1, L)), full((HC * C, 1)),                         # lane_pos, row_pos
        full((L, L)),                                            # segment-sum matrix
        full((C, L)), full((C, L)),                              # ln1 w/b
        full((HC * C, KK * CP)), full((HC * C, 1)),              # conv1 (im2col) w/b
        full((KK, HC * C, 1)), full((HC * C, 1)),                # conv2 (depthwise) w/b
        full((D_mid, HC * C)), full((D_mid, 1)),                 # fc1 w/b
        full((OC, D_mid)), full((OC, 1)),                        # fc2 w/b
        full((OC, L)), full((OC, L)),                            # ln2 w/b
    ]
    out_spec = pl.BlockSpec((1, OC, L), lambda g: (g, 0, 0))

    out = pl.pallas_call(
        kernel,
        out_shape=jax.ShapeDtypeStruct((Gb, OC, L), jnp.float32),
        grid_spec=pltpu.PrefetchScalarGridSpec(
            num_scalar_prefetch=0,
            grid=(Gb,),
            in_specs=in_specs,
            out_specs=out_spec,
            scratch_shapes=[pltpu.VMEM((KK * CP, L), jnp.float32)],
        ),
        compiler_params=pltpu.CompilerParams(
            dimension_semantics=("parallel",)),
    )(x3, lane_pos, row_pos, gseg, ln1_w, ln1_b,
      w1big, b1e, w2e, b2e, fc1_w, fc1_b, fc2_w, fc2_b, ln2_w, ln2_b)

    # back to the PyTorch output layout (B, OC, W)
    return out.reshape(Gb, OC, Bt, W).transpose(0, 2, 1, 3).reshape(B, OC, W)


# ----------------------------------------------------------------------------
# deterministic parameter init (PyTorch-style layouts & defaults)
# ----------------------------------------------------------------------------
def init_params(key, C, W, HC, OC):
    K = C
    D_in = HC * C
    D_mid = D_in // 3
    ks = jax.random.split(key, 8)

    def u(k, shape, fan_in):
        bound = fan_in ** -0.5
        return jax.random.uniform(k, shape, jnp.float32, -bound, bound)

    return {
        "ln1_w": jnp.ones((C, W), jnp.float32),
        "ln1_b": jnp.zeros((C, W), jnp.float32),
        "c1_w": u(ks[0], (HC, 1, K, K), 1 * K * K),     # Conv2d(1, HC, K)
        "c1_b": u(ks[1], (HC,), 1 * K * K),
        "c2_w": u(ks[2], (HC, 1, K, K), 1 * K * K),     # depthwise Conv2d
        "c2_b": u(ks[3], (HC,), 1 * K * K),
        "fc1_w": u(ks[4], (D_mid, D_in), D_in),         # Linear (out, in)
        "fc1_b": u(ks[5], (D_mid,), D_in),
        "fc2_w": u(ks[6], (OC, D_mid), D_mid),
        "fc2_b": u(ks[7], (OC,), D_mid),
        "ln2_w": jnp.ones((W, OC), jnp.float32),
        "ln2_b": jnp.zeros((W, OC), jnp.float32),
    }


# ----------------------------------------------------------------------------
# pure-JAX reference (torch semantics) for validation
# ----------------------------------------------------------------------------
def reference_forward(x, params, *, hidden_channels, out_channels, eps=1e-5):
    HC, OC = hidden_channels, out_channels
    B, C, W = x.shape
    K, P = C, C // 2

    mu = jnp.mean(x, axis=(1, 2), keepdims=True)
    var = jnp.mean((x - mu) ** 2, axis=(1, 2), keepdims=True)
    xn = (x - mu) * jax.lax.rsqrt(var + eps) * params["ln1_w"][None] + params["ln1_b"][None]

    xp = jnp.pad(xn, ((0, 0), (P, P), (P, P)))
    w1 = params["c1_w"][:, 0]
    acc1 = jnp.zeros((B, HC, C, W), jnp.float32)
    for di in range(K):
        for dj in range(K):
            patch = xp[:, di:di + C, dj:dj + W]
            acc1 = acc1 + patch[:, None, :, :] * w1[None, :, di:di + 1, dj:dj + 1]
    acc1 = acc1 + params["c1_b"][None, :, None, None]

    hp = jnp.pad(acc1, ((0, 0), (0, 0), (P, P), (P, P)))
    w2 = params["c2_w"][:, 0]
    acc2 = jnp.zeros((B, HC, C, W), jnp.float32)
    for di in range(K):
        for dj in range(K):
            patch = hp[:, :, di:di + C, dj:dj + W]
            acc2 = acc2 + patch * w2[None, :, di:di + 1, dj:dj + 1]
    acc2 = acc2 + params["c2_b"][None, :, None, None]
    h = _gelu(acc2)                                           # (B, HC, C, W)

    feat = jnp.transpose(h.reshape(B, HC * C, W), (0, 2, 1))  # (B, W, HC*C)
    z = jnp.einsum("bwi,oi->bwo", feat, params["fc1_w"],
                   precision=jax.lax.Precision.HIGHEST) + params["fc1_b"]
    z = _gelu(z)                                              # dropout = identity (eval)
    y = jnp.einsum("bwm,om->bwo", z, params["fc2_w"],
                   precision=jax.lax.Precision.HIGHEST) + params["fc2_b"]

    mu2 = jnp.mean(y, axis=(1, 2), keepdims=True)
    var2 = jnp.mean((y - mu2) ** 2, axis=(1, 2), keepdims=True)
    yn = (y - mu2) * jax.lax.rsqrt(var2 + eps) * params["ln2_w"][None] + params["ln2_b"][None]
    return jnp.transpose(yn, (0, 2, 1))                       # (B, OC, W)


if __name__ == "__main__":
    # val_channels must be odd for the PyTorch module's reshape to be valid.
    B, C, W = 16, 5, 16         # batch, val_channels, w_len
    HC, OC = 8, 4               # hidden_channels, out_channels
    Bt = 8                      # batch block -> Bt * W = 128 lanes (lane-dense)

    key = jax.random.PRNGKey(0)
    kx, kp = jax.random.split(key)
    x = jax.random.normal(kx, (B, C, W), jnp.float32)
    params = init_params(kp, C, W, HC, OC)

    out = autoencoder_forward(x, params, hidden_channels=HC, out_channels=OC,
                              batch_block=Bt)
    out = jax.block_until_ready(out)

    ref = jax.block_until_ready(
        reference_forward(x, params, hidden_channels=HC, out_channels=OC))

    assert out.shape == (B, OC, W), out.shape
    max_err = float(jnp.max(jnp.abs(out - ref)))
    if max_err > 5e-4:
        raise AssertionError(f"kernel/reference mismatch, max abs err = {max_err}")
    print("KERNEL_OK")
</pallas_src>

<mosaic_0001>
module attributes {stable_mosaic.version = 11 : i64} {
  func.func @autoencoder_kernel(%arg0: i32, %arg1: memref<1x5x128xf32, #tpu.memory_space<vmem>>, %arg2: memref<1x128xi32, #tpu.memory_space<vmem>>, %arg3: memref<40x1xi32, #tpu.memory_space<vmem>>, %arg4: memref<128x128xf32, #tpu.memory_space<vmem>>, %arg5: memref<5x128xf32, #tpu.memory_space<vmem>>, %arg6: memref<5x128xf32, #tpu.memory_space<vmem>>, %arg7: memref<40x200xf32, #tpu.memory_space<vmem>>, %arg8: memref<40x1xf32, #tpu.memory_space<vmem>>, %arg9: memref<25x40x1xf32, #tpu.memory_space<vmem>>, %arg10: memref<40x1xf32, #tpu.memory_space<vmem>>, %arg11: memref<13x40xf32, #tpu.memory_space<vmem>>, %arg12: memref<13x1xf32, #tpu.memory_space<vmem>>, %arg13: memref<4x13xf32, #tpu.memory_space<vmem>>, %arg14: memref<4x1xf32, #tpu.memory_space<vmem>>, %arg15: memref<4x128xf32, #tpu.memory_space<vmem>>, %arg16: memref<4x128xf32, #tpu.memory_space<vmem>>, %arg17: memref<1x4x128xf32, #tpu.memory_space<vmem>>, %arg18: memref<200x128xf32, #tpu.memory_space<vmem>>) attributes {dimension_semantics = [#tpu.dimension_semantics<parallel>], iteration_bounds = array<i64: 2>, scalar_prefetch = 0 : i64, scratch_operands = 1 : i64, tpu.core_type = #tpu.core_type<tc>, window_params = [{transform_indices = @transform_0, window_bounds = array<i64: 1, 5, 128>}, {pipeline_mode = #tpu.pipeline_mode<synchronous>, transform_indices = @transform_1, window_bounds = array<i64: 1, 128>}, {pipeline_mode = #tpu.pipeline_mode<synchronous>, transform_indices = @transform_2, window_bounds = array<i64: 40, 1>}, {pipeline_mode = #tpu.pipeline_mode<synchronous>, transform_indices = @transform_3, window_bounds = array<i64: 128, 128>}, {pipeline_mode = #tpu.pipeline_mode<synchronous>, transform_indices = @transform_4, window_bounds = array<i64: 5, 128>}, {pipeline_mode = #tpu.pipeline_mode<synchronous>, transform_indices = @transform_5, window_bounds = array<i64: 5, 128>}, {pipeline_mode = #tpu.pipeline_mode<synchronous>, transform_indices = @transform_6, window_bounds = array<i64: 40, 200>}, {pipeline_mode = #tpu.pipeline_mode<synchronous>, transform_indices = @transform_7, window_bounds = array<i64: 40, 1>}, {pipeline_mode = #tpu.pipeline_mode<synchronous>, transform_indices = @transform_8, window_bounds = array<i64: 25, 40, 1>}, {pipeline_mode = #tpu.pipeline_mode<synchronous>, transform_indices = @transform_9, window_bounds = array<i64: 40, 1>}, {pipeline_mode = #tpu.pipeline_mode<synchronous>, transform_indices = @transform_10, window_bounds = array<i64: 13, 40>}, {pipeline_mode = #tpu.pipeline_mode<synchronous>, transform_indices = @transform_11, window_bounds = array<i64: 13, 1>}, {pipeline_mode = #tpu.pipeline_mode<synchronous>, transform_indices = @transform_12, window_bounds = array<i64: 4, 13>}, {pipeline_mode = #tpu.pipeline_mode<synchronous>, transform_indices = @transform_13, window_bounds = array<i64: 4, 1>}, {pipeline_mode = #tpu.pipeline_mode<synchronous>, transform_indices = @transform_14, window_bounds = array<i64: 4, 128>}, {pipeline_mode = #tpu.pipeline_mode<synchronous>, transform_indices = @transform_15, window_bounds = array<i64: 4, 128>}, {transform_indices = @transform_16, window_bounds = array<i64: 1, 4, 128>}]} {
    %c0 = arith.constant 0 : index
    %c0_0 = arith.constant 0 : index
    %c0_1 = arith.constant 0 : index
    %0 = vector.load %arg1[%c0, %c0_0, %c0_1] : memref<1x5x128xf32, #tpu.memory_space<vmem>>, vector<1x5x128xf32>
    %1 = vector.shape_cast %0 : vector<1x5x128xf32> to vector<5x128xf32>
    %c0_2 = arith.constant 0 : index
    %c0_3 = arith.constant 0 : index
    %2 = vector.load %arg4[%c0_2, %c0_3] : memref<128x128xf32, #tpu.memory_space<vmem>>, vector<128x128xf32>
    %c0_4 = arith.constant 0 : index
    %c0_5 = arith.constant 0 : index
    %3 = vector.load %arg2[%c0_4, %c0_5] : memref<1x128xi32, #tpu.memory_space<vmem>>, vector<1x128xi32>
    %c0_6 = arith.constant 0 : index
    %c0_7 = arith.constant 0 : index
    %4 = vector.load %arg3[%c0_6, %c0_7] : memref<40x1xi32, #tpu.memory_space<vmem>>, vector<40x1xi32>
    %cst = arith.constant dense<0.000000e+00> : vector<5x128xf32>
    %5 = tpu.matmul %1, %2, %cst {dimension_numbers = #tpu.dot_dimension_numbers<[1], [0], [0], [1], [0, 0, 1, 1], [], []>, precision = #tpu.contract_precision<fp32>} : vector<5x128xf32>, vector<128x128xf32>, vector<5x128xf32> -> vector<5x128xf32>
    %cst_8 = arith.constant dense<0.000000e+00> : vector<128xf32>
    %6 = vector.multi_reduction <add>, %5, %cst_8 [0] : vector<5x128xf32> to vector<128xf32>
    %7 = vector.shape_cast %6 : vector<128xf32> to vector<1x128xf32>
    %cst_9 = arith.constant 1.250000e-02 : f32
    %8 = vector.broadcast %cst_9 : f32 to vector<1x128xf32>
    %9 = arith.mulf %7, %8 : vector<1x128xf32>
    %10 = vector.broadcast %9 : vector<1x128xf32> to vector<5x128xf32>
    %11 = arith.subf %1, %10 : vector<5x128xf32>
    %12 = arith.mulf %11, %11 : vector<5x128xf32>
    %cst_10 = arith.constant dense<0.000000e+00> : vector<5x128xf32>
    %13 = tpu.matmul %12, %2, %cst_10 {dimension_numbers = #tpu.dot_dimension_numbers<[1], [0], [0], [1], [0, 0, 1, 1], [], []>, precision = #tpu.contract_precision<fp32>} : vector<5x128xf32>, vector<128x128xf32>, vector<5x128xf32> -> vector<5x128xf32>
    %cst_11 = arith.constant dense<0.000000e+00> : vector<128xf32>
    %14 = vector.multi_reduction <add>, %13, %cst_11 [0] : vector<5x128xf32> to vector<128xf32>
    %15 = vector.shape_cast %14 : vector<128xf32> to vector<1x128xf32>
    %cst_12 = arith.constant 1.250000e-02 : f32
    %16 = vector.broadcast %cst_12 : f32 to vector<1x128xf32>
    %17 = arith.mulf %15, %16 : vector<1x128xf32>
    %cst_13 = arith.constant 9.99999974E-6 : f32
    %18 = vector.broadcast %cst_13 : f32 to vector<1x128xf32>
    %19 = arith.addf %17, %18 : vector<1x128xf32>
    %20 = math.rsqrt %19 : vector<1x128xf32>
    %21 = vector.broadcast %20 : vector<1x128xf32> to vector<5x128xf32>
    %22 = arith.mulf %11, %21 : vector<5x128xf32>
    %c0_14 = arith.constant 0 : index
    %c0_15 = arith.constant 0 : index
    %23 = vector.load %arg5[%c0_14, %c0_15] : memref<5x128xf32, #tpu.memory_space<vmem>>, vector<5x128xf32>
    %24 = arith.mulf %22, %23 : vector<5x128xf32>
    %c0_16 = arith.constant 0 : index
    %c0_17 = arith.constant 0 : index
    %25 = vector.load %arg6[%c0_16, %c0_17] : memref<5x128xf32, #tpu.memory_space<vmem>>, vector<5x128xf32>
    %26 = arith.addf %24, %25 : vector<5x128xf32>
    %cst_18 = arith.constant 0.000000e+00 : f32
    %27 = vector.broadcast %cst_18 : f32 to vector<3x128xf32>
    %28 = tpu.concatenate %26, %27 in 0 : vector<5x128xf32>, vector<3x128xf32> -> vector<8x128xf32>
    %c-2_i32 = arith.constant -2 : i32
    %29 = vector.broadcast %c-2_i32 : i32 to vector<1x128xi32>
    %30 = arith.addi %3, %29 : vector<1x128xi32>
    %c0_i32 = arith.constant 0 : i32
    %31 = vector.broadcast %c0_i32 : i32 to vector<1x128xi32>
    %32 = arith.cmpi sge, %30, %31 : vector<1x128xi32>
    %c-2_i32_19 = arith.constant -2 : i32
    %33 = vector.broadcast %c-2_i32_19 : i32 to vector<1x128xi32>
    %34 = arith.addi %3, %33 : vector<1x128xi32>
    %c16_i32 = arith.constant 16 : i32
    %35 = vector.broadcast %c16_i32 : i32 to vector<1x128xi32>
    %36 = arith.cmpi slt, %34, %35 : vector<1x128xi32>
    %37 = arith.andi %32, %36 : vector<1x128xi1>
    %c-1_i32 = arith.constant -1 : i32
    %38 = vector.broadcast %c-1_i32 : i32 to vector<1x128xi32>
    %39 = arith.addi %3, %38 : vector<1x128xi32>
    %c0_i32_20 = arith.constant 0 : i32
    %40 = vector.broadcast %c0_i32_20 : i32 to vector<1x128xi32>
    %41 = arith.cmpi sge, %39, %40 : vector<1x128xi32>
    %c-1_i32_21 = arith.constant -1 : i32
    %42 = vector.broadcast %c-1_i32_21 : i32 to vector<1x128xi32>
    %43 = arith.addi %3, %42 : vector<1x128xi32>
    %c16_i32_22 = arith.constant 16 : i32
    %44 = vector.broadcast %c16_i32_22 : i32 to vector<1x128xi32>
    %45 = arith.cmpi slt, %43, %44 : vector<1x128xi32>
    %46 = arith.andi %41, %45 : vector<1x128xi1>
    %c0_i32_23 = arith.constant 0 : i32
    %47 = vector.broadcast %c0_i32_23 : i32 to vector<1x128xi32>
    %48 = arith.addi %3, %47 : vector<1x128xi32>
    %c0_i32_24 = arith.constant 0 : i32
    %49 = vector.broadcast %c0_i32_24 : i32 to vector<1x128xi32>
    %50 = arith.cmpi sge, %48, %49 : vector<1x128xi32>
    %c0_i32_25 = arith.constant 0 : i32
    %51 = vector.broadcast %c0_i32_25 : i32 to vector<1x128xi32>
    %52 = arith.addi %3, %51 : vector<1x128xi32>
    %c16_i32_26 = arith.constant 16 : i32
    %53 = vector.broadcast %c16_i32_26 : i32 to vector<1x128xi32>
    %54 = arith.cmpi slt, %52, %53 : vector<1x128xi32>
    %55 = arith.andi %50, %54 : vector<1x128xi1>
    %c1_i32 = arith.constant 1 : i32
    %56 = vector.broadcast %c1_i32 : i32 to vector<1x128xi32>
    %57 = arith.addi %3, %56 : vector<1x128xi32>
    %c0_i32_27 = arith.constant 0 : i32
    %58 = vector.broadcast %c0_i32_27 : i32 to vector<1x128xi32>
    %59 = arith.cmpi sge, %57, %58 : vector<1x128xi32>
    %c1_i32_28 = arith.constant 1 : i32
    %60 = vector.broadcast %c1_i32_28 : i32 to vector<1x128xi32>
    %61 = arith.addi %3, %60 : vector<1x128xi32>
    %c16_i32_29 = arith.constant 16 : i32
    %62 = vector.broadcast %c16_i32_29 : i32 to vector<1x128xi32>
    %63 = arith.cmpi slt, %61, %62 : vector<1x128xi32>
    %64 = arith.andi %59, %63 : vector<1x128xi1>
    %c2_i32 = arith.constant 2 : i32
    %65 = vector.broadcast %c2_i32 : i32 to vector<1x128xi32>
    %66 = arith.addi %3, %65 : vector<1x128xi32>
    %c0_i32_30 = arith.constant 0 : i32
    %67 = vector.broadcast %c0_i32_30 : i32 to vector<1x128xi32>
    %68 = arith.cmpi sge, %66, %67 : vector<1x128xi32>
    %c2_i32_31 = arith.constant 2 : i32
    %69 = vector.broadcast %c2_i32_31 : i32 to vector<1x128xi32>
    %70 = arith.addi %3, %69 : vector<1x128xi32>
    %c16_i32_32 = arith.constant 16 : i32
    %71 = vector.broadcast %c16_i32_32 : i32 to vector<1x128xi32>
    %72 = arith.cmpi slt, %70, %71 : vector<1x128xi32>
    %73 = arith.andi %68, %72 : vector<1x128xi1>
    %74 = vector.extract_strided_slice %28 {offsets = [0, 126], sizes = [8, 2], strides = [1, 1]} : vector<8x128xf32> to vector<8x2xf32>
    %75 = vector.extract_strided_slice %28 {offsets = [0, 0], sizes = [8, 126], strides = [1, 1]} : vector<8x128xf32> to vector<8x126xf32>
    %76 = tpu.concatenate %74, %75 in 1 : vector<8x2xf32>, vector<8x126xf32> -> vector<8x128xf32>
    %cst_33 = arith.constant 0.000000e+00 : f32
    %77 = vector.shape_cast %37 : vector<1x128xi1> to vector<1x128xi1>
    %78 = vector.broadcast %77 : vector<1x128xi1> to vector<8x128xi1>
    %79 = vector.broadcast %cst_33 : f32 to vector<8x128xf32>
    %80 = arith.select %78, %76, %79 : vector<8x128xi1>, vector<8x128xf32>
    %81 = vector.extract_strided_slice %80 {offsets = [6, 0], sizes = [2, 128], strides = [1, 1]} : vector<8x128xf32> to vector<2x128xf32>
    %82 = vector.extract_strided_slice %80 {offsets = [0, 0], sizes = [6, 128], strides = [1, 1]} : vector<8x128xf32> to vector<6x128xf32>
    %83 = tpu.concatenate %81, %82 in 0 : vector<2x128xf32>, vector<6x128xf32> -> vector<8x128xf32>
    %c0_34 = arith.constant 0 : index
    %c0_35 = arith.constant 0 : index
    %84 = vector.load %arg18[%c0_34, %c0_35] : memref<200x128xf32, #tpu.memory_space<vmem>>, vector<8x128xf32>
    tpu.vector_store %arg18[%c0_34, %c0_35], %83 {strides = array<i32>} : memref<200x128xf32, #tpu.memory_space<vmem>>, vector<8x128xf32>,
    %85 = vector.extract_strided_slice %80 {offsets = [7, 0], sizes = [1, 128], strides = [1, 1]} : vector<8x128xf32> to vector<1x128xf32>
    %86 = vector.extract_strided_slice %80 {offsets = [0, 0], sizes = [7, 128], strides = [1, 1]} : vector<8x128xf32> to vector<7x128xf32>
    %87 = tpu.concatenate %85, %86 in 0 : vector<1x128xf32>, vector<7x128xf32> -> vector<8x128xf32>
    %c40 = arith.constant 40 : index
    %c0_36 = arith.constant 0 : index
    %88 = vector.load %arg18[%c40, %c0_36] : memref<200x128xf32, #tpu.memory_space<vmem>>, vector<8x128xf32>
    tpu.vector_store %arg18[%c40, %c0_36], %87 {strides = array<i32>} : memref<200x128xf32, #tpu.memory_space<vmem>>, vector<8x128xf32>,
    %c80 = arith.constant 80 : index
    %c0_37 = arith.constant 0 : index
    %89 = vector.load %arg18[%c80, %c0_37] : memref<200x128xf32, #tpu.memory_space<vmem>>, vector<8x128xf32>
    tpu.vector_store %arg18[%c80, %c0_37], %80 {strides = array<i32>} : memref<200x128xf32, #tpu.memory_space<vmem>>, vector<8x128xf32>,
    %90 = vector.extract_strided_slice %80 {offsets = [1, 0], sizes = [7, 128], strides = [1, 1]} : vector<8x128xf32> to vector<7x128xf32>
    %91 = vector.extract_strided_slice %80 {offsets = [0, 0], sizes = [1, 128], strides = [1, 1]} : vector<8x128xf32> to vector<1x128xf32>
    %92 = tpu.concatenate %90, %91 in 0 : vector<7x128xf32>, vector<1x128xf32> -> vector<8x128xf32>
    %c120 = arith.constant 120 : index
    %c0_38 = arith.constant 0 : index
    %93 = vector.load %arg18[%c120, %c0_38] : memref<200x128xf32, #tpu.memory_space<vmem>>, vector<8x128xf32>
    tpu.vector_store %arg18[%c120, %c0_38], %92 {strides = array<i32>} : memref<200x128xf32, #tpu.memory_space<vmem>>, vector<8x128xf32>,
    %94 = vector.extract_strided_slice %80 {offsets = [2, 0], sizes = [6, 128], strides = [1, 1]} : vector<8x128xf32> to vector<6x128xf32>
    %95 = vector.extract_strided_slice %80 {offsets = [0, 0], sizes = [2, 128], strides = [1, 1]} : vector<8x128xf32> to vector<2x128xf32>
    %96 = tpu.concatenate %94, %95 in 0 : vector<6x128xf32>, vector<2x128xf32> -> vector<8x128xf32>
    %c160 = arith.constant 160 : index
    %c0_39 = arith.constant 0 : index
    %97 = vector.load %arg18[%c160, %c0_39] : memref<200x128xf32, #tpu.memory_space<vmem>>, vector<8x128xf32>
    tpu.vector_store %arg18[%c160, %c0_39], %96 {strides = array<i32>} : memref<200x128xf32, #tpu.memory_space<vmem>>, vector<8x128xf32>,
    %98 = vector.extract_strided_slice %28 {offsets = [0, 127], sizes = [8, 1], strides = [1, 1]} : vector<8x128xf32> to vector<8x1xf32>
    %99 = vector.extract_strided_slice %28 {offsets = [0, 0], sizes = [8, 127], strides = [1, 1]} : vector<8x128xf32> to vector<8x127xf32>
    %100 = tpu.concatenate %98, %99 in 1 : vector<8x1xf32>, vector<8x127xf32> -> vector<8x128xf32>
    %cst_40 = arith.constant 0.000000e+00 : f32
    %101 = vector.shape_cast %46 : vector<1x128xi1> to vector<1x128xi1>
    %102 = vector.broadcast %101 : vector<1x128xi1> to vector<8x128xi1>
    %103 = vector.broadcast %cst_40 : f32 to vector<8x128xf32>
    %104 = arith.select %102, %100, %103 : vector<8x128xi1>, vector<8x128xf32>
    %105 = vector.extract_strided_slice %104 {offsets = [6, 0], sizes = [2, 128], strides = [1, 1]} : vector<8x128xf32> to vector<2x128xf32>
    %106 = vector.extract_strided_slice %104 {offsets = [0, 0], sizes = [6, 128], strides = [1, 1]} : vector<8x128xf32> to vector<6x128xf32>
    %107 = tpu.concatenate %105, %106 in 0 : vector<2x128xf32>, vector<6x128xf32> -> vector<8x128xf32>
    %c8 = arith.constant 8 : index
    %c0_41 = arith.constant 0 : index
    %108 = vector.load %arg18[%c8, %c0_41] : memref<200x128xf32, #tpu.memory_space<vmem>>, vector<8x128xf32>
    tpu.vector_store %arg18[%c8, %c0_41], %107 {strides = array<i32>} : memref<200x128xf32, #tpu.memory_space<vmem>>, vector<8x128xf32>,
    %109 = vector.extract_strided_slice %104 {offsets = [7, 0], sizes = [1, 128], strides = [1, 1]} : vector<8x128xf32> to vector<1x128xf32>
    %110 = vector.extract_strided_slice %104 {offsets = [0, 0], sizes = [7, 128], strides = [1, 1]} : vector<8x128xf32> to vector<7x128xf32>
    %111 = tpu.concatenate %109, %110 in 0 : vector<1x128xf32>, vector<7x128xf32> -> vector<8x128xf32>
    %c48 = arith.constant 48 : index
    %c0_42 = arith.constant 0 : index
    %112 = vector.load %arg18[%c48, %c0_42] : memref<200x128xf32, #tpu.memory_space<vmem>>, vector<8x128xf32>
    tpu.vector_store %arg18[%c48, %c0_42], %111 {strides = array<i32>} : memref<200x128xf32, #tpu.memory_space<vmem>>, vector<8x128xf32>,
    %c88 = arith.constant 88 : index
    %c0_43 = arith.constant 0 : index
    %113 = vector.load %arg18[%c88, %c0_43] : memref<200x128xf32, #tpu.memory_space<vmem>>, vector<8x128xf32>
    tpu.vector_store %arg18[%c88, %c0_43], %104 {strides = array<i32>} : memref<200x128xf32, #tpu.memory_space<vmem>>, vector<8x128xf32>,
    %114 = vector.extract_strided_slice %104 {offsets = [1, 0], sizes = [7, 128], strides = [1, 1]} : vector<8x128xf32> to vector<7x128xf32>
    %115 = vector.extract_strided_slice %104 {offsets = [0, 0], sizes = [1, 128], strides = [1, 1]} : vector<8x128xf32> to vector<1x128xf32>
    %116 = tpu.concatenate %114, %115 in 0 : vector<7x128xf32>, vector<1x128xf32> -> vector<8x128xf32>
    %c128 = arith.constant 128 : index
    %c0_44 = arith.constant 0 : index
    %117 = vector.load %arg18[%c128, %c0_44] : memref<200x128xf32, #tpu.memory_space<vmem>>, vector<8x128xf32>
    tpu.vector_store %arg18[%c128, %c0_44], %116 {strides = array<i32>} : memref<200x128xf32, #tpu.memory_space<vmem>>, vector<8x128xf32>,
    %118 = vector.extract_strided_slice %104 {offsets = [2, 0], sizes = [6, 128], strides = [1, 1]} : vector<8x128xf32> to vector<6x128xf32>
    %119 = vector.extract_strided_slice %104 {offsets = [0, 0], sizes = [2, 128], strides = [1, 1]} : vector<8x128xf32> to vector<2x128xf32>
    %120 = tpu.concatenate %118, %119 in 0 : vector<6x128xf32>, vector<2x128xf32> -> vector<8x128xf32>
    %c168 = arith.constant 168 : index
    %c0_45 = arith.constant 0 : index
    %121 = vector.load %arg18[%c168, %c0_45] : memref<200x128xf32, #tpu.memory_space<vmem>>, vector<8x128xf32>
    tpu.vector_store %arg18[%c168, %c0_45], %120 {strides = array<i32>} : memref<200x128xf32, #tpu.memory_space<vmem>>, vector<8x128xf32>,
    %cst_46 = arith.constant 0.000000e+00 : f32
    %122 = vector.shape_cast %55 : vector<1x128xi1> to vector<1x128xi1>
    %123 = vector.broadcast %122 : vector<1x128xi1> to vector<8x128xi1>
    %124 = vector.broadcast %cst_46 : f32 to vector<8x128xf32>
    %125 = arith.select %123, %28, %124 : vector<8x128xi1>, vector<8x128xf32>
    %126 = vector.extract_strided_slice %125 {offsets = [6, 0], sizes = [2, 128], strides = [1, 1]} : vector<8x128xf32> to vector<2x128xf32>
    %127 = vector.extract_strided_slice %125 {offsets = [0, 0], sizes = [6, 128], strides = [1, 1]} : vector<8x128xf32> to vector<6x128xf32>
    %128 = tpu.concatenate %126, %127 in 0 : vector<2x128xf32>, vector<6x128xf32> -> vector<8x128xf32>
    %c16 = arith.constant 16 : index
    %c0_47 = arith.constant 0 : index
    %129 = vector.load %arg18[%c16, %c0_47] : memref<200x128xf32, #tpu.memory_space<vmem>>, vector<8x128xf32>
    tpu.vector_store %arg18[%c16, %c0_47], %128 {strides = array<i32>} : memref<200x128xf32, #tpu.memory_space<vmem>>, vector<8x128xf32>,
    %130 = vector.extract_strided_slice %125 {offsets = [7, 0], sizes = [1, 128], strides = [1, 1]} : vector<8x128xf32> to vector<1x128xf32>
    %131 = vector.extract_strided_slice %125 {offsets = [0, 0], sizes = [7, 128], strides = [1, 1]} : vector<8x128xf32> to vector<7x128xf32>
    %132 = tpu.concatenate %130, %131 in 0 : vector<1x128xf32>, vector<7x128xf32> -> vector<8x128xf32>
    %c56 = arith.constant 56 : index
    %c0_48 = arith.constant 0 : index
    %133 = vector.load %arg18[%c56, %c0_48] : memref<200x128xf32, #tpu.memory_space<vmem>>, vector<8x128xf32>
    tpu.vector_store %arg18[%c56, %c0_48], %132 {strides = array<i32>} : memref<200x128xf32, #tpu.memory_space<vmem>>, vector<8x128xf32>,
    %c96 = arith.constant 96 : index
    %c0_49 = arith.constant 0 : index
    %134 = vector.load %arg18[%c96, %c0_49] : memref<200x128xf32, #tpu.memory_space<vmem>>, vector<8x128xf32>
    tpu.vector_store %arg18[%c96, %c0_49], %125 {strides = array<i32>} : memref<200x128xf32, #tpu.memory_space<vmem>>, vector<8x128xf32>,
    %135 = vector.extract_strided_slice %125 {offsets = [1, 0], sizes = [7, 128], strides = [1, 1]} : vector<8x128xf32> to vector<7x128xf32>
    %136 = vector.extract_strided_slice %125 {offsets = [0, 0], sizes = [1, 128], strides = [1, 1]} : vector<8x128xf32> to vector<1x128xf32>
    %137 = tpu.concatenate %135, %136 in 0 : vector<7x128xf32>, vector<1x128xf32> -> vector<8x128xf32>
    %c136 = arith.constant 136 : index
    %c0_50 = arith.constant 0 : index
    %138 = vector.load %arg18[%c136, %c0_50] : memref<200x128xf32, #tpu.memory_space<vmem>>, vector<8x128xf32>
    tpu.vector_store %arg18[%c136, %c0_50], %137 {strides = array<i32>} : memref<200x128xf32, #tpu.memory_space<vmem>>, vector<8x128xf32>,
    %139 = vector.extract_strided_slice %125 {offsets = [2, 0], sizes = [6, 128], strides = [1, 1]} : vector<8x128xf32> to vector<6x128xf32>
    %140 = vector.extract_strided_slice %125 {offsets = [0, 0], sizes = [2, 128], strides = [1, 1]} : vector<8x128xf32> to vector<2x128xf32>
    %141 = tpu.concatenate %139, %140 in 0 : vector<6x128xf32>, vector<2x128xf32> -> vector<8x128xf32>
    %c176 = arith.constant 176 : index
    %c0_51 = arith.constant 0 : index
    %142 = vector.load %arg18[%c176, %c0_51] : memref<200x128xf32, #tpu.memory_space<vmem>>, vector<8x128xf32>
    tpu.vector_store %arg18[%c176, %c0_51], %141 {strides = array<i32>} : memref<200x128xf32, #tpu.memory_space<vmem>>, vector<8x128xf32>,
    %143 = vector.extract_strided_slice %28 {offsets = [0, 1], sizes = [8, 127], strides = [1, 1]} : vector<8x128xf32> to vector<8x127xf32>
    %144 = vector.extract_strided_slice %28 {offsets = [0, 0], sizes = [8, 1], strides = [1, 1]} : vector<8x128xf32> to vector<8x1xf32>
    %145 = tpu.concatenate %143, %144 in 1 : vector<8x127xf32>, vector<8x1xf32> -> vector<8x128xf32>
    %cst_52 = arith.constant 0.000000e+00 : f32
    %146 = vector.shape_cast %64 : vector<1x128xi1> to vector<1x128xi1>
    %147 = vector.broadcast %146 : vector<1x128xi1> to vector<8x128xi1>
    %148 = vector.broadcast %cst_52 : f32 to vector<8x128xf32>
    %149 = arith.select %147, %145, %148 : vector<8x128xi1>, vector<8x128xf32>
    %150 = vector.extract_strided_slice %149 {offsets = [6, 0], sizes = [2, 128], strides = [1, 1]} : vector<8x128xf32> to vector<2x128xf32>
    %151 = vector.extract_strided_slice %149 {offsets = [0, 0], sizes = [6, 128], strides = [1, 1]} : vector<8x128xf32> to vector<6x128xf32>
    %152 = tpu.concatenate %150, %151 in 0 : vector<2x128xf32>, vector<6x128xf32> -> vector<8x128xf32>
    %c24 = arith.constant 24 : index
    %c0_53 = arith.constant 0 : index
    %153 = vector.load %arg18[%c24, %c0_53] : memref<200x128xf32, #tpu.memory_space<vmem>>, vector<8x128xf32>
    tpu.vector_store %arg18[%c24, %c0_53], %152 {strides = array<i32>} : memref<200x128xf32, #tpu.memory_space<vmem>>, vector<8x128xf32>,
    %154 = vector.extract_strided_slice %149 {offsets = [7, 0], sizes = [1, 128], strides = [1, 1]} : vector<8x128xf32> to vector<1x128xf32>
    %155 = vector.extract_strided_slice %149 {offsets = [0, 0], sizes = [7, 128], strides = [1, 1]} : vector<8x128xf32> to vector<7x128xf32>
    %156 = tpu.concatenate %154, %155 in 0 : vector<1x128xf32>, vector<7x128xf32> -> vector<8x128xf32>
    %c64 = arith.constant 64 : index
    %c0_54 = arith.constant 0 : index
    %157 = vector.load %arg18[%c64, %c0_54] : memref<200x128xf32, #tpu.memory_space<vmem>>, vector<8x128xf32>
    tpu.vector_store %arg18[%c64, %c0_54], %156 {strides = array<i32>} : memref<200x128xf32, #tpu.memory_space<vmem>>, vector<8x128xf32>,
    %c104 = arith.constant 104 : index
    %c0_55 = arith.constant 0 : index
    %158 = vector.load %arg18[%c104, %c0_55] : memref<200x128xf32, #tpu.memory_space<vmem>>, vector<8x128xf32>
    tpu.vector_store %arg18[%c104, %c0_55], %149 {strides = array<i32>} : memref<200x128xf32, #tpu.memory_space<vmem>>, vector<8x128xf32>,
    %159 = vector.extract_strided_slice %149 {offsets = [1, 0], sizes = [7, 128], strides = [1, 1]} : vector<8x128xf32> to vector<7x128xf32>
    %160 = vector.extract_strided_slice %149 {offsets = [0, 0], sizes = [1, 128], strides = [1, 1]} : vector<8x128xf32> to vector<1x128xf32>
    %161 = tpu.concatenate %159, %160 in 0 : vector<7x128xf32>, vector<1x128xf32> -> vector<8x128xf32>
    %c144 = arith.constant 144 : index
    %c0_56 = arith.constant 0 : index
    %162 = vector.load %arg18[%c144, %c0_56] : memref<200x128xf32, #tpu.memory_space<vmem>>, vector<8x128xf32>
    tpu.vector_store %arg18[%c144, %c0_56], %161 {strides = array<i32>} : memref<200x128xf32, #tpu.memory_space<vmem>>, vector<8x128xf32>,
    %163 = vector.extract_strided_slice %149 {offsets = [2, 0], sizes = [6, 128], strides = [1, 1]} : vector<8x128xf32> to vector<6x128xf32>
    %164 = vector.extract_strided_slice %149 {offsets = [0, 0], sizes = [2, 128], strides = [1, 1]} : vector<8x128xf32> to vector<2x128xf32>
    %165 = tpu.concatenate %163, %164 in 0 : vector<6x128xf32>, vector<2x128xf32> -> vector<8x128xf32>
    %c184 = arith.constant 184 : index
    %c0_57 = arith.constant 0 : index
    %166 = vector.load %arg18[%c184, %c0_57] : memref<200x128xf32, #tpu.memory_space<vmem>>, vector<8x128xf32>
    tpu.vector_store %arg18[%c184, %c0_57], %165 {strides = array<i32>} : memref<200x128xf32, #tpu.memory_space<vmem>>, vector<8x128xf32>,
    %167 = vector.extract_strided_slice %28 {offsets = [0, 2], sizes = [8, 126], strides = [1, 1]} : vector<8x128xf32> to vector<8x126xf32>
    %168 = vector.extract_strided_slice %28 {offsets = [0, 0], sizes = [8, 2], strides = [1, 1]} : vector<8x128xf32> to vector<8x2xf32>
    %169 = tpu.concatenate %167, %168 in 1 : vector<8x126xf32>, vector<8x2xf32> -> vector<8x128xf32>
    %cst_58 = arith.constant 0.000000e+00 : f32
    %170 = vector.shape_cast %73 : vector<1x128xi1> to vector<1x128xi1>
    %171 = vector.broadcast %170 : vector<1x128xi1> to vector<8x128xi1>
    %172 = vector.broadcast %cst_58 : f32 to vector<8x128xf32>
    %173 = arith.select %171, %169, %172 : vector<8x128xi1>, vector<8x128xf32>
    %174 = vector.extract_strided_slice %173 {offsets = [6, 0], sizes = [2, 128], strides = [1, 1]} : vector<8x128xf32> to vector<2x128xf32>
    %175 = vector.extract_strided_slice %173 {offsets = [0, 0], sizes = [6, 128], strides = [1, 1]} : vector<8x128xf32> to vector<6x128xf32>
    %176 = tpu.concatenate %174, %175 in 0 : vector<2x128xf32>, vector<6x128xf32> -> vector<8x128xf32>
    %c32 = arith.constant 32 : index
    %c0_59 = arith.constant 0 : index
    %177 = vector.load %arg18[%c32, %c0_59] : memref<200x128xf32, #tpu.memory_space<vmem>>, vector<8x128xf32>
    tpu.vector_store %arg18[%c32, %c0_59], %176 {strides = array<i32>} : memref<200x128xf32, #tpu.memory_space<vmem>>, vector<8x128xf32>,
    %178 = vector.extract_strided_slice %173 {offsets = [7, 0], sizes = [1, 128], strides = [1, 1]} : vector<8x128xf32> to vector<1x128xf32>
    %179 = vector.extract_strided_slice %173 {offsets = [0, 0], sizes = [7, 128], strides = [1, 1]} : vector<8x128xf32> to vector<7x128xf32>
    %180 = tpu.concatenate %178, %179 in 0 : vector<1x128xf32>, vector<7x128xf32> -> vector<8x128xf32>
    %c72 = arith.constant 72 : index
    %c0_60 = arith.constant 0 : index
    %181 = vector.load %arg18[%c72, %c0_60] : memref<200x128xf32, #tpu.memory_space<vmem>>, vector<8x128xf32>
    tpu.vector_store %arg18[%c72, %c0_60], %180 {strides = array<i32>} : memref<200x128xf32, #tpu.memory_space<vmem>>, vector<8x128xf32>,
    %c112 = arith.constant 112 : index
    %c0_61 = arith.constant 0 : index
    %182 = vector.load %arg18[%c112, %c0_61] : memref<200x128xf32, #tpu.memory_space<vmem>>, vector<8x128xf32>
    tpu.vector_store %arg18[%c112, %c0_61], %173 {strides = array<i32>} : memref<200x128xf32, #tpu.memory_space<vmem>>, vector<8x128xf32>,
    %183 = vector.extract_strided_slice %173 {offsets = [1, 0], sizes = [7, 128], strides = [1, 1]} : vector<8x128xf32> to vector<7x128xf32>
    %184 = vector.extract_strided_slice %173 {offsets = [0, 0], sizes = [1, 128], strides = [1, 1]} : vector<8x128xf32> to vector<1x128xf32>
    %185 = tpu.concatenate %183, %184 in 0 : vector<7x128xf32>, vector<1x128xf32> -> vector<8x128xf32>
    %c152 = arith.constant 152 : index
    %c0_62 = arith.constant 0 : index
    %186 = vector.load %arg18[%c152, %c0_62] : memref<200x128xf32, #tpu.memory_space<vmem>>, vector<8x128xf32>
    tpu.vector_store %arg18[%c152, %c0_62], %185 {strides = array<i32>} : memref<200x128xf32, #tpu.memory_space<vmem>>, vector<8x128xf32>,
    %187 = vector.extract_strided_slice %173 {offsets = [2, 0], sizes = [6, 128], strides = [1, 1]} : vector<8x128xf32> to vector<6x128xf32>
    %188 = vector.extract_strided_slice %173 {offsets = [0, 0], sizes = [2, 128], strides = [1, 1]} : vector<8x128xf32> to vector<2x128xf32>
    %189 = tpu.concatenate %187, %188 in 0 : vector<6x128xf32>, vector<2x128xf32> -> vector<8x128xf32>
    %c192 = arith.constant 192 : index
    %c0_63 = arith.constant 0 : index
    %190 = vector.load %arg18[%c192, %c0_63] : memref<200x128xf32, #tpu.memory_space<vmem>>, vector<8x128xf32>
    tpu.vector_store %arg18[%c192, %c0_63], %189 {strides = array<i32>} : memref<200x128xf32, #tpu.memory_space<vmem>>, vector<8x128xf32>,
    %c0_64 = arith.constant 0 : index
    %c0_65 = arith.constant 0 : index
    %191 = vector.load %arg7[%c0_64, %c0_65] : memref<40x200xf32, #tpu.memory_space<vmem>>, vector<40x200xf32>
    %c0_66 = arith.constant 0 : index
    %c0_67 = arith.constant 0 : index
    %192 = vector.load %arg18[%c0_66, %c0_67] : memref<200x128xf32, #tpu.memory_space<vmem>>, vector<200x128xf32>
    %cst_68 = arith.constant dense<0.000000e+00> : vector<40x128xf32>
    %193 = tpu.matmul %191, %192, %cst_68 {dimension_numbers = #tpu.dot_dimension_numbers<[1], [0], [0], [1], [0, 0, 1, 1], [], []>, precision = #tpu.contract_precision<fp32>} : vector<40x200xf32>, vector<200x128xf32>, vector<40x128xf32> -> vector<40x128xf32>
    %c0_69 = arith.constant 0 : index
    %c0_70 = arith.constant 0 : index
    %194 = vector.load %arg8[%c0_69, %c0_70] : memref<40x1xf32, #tpu.memory_space<vmem>>, vector<40x1xf32>
    %195 = vector.broadcast %194 : vector<40x1xf32> to vector<40x128xf32>
    %196 = arith.addf %193, %195 : vector<40x128xf32>
    %cst_71 = arith.constant 0.000000e+00 : f32
    %197 = vector.broadcast %cst_71 : f32 to vector<40x128xf32>
    %c-2_i32_72 = arith.constant -2 : i32
    %198 = vector.broadcast %c-2_i32_72 : i32 to vector<40x1xi32>
    %199 = arith.addi %4, %198 : vector<40x1xi32>
    %c0_i32_73 = arith.constant 0 : i32
    %200 = vector.broadcast %c0_i32_73 : i32 to vector<40x1xi32>
    %201 = arith.cmpi sge, %199, %200 : vector<40x1xi32>
    %c-2_i32_74 = arith.constant -2 : i32
    %202 = vector.broadcast %c-2_i32_74 : i32 to vector<40x1xi32>
    %203 = arith.addi %4, %202 : vector<40x1xi32>
    %c5_i32 = arith.constant 5 : i32
    %204 = vector.broadcast %c5_i32 : i32 to vector<40x1xi32>
    %205 = arith.cmpi slt, %203, %204 : vector<40x1xi32>
    %206 = arith.andi %201, %205 : vector<40x1xi1>
    %207 = vector.extract_strided_slice %196 {offsets = [38, 0], sizes = [2, 128], strides = [1, 1]} : vector<40x128xf32> to vector<2x128xf32>
    %208 = vector.extract_strided_slice %196 {offsets = [0, 0], sizes = [38, 128], strides = [1, 1]} : vector<40x128xf32> to vector<38x128xf32>
    %209 = tpu.concatenate %207, %208 in 0 : vector<2x128xf32>, vector<38x128xf32> -> vector<40x128xf32>
    %210 = vector.extract_strided_slice %209 {offsets = [0, 126], sizes = [40, 2], strides = [1, 1]} : vector<40x128xf32> to vector<40x2xf32>
    %211 = vector.extract_strided_slice %209 {offsets = [0, 0], sizes = [40, 126], strides = [1, 1]} : vector<40x128xf32> to vector<40x126xf32>
    %212 = tpu.concatenate %210, %211 in 1 : vector<40x2xf32>, vector<40x126xf32> -> vector<40x128xf32>
    %213 = vector.broadcast %206 : vector<40x1xi1> to vector<40x128xi1>
    %214 = vector.broadcast %37 : vector<1x128xi1> to vector<40x128xi1>
    %215 = arith.andi %213, %214 : vector<40x128xi1>
    %cst_75 = arith.constant 0.000000e+00 : f32
    %216 = vector.broadcast %cst_75 : f32 to vector<40x128xf32>
    %217 = arith.select %215, %212, %216 : vector<40x128xi1>, vector<40x128xf32>
    %c0_76 = arith.constant 0 : index
    %c0_77 = arith.constant 0 : index
    %c0_78 = arith.constant 0 : index
    %218 = vector.load %arg9[%c0_76, %c0_77, %c0_78] : memref<25x40x1xf32, #tpu.memory_space<vmem>>, vector<1x40x1xf32>
    %219 = vector.shape_cast %218 : vector<1x40x1xf32> to vector<40x1xf32>
    %220 = vector.broadcast %219 : vector<40x1xf32> to vector<40x128xf32>
    %221 = arith.mulf %217, %220 : vector<40x128xf32>
    %222 = arith.addf %197, %221 : vector<40x128xf32>
    %223 = vector.extract_strided_slice %209 {offsets = [0, 127], sizes = [40, 1], strides = [1, 1]} : vector<40x128xf32> to vector<40x1xf32>
    %224 = vector.extract_strided_slice %209 {offsets = [0, 0], sizes = [40, 127], strides = [1, 1]} : vector<40x128xf32> to vector<40x127xf32>
    %225 = tpu.concatenate %223, %224 in 1 : vector<40x1xf32>, vector<40x127xf32> -> vector<40x128xf32>
    %226 = vector.broadcast %206 : vector<40x1xi1> to vector<40x128xi1>
    %227 = vector.broadcast %46 : vector<1x128xi1> to vector<40x128xi1>
    %228 = arith.andi %226, %227 : vector<40x128xi1>
    %cst_79 = arith.constant 0.000000e+00 : f32
    %229 = vector.broadcast %cst_79 : f32 to vector<40x128xf32>
    %230 = arith.select %228, %225, %229 : vector<40x128xi1>, vector<40x128xf32>
    %c1 = arith.constant 1 : index
    %c0_80 = arith.constant 0 : index
    %c0_81 = arith.constant 0 : index
    %231 = vector.load %arg9[%c1, %c0_80, %c0_81] : memref<25x40x1xf32, #tpu.memory_space<vmem>>, vector<1x40x1xf32>
    %232 = vector.shape_cast %231 : vector<1x40x1xf32> to vector<40x1xf32>
    %233 = vector.broadcast %232 : vector<40x1xf32> to vector<40x128xf32>
    %234 = arith.mulf %230, %233 : vector<40x128xf32>
    %235 = arith.addf %222, %234 : vector<40x128xf32>
    %236 = vector.broadcast %206 : vector<40x1xi1> to vector<40x128xi1>
    %237 = vector.broadcast %55 : vector<1x128xi1> to vector<40x128xi1>
    %238 = arith.andi %236, %237 : vector<40x128xi1>
    %cst_82 = arith.constant 0.000000e+00 : f32
    %239 = vector.broadcast %cst_82 : f32 to vector<40x128xf32>
    %240 = arith.select %238, %209, %239 : vector<40x128xi1>, vector<40x128xf32>
    %c2 = arith.constant 2 : index
    %c0_83 = arith.constant 0 : index
    %c0_84 = arith.constant 0 : index
    %241 = vector.load %arg9[%c2, %c0_83, %c0_84] : memref<25x40x1xf32, #tpu.memory_space<vmem>>, vector<1x40x1xf32>
    %242 = vector.shape_cast %241 : vector<1x40x1xf32> to vector<40x1xf32>
    %243 = vector.broadcast %242 : vector<40x1xf32> to vector<40x128xf32>
    %244 = arith.mulf %240, %243 : vector<40x128xf32>
    %245 = arith.addf %235, %244 : vector<40x128xf32>
    %246 = vector.extract_strided_slice %209 {offsets = [0, 1], sizes = [40, 127], strides = [1, 1]} : vector<40x128xf32> to vector<40x127xf32>
    %247 = vector.extract_strided_slice %209 {offsets = [0, 0], sizes = [40, 1], strides = [1, 1]} : vector<40x128xf32> to vector<40x1xf32>
    %248 = tpu.concatenate %246, %247 in 1 : vector<40x127xf32>, vector<40x1xf32> -> vector<40x128xf32>
    %249 = vector.broadcast %206 : vector<40x1xi1> to vector<40x128xi1>
    %250 = vector.broadcast %64 : vector<1x128xi1> to vector<40x128xi1>
    %251 = arith.andi %249, %250 : vector<40x128xi1>
    %cst_85 = arith.constant 0.000000e+00 : f32
    %252 = vector.broadcast %cst_85 : f32 to vector<40x128xf32>
    %253 = arith.select %251, %248, %252 : vector<40x128xi1>, vector<40x128xf32>
    %c3 = arith.constant 3 : index
    %c0_86 = arith.constant 0 : index
    %c0_87 = arith.constant 0 : index
    %254 = vector.load %arg9[%c3, %c0_86, %c0_87] : memref<25x40x1xf32, #tpu.memory_space<vmem>>, vector<1x40x1xf32>
    %255 = vector.shape_cast %254 : vector<1x40x1xf32> to vector<40x1xf32>
    %256 = vector.broadcast %255 : vector<40x1xf32> to vector<40x128xf32>
    %257 = arith.mulf %253, %256 : vector<40x128xf32>
    %258 = arith.addf %245, %257 : vector<40x128xf32>
    %259 = vector.extract_strided_slice %209 {offsets = [0, 2], sizes = [40, 126], strides = [1, 1]} : vector<40x128xf32> to vector<40x126xf32>
    %260 = vector.extract_strided_slice %209 {offsets = [0, 0], sizes = [40, 2], strides = [1, 1]} : vector<40x128xf32> to vector<40x2xf32>
    %261 = tpu.concatenate %259, %260 in 1 : vector<40x126xf32>, vector<40x2xf32> -> vector<40x128xf32>
    %262 = vector.broadcast %206 : vector<40x1xi1> to vector<40x128xi1>
    %263 = vector.broadcast %73 : vector<1x128xi1> to vector<40x128xi1>
    %264 = arith.andi %262, %263 : vector<40x128xi1>
    %cst_88 = arith.constant 0.000000e+00 : f32
    %265 = vector.broadcast %cst_88 : f32 to vector<40x128xf32>
    %266 = arith.select %264, %261, %265 : vector<40x128xi1>, vector<40x128xf32>
    %c4 = arith.constant 4 : index
    %c0_89 = arith.constant 0 : index
    %c0_90 = arith.constant 0 : index
    %267 = vector.load %arg9[%c4, %c0_89, %c0_90] : memref<25x40x1xf32, #tpu.memory_space<vmem>>, vector<1x40x1xf32>
    %268 = vector.shape_cast %267 : vector<1x40x1xf32> to vector<40x1xf32>
    %269 = vector.broadcast %268 : vector<40x1xf32> to vector<40x128xf32>
    %270 = arith.mulf %266, %269 : vector<40x128xf32>
    %271 = arith.addf %258, %270 : vector<40x128xf32>
    %c-1_i32_91 = arith.constant -1 : i32
    %272 = vector.broadcast %c-1_i32_91 : i32 to vector<40x1xi32>
    %273 = arith.addi %4, %272 : vector<40x1xi32>
    %c0_i32_92 = arith.constant 0 : i32
    %274 = vector.broadcast %c0_i32_92 : i32 to vector<40x1xi32>
    %275 = arith.cmpi sge, %273, %274 : vector<40x1xi32>
    %c-1_i32_93 = arith.constant -1 : i32
    %276 = vector.broadcast %c-1_i32_93 : i32 to vector<40x1xi32>
    %277 = arith.addi %4, %276 : vector<40x1xi32>
    %c5_i32_94 = arith.constant 5 : i32
    %278 = vector.broadcast %c5_i32_94 : i32 to vector<40x1xi32>
    %279 = arith.cmpi slt, %277, %278 : vector<40x1xi32>
    %280 = arith.andi %275, %279 : vector<40x1xi1>
    %281 = vector.extract_strided_slice %196 {offsets = [39, 0], sizes = [1, 128], strides = [1, 1]} : vector<40x128xf32> to vector<1x128xf32>
    %282 = vector.extract_strided_slice %196 {offsets = [0, 0], sizes = [39, 128], strides = [1, 1]} : vector<40x128xf32> to vector<39x128xf32>
    %283 = tpu.concatenate %281, %282 in 0 : vector<1x128xf32>, vector<39x128xf32> -> vector<40x128xf32>
    %284 = vector.extract_strided_slice %283 {offsets = [0, 126], sizes = [40, 2], strides = [1, 1]} : vector<40x128xf32> to vector<40x2xf32>
    %285 = vector.extract_strided_slice %283 {offsets = [0, 0], sizes = [40, 126], strides = [1, 1]} : vector<40x128xf32> to vector<40x126xf32>
    %286 = tpu.concatenate %284, %285 in 1 : vector<40x2xf32>, vector<40x126xf32> -> vector<40x128xf32>
    %287 = vector.broadcast %280 : vector<40x1xi1> to vector<40x128xi1>
    %288 = vector.broadcast %37 : vector<1x128xi1> to vector<40x128xi1>
    %289 = arith.andi %287, %288 : vector<40x128xi1>
    %cst_95 = arith.constant 0.000000e+00 : f32
    %290 = vector.broadcast %cst_95 : f32 to vector<40x128xf32>
    %291 = arith.select %289, %286, %290 : vector<40x128xi1>, vector<40x128xf32>
    %c5 = arith.constant 5 : index
    %c0_96 = arith.constant 0 : index
    %c0_97 = arith.constant 0 : index
    %292 = vector.load %arg9[%c5, %c0_96, %c0_97] : memref<25x40x1xf32, #tpu.memory_space<vmem>>, vector<1x40x1xf32>
    %293 = vector.shape_cast %292 : vector<1x40x1xf32> to vector<40x1xf32>
    %294 = vector.broadcast %293 : vector<40x1xf32> to vector<40x128xf32>
    %295 = arith.mulf %291, %294 : vector<40x128xf32>
    %296 = arith.addf %271, %295 : vector<40x128xf32>
    %297 = vector.extract_strided_slice %283 {offsets = [0, 127], sizes = [40, 1], strides = [1, 1]} : vector<40x128xf32> to vector<40x1xf32>
    %298 = vector.extract_strided_slice %283 {offsets = [0, 0], sizes = [40, 127], strides = [1, 1]} : vector<40x128xf32> to vector<40x127xf32>
    %299 = tpu.concatenate %297, %298 in 1 : vector<40x1xf32>, vector<40x127xf32> -> vector<40x128xf32>
    %300 = vector.broadcast %280 : vector<40x1xi1> to vector<40x128xi1>
    %301 = vector.broadcast %46 : vector<1x128xi1> to vector<40x128xi1>
    %302 = arith.andi %300, %301 : vector<40x128xi1>
    %cst_98 = arith.constant 0.000000e+00 : f32
    %303 = vector.broadcast %cst_98 : f32 to vector<40x128xf32>
    %304 = arith.select %302, %299, %303 : vector<40x128xi1>, vector<40x128xf32>
    %c6 = arith.constant 6 : index
    %c0_99 = arith.constant 0 : index
    %c0_100 = arith.constant 0 : index
    %305 = vector.load %arg9[%c6, %c0_99, %c0_100] : memref<25x40x1xf32, #tpu.memory_space<vmem>>, vector<1x40x1xf32>
    %306 = vector.shape_cast %305 : vector<1x40x1xf32> to vector<40x1xf32>
    %307 = vector.broadcast %306 : vector<40x1xf32> to vector<40x128xf32>
    %308 = arith.mulf %304, %307 : vector<40x128xf32>
    %309 = arith.addf %296, %308 : vector<40x128xf32>
    %310 = vector.broadcast %280 : vector<40x1xi1> to vector<40x128xi1>
    %311 = vector.broadcast %55 : vector<1x128xi1> to vector<40x128xi1>
    %312 = arith.andi %310, %311 : vector<40x128xi1>
    %cst_101 = arith.constant 0.000000e+00 : f32
    %313 = vector.broadcast %cst_101 : f32 to vector<40x128xf32>
    %314 = arith.select %312, %283, %313 : vector<40x128xi1>, vector<40x128xf32>
    %c7 = arith.constant 7 : index
    %c0_102 = arith.constant 0 : index
    %c0_103 = arith.constant 0 : index
    %315 = vector.load %arg9[%c7, %c0_102, %c0_103] : memref<25x40x1xf32, #tpu.memory_space<vmem>>, vector<1x40x1xf32>
    %316 = vector.shape_cast %315 : vector<1x40x1xf32> to vector<40x1xf32>
    %317 = vector.broadcast %316 : vector<40x1xf32> to vector<40x128xf32>
    %318 = arith.mulf %314, %317 : vector<40x128xf32>
    %319 = arith.addf %309, %318 : vector<40x128xf32>
    %320 = vector.extract_strided_slice %283 {offsets = [0, 1], sizes = [40, 127], strides = [1, 1]} : vector<40x128xf32> to vector<40x127xf32>
    %321 = vector.extract_strided_slice %283 {offsets = [0, 0], sizes = [40, 1], strides = [1, 1]} : vector<40x128xf32> to vector<40x1xf32>
    %322 = tpu.concatenate %320, %321 in 1 : vector<40x127xf32>, vector<40x1xf32> -> vector<40x128xf32>
    %323 = vector.broadcast %280 : vector<40x1xi1> to vector<40x128xi1>
    %324 = vector.broadcast %64 : vector<1x128xi1> to vector<40x128xi1>
    %325 = arith.andi %323, %324 : vector<40x128xi1>
    %cst_104 = arith.constant 0.000000e+00 : f32
    %326 = vector.broadcast %cst_104 : f32 to vector<40x128xf32>
    %327 = arith.select %325, %322, %326 : vector<40x128xi1>, vector<40x128xf32>
    %c8_105 = arith.constant 8 : index
    %c0_106 = arith.constant 0 : index
    %c0_107 = arith.constant 0 : index
    %328 = vector.load %arg9[%c8_105, %c0_106, %c0_107] : memref<25x40x1xf32, #tpu.memory_space<vmem>>, vector<1x40x1xf32>
    %329 = vector.shape_cast %328 : vector<1x40x1xf32> to vector<40x1xf32>
    %330 = vector.broadcast %329 : vector<40x1xf32> to vector<40x128xf32>
    %331 = arith.mulf %327, %330 : vector<40x128xf32>
    %332 = arith.addf %319, %331 : vector<40x128xf32>
    %333 = vector.extract_strided_slice %283 {offsets = [0, 2], sizes = [40, 126], strides = [1, 1]} : vector<40x128xf32> to vector<40x126xf32>
    %334 = vector.extract_strided_slice %283 {offsets = [0, 0], sizes = [40, 2], strides = [1, 1]} : vector<40x128xf32> to vector<40x2xf32>
    %335 = tpu.concatenate %333, %334 in 1 : vector<40x126xf32>, vector<40x2xf32> -> vector<40x128xf32>
    %336 = vector.broadcast %280 : vector<40x1xi1> to vector<40x128xi1>
    %337 = vector.broadcast %73 : vector<1x128xi1> to vector<40x128xi1>
    %338 = arith.andi %336, %337 : vector<40x128xi1>
    %cst_108 = arith.constant 0.000000e+00 : f32
    %339 = vector.broadcast %cst_108 : f32 to vector<40x128xf32>
    %340 = arith.select %338, %335, %339 : vector<40x128xi1>, vector<40x128xf32>
    %c9 = arith.constant 9 : index
    %c0_109 = arith.constant 0 : index
    %c0_110 = arith.constant 0 : index
    %341 = vector.load %arg9[%c9, %c0_109, %c0_110] : memref<25x40x1xf32, #tpu.memory_space<vmem>>, vector<1x40x1xf32>
    %342 = vector.shape_cast %341 : vector<1x40x1xf32> to vector<40x1xf32>
    %343 = vector.broadcast %342 : vector<40x1xf32> to vector<40x128xf32>
    %344 = arith.mulf %340, %343 : vector<40x128xf32>
    %345 = arith.addf %332, %344 : vector<40x128xf32>
    %c0_i32_111 = arith.constant 0 : i32
    %346 = vector.broadcast %c0_i32_111 : i32 to vector<40x1xi32>
    %347 = arith.addi %4, %346 : vector<40x1xi32>
    %c0_i32_112 = arith.constant 0 : i32
    %348 = vector.broadcast %c0_i32_112 : i32 to vector<40x1xi32>
    %349 = arith.cmpi sge, %347, %348 : vector<40x1xi32>
    %c0_i32_113 = arith.constant 0 : i32
    %350 = vector.broadcast %c0_i32_113 : i32 to vector<40x1xi32>
    %351 = arith.addi %4, %350 : vector<40x1xi32>
    %c5_i32_114 = arith.constant 5 : i32
    %352 = vector.broadcast %c5_i32_114 : i32 to vector<40x1xi32>
    %353 = arith.cmpi slt, %351, %352 : vector<40x1xi32>
    %354 = arith.andi %349, %353 : vector<40x1xi1>
    %355 = vector.extract_strided_slice %196 {offsets = [0, 126], sizes = [40, 2], strides = [1, 1]} : vector<40x128xf32> to vector<40x2xf32>
    %356 = vector.extract_strided_slice %196 {offsets = [0, 0], sizes = [40, 126], strides = [1, 1]} : vector<40x128xf32> to vector<40x126xf32>
    %357 = tpu.concatenate %355, %356 in 1 : vector<40x2xf32>, vector<40x126xf32> -> vector<40x128xf32>
    %358 = vector.broadcast %354 : vector<40x1xi1> to vector<40x128xi1>
    %359 = vector.broadcast %37 : vector<1x128xi1> to vector<40x128xi1>
    %360 = arith.andi %358, %359 : vector<40x128xi1>
    %cst_115 = arith.constant 0.000000e+00 : f32
    %361 = vector.broadcast %cst_115 : f32 to vector<40x128xf32>
    %362 = arith.select %360, %357, %361 : vector<40x128xi1>, vector<40x128xf32>
    %c10 = arith.constant 10 : index
    %c0_116 = arith.constant 0 : index
    %c0_117 = arith.constant 0 : index
    %363 = vector.load %arg9[%c10, %c0_116, %c0_117] : memref<25x40x1xf32, #tpu.memory_space<vmem>>, vector<1x40x1xf32>
    %364 = vector.shape_cast %363 : vector<1x40x1xf32> to vector<40x1xf32>
    %365 = vector.broadcast %364 : vector<40x1xf32> to vector<40x128xf32>
    %366 = arith.mulf %362, %365 : vector<40x128xf32>
    %367 = arith.addf %345, %366 : vector<40x128xf32>
    %368 = vector.extract_strided_slice %196 {offsets = [0, 127], sizes = [40, 1], strides = [1, 1]} : vector<40x128xf32> to vector<40x1xf32>
    %369 = vector.extract_strided_slice %196 {offsets = [0, 0], sizes = [40, 127], strides = [1, 1]} : vector<40x128xf32> to vector<40x127xf32>
    %370 = tpu.concatenate %368, %369 in 1 : vector<40x1xf32>, vector<40x127xf32> -> vector<40x128xf32>
    %371 = vector.broadcast %354 : vector<40x1xi1> to vector<40x128xi1>
    %372 = vector.broadcast %46 : vector<1x128xi1> to vector<40x128xi1>
    %373 = arith.andi %371, %372 : vector<40x128xi1>
    %cst_118 = arith.constant 0.000000e+00 : f32
    %374 = vector.broadcast %cst_118 : f32 to vector<40x128xf32>
    %375 = arith.select %373, %370, %374 : vector<40x128xi1>, vector<40x128xf32>
    %c11 = arith.constant 11 : index
    %c0_119 = arith.constant 0 : index
    %c0_120 = arith.constant 0 : index
    %376 = vector.load %arg9[%c11, %c0_119, %c0_120] : memref<25x40x1xf32, #tpu.memory_space<vmem>>, vector<1x40x1xf32>
    %377 = vector.shape_cast %376 : vector<1x40x1xf32> to vector<40x1xf32>
    %378 = vector.broadcast %377 : vector<40x1xf32> to vector<40x128xf32>
    %379 = arith.mulf %375, %378 : vector<40x128xf32>
    %380 = arith.addf %367, %379 : vector<40x128xf32>
    %381 = vector.broadcast %354 : vector<40x1xi1> to vector<40x128xi1>
    %382 = vector.broadcast %55 : vector<1x128xi1> to vector<40x128xi1>
    %383 = arith.andi %381, %382 : vector<40x128xi1>
    %cst_121 = arith.constant 0.000000e+00 : f32
    %384 = vector.broadcast %cst_121 : f32 to vector<40x128xf32>
    %385 = arith.select %383, %196, %384 : vector<40x128xi1>, vector<40x128xf32>
    %c12 = arith.constant 12 : index
    %c0_122 = arith.constant 0 : index
    %c0_123 = arith.constant 0 : index
    %386 = vector.load %arg9[%c12, %c0_122, %c0_123] : memref<25x40x1xf32, #tpu.memory_space<vmem>>, vector<1x40x1xf32>
    %387 = vector.shape_cast %386 : vector<1x40x1xf32> to vector<40x1xf32>
    %388 = vector.broadcast %387 : vector<40x1xf32> to vector<40x128xf32>
    %389 = arith.mulf %385, %388 : vector<40x128xf32>
    %390 = arith.addf %380, %389 : vector<40x128xf32>
    %391 = vector.extract_strided_slice %196 {offsets = [0, 1], sizes = [40, 127], strides = [1, 1]} : vector<40x128xf32> to vector<40x127xf32>
    %392 = vector.extract_strided_slice %196 {offsets = [0, 0], sizes = [40, 1], strides = [1, 1]} : vector<40x128xf32> to vector<40x1xf32>
    %393 = tpu.concatenate %391, %392 in 1 : vector<40x127xf32>, vector<40x1xf32> -> vector<40x128xf32>
    %394 = vector.broadcast %354 : vector<40x1xi1> to vector<40x128xi1>
    %395 = vector.broadcast %64 : vector<1x128xi1> to vector<40x128xi1>
    %396 = arith.andi %394, %395 : vector<40x128xi1>
    %cst_124 = arith.constant 0.000000e+00 : f32
    %397 = vector.broadcast %cst_124 : f32 to vector<40x128xf32>
    %398 = arith.select %396, %393, %397 : vector<40x128xi1>, vector<40x128xf32>
    %c13 = arith.constant 13 : index
    %c0_125 = arith.constant 0 : index
    %c0_126 = arith.constant 0 : index
    %399 = vector.load %arg9[%c13, %c0_125, %c0_126] : memref<25x40x1xf32, #tpu.memory_space<vmem>>, vector<1x40x1xf32>
    %400 = vector.shape_cast %399 : vector<1x40x1xf32> to vector<40x1xf32>
    %401 = vector.broadcast %400 : vector<40x1xf32> to vector<40x128xf32>
    %402 = arith.mulf %398, %401 : vector<40x128xf32>
    %403 = arith.addf %390, %402 : vector<40x128xf32>
    %404 = vector.extract_strided_slice %196 {offsets = [0, 2], sizes = [40, 126], strides = [1, 1]} : vector<40x128xf32> to vector<40x126xf32>
    %405 = vector.extract_strided_slice %196 {offsets = [0, 0], sizes = [40, 2], strides = [1, 1]} : vector<40x128xf32> to vector<40x2xf32>
    %406 = tpu.concatenate %404, %405 in 1 : vector<40x126xf32>, vector<40x2xf32> -> vector<40x128xf32>
    %407 = vector.broadcast %354 : vector<40x1xi1> to vector<40x128xi1>
    %408 = vector.broadcast %73 : vector<1x128xi1> to vector<40x128xi1>
    %409 = arith.andi %407, %408 : vector<40x128xi1>
    %cst_127 = arith.constant 0.000000e+00 : f32
    %410 = vector.broadcast %cst_127 : f32 to vector<40x128xf32>
    %411 = arith.select %409, %406, %410 : vector<40x128xi1>, vector<40x128xf32>
    %c14 = arith.constant 14 : index
    %c0_128 = arith.constant 0 : index
    %c0_129 = arith.constant 0 : index
    %412 = vector.load %arg9[%c14, %c0_128, %c0_129] : memref<25x40x1xf32, #tpu.memory_space<vmem>>, vector<1x40x1xf32>
    %413 = vector.shape_cast %412 : vector<1x40x1xf32> to vector<40x1xf32>
    %414 = vector.broadcast %413 : vector<40x1xf32> to vector<40x128xf32>
    %415 = arith.mulf %411, %414 : vector<40x128xf32>
    %416 = arith.addf %403, %415 : vector<40x128xf32>
    %c1_i32_130 = arith.constant 1 : i32
    %417 = vector.broadcast %c1_i32_130 : i32 to vector<40x1xi32>
    %418 = arith.addi %4, %417 : vector<40x1xi32>
    %c0_i32_131 = arith.constant 0 : i32
    %419 = vector.broadcast %c0_i32_131 : i32 to vector<40x1xi32>
    %420 = arith.cmpi sge, %418, %419 : vector<40x1xi32>
    %c1_i32_132 = arith.constant 1 : i32
    %421 = vector.broadcast %c1_i32_132 : i32 to vector<40x1xi32>
    %422 = arith.addi %4, %421 : vector<40x1xi32>
    %c5_i32_133 = arith.constant 5 : i32
    %423 = vector.broadcast %c5_i32_133 : i32 to vector<40x1xi32>
    %424 = arith.cmpi slt, %422, %423 : vector<40x1xi32>
    %425 = arith.andi %420, %424 : vector<40x1xi1>
    %426 = vector.extract_strided_slice %196 {offsets = [1, 0], sizes = [39, 128], strides = [1, 1]} : vector<40x128xf32> to vector<39x128xf32>
    %427 = vector.extract_strided_slice %196 {offsets = [0, 0], sizes = [1, 128], strides = [1, 1]} : vector<40x128xf32> to vector<1x128xf32>
    %428 = tpu.concatenate %426, %427 in 0 : vector<39x128xf32>, vector<1x128xf32> -> vector<40x128xf32>
    %429 = vector.extract_strided_slice %428 {offsets = [0, 126], sizes = [40, 2], strides = [1, 1]} : vector<40x128xf32> to vector<40x2xf32>
    %430 = vector.extract_strided_slice %428 {offsets = [0, 0], sizes = [40, 126], strides = [1, 1]} : vector<40x128xf32> to vector<40x126xf32>
    %431 = tpu.concatenate %429, %430 in 1 : vector<40x2xf32>, vector<40x126xf32> -> vector<40x128xf32>
    %432 = vector.broadcast %425 : vector<40x1xi1> to vector<40x128xi1>
    %433 = vector.broadcast %37 : vector<1x128xi1> to vector<40x128xi1>
    %434 = arith.andi %432, %433 : vector<40x128xi1>
    %cst_134 = arith.constant 0.000000e+00 : f32
    %435 = vector.broadcast %cst_134 : f32 to vector<40x128xf32>
    %436 = arith.select %434, %431, %435 : vector<40x128xi1>, vector<40x128xf32>
    %c15 = arith.constant 15 : index
    %c0_135 = arith.constant 0 : index
    %c0_136 = arith.constant 0 : index
    %437 = vector.load %arg9[%c15, %c0_135, %c0_136] : memref<25x40x1xf32, #tpu.memory_space<vmem>>, vector<1x40x1xf32>
    %438 = vector.shape_cast %437 : vector<1x40x1xf32> to vector<40x1xf32>
    %439 = vector.broadcast %438 : vector<40x1xf32> to vector<40x128xf32>
    %440 = arith.mulf %436, %439 : vector<40x128xf32>
    %441 = arith.addf %416, %440 : vector<40x128xf32>
    %442 = vector.extract_strided_slice %428 {offsets = [0, 127], sizes = [40, 1], strides = [1, 1]} : vector<40x128xf32> to vector<40x1xf32>
    %443 = vector.extract_strided_slice %428 {offsets = [0, 0], sizes = [40, 127], strides = [1, 1]} : vector<40x128xf32> to vector<40x127xf32>
    %444 = tpu.concatenate %442, %443 in 1 : vector<40x1xf32>, vector<40x127xf32> -> vector<40x128xf32>
    %445 = vector.broadcast %425 : vector<40x1xi1> to vector<40x128xi1>
    %446 = vector.broadcast %46 : vector<1x128xi1> to vector<40x128xi1>
    %447 = arith.andi %445, %446 : vector<40x128xi1>
    %cst_137 = arith.constant 0.000000e+00 : f32
    %448 = vector.broadcast %cst_137 : f32 to vector<40x128xf32>
    %449 = arith.select %447, %444, %448 : vector<40x128xi1>, vector<40x128xf32>
    %c16_138 = arith.constant 16 : index
    %c0_139 = arith.constant 0 : index
    %c0_140 = arith.constant 0 : index
    %450 = vector.load %arg9[%c16_138, %c0_139, %c0_140] : memref<25x40x1xf32, #tpu.memory_space<vmem>>, vector<1x40x1xf32>
    %451 = vector.shape_cast %450 : vector<1x40x1xf32> to vector<40x1xf32>
    %452 = vector.broadcast %451 : vector<40x1xf32> to vector<40x128xf32>
    %453 = arith.mulf %449, %452 : vector<40x128xf32>
    %454 = arith.addf %441, %453 : vector<40x128xf32>
    %455 = vector.broadcast %425 : vector<40x1xi1> to vector<40x128xi1>
    %456 = vector.broadcast %55 : vector<1x128xi1> to vector<40x128xi1>
    %457 = arith.andi %455, %456 : vector<40x128xi1>
    %cst_141 = arith.constant 0.000000e+00 : f32
    %458 = vector.broadcast %cst_141 : f32 to vector<40x128xf32>
    %459 = arith.select %457, %428, %458 : vector<40x128xi1>, vector<40x128xf32>
    %c17 = arith.constant 17 : index
    %c0_142 = arith.constant 0 : index
    %c0_143 = arith.constant 0 : index
    %460 = vector.load %arg9[%c17, %c0_142, %c0_143] : memref<25x40x1xf32, #tpu.memory_space<vmem>>, vector<1x40x1xf32>
    %461 = vector.shape_cast %460 : vector<1x40x1xf32> to vector<40x1xf32>
    %462 = vector.broadcast %461 : vector<40x1xf32> to vector<40x128xf32>
    %463 = arith.mulf %459, %462 : vector<40x128xf32>
    %464 = arith.addf %454, %463 : vector<40x128xf32>
    %465 = vector.extract_strided_slice %428 {offsets = [0, 1], sizes = [40, 127], strides = [1, 1]} : vector<40x128xf32> to vector<40x127xf32>
    %466 = vector.extract_strided_slice %428 {offsets = [0, 0], sizes = [40, 1], strides = [1, 1]} : vector<40x128xf32> to vector<40x1xf32>
    %467 = tpu.concatenate %465, %466 in 1 : vector<40x127xf32>, vector<40x1xf32> -> vector<40x128xf32>
    %468 = vector.broadcast %425 : vector<40x1xi1> to vector<40x128xi1>
    %469 = vector.broadcast %64 : vector<1x128xi1> to vector<40x128xi1>
    %470 = arith.andi %468, %469 : vector<40x128xi1>
    %cst_144 = arith.constant 0.000000e+00 : f32
    %471 = vector.broadcast %cst_144 : f32 to vector<40x128xf32>
    %472 = arith.select %470, %467, %471 : vector<40x128xi1>, vector<40x128xf32>
    %c18 = arith.constant 18 : index
    %c0_145 = arith.constant 0 : index
    %c0_146 = arith.constant 0 : index
    %473 = vector.load %arg9[%c18, %c0_145, %c0_146] : memref<25x40x1xf32, #tpu.memory_space<vmem>>, vector<1x40x1xf32>
    %474 = vector.shape_cast %473 : vector<1x40x1xf32> to vector<40x1xf32>
    %475 = vector.broadcast %474 : vector<40x1xf32> to vector<40x128xf32>
    %476 = arith.mulf %472, %475 : vector<40x128xf32>
    %477 = arith.addf %464, %476 : vector<40x128xf32>
    %478 = vector.extract_strided_slice %428 {offsets = [0, 2], sizes = [40, 126], strides = [1, 1]} : vector<40x128xf32> to vector<40x126xf32>
    %479 = vector.extract_strided_slice %428 {offsets = [0, 0], sizes = [40, 2], strides = [1, 1]} : vector<40x128xf32> to vector<40x2xf32>
    %480 = tpu.concatenate %478, %479 in 1 : vector<40x126xf32>, vector<40x2xf32> -> vector<40x128xf32>
    %481 = vector.broadcast %425 : vector<40x1xi1> to vector<40x128xi1>
    %482 = vector.broadcast %73 : vector<1x128xi1> to vector<40x128xi1>
    %483 = arith.andi %481, %482 : vector<40x128xi1>
    %cst_147 = arith.constant 0.000000e+00 : f32
    %484 = vector.broadcast %cst_147 : f32 to vector<40x128xf32>
    %485 = arith.select %483, %480, %484 : vector<40x128xi1>, vector<40x128xf32>
    %c19 = arith.constant 19 : index
    %c0_148 = arith.constant 0 : index
    %c0_149 = arith.constant 0 : index
    %486 = vector.load %arg9[%c19, %c0_148, %c0_149] : memref<25x40x1xf32, #tpu.memory_space<vmem>>, vector<1x40x1xf32>
    %487 = vector.shape_cast %486 : vector<1x40x1xf32> to vector<40x1xf32>
    %488 = vector.broadcast %487 : vector<40x1xf32> to vector<40x128xf32>
    %489 = arith.mulf %485, %488 : vector<40x128xf32>
    %490 = arith.addf %477, %489 : vector<40x128xf32>
    %c2_i32_150 = arith.constant 2 : i32
    %491 = vector.broadcast %c2_i32_150 : i32 to vector<40x1xi32>
    %492 = arith.addi %4, %491 : vector<40x1xi32>
    %c0_i32_151 = arith.constant 0 : i32
    %493 = vector.broadcast %c0_i32_151 : i32 to vector<40x1xi32>
    %494 = arith.cmpi sge, %492, %493 : vector<40x1xi32>
    %c2_i32_152 = arith.constant 2 : i32
    %495 = vector.broadcast %c2_i32_152 : i32 to vector<40x1xi32>
    %496 = arith.addi %4, %495 : vector<40x1xi32>
    %c5_i32_153 = arith.constant 5 : i32
    %497 = vector.broadcast %c5_i32_153 : i32 to vector<40x1xi32>
    %498 = arith.cmpi slt, %496, %497 : vector<40x1xi32>
    %499 = arith.andi %494, %498 : vector<40x1xi1>
    %500 = vector.extract_strided_slice %196 {offsets = [2, 0], sizes = [38, 128], strides = [1, 1]} : vector<40x128xf32> to vector<38x128xf32>
    %501 = vector.extract_strided_slice %196 {offsets = [0, 0], sizes = [2, 128], strides = [1, 1]} : vector<40x128xf32> to vector<2x128xf32>
    %502 = tpu.concatenate %500, %501 in 0 : vector<38x128xf32>, vector<2x128xf32> -> vector<40x128xf32>
    %503 = vector.extract_strided_slice %502 {offsets = [0, 126], sizes = [40, 2], strides = [1, 1]} : vector<40x128xf32> to vector<40x2xf32>
    %504 = vector.extract_strided_slice %502 {offsets = [0, 0], sizes = [40, 126], strides = [1, 1]} : vector<40x128xf32> to vector<40x126xf32>
    %505 = tpu.concatenate %503, %504 in 1 : vector<40x2xf32>, vector<40x126xf32> -> vector<40x128xf32>
    %506 = vector.broadcast %499 : vector<40x1xi1> to vector<40x128xi1>
    %507 = vector.broadcast %37 : vector<1x128xi1> to vector<40x128xi1>
    %508 = arith.andi %506, %507 : vector<40x128xi1>
    %cst_154 = arith.constant 0.000000e+00 : f32
    %509 = vector.broadcast %cst_154 : f32 to vector<40x128xf32>
    %510 = arith.select %508, %505, %509 : vector<40x128xi1>, vector<40x128xf32>
    %c20 = arith.constant 20 : index
    %c0_155 = arith.constant 0 : index
    %c0_156 = arith.constant 0 : index
    %511 = vector.load %arg9[%c20, %c0_155, %c0_156] : memref<25x40x1xf32, #tpu.memory_space<vmem>>, vector<1x40x1xf32>
    %512 = vector.shape_cast %511 : vector<1x40x1xf32> to vector<40x1xf32>
    %513 = vector.broadcast %512 : vector<40x1xf32> to vector<40x128xf32>
    %514 = arith.mulf %510, %513 : vector<40x128xf32>
    %515 = arith.addf %490, %514 : vector<40x128xf32>
    %516 = vector.extract_strided_slice %502 {offsets = [0, 127], sizes = [40, 1], strides = [1, 1]} : vector<40x128xf32> to vector<40x1xf32>
    %517 = vector.extract_strided_slice %502 {offsets = [0, 0], sizes = [40, 127], strides = [1, 1]} : vector<40x128xf32> to vector<40x127xf32>
    %518 = tpu.concatenate %516, %517 in 1 : vector<40x1xf32>, vector<40x127xf32> -> vector<40x128xf32>
    %519 = vector.broadcast %499 : vector<40x1xi1> to vector<40x128xi1>
    %520 = vector.broadcast %46 : vector<1x128xi1> to vector<40x128xi1>
    %521 = arith.andi %519, %520 : vector<40x128xi1>
    %cst_157 = arith.constant 0.000000e+00 : f32
    %522 = vector.broadcast %cst_157 : f32 to vector<40x128xf32>
    %523 = arith.select %521, %518, %522 : vector<40x128xi1>, vector<40x128xf32>
    %c21 = arith.constant 21 : index
    %c0_158 = arith.constant 0 : index
    %c0_159 = arith.constant 0 : index
    %524 = vector.load %arg9[%c21, %c0_158, %c0_159] : memref<25x40x1xf32, #tpu.memory_space<vmem>>, vector<1x40x1xf32>
    %525 = vector.shape_cast %524 : vector<1x40x1xf32> to vector<40x1xf32>
    %526 = vector.broadcast %525 : vector<40x1xf32> to vector<40x128xf32>
    %527 = arith.mulf %523, %526 : vector<40x128xf32>
    %528 = arith.addf %515, %527 : vector<40x128xf32>
    %529 = vector.broadcast %499 : vector<40x1xi1> to vector<40x128xi1>
    %530 = vector.broadcast %55 : vector<1x128xi1> to vector<40x128xi1>
    %531 = arith.andi %529, %530 : vector<40x128xi1>
    %cst_160 = arith.constant 0.000000e+00 : f32
    %532 = vector.broadcast %cst_160 : f32 to vector<40x128xf32>
    %533 = arith.select %531, %502, %532 : vector<40x128xi1>, vector<40x128xf32>
    %c22 = arith.constant 22 : index
    %c0_161 = arith.constant 0 : index
    %c0_162 = arith.constant 0 : index
    %534 = vector.load %arg9[%c22, %c0_161, %c0_162] : memref<25x40x1xf32, #tpu.memory_space<vmem>>, vector<1x40x1xf32>
    %535 = vector.shape_cast %534 : vector<1x40x1xf32> to vector<40x1xf32>
    %536 = vector.broadcast %535 : vector<40x1xf32> to vector<40x128xf32>
    %537 = arith.mulf %533, %536 : vector<40x128xf32>
    %538 = arith.addf %528, %537 : vector<40x128xf32>
    %539 = vector.extract_strided_slice %502 {offsets = [0, 1], sizes = [40, 127], strides = [1, 1]} : vector<40x128xf32> to vector<40x127xf32>
    %540 = vector.extract_strided_slice %502 {offsets = [0, 0], sizes = [40, 1], strides = [1, 1]} : vector<40x128xf32> to vector<40x1xf32>
    %541 = tpu.concatenate %539, %540 in 1 : vector<40x127xf32>, vector<40x1xf32> -> vector<40x128xf32>
    %542 = vector.broadcast %499 : vector<40x1xi1> to vector<40x128xi1>
    %543 = vector.broadcast %64 : vector<1x128xi1> to vector<40x128xi1>
    %544 = arith.andi %542, %543 : vector<40x128xi1>
    %cst_163 = arith.constant 0.000000e+00 : f32
    %545 = vector.broadcast %cst_163 : f32 to vector<40x128xf32>
    %546 = arith.select %544, %541, %545 : vector<40x128xi1>, vector<40x128xf32>
    %c23 = arith.constant 23 : index
    %c0_164 = arith.constant 0 : index
    %c0_165 = arith.constant 0 : index
    %547 = vector.load %arg9[%c23, %c0_164, %c0_165] : memref<25x40x1xf32, #tpu.memory_space<vmem>>, vector<1x40x1xf32>
    %548 = vector.shape_cast %547 : vector<1x40x1xf32> to vector<40x1xf32>
    %549 = vector.broadcast %548 : vector<40x1xf32> to vector<40x128xf32>
    %550 = arith.mulf %546, %549 : vector<40x128xf32>
    %551 = arith.addf %538, %550 : vector<40x128xf32>
    %552 = vector.extract_strided_slice %502 {offsets = [0, 2], sizes = [40, 126], strides = [1, 1]} : vector<40x128xf32> to vector<40x126xf32>
    %553 = vector.extract_strided_slice %502 {offsets = [0, 0], sizes = [40, 2], strides = [1, 1]} : vector<40x128xf32> to vector<40x2xf32>
    %554 = tpu.concatenate %552, %553 in 1 : vector<40x126xf32>, vector<40x2xf32> -> vector<40x128xf32>
    %555 = vector.broadcast %499 : vector<40x1xi1> to vector<40x128xi1>
    %556 = vector.broadcast %73 : vector<1x128xi1> to vector<40x128xi1>
    %557 = arith.andi %555, %556 : vector<40x128xi1>
    %cst_166 = arith.constant 0.000000e+00 : f32
    %558 = vector.broadcast %cst_166 : f32 to vector<40x128xf32>
    %559 = arith.select %557, %554, %558 : vector<40x128xi1>, vector<40x128xf32>
    %c24_167 = arith.constant 24 : index
    %c0_168 = arith.constant 0 : index
    %c0_169 = arith.constant 0 : index
    %560 = vector.load %arg9[%c24_167, %c0_168, %c0_169] : memref<25x40x1xf32, #tpu.memory_space<vmem>>, vector<1x40x1xf32>
    %561 = vector.shape_cast %560 : vector<1x40x1xf32> to vector<40x1xf32>
    %562 = vector.broadcast %561 : vector<40x1xf32> to vector<40x128xf32>
    %563 = arith.mulf %559, %562 : vector<40x128xf32>
    %564 = arith.addf %551, %563 : vector<40x128xf32>
    %c0_170 = arith.constant 0 : index
    %c0_171 = arith.constant 0 : index
    %565 = vector.load %arg10[%c0_170, %c0_171] : memref<40x1xf32, #tpu.memory_space<vmem>>, vector<40x1xf32>
    %566 = vector.broadcast %565 : vector<40x1xf32> to vector<40x128xf32>
    %567 = arith.addf %564, %566 : vector<40x128xf32>
    %cst_172 = arith.constant 5.000000e-01 : f32
    %568 = vector.broadcast %cst_172 : f32 to vector<40x128xf32>
    %569 = arith.mulf %568, %567 : vector<40x128xf32>
    %cst_173 = arith.constant 0.707106769 : f32
    %570 = vector.broadcast %cst_173 : f32 to vector<40x128xf32>
    %571 = arith.mulf %567, %570 : vector<40x128xf32>
    %cst_174 = arith.constant 0.000000e+00 : f32
    %572 = vector.broadcast %cst_174 : f32 to vector<40x128xf32>
    %573 = arith.cmpf oge, %571, %572 : vector<40x128xf32>
    %cst_175 = arith.constant 1.000000e+00 : f32
    %cst_176 = arith.constant -1.000000e+00 : f32
    %574 = vector.broadcast %cst_175 : f32 to vector<40x128xf32>
    %575 = vector.broadcast %cst_176 : f32 to vector<40x128xf32>
    %576 = arith.select %573, %574, %575 : vector<40x128xi1>, vector<40x128xf32>
    %577 = math.absf %571 : vector<40x128xf32>
    %cst_177 = arith.constant 0.327591091 : f32
    %578 = vector.broadcast %cst_177 : f32 to vector<40x128xf32>
    %579 = arith.mulf %578, %577 : vector<40x128xf32>
    %cst_178 = arith.constant 1.000000e+00 : f32
    %580 = vector.broadcast %cst_178 : f32 to vector<40x128xf32>
    %581 = arith.addf %580, %579 : vector<40x128xf32>
    %cst_179 = arith.constant 1.000000e+00 : f32
    %582 = vector.broadcast %cst_179 : f32 to vector<40x128xf32>
    %583 = arith.divf %582, %581 : vector<40x128xf32>
    %cst_180 = arith.constant 1.06140542 : f32
    %584 = vector.broadcast %cst_180 : f32 to vector<40x128xf32>
    %585 = arith.mulf %584, %583 : vector<40x128xf32>
    %cst_181 = arith.constant -1.45315206 : f32
    %586 = vector.broadcast %cst_181 : f32 to vector<40x128xf32>
    %587 = arith.addf %585, %586 : vector<40x128xf32>
    %588 = arith.mulf %587, %583 : vector<40x128xf32>
    %cst_182 = arith.constant 1.42141378 : f32
    %589 = vector.broadcast %cst_182 : f32 to vector<40x128xf32>
    %590 = arith.addf %588, %589 : vector<40x128xf32>
    %591 = arith.mulf %590, %583 : vector<40x128xf32>
    %cst_183 = arith.constant -0.284496725 : f32
    %592 = vector.broadcast %cst_183 : f32 to vector<40x128xf32>
    %593 = arith.addf %591, %592 : vector<40x128xf32>
    %594 = arith.mulf %593, %583 : vector<40x128xf32>
    %cst_184 = arith.constant 0.254829586 : f32
    %595 = vector.broadcast %cst_184 : f32 to vector<40x128xf32>
    %596 = arith.addf %594, %595 : vector<40x128xf32>
    %597 = arith.mulf %596, %583 : vector<40x128xf32>
    %cst_185 = arith.constant 0.000000e+00 : f32
    %598 = vector.broadcast %cst_185 : f32 to vector<40x128xf32>
    %599 = arith.subf %598, %577 : vector<40x128xf32>
    %600 = arith.mulf %599, %577 : vector<40x128xf32>
    %601 = math.exp %600 : vector<40x128xf32>
    %602 = arith.mulf %597, %601 : vector<40x128xf32>
    %cst_186 = arith.constant 1.000000e+00 : f32
    %603 = vector.broadcast %cst_186 : f32 to vector<40x128xf32>
    %604 = arith.subf %603, %602 : vector<40x128xf32>
    %605 = arith.mulf %576, %604 : vector<40x128xf32>
    %cst_187 = arith.constant 1.000000e+00 : f32
    %606 = vector.broadcast %cst_187 : f32 to vector<40x128xf32>
    %607 = arith.addf %606, %605 : vector<40x128xf32>
    %608 = arith.mulf %569, %607 : vector<40x128xf32>
    %c0_188 = arith.constant 0 : index
    %c0_189 = arith.constant 0 : index
    %609 = vector.load %arg11[%c0_188, %c0_189] : memref<13x40xf32, #tpu.memory_space<vmem>>, vector<13x40xf32>
    %cst_190 = arith.constant dense<0.000000e+00> : vector<13x128xf32>
    %610 = tpu.matmul %609, %608, %cst_190 {dimension_numbers = #tpu.dot_dimension_numbers<[1], [0], [0], [1], [0, 0, 1, 1], [], []>, precision = #tpu.contract_precision<fp32>} : vector<13x40xf32>, vector<40x128xf32>, vector<13x128xf32> -> vector<13x128xf32>
    %c0_191 = arith.constant 0 : index
    %c0_192 = arith.constant 0 : index
    %611 = vector.load %arg12[%c0_191, %c0_192] : memref<13x1xf32, #tpu.memory_space<vmem>>, vector<13x1xf32>
    %612 = vector.broadcast %611 : vector<13x1xf32> to vector<13x128xf32>
    %613 = arith.addf %610, %612 : vector<13x128xf32>
    %cst_193 = arith.constant 5.000000e-01 : f32
    %614 = vector.broadcast %cst_193 : f32 to vector<13x128xf32>
    %615 = arith.mulf %614, %613 : vector<13x128xf32>
    %cst_194 = arith.constant 0.707106769 : f32
    %616 = vector.broadcast %cst_194 : f32 to vector<13x128xf32>
    %617 = arith.mulf %613, %616 : vector<13x128xf32>
    %cst_195 = arith.constant 0.000000e+00 : f32
    %618 = vector.broadcast %cst_195 : f32 to vector<13x128xf32>
    %619 = arith.cmpf oge, %617, %618 : vector<13x128xf32>
    %cst_196 = arith.constant 1.000000e+00 : f32
    %cst_197 = arith.constant -1.000000e+00 : f32
    %620 = vector.broadcast %cst_196 : f32 to vector<13x128xf32>
    %621 = vector.broadcast %cst_197 : f32 to vector<13x128xf32>
    %622 = arith.select %619, %620, %621 : vector<13x128xi1>, vector<13x128xf32>
    %623 = math.absf %617 : vector<13x128xf32>
    %cst_198 = arith.constant 0.327591091 : f32
    %624 = vector.broadcast %cst_198 : f32 to vector<13x128xf32>
    %625 = arith.mulf %624, %623 : vector<13x128xf32>
    %cst_199 = arith.constant 1.000000e+00 : f32
    %626 = vector.broadcast %cst_199 : f32 to vector<13x128xf32>
    %627 = arith.addf %626, %625 : vector<13x128xf32>
    %cst_200 = arith.constant 1.000000e+00 : f32
    %628 = vector.broadcast %cst_200 : f32 to vector<13x128xf32>
    %629 = arith.divf %628, %627 : vector<13x128xf32>
    %cst_201 = arith.constant 1.06140542 : f32
    %630 = vector.broadcast %cst_201 : f32 to vector<13x128xf32>
    %631 = arith.mulf %630, %629 : vector<13x128xf32>
    %cst_202 = arith.constant -1.45315206 : f32
    %632 = vector.broadcast %cst_202 : f32 to vector<13x128xf32>
    %633 = arith.addf %631, %632 : vector<13x128xf32>
    %634 = arith.mulf %633, %629 : vector<13x128xf32>
    %cst_203 = arith.constant 1.42141378 : f32
    %635 = vector.broadcast %cst_203 : f32 to vector<13x128xf32>
    %636 = arith.addf %634, %635 : vector<13x128xf32>
    %637 = arith.mulf %636, %629 : vector<13x128xf32>
    %cst_204 = arith.constant -0.284496725 : f32
    %638 = vector.broadcast %cst_204 : f32 to vector<13x128xf32>
    %639 = arith.addf %637, %638 : vector<13x128xf32>
    %640 = arith.mulf %639, %629 : vector<13x128xf32>
    %cst_205 = arith.constant 0.254829586 : f32
    %641 = vector.broadcast %cst_205 : f32 to vector<13x128xf32>
    %642 = arith.addf %640, %641 : vector<13x128xf32>
    %643 = arith.mulf %642, %629 : vector<13x128xf32>
    %cst_206 = arith.constant 0.000000e+00 : f32
    %644 = vector.broadcast %cst_206 : f32 to vector<13x128xf32>
    %645 = arith.subf %644, %623 : vector<13x128xf32>
    %646 = arith.mulf %645, %623 : vector<13x128xf32>
    %647 = math.exp %646 : vector<13x128xf32>
    %648 = arith.mulf %643, %647 : vector<13x128xf32>
    %cst_207 = arith.constant 1.000000e+00 : f32
    %649 = vector.broadcast %cst_207 : f32 to vector<13x128xf32>
    %650 = arith.subf %649, %648 : vector<13x128xf32>
    %651 = arith.mulf %622, %650 : vector<13x128xf32>
    %cst_208 = arith.constant 1.000000e+00 : f32
    %652 = vector.broadcast %cst_208 : f32 to vector<13x128xf32>
    %653 = arith.addf %652, %651 : vector<13x128xf32>
    %654 = arith.mulf %615, %653 : vector<13x128xf32>
    %c0_209 = arith.constant 0 : index
    %c0_210 = arith.constant 0 : index
    %655 = vector.load %arg13[%c0_209, %c0_210] : memref<4x13xf32, #tpu.memory_space<vmem>>, vector<4x13xf32>
    %cst_211 = arith.constant dense<0.000000e+00> : vector<4x128xf32>
    %656 = tpu.matmul %655, %654, %cst_211 {dimension_numbers = #tpu.dot_dimension_numbers<[1], [0], [0], [1], [0, 0, 1, 1], [], []>, precision = #tpu.contract_precision<fp32>} : vector<4x13xf32>, vector<13x128xf32>, vector<4x128xf32> -> vector<4x128xf32>
    %c0_212 = arith.constant 0 : index
    %c0_213 = arith.constant 0 : index
    %657 = vector.load %arg14[%c0_212, %c0_213] : memref<4x1xf32, #tpu.memory_space<vmem>>, vector<4x1xf32>
    %658 = vector.broadcast %657 : vector<4x1xf32> to vector<4x128xf32>
    %659 = arith.addf %656, %658 : vector<4x128xf32>
    %cst_214 = arith.constant dense<0.000000e+00> : vector<4x128xf32>
    %660 = tpu.matmul %659, %2, %cst_214 {dimension_numbers = #tpu.dot_dimension_numbers<[1], [0], [0], [1], [0, 0, 1, 1], [], []>, precision = #tpu.contract_precision<fp32>} : vector<4x128xf32>, vector<128x128xf32>, vector<4x128xf32> -> vector<4x128xf32>
    %cst_215 = arith.constant dense<0.000000e+00> : vector<128xf32>
    %661 = vector.multi_reduction <add>, %660, %cst_215 [0] : vector<4x128xf32> to vector<128xf32>
    %662 = vector.shape_cast %661 : vector<128xf32> to vector<1x128xf32>
    %cst_216 = arith.constant 1.562500e-02 : f32
    %663 = vector.broadcast %cst_216 : f32 to vector<1x128xf32>
    %664 = arith.mulf %662, %663 : vector<1x128xf32>
    %665 = vector.broadcast %664 : vector<1x128xf32> to vector<4x128xf32>
    %666 = arith.subf %659, %665 : vector<4x128xf32>
    %667 = arith.mulf %666, %666 : vector<4x128xf32>
    %cst_217 = arith.constant dense<0.000000e+00> : vector<4x128xf32>
    %668 = tpu.matmul %667, %2, %cst_217 {dimension_numbers = #tpu.dot_dimension_numbers<[1], [0], [0], [1], [0, 0, 1, 1], [], []>, precision = #tpu.contract_precision<fp32>} : vector<4x128xf32>, vector<128x128xf32>, vector<4x128xf32> -> vector<4x128xf32>
    %cst_218 = arith.constant dense<0.000000e+00> : vector<128xf32>
    %669 = vector.multi_reduction <add>, %668, %cst_218 [0] : vector<4x128xf32> to vector<128xf32>
    %670 = vector.shape_cast %669 : vector<128xf32> to vector<1x128xf32>
    %cst_219 = arith.constant 1.562500e-02 : f32
    %671 = vector.broadcast %cst_219 : f32 to vector<1x128xf32>
    %672 = arith.mulf %670, %671 : vector<1x128xf32>
    %cst_220 = arith.constant 9.99999974E-6 : f32
    %673 = vector.broadcast %cst_220 : f32 to vector<1x128xf32>
    %674 = arith.addf %672, %673 : vector<1x128xf32>
    %675 = math.rsqrt %674 : vector<1x128xf32>
    %676 = vector.broadcast %675 : vector<1x128xf32> to vector<4x128xf32>
    %677 = arith.mulf %666, %676 : vector<4x128xf32>
    %c0_221 = arith.constant 0 : index
    %c0_222 = arith.constant 0 : index
    %678 = vector.load %arg15[%c0_221, %c0_222] : memref<4x128xf32, #tpu.memory_space<vmem>>, vector<4x128xf32>
    %679 = arith.mulf %677, %678 : vector<4x128xf32>
    %c0_223 = arith.constant 0 : index
    %c0_224 = arith.constant 0 : index
    %680 = vector.load %arg16[%c0_223, %c0_224] : memref<4x128xf32, #tpu.memory_space<vmem>>, vector<4x128xf32>
    %681 = arith.addf %679, %680 : vector<4x128xf32>
    %c0_225 = arith.constant 0 : index
    %c0_226 = arith.constant 0 : index
    %c0_227 = arith.constant 0 : index
    %682 = vector.load %arg17[%c0_225, %c0_226, %c0_227] : memref<1x4x128xf32, #tpu.memory_space<vmem>>, vector<1x4x128xf32>
    %683 = vector.shape_cast %682 : vector<1x4x128xf32> to vector<4x128xf32>
    %684 = vector.shape_cast %681 : vector<4x128xf32> to vector<1x4x128xf32>
    tpu.vector_store %arg17[%c0_225, %c0_226, %c0_227], %684 {strides = array<i32>} : memref<1x4x128xf32, #tpu.memory_space<vmem>>, vector<1x4x128xf32>,
    return
  }
  func.func @transform_0(%arg0: i32) -> (i32, i32, i32) {
    %c0_i32 = arith.constant 0 : i32
    %c0_i32_0 = arith.constant 0 : i32
    %c0_i32_1 = arith.constant 0 : i32
    return %arg0, %c0_i32, %c0_i32_0 : i32, i32, i32
  }
  func.func @transform_1(%arg0: i32) -> (i32, i32) {
    %c0_i32 = arith.constant 0 : i32
    %c0_i32_0 = arith.constant 0 : i32
    %c0_i32_1 = arith.constant 0 : i32
    return %c0_i32, %c0_i32_0 : i32, i32
  }
  func.func @transform_2(%arg0: i32) -> (i32, i32) {
    %c0_i32 = arith.constant 0 : i32
    %c0_i32_0 = arith.constant 0 : i32
    %c0_i32_1 = arith.constant 0 : i32
    return %c0_i32, %c0_i32_0 : i32, i32
  }
  func.func @transform_3(%arg0: i32) -> (i32, i32) {
    %c0_i32 = arith.constant 0 : i32
    %c0_i32_0 = arith.constant 0 : i32
    %c0_i32_1 = arith.constant 0 : i32
    return %c0_i32, %c0_i32_0 : i32, i32
  }
  func.func @transform_4(%arg0: i32) -> (i32, i32) {
    %c0_i32 = arith.constant 0 : i32
    %c0_i32_0 = arith.constant 0 : i32
    %c0_i32_1 = arith.constant 0 : i32
    return %c0_i32, %c0_i32_0 : i32, i32
  }
  func.func @transform_5(%arg0: i32) -> (i32, i32) {
    %c0_i32 = arith.constant 0 : i32
    %c0_i32_0 = arith.constant 0 : i32
    %c0_i32_1 = arith.constant 0 : i32
    return %c0_i32, %c0_i32_0 : i32, i32
  }
  func.func @transform_6(%arg0: i32) -> (i32, i32) {
    %c0_i32 = arith.constant 0 : i32
    %c0_i32_0 = arith.constant 0 : i32
    %c0_i32_1 = arith.constant 0 : i32
    return %c0_i32, %c0_i32_0 : i32, i32
  }
  func.func @transform_7(%arg0: i32) -> (i32, i32) {
    %c0_i32 = arith.constant 0 : i32
    %c0_i32_0 = arith.constant 0 : i32
    %c0_i32_1 = arith.constant 0 : i32
    return %c0_i32, %c0_i32_0 : i32, i32
  }
  func.func @transform_8(%arg0: i32) -> (i32, i32, i32) {
    %c0_i32 = arith.constant 0 : i32
    %c0_i32_0 = arith.constant 0 : i32
    %c0_i32_1 = arith.constant 0 : i32
    %c0_i32_2 = arith.constant 0 : i32
    return %c0_i32, %c0_i32_0, %c0_i32_1 : i32, i32, i32
  }
  func.func @transform_9(%arg0: i32) -> (i32, i32) {
    %c0_i32 = arith.constant 0 : i32
    %c0_i32_0 = arith.constant 0 : i32
    %c0_i32_1 = arith.constant 0 : i32
    return %c0_i32, %c0_i32_0 : i32, i32
  }
  func.func @transform_10(%arg0: i32) -> (i32, i32) {
    %c0_i32 = arith.constant 0 : i32
    %c0_i32_0 = arith.constant 0 : i32
    %c0_i32_1 = arith.constant 0 : i32
    return %c0_i32, %c0_i32_0 : i32, i32
  }
  func.func @transform_11(%arg0: i32) -> (i32, i32) {
    %c0_i32 = arith.constant 0 : i32
    %c0_i32_0 = arith.constant 0 : i32
    %c0_i32_1 = arith.constant 0 : i32
    return %c0_i32, %c0_i32_0 : i32, i32
  }
  func.func @transform_12(%arg0: i32) -> (i32, i32) {
    %c0_i32 = arith.constant 0 : i32
    %c0_i32_0 = arith.constant 0 : i32
    %c0_i32_1 = arith.constant 0 : i32
    return %c0_i32, %c0_i32_0 : i32, i32
  }
  func.func @transform_13(%arg0: i32) -> (i32, i32) {
    %c0_i32 = arith.constant 0 : i32
    %c0_i32_0 = arith.constant 0 : i32
    %c0_i32_1 = arith.constant 0 : i32
    return %c0_i32, %c0_i32_0 : i32, i32
  }
  func.func @transform_14(%arg0: i32) -> (i32, i32) {
    %c0_i32 = arith.constant 0 : i32
    %c0_i32_0 = arith.constant 0 : i32
    %c0_i32_1 = arith.constant 0 : i32
    return %c0_i32, %c0_i32_0 : i32, i32
  }
  func.func @transform_15(%arg0: i32) -> (i32, i32) {
    %c0_i32 = arith.constant 0 : i32
    %c0_i32_0 = arith.constant 0 : i32
    %c0_i32_1 = arith.constant 0 : i32
    return %c0_i32, %c0_i32_0 : i32, i32
  }
  func.func @transform_16(%arg0: i32) -> (i32, i32, i32) {
    %c0_i32 = arith.constant 0 : i32
    %c0_i32_0 = arith.constant 0 : i32
    %c0_i32_1 = arith.constant 0 : i32
    return %arg0, %c0_i32, %c0_i32_0 : i32, i32, i32
  }
}

</mosaic_0001>

<llo_original>
// kernel: tpu_custom_call.1
$region0: #{tpu_custom_call.1}
  #allocation0 [shape = 'u32[]', space=smem, size = 0x4, offset = 0x4, fixed_abs, tag = 'smem constant byte address 0x4 - core index']
  #allocation1 [shape = 'u32[144,128]{1,0:T(1,128)}', space=vmem, size = 0x12000, scoped, tag = 'internal scratch']
  #allocation2 [shape = 'f32[200,128]{1,0:T(8,128)}', space=vmem, size = 0x19000, scoped, tag = 'scratch operand']
  %s0 = inlined_call_operand.vmem [shape: f32[2,5,128], index: 0, kind: input, shape index: {}]
  %s1 = inlined_call_operand.vmem [shape: s32[1,128], index: 1, kind: input, shape index: {}]
  %s2 = inlined_call_operand.vmem [shape: s32[40,1], index: 2, kind: input, shape index: {}]
  %s3 = inlined_call_operand.vmem [shape: f32[128,128], index: 3, kind: input, shape index: {}]
  %s4 = inlined_call_operand.vmem [shape: f32[5,128], index: 4, kind: input, shape index: {}]
  %s5 = inlined_call_operand.vmem [shape: f32[5,128], index: 5, kind: input, shape index: {}]
  %s6 = inlined_call_operand.vmem [shape: f32[40,200], index: 6, kind: input, shape index: {}]
  %s7 = inlined_call_operand.vmem [shape: f32[40,1], index: 7, kind: input, shape index: {}]
  %s8 = inlined_call_operand.vmem [shape: f32[25,40,1], index: 8, kind: input, shape index: {}]
  %s9 = inlined_call_operand.vmem [shape: f32[40,1], index: 9, kind: input, shape index: {}]
  %s10 = inlined_call_operand.vmem [shape: f32[13,40], index: 10, kind: input, shape index: {}]
  %s11 = inlined_call_operand.vmem [shape: f32[13,1], index: 11, kind: input, shape index: {}]
  %s12 = inlined_call_operand.vmem [shape: f32[4,13], index: 12, kind: input, shape index: {}]
  %s13 = inlined_call_operand.vmem [shape: f32[4,1], index: 13, kind: input, shape index: {}]
  %s14 = inlined_call_operand.vmem [shape: f32[4,128], index: 14, kind: input, shape index: {}]
  %s15 = inlined_call_operand.vmem [shape: f32[4,128], index: 15, kind: input, shape index: {}]
  %s16 = inlined_call_operand.hbm [shape: f32[2,4,128], index: 16, kind: output, shape index: {}]
  %s17 = sld [smem:[#allocation0]]
  $region97: #{tpu_custom_call.1} parent=0
    _
  %s19 = ssub.s32 1, %s17
  %s20 = scalar_select 0, %s19, %s17
  $region1: #{tpu_custom_call.1} parent=0
    #allocation3 [shape = 'u8[4096]{0}', space=vmem, size = 0x1000, scoped, tag = 'output window, operand 0']
    #allocation4 [shape = 's32[2]{0}', space=sflag, size = 0x8, scoped, tag = 'scoped memory for tpu_custom_call.1']
    %21 = vsyncpa [#allocation4], 0
    %s22 = scalar_lea.sflag [#allocation4], 1
    %23 = vsyncpa %s22, 0
    loop: start=0, step=1, limit=4
    $region2: #{tpu_custom_call.1} parent=1 // loop_pre_header
      _
    $region3: #{tpu_custom_call.1} parent=1 // loop_header
      %s25 = sphi 0, %s29
      %p26 = scmp.ge.s32.totalorder %s25, 4
      %s35 = sphi 0, %s37
      %s38 = sphi 0, %s35
      %s39 = sphi 0, %s38
      %s55 = sphi 0, %s39
      %s59 = sphi 0, %s59
      %s61 = sphi 0, %s59
      %s62 = sphi 0, %s61
      %s76 = sphi 0, %s62
      %s80 = sphi 0, %s80
      %s82 = sphi 0, %s80
      %s83 = sphi 0, %s82
      %s97 = sphi 0, %s83
      %s101 = sphi 0, %s101
      %s103 = sphi 0, %s101
      %s104 = sphi 0, %s103
      %s118 = sphi 0, %s104
      %s122 = sphi 0, %s122
      %s124 = sphi 0, %s122
      %s125 = sphi 0, %s124
      %s139 = sphi 0, %s125
      %s143 = sphi 0, %s143
      %s145 = sphi 0, %s143
      %s146 = sphi 0, %s145
      %s160 = sphi 0, %s146
      %s164 = sphi 0, %s164
      %s166 = sphi 0, %s164
      %s167 = sphi 0, %s166
      %s181 = sphi 0, %s167
      %s185 = sphi 0, %s185
      %s187 = sphi 0, %s185
      %s188 = sphi 0, %s187
      %s202 = sphi 0, %s188
      %s206 = sphi 0, %s206
      %s208 = sphi 0, %s206
      %s209 = sphi 0, %s208
      %s223 = sphi 0, %s209
      %s227 = sphi 0, %s227
      %s229 = sphi 0, %s227
      %s230 = sphi 0, %s229
      %s244 = sphi 0, %s230
      %s248 = sphi 0, %s248
      %s250 = sphi 0, %s248
      %s251 = sphi 0, %s250
      %s265 = sphi 0, %s251
      %s269 = sphi 0, %s269
      %s271 = sphi 0, %s269
      %s272 = sphi 0, %s271
      %s286 = sphi 0, %s272
      %s290 = sphi 0, %s290
      %s292 = sphi 0, %s290
      %s293 = sphi 0, %s292
      %s307 = sphi 0, %s293
      %s311 = sphi 0, %s311
      %s313 = sphi 0, %s311
      %s314 = sphi 0, %s313
      %s328 = sphi 0, %s314
      %s332 = sphi 0, %s332
      %s334 = sphi 0, %s332
      %s335 = sphi 0, %s334
      %s349 = sphi 0, %s335
      %s353 = sphi 0, %s353
      %s355 = sphi 0, %s353
      %s356 = sphi 0, %s355
      %s370 = sphi 0, %s356
      %s376 = sphi 0, %s378
      %s379 = sphi 0, %s376
      %s380 = sphi 0, %s379
      %s396 = sphi 0, %s380
    $region4: #{tpu_custom_call.1} parent=1 // loop_header_branch
      %28 = sbr.rel (%p26) target = $region8
    $region5: #{tpu_custom_call.1} parent=1 // loop_body
      %s30 = ssub.s32 %s25, 1
      %s31 = ssub.s32 %s25, 2
      %s32 = sadd.s32 %s25, 1
      %s33 = ssub.s32 %s25, %s32
      %p34 = scmp.eq.s32.totalorder %s33, 0
      %s36 = sadd.s32 %s35, 1
      %s37 = scalar_select %p34, %s35, %s36
      %p40 = pneg %p34
      %p41 = scmp.eq.s32.totalorder %s25, 1
      %p42 = por %p40, %p41
      %p43 = scmp.ne.s32.totalorder %s35, %s38
      %p44 = scmp.eq.s32.totalorder %s25, 0
      %p45 = por %p43, %p44
      %p46 = scmp.ne.s32.totalorder %s35, %s38
      %p47 = scmp.eq.s32.totalorder %s30, 1
      %p48 = por %p46, %p47
      %p49 = scmp.ne.s32.totalorder %s38, %s39
      %p50 = scmp.eq.s32.totalorder %s30, 0
      %p51 = por %p49, %p50
      %p52 = scmp.ne.s32.totalorder %s38, %s39
      %p53 = scmp.eq.s32.totalorder %s31, 1
      %p54 = por %p52, %p53
      %p56 = scmp.ne.s32.totalorder %s39, %s55
      %p57 = scmp.eq.s32.totalorder %s31, 0
      %p58 = por %p56, %p57
      %s60 = sadd.s32 %s59, 1
      %p63 = scmp.eq.s32.totalorder %s25, 1
      %p64 = scmp.ne.s32.totalorder %s59, %s61
      %p65 = scmp.eq.s32.totalorder %s25, 0
      %p66 = por %p64, %p65
      %p67 = scmp.ne.s32.totalorder %s59, %s61
      %p68 = scmp.eq.s32.totalorder %s30, 1
      %p69 = por %p67, %p68
      %p70 = scmp.ne.s32.totalorder %s61, %s62
      %p71 = scmp.eq.s32.totalorder %s30, 0
      %p72 = por %p70, %p71
      %p73 = scmp.ne.s32.totalorder %s61, %s62
      %p74 = scmp.eq.s32.totalorder %s31, 1
      %p75 = por %p73, %p74
      %p77 = scmp.ne.s32.totalorder %s62, %s76
      %p78 = scmp.eq.s32.totalorder %s31, 0
      %p79 = por %p77, %p78
      %s81 = sadd.s32 %s80, 1
      %p84 = scmp.eq.s32.totalorder %s25, 1
      %p85 = scmp.ne.s32.totalorder %s80, %s82
      %p86 = scmp.eq.s32.totalorder %s25, 0
      %p87 = por %p85, %p86
      %p88 = scmp.ne.s32.totalorder %s80, %s82
      %p89 = scmp.eq.s32.totalorder %s30, 1
      %p90 = por %p88, %p89
      %p91 = scmp.ne.s32.totalorder %s82, %s83
      %p92 = scmp.eq.s32.totalorder %s30, 0
      %p93 = por %p91, %p92
      %p94 = scmp.ne.s32.totalorder %s82, %s83
      %p95 = scmp.eq.s32.totalorder %s31, 1
      %p96 = por %p94, %p95
      %p98 = scmp.ne.s32.totalorder %s83, %s97
      %p99 = scmp.eq.s32.totalorder %s31, 0
      %p100 = por %p98, %p99
      %s102 = sadd.s32 %s101, 1
      %p105 = scmp.eq.s32.totalorder %s25, 1
      %p106 = scmp.ne.s32.totalorder %s101, %s103
      %p107 = scmp.eq.s32.totalorder %s25, 0
      %p108 = por %p106, %p107
      %p109 = scmp.ne.s32.totalorder %s101, %s103
      %p110 = scmp.eq.s32.totalorder %s30, 1
      %p111 = por %p109, %p110
      %p112 = scmp.ne.s32.totalorder %s103, %s104
      %p113 = scmp.eq.s32.totalorder %s30, 0
      %p114 = por %p112, %p113
      %p115 = scmp.ne.s32.totalorder %s103, %s104
      %p116 = scmp.eq.s32.totalorder %s31, 1
      %p117 = por %p115, %p116
      %p119 = scmp.ne.s32.totalorder %s104, %s118
      %p120 = scmp.eq.s32.totalorder %s31, 0
      %p121 = por %p119, %p120
      %s123 = sadd.s32 %s122, 1
      %p126 = scmp.eq.s32.totalorder %s25, 1
      %p127 = scmp.ne.s32.totalorder %s122, %s124
      %p128 = scmp.eq.s32.totalorder %s25, 0
      %p129 = por %p127, %p128
      %p130 = scmp.ne.s32.totalorder %s122, %s124
      %p131 = scmp.eq.s32.totalorder %s30, 1
      %p132 = por %p130, %p131
      %p133 = scmp.ne.s32.totalorder %s124, %s125
      %p134 = scmp.eq.s32.totalorder %s30, 0
      %p135 = por %p133, %p134
      %p136 = scmp.ne.s32.totalorder %s124, %s125
      %p137 = scmp.eq.s32.totalorder %s31, 1
      %p138 = por %p136, %p137
      %p140 = scmp.ne.s32.totalorder %s125, %s139
      %p141 = scmp.eq.s32.totalorder %s31, 0
      %p142 = por %p140, %p141
      %s144 = sadd.s32 %s143, 1
      %p147 = scmp.eq.s32.totalorder %s25, 1
      %p148 = scmp.ne.s32.totalorder %s143, %s145
      %p149 = scmp.eq.s32.totalorder %s25, 0
      %p150 = por %p148, %p149
      %p151 = scmp.ne.s32.totalorder %s143, %s145
      %p152 = scmp.eq.s32.totalorder %s30, 1
      %p153 = por %p151, %p152
      %p154 = scmp.ne.s32.totalorder %s145, %s146
      %p155 = scmp.eq.s32.totalorder %s30, 0
      %p156 = por %p154, %p155
      %p157 = scmp.ne.s32.totalorder %s145, %s146
      %p158 = scmp.eq.s32.totalorder %s31, 1
      %p159 = por %p157, %p158
      %p161 = scmp.ne.s32.totalorder %s146, %s160
      %p162 = scmp.eq.s32.totalorder %s31, 0
      %p163 = por %p161, %p162
      %s165 = sadd.s32 %s164, 1
      %p168 = scmp.eq.s32.totalorder %s25, 1
      %p169 = scmp.ne.s32.totalorder %s164, %s166
      %p170 = scmp.eq.s32.totalorder %s25, 0
      %p171 = por %p169, %p170
      %p172 = scmp.ne.s32.totalorder %s164, %s166
      %p173 = scmp.eq.s32.totalorder %s30, 1
      %p174 = por %p172, %p173
      %p175 = scmp.ne.s32.totalorder %s166, %s167
      %p176 = scmp.eq.s32.totalorder %s30, 0
      %p177 = por %p175, %p176
      %p178 = scmp.ne.s32.totalorder %s166, %s167
      %p179 = scmp.eq.s32.totalorder %s31, 1
      %p180 = por %p178, %p179
      %p182 = scmp.ne.s32.totalorder %s167, %s181
      %p183 = scmp.eq.s32.totalorder %s31, 0
      %p184 = por %p182, %p183
      %s186 = sadd.s32 %s185, 1
      %p189 = scmp.eq.s32.totalorder %s25, 1
      %p190 = scmp.ne.s32.totalorder %s185, %s187
      %p191 = scmp.eq.s32.totalorder %s25, 0
      %p192 = por %p190, %p191
      %p193 = scmp.ne.s32.totalorder %s185, %s187
      %p194 = scmp.eq.s32.totalorder %s30, 1
      %p195 = por %p193, %p194
      %p196 = scmp.ne.s32.totalorder %s187, %s188
      %p197 = scmp.eq.s32.totalorder %s30, 0
      %p198 = por %p196, %p197
      %p199 = scmp.ne.s32.totalorder %s187, %s188
      %p200 = scmp.eq.s32.totalorder %s31, 1
      %p201 = por %p199, %p200
      %p203 = scmp.ne.s32.totalorder %s188, %s202
      %p204 = scmp.eq.s32.totalorder %s31, 0
      %p205 = por %p203, %p204
      %s207 = sadd.s32 %s206, 1
      %p210 = scmp.eq.s32.totalorder %s25, 1
      %p211 = scmp.ne.s32.totalorder %s206, %s208
      %p212 = scmp.eq.s32.totalorder %s25, 0
      %p213 = por %p211, %p212
      %p214 = scmp.ne.s32.totalorder %s206, %s208
      %p215 = scmp.eq.s32.totalorder %s30, 1
      %p216 = por %p214, %p215
      %p217 = scmp.ne.s32.totalorder %s208, %s209
      %p218 = scmp.eq.s32.totalorder %s30, 0
      %p219 = por %p217, %p218
      %p220 = scmp.ne.s32.totalorder %s208, %s209
      %p221 = scmp.eq.s32.totalorder %s31, 1
      %p222 = por %p220, %p221
      %p224 = scmp.ne.s32.totalorder %s209, %s223
      %p225 = scmp.eq.s32.totalorder %s31, 0
      %p226 = por %p224, %p225
      %s228 = sadd.s32 %s227, 1
      %p231 = scmp.eq.s32.totalorder %s25, 1
      %p232 = scmp.ne.s32.totalorder %s227, %s229
      %p233 = scmp.eq.s32.totalorder %s25, 0
      %p234 = por %p232, %p233
      %p235 = scmp.ne.s32.totalorder %s227, %s229
      %p236 = scmp.eq.s32.totalorder %s30, 1
      %p237 = por %p235, %p236
      %p238 = scmp.ne.s32.totalorder %s229, %s230
      %p239 = scmp.eq.s32.totalorder %s30, 0
      %p240 = por %p238, %p239
      %p241 = scmp.ne.s32.totalorder %s229, %s230
      %p242 = scmp.eq.s32.totalorder %s31, 1
      %p243 = por %p241, %p242
      %p245 = scmp.ne.s32.totalorder %s230, %s244
      %p246 = scmp.eq.s32.totalorder %s31, 0
      %p247 = por %p245, %p246
      %s249 = sadd.s32 %s248, 1
      %p252 = scmp.eq.s32.totalorder %s25, 1
      %p253 = scmp.ne.s32.totalorder %s248, %s250
      %p254 = scmp.eq.s32.totalorder %s25, 0
      %p255 = por %p253, %p254
      %p256 = scmp.ne.s32.totalorder %s248, %s250
      %p257 = scmp.eq.s32.totalorder %s30, 1
      %p258 = por %p256, %p257
      %p259 = scmp.ne.s32.totalorder %s250, %s251
      %p260 = scmp.eq.s32.totalorder %s30, 0
      %p261 = por %p259, %p260
      %p262 = scmp.ne.s32.totalorder %s250, %s251
      %p263 = scmp.eq.s32.totalorder %s31, 1
      %p264 = por %p262, %p263
      %p266 = scmp.ne.s32.totalorder %s251, %s265
      %p267 = scmp.eq.s32.totalorder %s31, 0
      %p268 = por %p266, %p267
      %s270 = sadd.s32 %s269, 1
      %p273 = scmp.eq.s32.totalorder %s25, 1
      %p274 = scmp.ne.s32.totalorder %s269, %s271
      %p275 = scmp.eq.s32.totalorder %s25, 0
      %p276 = por %p274, %p275
      %p277 = scmp.ne.s32.totalorder %s269, %s271
      %p278 = scmp.eq.s32.totalorder %s30, 1
      %p279 = por %p277, %p278
      %p280 = scmp.ne.s32.totalorder %s271, %s272
      %p281 = scmp.eq.s32.totalorder %s30, 0
      %p282 = por %p280, %p281
      %p283 = scmp.ne.s32.totalorder %s271, %s272
      %p284 = scmp.eq.s32.totalorder %s31, 1
      %p285 = por %p283, %p284
      %p287 = scmp.ne.s32.totalorder %s272, %s286
      %p288 = scmp.eq.s32.totalorder %s31, 0
      %p289 = por %p287, %p288
      %s291 = sadd.s32 %s290, 1
      %p294 = scmp.eq.s32.totalorder %s25, 1
      %p295 = scmp.ne.s32.totalorder %s290, %s292
      %p296 = scmp.eq.s32.totalorder %s25, 0
      %p297 = por %p295, %p296
      %p298 = scmp.ne.s32.totalorder %s290, %s292
      %p299 = scmp.eq.s32.totalorder %s30, 1
      %p300 = por %p298, %p299
      %p301 = scmp.ne.s32.totalorder %s292, %s293
      %p302 = scmp.eq.s32.totalorder %s30, 0
      %p303 = por %p301, %p302
      %p304 = scmp.ne.s32.totalorder %s292, %s293
      %p305 = scmp.eq.s32.totalorder %s31, 1
      %p306 = por %p304, %p305
      %p308 = scmp.ne.s32.totalorder %s293, %s307
      %p309 = scmp.eq.s32.totalorder %s31, 0
      %p310 = por %p308, %p309
      %s312 = sadd.s32 %s311, 1
      %p315 = scmp.eq.s32.totalorder %s25, 1
      %p316 = scmp.ne.s32.totalorder %s311, %s313
      %p317 = scmp.eq.s32.totalorder %s25, 0
      %p318 = por %p316, %p317
      %p319 = scmp.ne.s32.totalorder %s311, %s313
      %p320 = scmp.eq.s32.totalorder %s30, 1
      %p321 = por %p319, %p320
      %p322 = scmp.ne.s32.totalorder %s313, %s314
      %p323 = scmp.eq.s32.totalorder %s30, 0
      %p324 = por %p322, %p323
      %p325 = scmp.ne.s32.totalorder %s313, %s314
      %p326 = scmp.eq.s32.totalorder %s31, 1
      %p327 = por %p325, %p326
      %p329 = scmp.ne.s32.totalorder %s314, %s328
      %p330 = scmp.eq.s32.totalorder %s31, 0
      %p331 = por %p329, %p330
      %s333 = sadd.s32 %s332, 1
      %p336 = scmp.eq.s32.totalorder %s25, 1
      %p337 = scmp.ne.s32.totalorder %s332, %s334
      %p338 = scmp.eq.s32.totalorder %s25, 0
      %p339 = por %p337, %p338
      %p340 = scmp.ne.s32.totalorder %s332, %s334
      %p341 = scmp.eq.s32.totalorder %s30, 1
      %p342 = por %p340, %p341
      %p343 = scmp.ne.s32.totalorder %s334, %s335
      %p344 = scmp.eq.s32.totalorder %s30, 0
      %p345 = por %p343, %p344
      %p346 = scmp.ne.s32.totalorder %s334, %s335
      %p347 = scmp.eq.s32.totalorder %s31, 1
      %p348 = por %p346, %p347
      %p350 = scmp.ne.s32.totalorder %s335, %s349
      %p351 = scmp.eq.s32.totalorder %s31, 0
      %p352 = por %p350, %p351
      %s354 = sadd.s32 %s353, 1
      %p357 = scmp.eq.s32.totalorder %s25, 1
      %p358 = scmp.ne.s32.totalorder %s353, %s355
      %p359 = scmp.eq.s32.totalorder %s25, 0
      %p360 = por %p358, %p359
      %p361 = scmp.ne.s32.totalorder %s353, %s355
      %p362 = scmp.eq.s32.totalorder %s30, 1
      %p363 = por %p361, %p362
      %p364 = scmp.ne.s32.totalorder %s355, %s356
      %p365 = scmp.eq.s32.totalorder %s30, 0
      %p366 = por %p364, %p365
      %p367 = scmp.ne.s32.totalorder %s355, %s356
      %p368 = scmp.eq.s32.totalorder %s31, 1
      %p369 = por %p367, %p368
      %p371 = scmp.ne.s32.totalorder %s356, %s370
      %p372 = scmp.eq.s32.totalorder %s31, 0
      %p373 = por %p371, %p372
      %s374 = ssub.s32 %s25, %s32
      %p375 = scmp.eq.s32.totalorder %s374, 0
      %s377 = sadd.s32 %s376, 1
      %s378 = scalar_select %p375, %s376, %s377
      %p381 = pneg %p375
      %p382 = scmp.eq.s32.totalorder %s25, 1
      %p383 = por %p381, %p382
      %p384 = scmp.ne.s32.totalorder %s376, %s379
      %p385 = scmp.eq.s32.totalorder %s25, 0
      %p386 = por %p384, %p385
      %p387 = scmp.ne.s32.totalorder %s376, %s379
      %p388 = scmp.eq.s32.totalorder %s30, 1
      %p389 = por %p387, %p388
      %p390 = scmp.ne.s32.totalorder %s379, %s380
      %p391 = scmp.eq.s32.totalorder %s30, 0
      %p392 = por %p390, %p391
      %p393 = scmp.ne.s32.totalorder %s379, %s380
      %p394 = scmp.eq.s32.totalorder %s31, 1
      %p395 = por %p393, %p394
      %p397 = scmp.ne.s32.totalorder %s380, %s396
      %p398 = scmp.eq.s32.totalorder %s31, 0
      %p399 = por %p397, %p398
      %p400 = scmp.le.s32.totalorder 1, %s25
      %p401 = scmp.lt.s32.totalorder %s25, 3
      %p402 = pnand %p400, %p401
      %p403 = pneg %p402
      // Predicated region
      $region9: #{tpu_custom_call.1} parent=5 // pred_check
        _
      $region10: #{tpu_custom_call.1} parent=5 // pred_check_branch
        %405 = sbr.rel (%p402) target = $region12
      $region11: #{tpu_custom_call.1} parent=5 // pred_region
        %s406 = ssub.s32 %s25, 1
        // Predicated region
        $region13: #{tpu_custom_call.1} parent=11 // pred_check
          %p407 = pneg %p72
        $region14: #{tpu_custom_call.1} parent=11 // pred_check_branch
          %409 = sbr.rel (%p407) target = $region16
        $region15: #{tpu_custom_call.1} parent=11 // pred_region
          _
        $region16: #{tpu_custom_call.1} parent=11 // pred_fallthru
          _
        // Predicated region
        $region17: #{tpu_custom_call.1} parent=11 // pred_check
          %p410 = pneg %p93
        $region18: #{tpu_custom_call.1} parent=11 // pred_check_branch
          %412 = sbr.rel (%p410) target = $region20
        $region19: #{tpu_custom_call.1} parent=11 // pred_region
          _
        $region20: #{tpu_custom_call.1} parent=11 // pred_fallthru
          _
        // Predicated region
        $region21: #{tpu_custom_call.1} parent=11 // pred_check
          %p413 = pneg %p114
        $region22: #{tpu_custom_call.1} parent=11 // pred_check_branch
          %415 = sbr.rel (%p413) target = $region24
        $region23: #{tpu_custom_call.1} parent=11 // pred_region
          _
        $region24: #{tpu_custom_call.1} parent=11 // pred_fallthru
          _
        // Predicated region
        $region25: #{tpu_custom_call.1} parent=11 // pred_check
          %p416 = pneg %p135
        $region26: #{tpu_custom_call.1} parent=11 // pred_check_branch
          %418 = sbr.rel (%p416) target = $region28
        $region27: #{tpu_custom_call.1} parent=11 // pred_region
          _
        $region28: #{tpu_custom_call.1} parent=11 // pred_fallthru
          _
        // Predicated region
        $region29: #{tpu_custom_call.1} parent=11 // pred_check
          %p419 = pneg %p156
        $region30: #{tpu_custom_call.1} parent=11 // pred_check_branch
          %421 = sbr.rel (%p419) target = $region32
        $region31: #{tpu_custom_call.1} parent=11 // pred_region
          _
        $region32: #{tpu_custom_call.1} parent=11 // pred_fallthru
          _
        // Predicated region
        $region33: #{tpu_custom_call.1} parent=11 // pred_check
          %p422 = pneg %p177
        $region34: #{tpu_custom_call.1} parent=11 // pred_check_branch
          %424 = sbr.rel (%p422) target = $region36
        $region35: #{tpu_custom_call.1} parent=11 // pred_region
          _
        $region36: #{tpu_custom_call.1} parent=11 // pred_fallthru
          _
        // Predicated region
        $region37: #{tpu_custom_call.1} parent=11 // pred_check
          %p425 = pneg %p198
        $region38: #{tpu_custom_call.1} parent=11 // pred_check_branch
          %427 = sbr.rel (%p425) target = $region40
        $region39: #{tpu_custom_call.1} parent=11 // pred_region
          _
        $region40: #{tpu_custom_call.1} parent=11 // pred_fallthru
          _
        // Predicated region
        $region41: #{tpu_custom_call.1} parent=11 // pred_check
          %p428 = pneg %p219
        $region42: #{tpu_custom_call.1} parent=11 // pred_check_branch
          %430 = sbr.rel (%p428) target = $region44
        $region43: #{tpu_custom_call.1} parent=11 // pred_region
          _
        $region44: #{tpu_custom_call.1} parent=11 // pred_fallthru
          _
        // Predicated region
        $region45: #{tpu_custom_call.1} parent=11 // pred_check
          %p431 = pneg %p240
        $region46: #{tpu_custom_call.1} parent=11 // pred_check_branch
          %433 = sbr.rel (%p431) target = $region48
        $region47: #{tpu_custom_call.1} parent=11 // pred_region
          _
        $region48: #{tpu_custom_call.1} parent=11 // pred_fallthru
          _
        // Predicated region
        $region49: #{tpu_custom_call.1} parent=11 // pred_check
          %p434 = pneg %p261
        $region50: #{tpu_custom_call.1} parent=11 // pred_check_branch
          %436 = sbr.rel (%p434) target = $region52
        $region51: #{tpu_custom_call.1} parent=11 // pred_region
          _
        $region52: #{tpu_custom_call.1} parent=11 // pred_fallthru
          _
        // Predicated region
        $region53: #{tpu_custom_call.1} parent=11 // pred_check
          %p437 = pneg %p282
        $region54: #{tpu_custom_call.1} parent=11 // pred_check_branch
          %439 = sbr.rel (%p437) target = $region56
        $region55: #{tpu_custom_call.1} parent=11 // pred_region
          _
        $region56: #{tpu_custom_call.1} parent=11 // pred_fallthru
          _
        // Predicated region
        $region57: #{tpu_custom_call.1} parent=11 // pred_check
          %p440 = pneg %p303
        $region58: #{tpu_custom_call.1} parent=11 // pred_check_branch
          %442 = sbr.rel (%p440) target = $region60
        $region59: #{tpu_custom_call.1} parent=11 // pred_region
          _
        $region60: #{tpu_custom_call.1} parent=11 // pred_fallthru
          _
        // Predicated region
        $region61: #{tpu_custom_call.1} parent=11 // pred_check
          %p443 = pneg %p324
        $region62: #{tpu_custom_call.1} parent=11 // pred_check_branch
          %445 = sbr.rel (%p443) target = $region64
        $region63: #{tpu_custom_call.1} parent=11 // pred_region
          _
        $region64: #{tpu_custom_call.1} parent=11 // pred_fallthru
          _
        // Predicated region
        $region65: #{tpu_custom_call.1} parent=11 // pred_check
          %p446 = pneg %p345
        $region66: #{tpu_custom_call.1} parent=11 // pred_check_branch
          %448 = sbr.rel (%p446) target = $region68
        $region67: #{tpu_custom_call.1} parent=11 // pred_region
          _
        $region68: #{tpu_custom_call.1} parent=11 // pred_fallthru
          _
        // Predicated region
        $region69: #{tpu_custom_call.1} parent=11 // pred_check
          %p449 = pneg %p366
        $region70: #{tpu_custom_call.1} parent=11 // pred_check_branch
          %451 = sbr.rel (%p449) target = $region72
        $region71: #{tpu_custom_call.1} parent=11 // pred_region
          _
        $region72: #{tpu_custom_call.1} parent=11 // pred_fallthru
          _
      $region12: #{tpu_custom_call.1} parent=5 // pred_fallthru
        _
      %p452 = scmp.lt.s32.totalorder %s25, 2
      // Predicated region
      $region73: #{tpu_custom_call.1} parent=5 // pred_check
        %p453 = pneg %p452
      $region74: #{tpu_custom_call.1} parent=5 // pred_check_branch
        %455 = sbr.rel (%p453) target = $region76
      $region75: #{tpu_custom_call.1} parent=5 // pred_region
        // Predicated region
        $region77: #{tpu_custom_call.1} parent=75 // pred_check
          %p456 = pneg %p45
        $region78: #{tpu_custom_call.1} parent=75 // pred_check_branch
          %458 = sbr.rel (%p456) target = $region80
        $region79: #{tpu_custom_call.1} parent=75 // pred_region
          %p459 = scmp.lt.s32.totalorder %s25, 1
          %s460 = scalar_select %p459, %s25, 1
          %s461 = smul.addr %s460, 8
          %s462 = scalar_lea.vmem %s0, %s461
        $region80: #{tpu_custom_call.1} parent=75 // pred_fallthru
          _
      $region76: #{tpu_custom_call.1} parent=5 // pred_fallthru
        _
      %p463 = scmp.le.s32.totalorder 1, %s25
      %p464 = scmp.lt.s32.totalorder %s25, 3
      %p465 = pnand %p463, %p464
      %p466 = pneg %p465
      // Predicated region
      $region81: #{tpu_custom_call.1} parent=5 // pred_check
        _
      $region82: #{tpu_custom_call.1} parent=5 // pred_check_branch
        %468 = sbr.rel (%p465) target = $region84
      $region83: #{tpu_custom_call.1} parent=5 // pred_region
        %s469 = ssub.s32 %s25, 1
        %p470 = scmp.lt.s32.totalorder %s30, 1
        %s471 = scalar_select %p470, %s30, 1
        %s472 = smul.addr %s471, 8
        %s473 = scalar_lea.vmem %s0, %s472
        %p474 = pneg %p51
        %p475 = pneg %p48
        %p476 = pneg %p72
        %p477 = pneg %p69
        %p478 = pneg %p93
        %p479 = pneg %p90
        %p480 = pneg %p114
        %p481 = pneg %p111
        %p482 = pneg %p135
        %p483 = pneg %p132
        %p484 = pneg %p156
        %p485 = pneg %p153
        %p486 = pneg %p177
        %p487 = pneg %p174
        %p488 = pneg %p198
        %p489 = pneg %p195
        %p490 = pneg %p219
        %p491 = pneg %p216
        %p492 = pneg %p240
        %p493 = pneg %p237
        %p494 = pneg %p261
        %p495 = pneg %p258
        %p496 = pneg %p282
        %p497 = pneg %p279
        %p498 = pneg %p303
        %p499 = pneg %p300
        %p500 = pneg %p324
        %p501 = pneg %p321
        %p502 = pneg %p345
        %p503 = pneg %p342
        %p504 = pneg %p366
        %p505 = pneg %p363
        %p506 = pneg %p392
        %p507 = pneg %p389
        %s508 = sand.u32 %s379, 1
        %s509 = scalar_lea.sflag [#allocation4], %s508
        %s510 = sand.u32 %s379, 1
        %s511 = smul.addr %s510, 4
        %s512 = scalar_lea.vmem [#allocation3], %s511
        %p513 = scmp.lt.s32.totalorder %s30, 1
        %s514 = scalar_select %p513, %s30, 1
        %s515 = smul.addr %s514, 8
        %s516 = scalar_lea.vmem %s0, %s515
        %v517 = vld [vmem:[%s516] sm:$0x1f]
        %v518 = vld [vmem:[%s3] sm:$0xff]
        %v519 = vld [vmem:[%s3 + $0x8] sm:$0xff]
        %v520 = vld [vmem:[%s3 + $0x10] sm:$0xff]
        %v521 = vld [vmem:[%s3 + $0x18] sm:$0xff]
        %v522 = vld [vmem:[%s3 + $0x20] sm:$0xff]
        %v523 = vld [vmem:[%s3 + $0x28] sm:$0xff]
        %v524 = vld [vmem:[%s3 + $0x30] sm:$0xff]
        %v525 = vld [vmem:[%s3 + $0x38] sm:$0xff]
        %v526 = vld [vmem:[%s3 + $0x40] sm:$0xff]
        %v527 = vld [vmem:[%s3 + $0x48] sm:$0xff]
        %v528 = vld [vmem:[%s3 + $0x50] sm:$0xff]
        %v529 = vld [vmem:[%s3 + $0x58] sm:$0xff]
        %v530 = vld [vmem:[%s3 + $0x60] sm:$0xff]
        %v531 = vld [vmem:[%s3 + $0x68] sm:$0xff]
        %v532 = vld [vmem:[%s3 + $0x70] sm:$0xff]
        %v533 = vld [vmem:[%s3 + $0x78] sm:$0xff]
        %v534 = vld [vmem:[%s1] sm:$0x1]
        %v535 = vld [vmem:[%s2] sm:$0xff]
        %v536 = vld [vmem:[%s2 + $0x8] sm:$0xff]
        %v537 = vld [vmem:[%s2 + $0x10] sm:$0xff]
        %v538 = vld [vmem:[%s2 + $0x18] sm:$0xff]
        %v539 = vld [vmem:[%s2 + $0x20] sm:$0xff]
        %540 = vmatprep.subr.mxu0 0.0
        %v541 = vand.u32 %v533, 4294901760
        %542 = vmatpush1.msra.mxu0 %v541
        %543 = vmatprep.subr.mxu0 0.0
        %v544 = vand.u32 %v532, 4294901760
        %545 = vmatpush1.msra.mxu0 %v544
        %546 = vmatprep.subr.mxu0 0.0
        %v547 = vand.u32 %v531, 4294901760
        %548 = vmatpush1.msra.mxu0 %v547
        %549 = vmatprep.subr.mxu0 0.0
        %v550 = vand.u32 %v530, 4294901760
        %551 = vmatpush1.msra.mxu0 %v550
        %552 = vmatprep.subr.mxu0 0.0
        %v553 = vand.u32 %v529, 4294901760
        %554 = vmatpush1.msra.mxu0 %v553
        %555 = vmatprep.subr.mxu0 0.0
        %v556 = vand.u32 %v528, 4294901760
        %557 = vmatpush1.msra.mxu0 %v556
        %558 = vmatprep.subr.mxu0 0.0
        %v559 = vand.u32 %v527, 4294901760
        %560 = vmatpush1.msra.mxu0 %v559
        %561 = vmatprep.subr.mxu0 0.0
        %v562 = vand.u32 %v526, 4294901760
        %563 = vmatpush1.msra.mxu0 %v562
        %564 = vmatprep.subr.mxu0 0.0
        %v565 = vand.u32 %v525, 4294901760
        %566 = vmatpush1.msra.mxu0 %v565
        %567 = vmatprep.subr.mxu0 0.0
        %v568 = vand.u32 %v524, 4294901760
        %569 = vmatpush1.msra.mxu0 %v568
        %570 = vmatprep.subr.mxu0 0.0
        %v571 = vand.u32 %v523, 4294901760
        %572 = vmatpush1.msra.mxu0 %v571
        %573 = vmatprep.subr.mxu0 0.0
        %v574 = vand.u32 %v522, 4294901760
        %575 = vmatpush1.msra.mxu0 %v574
        %576 = vmatprep.subr.mxu0 0.0
        %v577 = vand.u32 %v521, 4294901760
        %578 = vmatpush1.msra.mxu0 %v577
        %579 = vmatprep.subr.mxu0 0.0
        %v580 = vand.u32 %v520, 4294901760
        %581 = vmatpush1.msra.mxu0 %v580
        %582 = vmatprep.subr.mxu0 0.0
        %v583 = vand.u32 %v519, 4294901760
        %584 = vmatpush1.msra.mxu0 %v583
        %585 = vmatprep.subr.mxu0 0.0
        %v586 = vand.u32 %v518, 4294901760
        %587 = vmatpush1.msra.mxu0 %v586
        %588 = vmatprep.subr.mxu0 0.0
        %589 = vmatpush2.msra.mxu0 0.0
        %590 = vmatprep.subr.mxu0 0.0
        %591 = vmatpush2.msra.mxu0 0.0
        %592 = vmatprep.subr.mxu0 0.0
        %593 = vmatpush2.msra.mxu0 0.0
        %594 = vmatprep.subr.mxu0 0.0
        %595 = vmatpush2.msra.mxu0 0.0
        %596 = vmatprep.subr.mxu0 0.0
        %597 = vmatpush2.msra.mxu0 0.0
        %598 = vmatprep.subr.mxu0 0.0
        %599 = vmatpush2.msra.mxu0 0.0
        %600 = vmatprep.subr.mxu0 0.0
        %601 = vmatpush2.msra.mxu0 0.0
        %602 = vmatprep.subr.mxu0 0.0
        %603 = vmatpush2.msra.mxu0 0.0
        %604 = vmatprep.subr.mxu0 0.0
        %605 = vmatpush2.msra.mxu0 0.0
        %606 = vmatprep.subr.mxu0 0.0
        %607 = vmatpush2.msra.mxu0 0.0
        %608 = vmatprep.subr.mxu0 0.0
        %609 = vmatpush2.msra.mxu0 0.0
        %610 = vmatprep.subr.mxu0 0.0
        %611 = vmatpush2.msra.mxu0 0.0
        %612 = vmatprep.subr.mxu0 0.0
        %613 = vmatpush2.msra.mxu0 0.0
        %614 = vmatprep.subr.mxu0 0.0
        %615 = vmatpush2.msra.mxu0 0.0
        %616 = vmatprep.subr.mxu0 0.0
        %617 = vmatpush2.msra.mxu0 0.0
        %618 = vmatprep.subr.mxu0 0.0
        %619 = vmatpush2.msra.mxu0 0.0
        %620 = vmatprep.mubr.f32.mxu0 0.0
        %v621 = vand.u32 %v517, 4294901760
        %v622 = vsub.f32 %v517, %v621
        %v623 = vand.u32 %v622, 4294901760
        %v624 = vsub.f32 %v622, %v623
        %v625 = vand.u32 %v624, 4294901760
        %626 = vmatmul.mubr.f32.gmra.mxu0 %v625
        %v627 = vpop.f32.mrf.mxu0
        %v628 = vadd.f32 0.0, %v627
        %v629 = vpop.f32.mrf.mxu0
        %630 = vdwg.mxu0
        %631 = vmatprep.subr.mxu0 0.0
        %v632 = vand.u32 %v533, 4294901760
        %v633 = vsub.f32 %v533, %v632
        %v634 = vand.u32 %v633, 4294901760
        %v635 = vsub.f32 %v633, %v634
        %v636 = vand.u32 %v635, 4294901760
        %637 = vmatpush1.msra.mxu0 %v636
        %638 = vmatprep.subr.mxu0 0.0
        %v639 = vand.u32 %v532, 4294901760
        %v640 = vsub.f32 %v532, %v639
        %v641 = vand.u32 %v640, 4294901760
        %v642 = vsub.f32 %v640, %v641
        %v643 = vand.u32 %v642, 4294901760
        %644 = vmatpush1.msra.mxu0 %v643
        %645 = vmatprep.subr.mxu0 0.0
        %v646 = vand.u32 %v531, 4294901760
        %v647 = vsub.f32 %v531, %v646
        %v648 = vand.u32 %v647, 4294901760
        %v649 = vsub.f32 %v647, %v648
        %v650 = vand.u32 %v649, 4294901760
        %651 = vmatpush1.msra.mxu0 %v650
        %652 = vmatprep.subr.mxu0 0.0
        %v653 = vand.u32 %v530, 4294901760
        %v654 = vsub.f32 %v530, %v653
        %v655 = vand.u32 %v654, 4294901760
        %v656 = vsub.f32 %v654, %v655
        %v657 = vand.u32 %v656, 4294901760
        %658 = vmatpush1.msra.mxu0 %v657
        %659 = vmatprep.subr.mxu0 0.0
        %v660 = vand.u32 %v529, 4294901760
        %v661 = vsub.f32 %v529, %v660
        %v662 = vand.u32 %v661, 4294901760
        %v663 = vsub.f32 %v661, %v662
        %v664 = vand.u32 %v663, 4294901760
        %665 = vmatpush1.msra.mxu0 %v664
        %666 = vmatprep.subr.mxu0 0.0
        %v667 = vand.u32 %v528, 4294901760
        %v668 = vsub.f32 %v528, %v667
        %v669 = vand.u32 %v668, 4294901760
        %v670 = vsub.f32 %v668, %v669
        %v671 = vand.u32 %v670, 4294901760
        %672 = vmatpush1.msra.mxu0 %v671
        %673 = vmatprep.subr.mxu0 0.0
        %v674 = vand.u32 %v527, 4294901760
        %v675 = vsub.f32 %v527, %v674
        %v676 = vand.u32 %v675, 4294901760
        %v677 = vsub.f32 %v675, %v676
        %v678 = vand.u32 %v677, 4294901760
        %679 = vmatpush1.msra.mxu0 %v678
        %680 = vmatprep.subr.mxu0 0.0
        %v681 = vand.u32 %v526, 4294901760
        %v682 = vsub.f32 %v526, %v681
        %v683 = vand.u32 %v682, 4294901760
        %v684 = vsub.f32 %v682, %v683
        %v685 = vand.u32 %v684, 4294901760
        %686 = vmatpush1.msra.mxu0 %v685
        %687 = vmatprep.subr.mxu0 0.0
        %v688 = vand.u32 %v525, 4294901760
        %v689 = vsub.f32 %v525, %v688
        %v690 = vand.u32 %v689, 4294901760
        %v691 = vsub.f32 %v689, %v690
        %v692 = vand.u32 %v691, 4294901760
        %693 = vmatpush1.msra.mxu0 %v692
        %694 = vmatprep.subr.mxu0 0.0
        %v695 = vand.u32 %v524, 4294901760
        %v696 = vsub.f32 %v524, %v695
        %v697 = vand.u32 %v696, 4294901760
        %v698 = vsub.f32 %v696, %v697
        %v699 = vand.u32 %v698, 4294901760
        %700 = vmatpush1.msra.mxu0 %v699
        %701 = vmatprep.subr.mxu0 0.0
        %v702 = vand.u32 %v523, 4294901760
        %v703 = vsub.f32 %v523, %v702
        %v704 = vand.u32 %v703, 4294901760
        %v705 = vsub.f32 %v703, %v704
        %v706 = vand.u32 %v705, 4294901760
        %707 = vmatpush1.msra.mxu0 %v706
        %708 = vmatprep.subr.mxu0 0.0
        %v709 = vand.u32 %v522, 4294901760
        %v710 = vsub.f32 %v522, %v709
        %v711 = vand.u32 %v710, 4294901760
        %v712 = vsub.f32 %v710, %v711
        %v713 = vand.u32 %v712, 4294901760
        %714 = vmatpush1.msra.mxu0 %v713
        %715 = vmatprep.subr.mxu0 0.0
        %v716 = vand.u32 %v521, 4294901760
        %v717 = vsub.f32 %v521, %v716
        %v718 = vand.u32 %v717, 4294901760
        %v719 = vsub.f32 %v717, %v718
        %v720 = vand.u32 %v719, 4294901760
        %721 = vmatpush1.msra.mxu0 %v720
        %722 = vmatprep.subr.mxu0 0.0
        %v723 = vand.u32 %v520, 4294901760
        %v724 = vsub.f32 %v520, %v723
        %v725 = vand.u32 %v724, 4294901760
        %v726 = vsub.f32 %v724, %v725
        %v727 = vand.u32 %v726, 4294901760
        %728 = vmatpush1.msra.mxu0 %v727
        %729 = vmatprep.subr.mxu0 0.0
        %v730 = vand.u32 %v519, 4294901760
        %v731 = vsub.f32 %v519, %v730
        %v732 = vand.u32 %v731, 4294901760
        %v733 = vsub.f32 %v731, %v732
        %v734 = vand.u32 %v733, 4294901760
        %735 = vmatpush1.msra.mxu0 %v734
        %736 = vmatprep.subr.mxu0 0.0
        %v737 = vand.u32 %v518, 4294901760
        %v738 = vsub.f32 %v518, %v737
        %v739 = vand.u32 %v738, 4294901760
        %v740 = vsub.f32 %v738, %v739
        %v741 = vand.u32 %v740, 4294901760
        %742 = vmatpush1.msra.mxu0 %v741
        %743 = vmatprep.subr.mxu0 0.0
        %744 = vmatpush2.msra.mxu0 0.0
        %745 = vmatprep.subr.mxu0 0.0
        %746 = vmatpush2.msra.mxu0 0.0
        %747 = vmatprep.subr.mxu0 0.0
        %748 = vmatpush2.msra.mxu0 0.0
        %749 = vmatprep.subr.mxu0 0.0
        %750 = vmatpush2.msra.mxu0 0.0
        %751 = vmatprep.subr.mxu0 0.0
        %752 = vmatpush2.msra.mxu0 0.0
        %753 = vmatprep.subr.mxu0 0.0
        %754 = vmatpush2.msra.mxu0 0.0
        %755 = vmatprep.subr.mxu0 0.0
        %756 = vmatpush2.msra.mxu0 0.0
        %757 = vmatprep.subr.mxu0 0.0
        %758 = vmatpush2.msra.mxu0 0.0
        %759 = vmatprep.subr.mxu0 0.0
        %760 = vmatpush2.msra.mxu0 0.0
        %761 = vmatprep.subr.mxu0 0.0
        %762 = vmatpush2.msra.mxu0 0.0
        %763 = vmatprep.subr.mxu0 0.0
        %764 = vmatpush2.msra.mxu0 0.0
        %765 = vmatprep.subr.mxu0 0.0
        %766 = vmatpush2.msra.mxu0 0.0
        %767 = vmatprep.subr.mxu0 0.0
        %768 = vmatpush2.msra.mxu0 0.0
        %769 = vmatprep.subr.mxu0 0.0
        %770 = vmatpush2.msra.mxu0 0.0
        %771 = vmatprep.subr.mxu0 0.0
        %772 = vmatpush2.msra.mxu0 0.0
        %773 = vmatprep.subr.mxu0 0.0
        %774 = vmatpush2.msra.mxu0 0.0
        %775 = vmatprep.mubr.f32.mxu0 0.0
        %v776 = vand.u32 %v517, 4294901760
        %777 = vmatmul.mubr.f32.gmra.mxu0 %v776
        %v778 = vpop.f32.mrf.mxu0
        %v779 = vadd.f32 %v628, %v778
        %v780 = vpop.f32.mrf.mxu0
        %781 = vdwg.mxu0
        %782 = vmatprep.subr.mxu0 0.0
        %v783 = vand.u32 %v533, 4294901760
        %v784 = vsub.f32 %v533, %v783
        %785 = vmatpush1.msra.mxu0 %v784
        %786 = vmatprep.subr.mxu0 0.0
        %v787 = vand.u32 %v532, 4294901760
        %v788 = vsub.f32 %v532, %v787
        %789 = vmatpush1.msra.mxu0 %v788
        %790 = vmatprep.subr.mxu0 0.0
        %v791 = vand.u32 %v531, 4294901760
        %v792 = vsub.f32 %v531, %v791
        %793 = vmatpush1.msra.mxu0 %v792
        %794 = vmatprep.subr.mxu0 0.0
        %v795 = vand.u32 %v530, 4294901760
        %v796 = vsub.f32 %v530, %v795
        %797 = vmatpush1.msra.mxu0 %v796
        %798 = vmatprep.subr.mxu0 0.0
        %v799 = vand.u32 %v529, 4294901760
        %v800 = vsub.f32 %v529, %v799
        %801 = vmatpush1.msra.mxu0 %v800
        %802 = vmatprep.subr.mxu0 0.0
        %v803 = vand.u32 %v528, 4294901760
        %v804 = vsub.f32 %v528, %v803
        %805 = vmatpush1.msra.mxu0 %v804
        %806 = vmatprep.subr.mxu0 0.0
        %v807 = vand.u32 %v527, 4294901760
        %v808 = vsub.f32 %v527, %v807
        %809 = vmatpush1.msra.mxu0 %v808
        %810 = vmatprep.subr.mxu0 0.0
        %v811 = vand.u32 %v526, 4294901760
        %v812 = vsub.f32 %v526, %v811
        %813 = vmatpush1.msra.mxu0 %v812
        %814 = vmatprep.subr.mxu0 0.0
        %v815 = vand.u32 %v525, 4294901760
        %v816 = vsub.f32 %v525, %v815
        %817 = vmatpush1.msra.mxu0 %v816
        %818 = vmatprep.subr.mxu0 0.0
        %v819 = vand.u32 %v524, 4294901760
        %v820 = vsub.f32 %v524, %v819
        %821 = vmatpush1.msra.mxu0 %v820
        %822 = vmatprep.subr.mxu0 0.0
        %v823 = vand.u32 %v523, 4294901760
        %v824 = vsub.f32 %v523, %v823
        %825 = vmatpush1.msra.mxu0 %v824
        %826 = vmatprep.subr.mxu0 0.0
        %v827 = vand.u32 %v522, 4294901760
        %v828 = vsub.f32 %v522, %v827
        %829 = vmatpush1.msra.mxu0 %v828
        %830 = vmatprep.subr.mxu0 0.0
        %v831 = vand.u32 %v521, 4294901760
        %v832 = vsub.f32 %v521, %v831
        %833 = vmatpush1.msra.mxu0 %v832
        %834 = vmatprep.subr.mxu0 0.0
        %v835 = vand.u32 %v520, 4294901760
        %v836 = vsub.f32 %v520, %v835
        %837 = vmatpush1.msra.mxu0 %v836
        %838 = vmatprep.subr.mxu0 0.0
        %v839 = vand.u32 %v519, 4294901760
        %v840 = vsub.f32 %v519, %v839
        %841 = vmatpush1.msra.mxu0 %v840
        %842 = vmatprep.subr.mxu0 0.0
        %v843 = vand.u32 %v518, 4294901760
        %v844 = vsub.f32 %v518, %v843
        %845 = vmatpush1.msra.mxu0 %v844
        %846 = vmatprep.subr.mxu0 0.0
        %847 = vmatpush2.msra.mxu0 0.0
        %848 = vmatprep.subr.mxu0 0.0
        %849 = vmatpush2.msra.mxu0 0.0
        %850 = vmatprep.subr.mxu0 0.0
        %851 = vmatpush2.msra.mxu0 0.0
        %852 = vmatprep.subr.mxu0 0.0
        %853 = vmatpush2.msra.mxu0 0.0
        %854 = vmatprep.subr.mxu0 0.0
        %855 = vmatpush2.msra.mxu0 0.0
        %856 = vmatprep.subr.mxu0 0.0
        %857 = vmatpush2.msra.mxu0 0.0
        %858 = vmatprep.subr.mxu0 0.0
        %859 = vmatpush2.msra.mxu0 0.0
        %860 = vmatprep.subr.mxu0 0.0
        %861 = vmatpush2.msra.mxu0 0.0
        %862 = vmatprep.subr.mxu0 0.0
        %863 = vmatpush2.msra.mxu0 0.0
        %864 = vmatprep.subr.mxu0 0.0
        %865 = vmatpush2.msra.mxu0 0.0
        %866 = vmatprep.subr.mxu0 0.0
        %867 = vmatpush2.msra.mxu0 0.0
        %868 = vmatprep.subr.mxu0 0.0
        %869 = vmatpush2.msra.mxu0 0.0
        %870 = vmatprep.subr.mxu0 0.0
        %871 = vmatpush2.msra.mxu0 0.0
        %872 = vmatprep.subr.mxu0 0.0
        %873 = vmatpush2.msra.mxu0 0.0
        %874 = vmatprep.subr.mxu0 0.0
        %875 = vmatpush2.msra.mxu0 0.0
        %876 = vmatprep.subr.mxu0 0.0
        %877 = vmatpush2.msra.mxu0 0.0
        %878 = vmatprep.mubr.f32.mxu0 0.0
        %v879 = vand.u32 %v517, 4294901760
        %v880 = vsub.f32 %v517, %v879
        %881 = vmatmul.mubr.f32.gmra.mxu0 %v880
        %v882 = vpop.f32.mrf.mxu0
        %v883 = vadd.f32 %v779, %v882
        %v884 = vpop.f32.mrf.mxu0
        %885 = vdwg.mxu0
        %886 = vmatprep.subr.mxu0 0.0
        %v887 = vand.u32 %v533, 4294901760
        %888 = vmatpush1.msra.mxu0 %v887
        %889 = vmatprep.subr.mxu0 0.0
        %v890 = vand.u32 %v532, 4294901760
        %891 = vmatpush1.msra.mxu0 %v890
        %892 = vmatprep.subr.mxu0 0.0
        %v893 = vand.u32 %v531, 4294901760
        %894 = vmatpush1.msra.mxu0 %v893
        %895 = vmatprep.subr.mxu0 0.0
        %v896 = vand.u32 %v530, 4294901760
        %897 = vmatpush1.msra.mxu0 %v896
        %898 = vmatprep.subr.mxu0 0.0
        %v899 = vand.u32 %v529, 4294901760
        %900 = vmatpush1.msra.mxu0 %v899
        %901 = vmatprep.subr.mxu0 0.0
        %v902 = vand.u32 %v528, 4294901760
        %903 = vmatpush1.msra.mxu0 %v902
        %904 = vmatprep.subr.mxu0 0.0
        %v905 = vand.u32 %v527, 4294901760
        %906 = vmatpush1.msra.mxu0 %v905
        %907 = vmatprep.subr.mxu0 0.0
        %v908 = vand.u32 %v526, 4294901760
        %909 = vmatpush1.msra.mxu0 %v908
        %910 = vmatprep.subr.mxu0 0.0
        %v911 = vand.u32 %v525, 4294901760
        %912 = vmatpush1.msra.mxu0 %v911
        %913 = vmatprep.subr.mxu0 0.0
        %v914 = vand.u32 %v524, 4294901760
        %915 = vmatpush1.msra.mxu0 %v914
        %916 = vmatprep.subr.mxu0 0.0
        %v917 = vand.u32 %v523, 4294901760
        %918 = vmatpush1.msra.mxu0 %v917
        %919 = vmatprep.subr.mxu0 0.0
        %v920 = vand.u32 %v522, 4294901760
        %921 = vmatpush1.msra.mxu0 %v920
        %922 = vmatprep.subr.mxu0 0.0
        %v923 = vand.u32 %v521, 4294901760
        %924 = vmatpush1.msra.mxu0 %v923
        %925 = vmatprep.subr.mxu0 0.0
        %v926 = vand.u32 %v520, 4294901760
        %927 = vmatpush1.msra.mxu0 %v926
        %928 = vmatprep.subr.mxu0 0.0
        %v929 = vand.u32 %v519, 4294901760
        %930 = vmatpush1.msra.mxu0 %v929
        %931 = vmatprep.subr.mxu0 0.0
        %v932 = vand.u32 %v518, 4294901760
        %933 = vmatpush1.msra.mxu0 %v932
        %934 = vmatprep.subr.mxu0 0.0
        %935 = vmatpush2.msra.mxu0 0.0
        %936 = vmatprep.subr.mxu0 0.0
        %937 = vmatpush2.msra.mxu0 0.0
        %938 = vmatprep.subr.mxu0 0.0
        %939 = vmatpush2.msra.mxu0 0.0
        %940 = vmatprep.subr.mxu0 0.0
        %941 = vmatpush2.msra.mxu0 0.0
        %942 = vmatprep.subr.mxu0 0.0
        %943 = vmatpush2.msra.mxu0 0.0
        %944 = vmatprep.subr.mxu0 0.0
        %945 = vmatpush2.msra.mxu0 0.0
        %946 = vmatprep.subr.mxu0 0.0
        %947 = vmatpush2.msra.mxu0 0.0
        %948 = vmatprep.subr.mxu0 0.0
        %949 = vmatpush2.msra.mxu0 0.0
        %950 = vmatprep.subr.mxu0 0.0
        %951 = vmatpush2.msra.mxu0 0.0
        %952 = vmatprep.subr.mxu0 0.0
        %953 = vmatpush2.msra.mxu0 0.0
        %954 = vmatprep.subr.mxu0 0.0
        %955 = vmatpush2.msra.mxu0 0.0
        %956 = vmatprep.subr.mxu0 0.0
        %957 = vmatpush2.msra.mxu0 0.0
        %958 = vmatprep.subr.mxu0 0.0
        %959 = vmatpush2.msra.mxu0 0.0
        %960 = vmatprep.subr.mxu0 0.0
        %961 = vmatpush2.msra.mxu0 0.0
        %962 = vmatprep.subr.mxu0 0.0
        %963 = vmatpush2.msra.mxu0 0.0
        %964 = vmatprep.subr.mxu0 0.0
        %965 = vmatpush2.msra.mxu0 0.0
        %966 = vmatprep.mubr.f32.mxu0 0.0
        %v967 = vand.u32 %v517, 4294901760
        %v968 = vsub.f32 %v517, %v967
        %v969 = vand.u32 %v968, 4294901760
        %970 = vmatmul.mubr.f32.gmra.mxu0 %v969
        %v971 = vpop.f32.mrf.mxu0
        %v972 = vadd.f32 %v883, %v971
        %v973 = vpop.f32.mrf.mxu0
        %974 = vdwg.mxu0
        %975 = vmatprep.subr.mxu0 0.0
        %v976 = vand.u32 %v533, 4294901760
        %v977 = vsub.f32 %v533, %v976
        %v978 = vand.u32 %v977, 4294901760
        %979 = vmatpush1.msra.mxu0 %v978
        %980 = vmatprep.subr.mxu0 0.0
        %v981 = vand.u32 %v532, 4294901760
        %v982 = vsub.f32 %v532, %v981
        %v983 = vand.u32 %v982, 4294901760
        %984 = vmatpush1.msra.mxu0 %v983
        %985 = vmatprep.subr.mxu0 0.0
        %v986 = vand.u32 %v531, 4294901760
        %v987 = vsub.f32 %v531, %v986
        %v988 = vand.u32 %v987, 4294901760
        %989 = vmatpush1.msra.mxu0 %v988
        %990 = vmatprep.subr.mxu0 0.0
        %v991 = vand.u32 %v530, 4294901760
        %v992 = vsub.f32 %v530, %v991
        %v993 = vand.u32 %v992, 4294901760
        %994 = vmatpush1.msra.mxu0 %v993
        %995 = vmatprep.subr.mxu0 0.0
        %v996 = vand.u32 %v529, 4294901760
        %v997 = vsub.f32 %v529, %v996
        %v998 = vand.u32 %v997, 4294901760
        %999 = vmatpush1.msra.mxu0 %v998
        %1000 = vmatprep.subr.mxu0 0.0
        %v1001 = vand.u32 %v528, 4294901760
        %v1002 = vsub.f32 %v528, %v1001
        %v1003 = vand.u32 %v1002, 4294901760
        %1004 = vmatpush1.msra.mxu0 %v1003
        %1005 = vmatprep.subr.mxu0 0.0
        %v1006 = vand.u32 %v527, 4294901760
        %v1007 = vsub.f32 %v527, %v1006
        %v1008 = vand.u32 %v1007, 4294901760
        %1009 = vmatpush1.msra.mxu0 %v1008
        %1010 = vmatprep.subr.mxu0 0.0
        %v1011 = vand.u32 %v526, 4294901760
        %v1012 = vsub.f32 %v526, %v1011
        %v1013 = vand.u32 %v1012, 4294901760
        %1014 = vmatpush1.msra.mxu0 %v1013
        %1015 = vmatprep.subr.mxu0 0.0
        %v1016 = vand.u32 %v525, 4294901760
        %v1017 = vsub.f32 %v525, %v1016
        %v1018 = vand.u32 %v1017, 4294901760
        %1019 = vmatpush1.msra.mxu0 %v1018
        %1020 = vmatprep.subr.mxu0 0.0
        %v1021 = vand.u32 %v524, 4294901760
        %v1022 = vsub.f32 %v524, %v1021
        %v1023 = vand.u32 %v1022, 4294901760
        %1024 = vmatpush1.msra.mxu0 %v1023
        %1025 = vmatprep.subr.mxu0 0.0
        %v1026 = vand.u32 %v523, 4294901760
        %v1027 = vsub.f32 %v523, %v1026
        %v1028 = vand.u32 %v1027, 4294901760
        %1029 = vmatpush1.msra.mxu0 %v1028
        %1030 = vmatprep.subr.mxu0 0.0
        %v1031 = vand.u32 %v522, 4294901760
        %v1032 = vsub.f32 %v522, %v1031
        %v1033 = vand.u32 %v1032, 4294901760
        %1034 = vmatpush1.msra.mxu0 %v1033
        %1035 = vmatprep.subr.mxu0 0.0
        %v1036 = vand.u32 %v521, 4294901760
        %v1037 = vsub.f32 %v521, %v1036
        %v1038 = vand.u32 %v1037, 4294901760
        %1039 = vmatpush1.msra.mxu0 %v1038
        %1040 = vmatprep.subr.mxu0 0.0
        %v1041 = vand.u32 %v520, 4294901760
        %v1042 = vsub.f32 %v520, %v1041
        %v1043 = vand.u32 %v1042, 4294901760
        %1044 = vmatpush1.msra.mxu0 %v1043
        %1045 = vmatprep.subr.mxu0 0.0
        %v1046 = vand.u32 %v519, 4294901760
        %v1047 = vsub.f32 %v519, %v1046
        %v1048 = vand.u32 %v1047, 4294901760
        %1049 = vmatpush1.msra.mxu0 %v1048
        %1050 = vmatprep.subr.mxu0 0.0
        %v1051 = vand.u32 %v518, 4294901760
        %v1052 = vsub.f32 %v518, %v1051
        %v1053 = vand.u32 %v1052, 4294901760
        %1054 = vmatpush1.msra.mxu0 %v1053
        %1055 = vmatprep.subr.mxu0 0.0
        %1056 = vmatpush2.msra.mxu0 0.0
        %1057 = vmatprep.subr.mxu0 0.0
        %1058 = vmatpush2.msra.mxu0 0.0
        %1059 = vmatprep.subr.mxu0 0.0
        %1060 = vmatpush2.msra.mxu0 0.0
        %1061 = vmatprep.subr.mxu0 0.0
        %1062 = vmatpush2.msra.mxu0 0.0
        %1063 = vmatprep.subr.mxu0 0.0
        %1064 = vmatpush2.msra.mxu0 0.0
        %1065 = vmatprep.subr.mxu0 0.0
        %1066 = vmatpush2.msra.mxu0 0.0
        %1067 = vmatprep.subr.mxu0 0.0
        %1068 = vmatpush2.msra.mxu0 0.0
        %1069 = vmatprep.subr.mxu0 0.0
        %1070 = vmatpush2.msra.mxu0 0.0
        %1071 = vmatprep.subr.mxu0 0.0
        %1072 = vmatpush2.msra.mxu0 0.0
        %1073 = vmatprep.subr.mxu0 0.0
        %1074 = vmatpush2.msra.mxu0 0.0
        %1075 = vmatprep.subr.mxu0 0.0
        %1076 = vmatpush2.msra.mxu0 0.0
        %1077 = vmatprep.subr.mxu0 0.0
        %1078 = vmatpush2.msra.mxu0 0.0
        %1079 = vmatprep.subr.mxu0 0.0
        %1080 = vmatpush2.msra.mxu0 0.0
        %1081 = vmatprep.subr.mxu0 0.0
        %1082 = vmatpush2.msra.mxu0 0.0
        %1083 = vmatprep.subr.mxu0 0.0
        %1084 = vmatpush2.msra.mxu0 0.0
        %1085 = vmatprep.subr.mxu0 0.0
        %1086 = vmatpush2.msra.mxu0 0.0
        %1087 = vmatprep.mubr.f32.mxu0 0.0
        %v1088 = vand.u32 %v517, 4294901760
        %1089 = vmatmul.mubr.f32.gmra.mxu0 %v1088
        %v1090 = vpop.f32.mrf.mxu0
        %v1091 = vadd.f32 %v972, %v1090
        %v1092 = vpop.f32.mrf.mxu0
        %1093 = vdwg.mxu0
        %1094 = vmatprep.subr.mxu0 0.0
        %v1095 = vand.u32 %v533, 4294901760
        %1096 = vmatpush1.msra.mxu0 %v1095
        %1097 = vmatprep.subr.mxu0 0.0
        %v1098 = vand.u32 %v532, 4294901760
        %1099 = vmatpush1.msra.mxu0 %v1098
        %1100 = vmatprep.subr.mxu0 0.0
        %v1101 = vand.u32 %v531, 4294901760
        %1102 = vmatpush1.msra.mxu0 %v1101
        %1103 = vmatprep.subr.mxu0 0.0
        %v1104 = vand.u32 %v530, 4294901760
        %1105 = vmatpush1.msra.mxu0 %v1104
        %1106 = vmatprep.subr.mxu0 0.0
        %v1107 = vand.u32 %v529, 4294901760
        %1108 = vmatpush1.msra.mxu0 %v1107
        %1109 = vmatprep.subr.mxu0 0.0
        %v1110 = vand.u32 %v528, 4294901760
        %1111 = vmatpush1.msra.mxu0 %v1110
        %1112 = vmatprep.subr.mxu0 0.0
        %v1113 = vand.u32 %v527, 4294901760
        %1114 = vmatpush1.msra.mxu0 %v1113
        %1115 = vmatprep.subr.mxu0 0.0
        %v1116 = vand.u32 %v526, 4294901760
        %1117 = vmatpush1.msra.mxu0 %v1116
        %1118 = vmatprep.subr.mxu0 0.0
        %v1119 = vand.u32 %v525, 4294901760
        %1120 = vmatpush1.msra.mxu0 %v1119
        %1121 = vmatprep.subr.mxu0 0.0
        %v1122 = vand.u32 %v524, 4294901760
        %1123 = vmatpush1.msra.mxu0 %v1122
        %1124 = vmatprep.subr.mxu0 0.0
        %v1125 = vand.u32 %v523, 4294901760
        %1126 = vmatpush1.msra.mxu0 %v1125
        %1127 = vmatprep.subr.mxu0 0.0
        %v1128 = vand.u32 %v522, 4294901760
        %1129 = vmatpush1.msra.mxu0 %v1128
        %1130 = vmatprep.subr.mxu0 0.0
        %v1131 = vand.u32 %v521, 4294901760
        %1132 = vmatpush1.msra.mxu0 %v1131
        %1133 = vmatprep.subr.mxu0 0.0
        %v1134 = vand.u32 %v520, 4294901760
        %1135 = vmatpush1.msra.mxu0 %v1134
        %1136 = vmatprep.subr.mxu0 0.0
        %v1137 = vand.u32 %v519, 4294901760
        %1138 = vmatpush1.msra.mxu0 %v1137
        %1139 = vmatprep.subr.mxu0 0.0
        %v1140 = vand.u32 %v518, 4294901760
        %1141 = vmatpush1.msra.mxu0 %v1140
        %1142 = vmatprep.subr.mxu0 0.0
        %1143 = vmatpush2.msra.mxu0 0.0
        %1144 = vmatprep.subr.mxu0 0.0
        %1145 = vmatpush2.msra.mxu0 0.0
        %1146 = vmatprep.subr.mxu0 0.0
        %1147 = vmatpush2.msra.mxu0 0.0
        %1148 = vmatprep.subr.mxu0 0.0
        %1149 = vmatpush2.msra.mxu0 0.0
        %1150 = vmatprep.subr.mxu0 0.0
        %1151 = vmatpush2.msra.mxu0 0.0
        %1152 = vmatprep.subr.mxu0 0.0
        %1153 = vmatpush2.msra.mxu0 0.0
        %1154 = vmatprep.subr.mxu0 0.0
        %1155 = vmatpush2.msra.mxu0 0.0
        %1156 = vmatprep.subr.mxu0 0.0
        %1157 = vmatpush2.msra.mxu0 0.0
        %1158 = vmatprep.subr.mxu0 0.0
        %1159 = vmatpush2.msra.mxu0 0.0
        %1160 = vmatprep.subr.mxu0 0.0
        %1161 = vmatpush2.msra.mxu0 0.0
        %1162 = vmatprep.subr.mxu0 0.0
        %1163 = vmatpush2.msra.mxu0 0.0
        %1164 = vmatprep.subr.mxu0 0.0
        %1165 = vmatpush2.msra.mxu0 0.0
        %1166 = vmatprep.subr.mxu0 0.0
        %1167 = vmatpush2.msra.mxu0 0.0
        %1168 = vmatprep.subr.mxu0 0.0
        %1169 = vmatpush2.msra.mxu0 0.0
        %1170 = vmatprep.subr.mxu0 0.0
        %1171 = vmatpush2.msra.mxu0 0.0
        %1172 = vmatprep.subr.mxu0 0.0
        %1173 = vmatpush2.msra.mxu0 0.0
        %1174 = vmatprep.mubr.f32.mxu0 0.0
        %v1175 = vand.u32 %v517, 4294901760
        %1176 = vmatmul.mubr.f32.gmra.mxu0 %v1175
        %v1177 = vpop.f32.mrf.mxu0
        %v1178 = vadd.f32 %v1091, %v1177
        %v1179 = vpop.f32.mrf.mxu0
        %1180 = vdwg.mxu0
        %vm1181 = vcmask 1044480
        %v1182 = vsel %vm1181, %v1178, 0.0
        %v1183 = vrot.slane %v1182, 4
        %v1184 = vadd.f32 %v1182, %v1183
        %v1185 = vrot.slane %v1184, 2
        %v1186 = vadd.f32 %v1184, %v1185
        %v1187 = vrot.slane %v1186, 1
        %v1188 = vadd.f32 %v1186, %v1187
        %v1189 = vmul.f32 %v1188, 0.0125
        %v1190 = vsub.f32 %v517, %v1189
        %v1191 = vmul.f32 %v1190, %v1190
        %1192 = vmatprep.subr.mxu0 0.0
        %v1193 = vand.u32 %v533, 4294901760
        %1194 = vmatpush1.msra.mxu0 %v1193
        %1195 = vmatprep.subr.mxu0 0.0
        %v1196 = vand.u32 %v532, 4294901760
        %1197 = vmatpush1.msra.mxu0 %v1196
        %1198 = vmatprep.subr.mxu0 0.0
        %v1199 = vand.u32 %v531, 4294901760
        %1200 = vmatpush1.msra.mxu0 %v1199
        %1201 = vmatprep.subr.mxu0 0.0
        %v1202 = vand.u32 %v530, 4294901760
        %1203 = vmatpush1.msra.mxu0 %v1202
        %1204 = vmatprep.subr.mxu0 0.0
        %v1205 = vand.u32 %v529, 4294901760
        %1206 = vmatpush1.msra.mxu0 %v1205
        %1207 = vmatprep.subr.mxu0 0.0
        %v1208 = vand.u32 %v528, 4294901760
        %1209 = vmatpush1.msra.mxu0 %v1208
        %1210 = vmatprep.subr.mxu0 0.0
        %v1211 = vand.u32 %v527, 4294901760
        %1212 = vmatpush1.msra.mxu0 %v1211
        %1213 = vmatprep.subr.mxu0 0.0
        %v1214 = vand.u32 %v526, 4294901760
        %1215 = vmatpush1.msra.mxu0 %v1214
        %1216 = vmatprep.subr.mxu0 0.0
        %v1217 = vand.u32 %v525, 4294901760
        %1218 = vmatpush1.msra.mxu0 %v1217
        %1219 = vmatprep.subr.mxu0 0.0
        %v1220 = vand.u32 %v524, 4294901760
        %1221 = vmatpush1.msra.mxu0 %v1220
        %1222 = vmatprep.subr.mxu0 0.0
        %v1223 = vand.u32 %v523, 4294901760
        %1224 = vmatpush1.msra.mxu0 %v1223
        %1225 = vmatprep.subr.mxu0 0.0
        %v1226 = vand.u32 %v522, 4294901760
        %1227 = vmatpush1.msra.mxu0 %v1226
        %1228 = vmatprep.subr.mxu0 0.0
        %v1229 = vand.u32 %v521, 4294901760
        %1230 = vmatpush1.msra.mxu0 %v1229
        %1231 = vmatprep.subr.mxu0 0.0
        %v1232 = vand.u32 %v520, 4294901760
        %1233 = vmatpush1.msra.mxu0 %v1232
        %1234 = vmatprep.subr.mxu0 0.0
        %v1235 = vand.u32 %v519, 4294901760
        %1236 = vmatpush1.msra.mxu0 %v1235
        %1237 = vmatprep.subr.mxu0 0.0
        %v1238 = vand.u32 %v518, 4294901760
        %1239 = vmatpush1.msra.mxu0 %v1238
        %1240 = vmatprep.subr.mxu0 0.0
        %1241 = vmatpush2.msra.mxu0 0.0
        %1242 = vmatprep.subr.mxu0 0.0
        %1243 = vmatpush2.msra.mxu0 0.0
        %1244 = vmatprep.subr.mxu0 0.0
        %1245 = vmatpush2.msra.mxu0 0.0
        %1246 = vmatprep.subr.mxu0 0.0
        %1247 = vmatpush2.msra.mxu0 0.0
        %1248 = vmatprep.subr.mxu0 0.0
        %1249 = vmatpush2.msra.mxu0 0.0
        %1250 = vmatprep.subr.mxu0 0.0
        %1251 = vmatpush2.msra.mxu0 0.0
        %1252 = vmatprep.subr.mxu0 0.0
        %1253 = vmatpush2.msra.mxu0 0.0
        %1254 = vmatprep.subr.mxu0 0.0
        %1255 = vmatpush2.msra.mxu0 0.0
        %1256 = vmatprep.subr.mxu0 0.0
        %1257 = vmatpush2.msra.mxu0 0.0
        %1258 = vmatprep.subr.mxu0 0.0
        %1259 = vmatpush2.msra.mxu0 0.0
        %1260 = vmatprep.subr.mxu0 0.0
        %1261 = vmatpush2.msra.mxu0 0.0
        %1262 = vmatprep.subr.mxu0 0.0
        %1263 = vmatpush2.msra.mxu0 0.0
        %1264 = vmatprep.subr.mxu0 0.0
        %1265 = vmatpush2.msra.mxu0 0.0
        %1266 = vmatprep.subr.mxu0 0.0
        %1267 = vmatpush2.msra.mxu0 0.0
        %1268 = vmatprep.subr.mxu0 0.0
        %1269 = vmatpush2.msra.mxu0 0.0
        %1270 = vmatprep.subr.mxu0 0.0
        %1271 = vmatpush2.msra.mxu0 0.0
        %1272 = vmatprep.mubr.f32.mxu0 0.0
        %v1273 = vand.u32 %v1191, 4294901760
        %v1274 = vsub.f32 %v1191, %v1273
        %v1275 = vand.u32 %v1274, 4294901760
        %v1276 = vsub.f32 %v1274, %v1275
        %v1277 = vand.u32 %v1276, 4294901760
        %1278 = vmatmul.mubr.f32.gmra.mxu0 %v1277
        %v1279 = vpop.f32.mrf.mxu0
        %v1280 = vadd.f32 0.0, %v1279
        %v1281 = vpop.f32.mrf.mxu0
        %1282 = vdwg.mxu0
        %1283 = vmatprep.subr.mxu0 0.0
        %v1284 = vand.u32 %v533, 4294901760
        %v1285 = vsub.f32 %v533, %v1284
        %v1286 = vand.u32 %v1285, 4294901760
        %v1287 = vsub.f32 %v1285, %v1286
        %v1288 = vand.u32 %v1287, 4294901760
        %1289 = vmatpush1.msra.mxu0 %v1288
        %1290 = vmatprep.subr.mxu0 0.0
        %v1291 = vand.u32 %v532, 4294901760
        %v1292 = vsub.f32 %v532, %v1291
        %v1293 = vand.u32 %v1292, 4294901760
        %v1294 = vsub.f32 %v1292, %v1293
        %v1295 = vand.u32 %v1294, 4294901760
        %1296 = vmatpush1.msra.mxu0 %v1295
        %1297 = vmatprep.subr.mxu0 0.0
        %v1298 = vand.u32 %v531, 4294901760
        %v1299 = vsub.f32 %v531, %v1298
        %v1300 = vand.u32 %v1299, 4294901760
        %v1301 = vsub.f32 %v1299, %v1300
        %v1302 = vand.u32 %v1301, 4294901760
        %1303 = vmatpush1.msra.mxu0 %v1302
        %1304 = vmatprep.subr.mxu0 0.0
        %v1305 = vand.u32 %v530, 4294901760
        %v1306 = vsub.f32 %v530, %v1305
        %v1307 = vand.u32 %v1306, 4294901760
        %v1308 = vsub.f32 %v1306, %v1307
        %v1309 = vand.u32 %v1308, 4294901760
        %1310 = vmatpush1.msra.mxu0 %v1309
        %1311 = vmatprep.subr.mxu0 0.0
        %v1312 = vand.u32 %v529, 4294901760
        %v1313 = vsub.f32 %v529, %v1312
        %v1314 = vand.u32 %v1313, 4294901760
        %v1315 = vsub.f32 %v1313, %v1314
        %v1316 = vand.u32 %v1315, 4294901760
        %1317 = vmatpush1.msra.mxu0 %v1316
        %1318 = vmatprep.subr.mxu0 0.0
        %v1319 = vand.u32 %v528, 4294901760
        %v1320 = vsub.f32 %v528, %v1319
        %v1321 = vand.u32 %v1320, 4294901760
        %v1322 = vsub.f32 %v1320, %v1321
        %v1323 = vand.u32 %v1322, 4294901760
        %1324 = vmatpush1.msra.mxu0 %v1323
        %1325 = vmatprep.subr.mxu0 0.0
        %v1326 = vand.u32 %v527, 4294901760
        %v1327 = vsub.f32 %v527, %v1326
        %v1328 = vand.u32 %v1327, 4294901760
        %v1329 = vsub.f32 %v1327, %v1328
        %v1330 = vand.u32 %v1329, 4294901760
        %1331 = vmatpush1.msra.mxu0 %v1330
        %1332 = vmatprep.subr.mxu0 0.0
        %v1333 = vand.u32 %v526, 4294901760
        %v1334 = vsub.f32 %v526, %v1333
        %v1335 = vand.u32 %v1334, 4294901760
        %v1336 = vsub.f32 %v1334, %v1335
        %v1337 = vand.u32 %v1336, 4294901760
        %1338 = vmatpush1.msra.mxu0 %v1337
        %1339 = vmatprep.subr.mxu0 0.0
        %v1340 = vand.u32 %v525, 4294901760
        %v1341 = vsub.f32 %v525, %v1340
        %v1342 = vand.u32 %v1341, 4294901760
        %v1343 = vsub.f32 %v1341, %v1342
        %v1344 = vand.u32 %v1343, 4294901760
        %1345 = vmatpush1.msra.mxu0 %v1344
        %1346 = vmatprep.subr.mxu0 0.0
        %v1347 = vand.u32 %v524, 4294901760
        %v1348 = vsub.f32 %v524, %v1347
        %v1349 = vand.u32 %v1348, 4294901760
        %v1350 = vsub.f32 %v1348, %v1349
        %v1351 = vand.u32 %v1350, 4294901760
        %1352 = vmatpush1.msra.mxu0 %v1351
        %1353 = vmatprep.subr.mxu0 0.0
        %v1354 = vand.u32 %v523, 4294901760
        %v1355 = vsub.f32 %v523, %v1354
        %v1356 = vand.u32 %v1355, 4294901760
        %v1357 = vsub.f32 %v1355, %v1356
        %v1358 = vand.u32 %v1357, 4294901760
        %1359 = vmatpush1.msra.mxu0 %v1358
        %1360 = vmatprep.subr.mxu0 0.0
        %v1361 = vand.u32 %v522, 4294901760
        %v1362 = vsub.f32 %v522, %v1361
        %v1363 = vand.u32 %v1362, 4294901760
        %v1364 = vsub.f32 %v1362, %v1363
        %v1365 = vand.u32 %v1364, 4294901760
        %1366 = vmatpush1.msra.mxu0 %v1365
        %1367 = vmatprep.subr.mxu0 0.0
        %v1368 = vand.u32 %v521, 4294901760
        %v1369 = vsub.f32 %v521, %v1368
        %v1370 = vand.u32 %v1369, 4294901760
        %v1371 = vsub.f32 %v1369, %v1370
        %v1372 = vand.u32 %v1371, 4294901760
        %1373 = vmatpush1.msra.mxu0 %v1372
        %1374 = vmatprep.subr.mxu0 0.0
        %v1375 = vand.u32 %v520, 4294901760
        %v1376 = vsub.f32 %v520, %v1375
        %v1377 = vand.u32 %v1376, 4294901760
        %v1378 = vsub.f32 %v1376, %v1377
        %v1379 = vand.u32 %v1378, 4294901760
        %1380 = vmatpush1.msra.mxu0 %v1379
        %1381 = vmatprep.subr.mxu0 0.0
        %v1382 = vand.u32 %v519, 4294901760
        %v1383 = vsub.f32 %v519, %v1382
        %v1384 = vand.u32 %v1383, 4294901760
        %v1385 = vsub.f32 %v1383, %v1384
        %v1386 = vand.u32 %v1385, 4294901760
        %1387 = vmatpush1.msra.mxu0 %v1386
        %1388 = vmatprep.subr.mxu0 0.0
        %v1389 = vand.u32 %v518, 4294901760
        %v1390 = vsub.f32 %v518, %v1389
        %v1391 = vand.u32 %v1390, 4294901760
        %v1392 = vsub.f32 %v1390, %v1391
        %v1393 = vand.u32 %v1392, 4294901760
        %1394 = vmatpush1.msra.mxu0 %v1393
        %1395 = vmatprep.subr.mxu0 0.0
        %1396 = vmatpush2.msra.mxu0 0.0
        %1397 = vmatprep.subr.mxu0 0.0
        %1398 = vmatpush2.msra.mxu0 0.0
        %1399 = vmatprep.subr.mxu0 0.0
        %1400 = vmatpush2.msra.mxu0 0.0
        %1401 = vmatprep.subr.mxu0 0.0
        %1402 = vmatpush2.msra.mxu0 0.0
        %1403 = vmatprep.subr.mxu0 0.0
        %1404 = vmatpush2.msra.mxu0 0.0
        %1405 = vmatprep.subr.mxu0 0.0
        %1406 = vmatpush2.msra.mxu0 0.0
        %1407 = vmatprep.subr.mxu0 0.0
        %1408 = vmatpush2.msra.mxu0 0.0
        %1409 = vmatprep.subr.mxu0 0.0
        %1410 = vmatpush2.msra.mxu0 0.0
        %1411 = vmatprep.subr.mxu0 0.0
        %1412 = vmatpush2.msra.mxu0 0.0
        %1413 = vmatprep.subr.mxu0 0.0
        %1414 = vmatpush2.msra.mxu0 0.0
        %1415 = vmatprep.subr.mxu0 0.0
        %1416 = vmatpush2.msra.mxu0 0.0
        %1417 = vmatprep.subr.mxu0 0.0
        %1418 = vmatpush2.msra.mxu0 0.0
        %1419 = vmatprep.subr.mxu0 0.0
        %1420 = vmatpush2.msra.mxu0 0.0
        %1421 = vmatprep.subr.mxu0 0.0
        %1422 = vmatpush2.msra.mxu0 0.0
        %1423 = vmatprep.subr.mxu0 0.0
        %1424 = vmatpush2.msra.mxu0 0.0
        %1425 = vmatprep.subr.mxu0 0.0
        %1426 = vmatpush2.msra.mxu0 0.0
        %1427 = vmatprep.mubr.f32.mxu0 0.0
        %v1428 = vand.u32 %v1191, 4294901760
        %1429 = vmatmul.mubr.f32.gmra.mxu0 %v1428
        %v1430 = vpop.f32.mrf.mxu0
        %v1431 = vadd.f32 %v1280, %v1430
        %v1432 = vpop.f32.mrf.mxu0
        %1433 = vdwg.mxu0
        %1434 = vmatprep.subr.mxu0 0.0
        %v1435 = vand.u32 %v533, 4294901760
        %v1436 = vsub.f32 %v533, %v1435
        %1437 = vmatpush1.msra.mxu0 %v1436
        %1438 = vmatprep.subr.mxu0 0.0
        %v1439 = vand.u32 %v532, 4294901760
        %v1440 = vsub.f32 %v532, %v1439
        %1441 = vmatpush1.msra.mxu0 %v1440
        %1442 = vmatprep.subr.mxu0 0.0
        %v1443 = vand.u32 %v531, 4294901760
        %v1444 = vsub.f32 %v531, %v1443
        %1445 = vmatpush1.msra.mxu0 %v1444
        %1446 = vmatprep.subr.mxu0 0.0
        %v1447 = vand.u32 %v530, 4294901760
        %v1448 = vsub.f32 %v530, %v1447
        %1449 = vmatpush1.msra.mxu0 %v1448
        %1450 = vmatprep.subr.mxu0 0.0
        %v1451 = vand.u32 %v529, 4294901760
        %v1452 = vsub.f32 %v529, %v1451
        %1453 = vmatpush1.msra.mxu0 %v1452
        %1454 = vmatprep.subr.mxu0 0.0
        %v1455 = vand.u32 %v528, 4294901760
        %v1456 = vsub.f32 %v528, %v1455
        %1457 = vmatpush1.msra.mxu0 %v1456
        %1458 = vmatprep.subr.mxu0 0.0
        %v1459 = vand.u32 %v527, 4294901760
        %v1460 = vsub.f32 %v527, %v1459
        %1461 = vmatpush1.msra.mxu0 %v1460
        %1462 = vmatprep.subr.mxu0 0.0
        %v1463 = vand.u32 %v526, 4294901760
        %v1464 = vsub.f32 %v526, %v1463
        %1465 = vmatpush1.msra.mxu0 %v1464
        %1466 = vmatprep.subr.mxu0 0.0
        %v1467 = vand.u32 %v525, 4294901760
        %v1468 = vsub.f32 %v525, %v1467
        %1469 = vmatpush1.msra.mxu0 %v1468
        %1470 = vmatprep.subr.mxu0 0.0
        %v1471 = vand.u32 %v524, 4294901760
        %v1472 = vsub.f32 %v524, %v1471
        %1473 = vmatpush1.msra.mxu0 %v1472
        %1474 = vmatprep.subr.mxu0 0.0
        %v1475 = vand.u32 %v523, 4294901760
        %v1476 = vsub.f32 %v523, %v1475
        %1477 = vmatpush1.msra.mxu0 %v1476
        %1478 = vmatprep.subr.mxu0 0.0
        %v1479 = vand.u32 %v522, 4294901760
        %v1480 = vsub.f32 %v522, %v1479
        %1481 = vmatpush1.msra.mxu0 %v1480
        %1482 = vmatprep.subr.mxu0 0.0
        %v1483 = vand.u32 %v521, 4294901760
        %v1484 = vsub.f32 %v521, %v1483
        %1485 = vmatpush1.msra.mxu0 %v1484
        %1486 = vmatprep.subr.mxu0 0.0
        %v1487 = vand.u32 %v520, 4294901760
        %v1488 = vsub.f32 %v520, %v1487
        %1489 = vmatpush1.msra.mxu0 %v1488
        %1490 = vmatprep.subr.mxu0 0.0
        %v1491 = vand.u32 %v519, 4294901760
        %v1492 = vsub.f32 %v519, %v1491
        %1493 = vmatpush1.msra.mxu0 %v1492
        %1494 = vmatprep.subr.mxu0 0.0
        %v1495 = vand.u32 %v518, 4294901760
        %v1496 = vsub.f32 %v518, %v1495
        %1497 = vmatpush1.msra.mxu0 %v1496
        %1498 = vmatprep.subr.mxu0 0.0
        %1499 = vmatpush2.msra.mxu0 0.0
        %1500 = vmatprep.subr.mxu0 0.0
        %1501 = vmatpush2.msra.mxu0 0.0
        %1502 = vmatprep.subr.mxu0 0.0
        %1503 = vmatpush2.msra.mxu0 0.0
        %1504 = vmatprep.subr.mxu0 0.0
        %1505 = vmatpush2.msra.mxu0 0.0
        %1506 = vmatprep.subr.mxu0 0.0
        %1507 = vmatpush2.msra.mxu0 0.0
        %1508 = vmatprep.subr.mxu0 0.0
        %1509 = vmatpush2.msra.mxu0 0.0
        %1510 = vmatprep.subr.mxu0 0.0
        %1511 = vmatpush2.msra.mxu0 0.0
        %1512 = vmatprep.subr.mxu0 0.0
        %1513 = vmatpush2.msra.mxu0 0.0
        %1514 = vmatprep.subr.mxu0 0.0
        %1515 = vmatpush2.msra.mxu0 0.0
        %1516 = vmatprep.subr.mxu0 0.0
        %1517 = vmatpush2.msra.mxu0 0.0
        %1518 = vmatprep.subr.mxu0 0.0
        %1519 = vmatpush2.msra.mxu0 0.0
        %1520 = vmatprep.subr.mxu0 0.0
        %1521 = vmatpush2.msra.mxu0 0.0
        %1522 = vmatprep.subr.mxu0 0.0
        %1523 = vmatpush2.msra.mxu0 0.0
        %1524 = vmatprep.subr.mxu0 0.0
        %1525 = vmatpush2.msra.mxu0 0.0
        %1526 = vmatprep.subr.mxu0 0.0
        %1527 = vmatpush2.msra.mxu0 0.0
        %1528 = vmatprep.subr.mxu0 0.0
        %1529 = vmatpush2.msra.mxu0 0.0
        %1530 = vmatprep.mubr.f32.mxu0 0.0
        %v1531 = vand.u32 %v1191, 4294901760
        %v1532 = vsub.f32 %v1191, %v1531
        %1533 = vmatmul.mubr.f32.gmra.mxu0 %v1532
        %v1534 = vpop.f32.mrf.mxu0
        %v1535 = vadd.f32 %v1431, %v1534
        %v1536 = vpop.f32.mrf.mxu0
        %1537 = vdwg.mxu0
        %1538 = vmatprep.subr.mxu0 0.0
        %v1539 = vand.u32 %v533, 4294901760
        %1540 = vmatpush1.msra.mxu0 %v1539
        %1541 = vmatprep.subr.mxu0 0.0
        %v1542 = vand.u32 %v532, 4294901760
        %1543 = vmatpush1.msra.mxu0 %v1542
        %1544 = vmatprep.subr.mxu0 0.0
        %v1545 = vand.u32 %v531, 4294901760
        %1546 = vmatpush1.msra.mxu0 %v1545
        %1547 = vmatprep.subr.mxu0 0.0
        %v1548 = vand.u32 %v530, 4294901760
        %1549 = vmatpush1.msra.mxu0 %v1548
        %1550 = vmatprep.subr.mxu0 0.0
        %v1551 = vand.u32 %v529, 4294901760
        %1552 = vmatpush1.msra.mxu0 %v1551
        %1553 = vmatprep.subr.mxu0 0.0
        %v1554 = vand.u32 %v528, 4294901760
        %1555 = vmatpush1.msra.mxu0 %v1554
        %1556 = vmatprep.subr.mxu0 0.0
        %v1557 = vand.u32 %v527, 4294901760
        %1558 = vmatpush1.msra.mxu0 %v1557
        %1559 = vmatprep.subr.mxu0 0.0
        %v1560 = vand.u32 %v526, 4294901760
        %1561 = vmatpush1.msra.mxu0 %v1560
        %1562 = vmatprep.subr.mxu0 0.0
        %v1563 = vand.u32 %v525, 4294901760
        %1564 = vmatpush1.msra.mxu0 %v1563
        %1565 = vmatprep.subr.mxu0 0.0
        %v1566 = vand.u32 %v524, 4294901760
        %1567 = vmatpush1.msra.mxu0 %v1566
        %1568 = vmatprep.subr.mxu0 0.0
        %v1569 = vand.u32 %v523, 4294901760
        %1570 = vmatpush1.msra.mxu0 %v1569
        %1571 = vmatprep.subr.mxu0 0.0
        %v1572 = vand.u32 %v522, 4294901760
        %1573 = vmatpush1.msra.mxu0 %v1572
        %1574 = vmatprep.subr.mxu0 0.0
        %v1575 = vand.u32 %v521, 4294901760
        %1576 = vmatpush1.msra.mxu0 %v1575
        %1577 = vmatprep.subr.mxu0 0.0
        %v1578 = vand.u32 %v520, 4294901760
        %1579 = vmatpush1.msra.mxu0 %v1578
        %1580 = vmatprep.subr.mxu0 0.0
        %v1581 = vand.u32 %v519, 4294901760
        %1582 = vmatpush1.msra.mxu0 %v1581
        %1583 = vmatprep.subr.mxu0 0.0
        %v1584 = vand.u32 %v518, 4294901760
        %1585 = vmatpush1.msra.mxu0 %v1584
        %1586 = vmatprep.subr.mxu0 0.0
        %1587 = vmatpush2.msra.mxu0 0.0
        %1588 = vmatprep.subr.mxu0 0.0
        %1589 = vmatpush2.msra.mxu0 0.0
        %1590 = vmatprep.subr.mxu0 0.0
        %1591 = vmatpush2.msra.mxu0 0.0
        %1592 = vmatprep.subr.mxu0 0.0
        %1593 = vmatpush2.msra.mxu0 0.0
        %1594 = vmatprep.subr.mxu0 0.0
        %1595 = vmatpush2.msra.mxu0 0.0
        %1596 = vmatprep.subr.mxu0 0.0
        %1597 = vmatpush2.msra.mxu0 0.0
        %1598 = vmatprep.subr.mxu0 0.0
        %1599 = vmatpush2.msra.mxu0 0.0
        %1600 = vmatprep.subr.mxu0 0.0
        %1601 = vmatpush2.msra.mxu0 0.0
        %1602 = vmatprep.subr.mxu0 0.0
        %1603 = vmatpush2.msra.mxu0 0.0
        %1604 = vmatprep.subr.mxu0 0.0
        %1605 = vmatpush2.msra.mxu0 0.0
        %1606 = vmatprep.subr.mxu0 0.0
        %1607 = vmatpush2.msra.mxu0 0.0
        %1608 = vmatprep.subr.mxu0 0.0
        %1609 = vmatpush2.msra.mxu0 0.0
        %1610 = vmatprep.subr.mxu0 0.0
        %1611 = vmatpush2.msra.mxu0 0.0
        %1612 = vmatprep.subr.mxu0 0.0
        %1613 = vmatpush2.msra.mxu0 0.0
        %1614 = vmatprep.subr.mxu0 0.0
        %1615 = vmatpush2.msra.mxu0 0.0
        %1616 = vmatprep.subr.mxu0 0.0
        %1617 = vmatpush2.msra.mxu0 0.0
        %1618 = vmatprep.mubr.f32.mxu0 0.0
        %v1619 = vand.u32 %v1191, 4294901760
        %v1620 = vsub.f32 %v1191, %v1619
        %v1621 = vand.u32 %v1620, 4294901760
        %1622 = vmatmul.mubr.f32.gmra.mxu0 %v1621
        %v1623 = vpop.f32.mrf.mxu0
        %v1624 = vadd.f32 %v1535, %v1623
        %v1625 = vpop.f32.mrf.mxu0
        %1626 = vdwg.mxu0
        %1627 = vmatprep.subr.mxu0 0.0
        %v1628 = vand.u32 %v533, 4294901760
        %v1629 = vsub.f32 %v533, %v1628
        %v1630 = vand.u32 %v1629, 4294901760
        %1631 = vmatpush1.msra.mxu0 %v1630
        %1632 = vmatprep.subr.mxu0 0.0
        %v1633 = vand.u32 %v532, 4294901760
        %v1634 = vsub.f32 %v532, %v1633
        %v1635 = vand.u32 %v1634, 4294901760
        %1636 = vmatpush1.msra.mxu0 %v1635
        %1637 = vmatprep.subr.mxu0 0.0
        %v1638 = vand.u32 %v531, 4294901760
        %v1639 = vsub.f32 %v531, %v1638
        %v1640 = vand.u32 %v1639, 4294901760
        %1641 = vmatpush1.msra.mxu0 %v1640
        %1642 = vmatprep.subr.mxu0 0.0
        %v1643 = vand.u32 %v530, 4294901760
        %v1644 = vsub.f32 %v530, %v1643
        %v1645 = vand.u32 %v1644, 4294901760
        %1646 = vmatpush1.msra.mxu0 %v1645
        %1647 = vmatprep.subr.mxu0 0.0
        %v1648 = vand.u32 %v529, 4294901760
        %v1649 = vsub.f32 %v529, %v1648
        %v1650 = vand.u32 %v1649, 4294901760
        %1651 = vmatpush1.msra.mxu0 %v1650
        %1652 = vmatprep.subr.mxu0 0.0
        %v1653 = vand.u32 %v528, 4294901760
        %v1654 = vsub.f32 %v528, %v1653
        %v1655 = vand.u32 %v1654, 4294901760
        %1656 = vmatpush1.msra.mxu0 %v1655
        %1657 = vmatprep.subr.mxu0 0.0
        %v1658 = vand.u32 %v527, 4294901760
        %v1659 = vsub.f32 %v527, %v1658
        %v1660 = vand.u32 %v1659, 4294901760
        %1661 = vmatpush1.msra.mxu0 %v1660
        %1662 = vmatprep.subr.mxu0 0.0
        %v1663 = vand.u32 %v526, 4294901760
        %v1664 = vsub.f32 %v526, %v1663
        %v1665 = vand.u32 %v1664, 4294901760
        %1666 = vmatpush1.msra.mxu0 %v1665
        %1667 = vmatprep.subr.mxu0 0.0
        %v1668 = vand.u32 %v525, 4294901760
        %v1669 = vsub.f32 %v525, %v1668
        %v1670 = vand.u32 %v1669, 4294901760
        %1671 = vmatpush1.msra.mxu0 %v1670
        %1672 = vmatprep.subr.mxu0 0.0
        %v1673 = vand.u32 %v524, 4294901760
        %v1674 = vsub.f32 %v524, %v1673
        %v1675 = vand.u32 %v1674, 4294901760
        %1676 = vmatpush1.msra.mxu0 %v1675
        %1677 = vmatprep.subr.mxu0 0.0
        %v1678 = vand.u32 %v523, 4294901760
        %v1679 = vsub.f32 %v523, %v1678
        %v1680 = vand.u32 %v1679, 4294901760
        %1681 = vmatpush1.msra.mxu0 %v1680
        %1682 = vmatprep.subr.mxu0 0.0
        %v1683 = vand.u32 %v522, 4294901760
        %v1684 = vsub.f32 %v522, %v1683
        %v1685 = vand.u32 %v1684, 4294901760
        %1686 = vmatpush1.msra.mxu0 %v1685
        %1687 = vmatprep.subr.mxu0 0.0
        %v1688 = vand.u32 %v521, 4294901760
        %v1689 = vsub.f32 %v521, %v1688
        %v1690 = vand.u32 %v1689, 4294901760
        %1691 = vmatpush1.msra.mxu0 %v1690
        %1692 = vmatprep.subr.mxu0 0.0
        %v1693 = vand.u32 %v520, 4294901760
        %v1694 = vsub.f32 %v520, %v1693
        %v1695 = vand.u32 %v1694, 4294901760
        %1696 = vmatpush1.msra.mxu0 %v1695
        %1697 = vmatprep.subr.mxu0 0.0
        %v1698 = vand.u32 %v519, 4294901760
        %v1699 = vsub.f32 %v519, %v1698
        %v1700 = vand.u32 %v1699, 4294901760
        %1701 = vmatpush1.msra.mxu0 %v1700
        %1702 = vmatprep.subr.mxu0 0.0
        %v1703 = vand.u32 %v518, 4294901760
        %v1704 = vsub.f32 %v518, %v1703
        %v1705 = vand.u32 %v1704, 4294901760
        %1706 = vmatpush1.msra.mxu0 %v1705
        %1707 = vmatprep.subr.mxu0 0.0
        %1708 = vmatpush2.msra.mxu0 0.0
        %1709 = vmatprep.subr.mxu0 0.0
        %1710 = vmatpush2.msra.mxu0 0.0
        %1711 = vmatprep.subr.mxu0 0.0
        %1712 = vmatpush2.msra.mxu0 0.0
        %1713 = vmatprep.subr.mxu0 0.0
        %1714 = vmatpush2.msra.mxu0 0.0
        %1715 = vmatprep.subr.mxu0 0.0
        %1716 = vmatpush2.msra.mxu0 0.0
        %1717 = vmatprep.subr.mxu0 0.0
        %1718 = vmatpush2.msra.mxu0 0.0
        %1719 = vmatprep.subr.mxu0 0.0
        %1720 = vmatpush2.msra.mxu0 0.0
        %1721 = vmatprep.subr.mxu0 0.0
        %1722 = vmatpush2.msra.mxu0 0.0
        %1723 = vmatprep.subr.mxu0 0.0
        %1724 = vmatpush2.msra.mxu0 0.0
        %1725 = vmatprep.subr.mxu0 0.0
        %1726 = vmatpush2.msra.mxu0 0.0
        %1727 = vmatprep.subr.mxu0 0.0
        %1728 = vmatpush2.msra.mxu0 0.0
        %1729 = vmatprep.subr.mxu0 0.0
        %1730 = vmatpush2.msra.mxu0 0.0
        %1731 = vmatprep.subr.mxu0 0.0
        %1732 = vmatpush2.msra.mxu0 0.0
        %1733 = vmatprep.subr.mxu0 0.0
        %1734 = vmatpush2.msra.mxu0 0.0
        %1735 = vmatprep.subr.mxu0 0.0
        %1736 = vmatpush2.msra.mxu0 0.0
        %1737 = vmatprep.subr.mxu0 0.0
        %1738 = vmatpush2.msra.mxu0 0.0
        %1739 = vmatprep.mubr.f32.mxu0 0.0
        %v1740 = vand.u32 %v1191, 4294901760
        %1741 = vmatmul.mubr.f32.gmra.mxu0 %v1740
        %v1742 = vpop.f32.mrf.mxu0
        %v1743 = vadd.f32 %v1624, %v1742
        %v1744 = vpop.f32.mrf.mxu0
        %1745 = vdwg.mxu0
        %1746 = vmatprep.subr.mxu0 0.0
        %v1747 = vand.u32 %v533, 4294901760
        %1748 = vmatpush1.msra.mxu0 %v1747
        %1749 = vmatprep.subr.mxu0 0.0
        %v1750 = vand.u32 %v532, 4294901760
        %1751 = vmatpush1.msra.mxu0 %v1750
        %1752 = vmatprep.subr.mxu0 0.0
        %v1753 = vand.u32 %v531, 4294901760
        %1754 = vmatpush1.msra.mxu0 %v1753
        %1755 = vmatprep.subr.mxu0 0.0
        %v1756 = vand.u32 %v530, 4294901760
        %1757 = vmatpush1.msra.mxu0 %v1756
        %1758 = vmatprep.subr.mxu0 0.0
        %v1759 = vand.u32 %v529, 4294901760
        %1760 = vmatpush1.msra.mxu0 %v1759
        %1761 = vmatprep.subr.mxu0 0.0
        %v1762 = vand.u32 %v528, 4294901760
        %1763 = vmatpush1.msra.mxu0 %v1762
        %1764 = vmatprep.subr.mxu0 0.0
        %v1765 = vand.u32 %v527, 4294901760
        %1766 = vmatpush1.msra.mxu0 %v1765
        %1767 = vmatprep.subr.mxu0 0.0
        %v1768 = vand.u32 %v526, 4294901760
        %1769 = vmatpush1.msra.mxu0 %v1768
        %1770 = vmatprep.subr.mxu0 0.0
        %v1771 = vand.u32 %v525, 4294901760
        %1772 = vmatpush1.msra.mxu0 %v1771
        %1773 = vmatprep.subr.mxu0 0.0
        %v1774 = vand.u32 %v524, 4294901760
        %1775 = vmatpush1.msra.mxu0 %v1774
        %1776 = vmatprep.subr.mxu0 0.0
        %v1777 = vand.u32 %v523, 4294901760
        %1778 = vmatpush1.msra.mxu0 %v1777
        %1779 = vmatprep.subr.mxu0 0.0
        %v1780 = vand.u32 %v522, 4294901760
        %1781 = vmatpush1.msra.mxu0 %v1780
        %1782 = vmatprep.subr.mxu0 0.0
        %v1783 = vand.u32 %v521, 4294901760
        %1784 = vmatpush1.msra.mxu0 %v1783
        %1785 = vmatprep.subr.mxu0 0.0
        %v1786 = vand.u32 %v520, 4294901760
        %1787 = vmatpush1.msra.mxu0 %v1786
        %1788 = vmatprep.subr.mxu0 0.0
        %v1789 = vand.u32 %v519, 4294901760
        %1790 = vmatpush1.msra.mxu0 %v1789
        %1791 = vmatprep.subr.mxu0 0.0
        %v1792 = vand.u32 %v518, 4294901760
        %1793 = vmatpush1.msra.mxu0 %v1792
        %1794 = vmatprep.subr.mxu0 0.0
        %1795 = vmatpush2.msra.mxu0 0.0
        %1796 = vmatprep.subr.mxu0 0.0
        %1797 = vmatpush2.msra.mxu0 0.0
        %1798 = vmatprep.subr.mxu0 0.0
        %1799 = vmatpush2.msra.mxu0 0.0
        %1800 = vmatprep.subr.mxu0 0.0
        %1801 = vmatpush2.msra.mxu0 0.0
        %1802 = vmatprep.subr.mxu0 0.0
        %1803 = vmatpush2.msra.mxu0 0.0
        %1804 = vmatprep.subr.mxu0 0.0
        %1805 = vmatpush2.msra.mxu0 0.0
        %1806 = vmatprep.subr.mxu0 0.0
        %1807 = vmatpush2.msra.mxu0 0.0
        %1808 = vmatprep.subr.mxu0 0.0
        %1809 = vmatpush2.msra.mxu0 0.0
        %1810 = vmatprep.subr.mxu0 0.0
        %1811 = vmatpush2.msra.mxu0 0.0
        %1812 = vmatprep.subr.mxu0 0.0
        %1813 = vmatpush2.msra.mxu0 0.0
        %1814 = vmatprep.subr.mxu0 0.0
        %1815 = vmatpush2.msra.mxu0 0.0
        %1816 = vmatprep.subr.mxu0 0.0
        %1817 = vmatpush2.msra.mxu0 0.0
        %1818 = vmatprep.subr.mxu0 0.0
        %1819 = vmatpush2.msra.mxu0 0.0
        %1820 = vmatprep.subr.mxu0 0.0
        %1821 = vmatpush2.msra.mxu0 0.0
        %1822 = vmatprep.subr.mxu0 0.0
        %1823 = vmatpush2.msra.mxu0 0.0
        %1824 = vmatprep.subr.mxu0 0.0
        %1825 = vmatpush2.msra.mxu0 0.0
        %1826 = vmatprep.mubr.f32.mxu0 0.0
        %v1827 = vand.u32 %v1191, 4294901760
        %1828 = vmatmul.mubr.f32.gmra.mxu0 %v1827
        %v1829 = vpop.f32.mrf.mxu0
        %v1830 = vadd.f32 %v1743, %v1829
        %v1831 = vpop.f32.mrf.mxu0
        %1832 = vdwg.mxu0
        %v1833 = vsel %vm1181, %v1830, 0.0
        %v1834 = vrot.slane %v1833, 4
        %v1835 = vadd.f32 %v1833, %v1834
        %v1836 = vrot.slane %v1835, 2
        %v1837 = vadd.f32 %v1835, %v1836
        %v1838 = vrot.slane %v1837, 1
        %v1839 = vadd.f32 %v1837, %v1838
        %v1840 = vmul.f32 %v1839, 0.0125
        %v1841 = vadd.f32 %v1840, 1e-05
        %v1842 = vrsqrt.pop %v1841
        %v1843 = vmul.f32 %v1190, %v1842
        %v1844 = vld [vmem:[%s4] sm:$0x1f]
        %v1845 = vmul.f32 %v1843, %v1844
        %v1846 = vld [vmem:[%s5] sm:$0x1f]
        %v1847 = vadd.f32 %v1845, %v1846
        %v1848 = vsel %vm1181, %v1847, 0.0
        %v1849 = vadd.s32 %v534, 4294967294
        %vm1850 = vcmp.ge.s32.totalorder %v1849, 0
        %vm1851 = vcmp.lt.s32.totalorder %v1849, 16
        %vm1852 = vmand %vm1850, %vm1851
        %v1853 = vadd.s32 %v534, 4294967295
        %vm1854 = vcmp.ge.s32.totalorder %v1853, 0
        %vm1855 = vcmp.lt.s32.totalorder %v1853, 16
        %vm1856 = vmand %vm1854, %vm1855
        %vm1857 = vcmp.ge.s32.totalorder %v534, 0
        %vm1858 = vcmp.lt.s32.totalorder %v534, 16
        %vm1859 = vmand %vm1857, %vm1858
        %v1860 = vadd.s32 %v534, 1
        %vm1861 = vcmp.ge.s32.totalorder %v1860, 0
        %vm1862 = vcmp.lt.s32.totalorder %v1860, 16
        %vm1863 = vmand %vm1861, %vm1862
        %v1864 = vadd.s32 %v534, 2
        %vm1865 = vcmp.ge.s32.totalorder %v1864, 0
        %vm1866 = vcmp.lt.s32.totalorder %v1864, 16
        %vm1867 = vmand %vm1865, %vm1866
        %1869 = vrot.lane.b32.xlu0 %v1848, 2
        %v1870 = vpop.permute.xlu0 %1869
        %v1872 = vsel %vm1852, 1, 0
        %v1873 = vlaneseq
        %v1874 = vshrl.u32 %v1873, 7
        %v1875 = vsub.s32 0, %v1874
        %v1876 = vrot.slane %v1872, %v1875
        %vm1877 = vcmp.eq.s32.totalorder %v1876, 1
        %v1878 = vsel %vm1877, %v1870, 0.0
        %v1880 = vrot.slane %v1878, 6
        %vm1882 = vcmask 1041408
        %v1883 = vsel %vm1882, %v1880, %v1880
        %1884 = vst [vmem:[#allocation2] sm:$0xff] %v1883
        %v1885 = vrot.slane %v1878, 7
        %vm1887 = vcmask 1040384
        %v1888 = vsel %vm1887, %v1885, %v1885
        %1889 = vst [vmem:[#allocation2 + $0x28] sm:$0xff] %v1888
        %1890 = vst [vmem:[#allocation2 + $0x50] sm:$0xff] %v1878
        %v1891 = vrot.slane %v1878, 1
        %vm1893 = vcmask 1046528
        %v1894 = vsel %vm1893, %v1891, %v1891
        %1895 = vst [vmem:[#allocation2 + $0x78] sm:$0xff] %v1894
        %v1896 = vrot.slane %v1878, 2
        %vm1898 = vcmask 1045504
        %v1899 = vsel %vm1898, %v1896, %v1896
        %1900 = vst [vmem:[#allocation2 + $0xa0] sm:$0xff] %v1899
        %1901 = vrot.lane.b32.xlu0 %v1848, 1
        %v1902 = vpop.permute.xlu0 %1901
        %v1904 = vsel %vm1856, 1, 0
        %v1905 = vlaneseq
        %v1906 = vshrl.u32 %v1905, 7
        %v1907 = vsub.s32 0, %v1906
        %v1908 = vrot.slane %v1904, %v1907
        %vm1909 = vcmp.eq.s32.totalorder %v1908, 1
        %v1910 = vsel %vm1909, %v1902, 0.0
        %v1912 = vrot.slane %v1910, 6
        %v1914 = vsel %vm1882, %v1912, %v1912
        %1915 = vst [vmem:[#allocation2 + $0x8] sm:$0xff] %v1914
        %v1916 = vrot.slane %v1910, 7
        %v1918 = vsel %vm1887, %v1916, %v1916
        %1919 = vst [vmem:[#allocation2 + $0x30] sm:$0xff] %v1918
        %1920 = vst [vmem:[#allocation2 + $0x58] sm:$0xff] %v1910
        %v1921 = vrot.slane %v1910, 1
        %v1923 = vsel %vm1893, %v1921, %v1921
        %1924 = vst [vmem:[#allocation2 + $0x80] sm:$0xff] %v1923
        %v1925 = vrot.slane %v1910, 2
        %v1927 = vsel %vm1898, %v1925, %v1925
        %1928 = vst [vmem:[#allocation2 + $0xa8] sm:$0xff] %v1927
        %v1929 = vsel %vm1859, 1, 0
        %v1930 = vlaneseq
        %v1931 = vshrl.u32 %v1930, 7
        %v1932 = vsub.s32 0, %v1931
        %v1933 = vrot.slane %v1929, %v1932
        %vm1934 = vcmp.eq.s32.totalorder %v1933, 1
        %v1935 = vsel %vm1934, %v1848, 0.0
        %v1937 = vrot.slane %v1935, 6
        %v1939 = vsel %vm1882, %v1937, %v1937
        %1940 = vst [vmem:[#allocation2 + $0x10] sm:$0xff] %v1939
        %v1941 = vrot.slane %v1935, 7
        %v1943 = vsel %vm1887, %v1941, %v1941
        %1944 = vst [vmem:[#allocation2 + $0x38] sm:$0xff] %v1943
        %1945 = vst [vmem:[#allocation2 + $0x60] sm:$0xff] %v1935
        %v1946 = vrot.slane %v1935, 1
        %v1948 = vsel %vm1893, %v1946, %v1946
        %1949 = vst [vmem:[#allocation2 + $0x88] sm:$0xff] %v1948
        %v1950 = vrot.slane %v1935, 2
        %v1952 = vsel %vm1898, %v1950, %v1950
        %1953 = vst [vmem:[#allocation2 + $0xb0] sm:$0xff] %v1952
        %1954 = vrot.lane.b32.xlu0 %v1848, 127
        %v1955 = vpop.permute.xlu0 %1954
        %v1957 = vsel %vm1863, 1, 0
        %v1958 = vlaneseq
        %v1959 = vshrl.u32 %v1958, 7
        %v1960 = vsub.s32 0, %v1959
        %v1961 = vrot.slane %v1957, %v1960
        %vm1962 = vcmp.eq.s32.totalorder %v1961, 1
        %v1963 = vsel %vm1962, %v1955, 0.0
        %v1965 = vrot.slane %v1963, 6
        %v1967 = vsel %vm1882, %v1965, %v1965
        %1968 = vst [vmem:[#allocation2 + $0x18] sm:$0xff] %v1967
        %v1969 = vrot.slane %v1963, 7
        %v1971 = vsel %vm1887, %v1969, %v1969
        %1972 = vst [vmem:[#allocation2 + $0x40] sm:$0xff] %v1971
        %1973 = vst [vmem:[#allocation2 + $0x68] sm:$0xff] %v1963
        %v1974 = vrot.slane %v1963, 1
        %v1976 = vsel %vm1893, %v1974, %v1974
        %1977 = vst [vmem:[#allocation2 + $0x90] sm:$0xff] %v1976
        %v1978 = vrot.slane %v1963, 2
        %v1980 = vsel %vm1898, %v1978, %v1978
        %1981 = vst [vmem:[#allocation2 + $0xb8] sm:$0xff] %v1980
        %1982 = vrot.lane.b32.xlu0 %v1848, 126
        %v1983 = vpop.permute.xlu0 %1982
        %v1985 = vsel %vm1867, 1, 0
        %v1986 = vlaneseq
        %v1987 = vshrl.u32 %v1986, 7
        %v1988 = vsub.s32 0, %v1987
        %v1989 = vrot.slane %v1985, %v1988
        %vm1990 = vcmp.eq.s32.totalorder %v1989, 1
        %v1991 = vsel %vm1990, %v1983, 0.0
        %v1993 = vrot.slane %v1991, 6
        %v1995 = vsel %vm1882, %v1993, %v1993
        %1996 = vst [vmem:[#allocation2 + $0x20] sm:$0xff] %v1995
        %v1997 = vrot.slane %v1991, 7
        %v1999 = vsel %vm1887, %v1997, %v1997
        %2000 = vst [vmem:[#allocation2 + $0x48] sm:$0xff] %v1999
        %2001 = vst [vmem:[#allocation2 + $0x70] sm:$0xff] %v1991
        %v2002 = vrot.slane %v1991, 1
        %v2004 = vsel %vm1893, %v2002, %v2002
        %2005 = vst [vmem:[#allocation2 + $0x98] sm:$0xff] %v2004
        %v2006 = vrot.slane %v1991, 2
        %v2008 = vsel %vm1898, %v2006, %v2006
        %2009 = vst [vmem:[#allocation2 + $0xc0] sm:$0xff] %v2008
        %v2010 = vld [vmem:[%s6] sm:$0xff]
        %v2011 = vld [vmem:[%s6 + $0x8] sm:$0xff]
        %v2012 = vld [vmem:[%s6 + $0x10] sm:$0xff]
        %v2013 = vld [vmem:[%s6 + $0x18] sm:$0xff]
        %v2014 = vld [vmem:[%s6 + $0x20] sm:$0xff]
        %v2015 = vld [vmem:[%s6 + $0x28] sm:$0xff]
        %v2016 = vld [vmem:[%s6 + $0x30] sm:$0xff]
        %v2017 = vld [vmem:[%s6 + $0x38] sm:$0xff]
        %v2018 = vld [vmem:[%s6 + $0x40] sm:$0xff]
        %v2019 = vld [vmem:[%s6 + $0x48] sm:$0xff]
        %v2020 = vld [vmem:[#allocation2] sm:$0xff]
        %v2021 = vld [vmem:[#allocation2 + $0x8] sm:$0xff]
        %v2022 = vld [vmem:[#allocation2 + $0x10] sm:$0xff]
        %v2023 = vld [vmem:[#allocation2 + $0x18] sm:$0xff]
        %v2024 = vld [vmem:[#allocation2 + $0x20] sm:$0xff]
        %v2025 = vld [vmem:[#allocation2 + $0x28] sm:$0xff]
        %v2026 = vld [vmem:[#allocation2 + $0x30] sm:$0xff]
        %v2027 = vld [vmem:[#allocation2 + $0x38] sm:$0xff]
        %v2028 = vld [vmem:[#allocation2 + $0x40] sm:$0xff]
        %v2029 = vld [vmem:[#allocation2 + $0x48] sm:$0xff]
        %v2030 = vld [vmem:[#allocation2 + $0x50] sm:$0xff]
        %v2031 = vld [vmem:[#allocation2 + $0x58] sm:$0xff]
        %v2032 = vld [vmem:[#allocation2 + $0x60] sm:$0xff]
        %v2033 = vld [vmem:[#allocation2 + $0x68] sm:$0xff]
        %v2034 = vld [vmem:[#allocation2 + $0x70] sm:$0xff]
        %v2035 = vld [vmem:[#allocation2 + $0x78] sm:$0xff]
        %v2036 = vld [vmem:[#allocation2 + $0x80] sm:$0xff]
        %v2037 = vld [vmem:[#allocation2 + $0x88] sm:$0xff]
        %v2038 = vld [vmem:[#allocation2 + $0x90] sm:$0xff]
        %v2039 = vld [vmem:[#allocation2 + $0x98] sm:$0xff]
        %v2040 = vld [vmem:[#allocation2 + $0xa0] sm:$0xff]
        %v2041 = vld [vmem:[#allocation2 + $0xa8] sm:$0xff]
        %v2042 = vld [vmem:[#allocation2 + $0xb0] sm:$0xff]
        %v2043 = vld [vmem:[#allocation2 + $0xb8] sm:$0xff]
        %v2044 = vld [vmem:[#allocation2 + $0xc0] sm:$0xff]
        %v2045 = vld [vmem:[%s7] sm:$0xff]
        %v2046 = vld [vmem:[%s7 + $0x8] sm:$0xff]
        %v2047 = vld [vmem:[%s7 + $0x10] sm:$0xff]
        %v2048 = vld [vmem:[%s7 + $0x18] sm:$0xff]
        %v2049 = vld [vmem:[%s7 + $0x20] sm:$0xff]
        %2051 = vset.pattern.permute.xlu0 0
        %2052 = vperm.xlu0 %2051, %v2045
        %v2053 = vpop.permute.xlu0 %2052
        %2056 = vset.pattern.permute.xlu0 0
        %2057 = vperm.xlu0 %2056, %v2046
        %v2058 = vpop.permute.xlu0 %2057
        %2061 = vset.pattern.permute.xlu0 0
        %2062 = vperm.xlu0 %2061, %v2047
        %v2063 = vpop.permute.xlu0 %2062
        %2066 = vset.pattern.permute.xlu0 0
        %2067 = vperm.xlu0 %2066, %v2048
        %v2068 = vpop.permute.xlu0 %2067
        %2071 = vset.pattern.permute.xlu0 0
        %2072 = vperm.xlu0 %2071, %v2049
        %v2073 = vpop.permute.xlu0 %2072
        %vm2075 = vcmask 588800
        %v2077 = vsel %vm2075, %v2011, 0
        %v2080 = vsel %vm2075, %v2013, 0
        %v2083 = vsel %vm2075, %v2015, 0
        %v2086 = vsel %vm2075, %v2017, 0
        %v2089 = vsel %vm2075, %v2019, 0
        %2091 = vmatprep.subr.mxu0 0.0
        %v2092 = vand.u32 %v2035, 4294901760
        %2093 = vmatpush1.msra.mxu0 %v2092
        %2094 = vmatprep.subr.mxu0 0.0
        %v2095 = vand.u32 %v2034, 4294901760
        %2096 = vmatpush1.msra.mxu0 %v2095
        %2097 = vmatprep.subr.mxu0 0.0
        %v2098 = vand.u32 %v2033, 4294901760
        %2099 = vmatpush1.msra.mxu0 %v2098
        %2100 = vmatprep.subr.mxu0 0.0
        %v2101 = vand.u32 %v2032, 4294901760
        %2102 = vmatpush1.msra.mxu0 %v2101
        %2103 = vmatprep.subr.mxu0 0.0
        %v2104 = vand.u32 %v2031, 4294901760
        %2105 = vmatpush1.msra.mxu0 %v2104
        %2106 = vmatprep.subr.mxu0 0.0
        %v2107 = vand.u32 %v2030, 4294901760
        %2108 = vmatpush1.msra.mxu0 %v2107
        %2109 = vmatprep.subr.mxu0 0.0
        %v2110 = vand.u32 %v2029, 4294901760
        %2111 = vmatpush1.msra.mxu0 %v2110
        %2112 = vmatprep.subr.mxu0 0.0
        %v2113 = vand.u32 %v2028, 4294901760
        %2114 = vmatpush1.msra.mxu0 %v2113
        %2115 = vmatprep.subr.mxu0 0.0
        %v2116 = vand.u32 %v2027, 4294901760
        %2117 = vmatpush1.msra.mxu0 %v2116
        %2118 = vmatprep.subr.mxu0 0.0
        %v2119 = vand.u32 %v2026, 4294901760
        %2120 = vmatpush1.msra.mxu0 %v2119
        %2121 = vmatprep.subr.mxu0 0.0
        %v2122 = vand.u32 %v2025, 4294901760
        %2123 = vmatpush1.msra.mxu0 %v2122
        %2124 = vmatprep.subr.mxu0 0.0
        %v2125 = vand.u32 %v2024, 4294901760
        %2126 = vmatpush1.msra.mxu0 %v2125
        %2127 = vmatprep.subr.mxu0 0.0
        %v2128 = vand.u32 %v2023, 4294901760
        %2129 = vmatpush1.msra.mxu0 %v2128
        %2130 = vmatprep.subr.mxu0 0.0
        %v2131 = vand.u32 %v2022, 4294901760
        %2132 = vmatpush1.msra.mxu0 %v2131
        %2133 = vmatprep.subr.mxu0 0.0
        %v2134 = vand.u32 %v2021, 4294901760
        %2135 = vmatpush1.msra.mxu0 %v2134
        %2136 = vmatprep.subr.mxu0 0.0
        %v2137 = vand.u32 %v2020, 4294901760
        %2138 = vmatpush1.msra.mxu0 %v2137
        %2139 = vmatprep.subr.mxu0 0.0
        %2140 = vmatpush2.msra.mxu0 0.0
        %2141 = vmatprep.subr.mxu0 0.0
        %2142 = vmatpush2.msra.mxu0 0.0
        %2143 = vmatprep.subr.mxu0 0.0
        %2144 = vmatpush2.msra.mxu0 0.0
        %2145 = vmatprep.subr.mxu0 0.0
        %2146 = vmatpush2.msra.mxu0 0.0
        %2147 = vmatprep.subr.mxu0 0.0
        %2148 = vmatpush2.msra.mxu0 0.0
        %2149 = vmatprep.subr.mxu0 0.0
        %2150 = vmatpush2.msra.mxu0 0.0
        %2151 = vmatprep.subr.mxu0 0.0
        %2152 = vmatpush2.msra.mxu0 0.0
        %2153 = vmatprep.subr.mxu0 0.0
        %v2154 = vand.u32 %v2044, 4294901760
        %2155 = vmatpush2.msra.mxu0 %v2154
        %2156 = vmatprep.subr.mxu0 0.0
        %v2157 = vand.u32 %v2043, 4294901760
        %2158 = vmatpush2.msra.mxu0 %v2157
        %2159 = vmatprep.subr.mxu0 0.0
        %v2160 = vand.u32 %v2042, 4294901760
        %2161 = vmatpush2.msra.mxu0 %v2160
        %2162 = vmatprep.subr.mxu0 0.0
        %v2163 = vand.u32 %v2041, 4294901760
        %2164 = vmatpush2.msra.mxu0 %v2163
        %2165 = vmatprep.subr.mxu0 0.0
        %v2166 = vand.u32 %v2040, 4294901760
        %2167 = vmatpush2.msra.mxu0 %v2166
        %2168 = vmatprep.subr.mxu0 0.0
        %v2169 = vand.u32 %v2039, 4294901760
        %2170 = vmatpush2.msra.mxu0 %v2169
        %2171 = vmatprep.subr.mxu0 0.0
        %v2172 = vand.u32 %v2038, 4294901760
        %2173 = vmatpush2.msra.mxu0 %v2172
        %2174 = vmatprep.subr.mxu0 0.0
        %v2175 = vand.u32 %v2037, 4294901760
        %2176 = vmatpush2.msra.mxu0 %v2175
        %2177 = vmatprep.subr.mxu0 0.0
        %v2178 = vand.u32 %v2036, 4294901760
        %2179 = vmatpush2.msra.mxu0 %v2178
        %v2180 = vand.u32 %v2077, 4294901760
        %v2181 = vsub.f32 %v2077, %v2180
        %v2182 = vand.u32 %v2181, 4294901760
        %v2183 = vsub.f32 %v2181, %v2182
        %v2184 = vand.u32 %v2183, 4294901760
        %2185 = vmatprep.mubr.f32.mxu0 %v2184
        %v2186 = vand.u32 %v2010, 4294901760
        %v2187 = vsub.f32 %v2010, %v2186
        %v2188 = vand.u32 %v2187, 4294901760
        %v2189 = vsub.f32 %v2187, %v2188
        %v2190 = vand.u32 %v2189, 4294901760
        %2191 = vmatmul.mubr.f32.gmra.mxu0 %v2190
        %v2192 = vpop.f32.mrf.mxu0
        %v2193 = vadd.f32 %v2053, %v2192
        %v2194 = vpop.f32.mrf.mxu0
        %v2195 = vand.u32 %v2080, 4294901760
        %v2196 = vsub.f32 %v2080, %v2195
        %v2197 = vand.u32 %v2196, 4294901760
        %v2198 = vsub.f32 %v2196, %v2197
        %v2199 = vand.u32 %v2198, 4294901760
        %2200 = vmatprep.mubr.f32.mxu0 %v2199
        %v2201 = vand.u32 %v2012, 4294901760
        %v2202 = vsub.f32 %v2012, %v2201
        %v2203 = vand.u32 %v2202, 4294901760
        %v2204 = vsub.f32 %v2202, %v2203
        %v2205 = vand.u32 %v2204, 4294901760
        %2206 = vmatmul.mubr.f32.gmra.mxu0 %v2205
        %v2207 = vpop.f32.mrf.mxu0
        %v2208 = vadd.f32 %v2058, %v2207
        %v2209 = vpop.f32.mrf.mxu0
        %v2210 = vand.u32 %v2083, 4294901760
        %v2211 = vsub.f32 %v2083, %v2210
        %v2212 = vand.u32 %v2211, 4294901760
        %v2213 = vsub.f32 %v2211, %v2212
        %v2214 = vand.u32 %v2213, 4294901760
        %2215 = vmatprep.mubr.f32.mxu0 %v2214
        %v2216 = vand.u32 %v2014, 4294901760
        %v2217 = vsub.f32 %v2014, %v2216
        %v2218 = vand.u32 %v2217, 4294901760
        %v2219 = vsub.f32 %v2217, %v2218
        %v2220 = vand.u32 %v2219, 4294901760
        %2221 = vmatmul.mubr.f32.gmra.mxu0 %v2220
        %v2222 = vpop.f32.mrf.mxu0
        %v2223 = vadd.f32 %v2063, %v2222
        %v2224 = vpop.f32.mrf.mxu0
        %v2225 = vand.u32 %v2086, 4294901760
        %v2226 = vsub.f32 %v2086, %v2225
        %v2227 = vand.u32 %v2226, 4294901760
        %v2228 = vsub.f32 %v2226, %v2227
        %v2229 = vand.u32 %v2228, 4294901760
        %2230 = vmatprep.mubr.f32.mxu0 %v2229
        %v2231 = vand.u32 %v2016, 4294901760
        %v2232 = vsub.f32 %v2016, %v2231
        %v2233 = vand.u32 %v2232, 4294901760
        %v2234 = vsub.f32 %v2232, %v2233
        %v2235 = vand.u32 %v2234, 4294901760
        %2236 = vmatmul.mubr.f32.gmra.mxu0 %v2235
        %v2237 = vpop.f32.mrf.mxu0
        %v2238 = vadd.f32 %v2068, %v2237
        %v2239 = vpop.f32.mrf.mxu0
        %v2240 = vand.u32 %v2089, 4294901760
        %v2241 = vsub.f32 %v2089, %v2240
        %v2242 = vand.u32 %v2241, 4294901760
        %v2243 = vsub.f32 %v2241, %v2242
        %v2244 = vand.u32 %v2243, 4294901760
        %2245 = vmatprep.mubr.f32.mxu0 %v2244
        %v2246 = vand.u32 %v2018, 4294901760
        %v2247 = vsub.f32 %v2018, %v2246
        %v2248 = vand.u32 %v2247, 4294901760
        %v2249 = vsub.f32 %v2247, %v2248
        %v2250 = vand.u32 %v2249, 4294901760
        %2251 = vmatmul.mubr.f32.gmra.mxu0 %v2250
        %v2252 = vpop.f32.mrf.mxu0
        %v2253 = vadd.f32 %v2073, %v2252
        %v2254 = vpop.f32.mrf.mxu0
        %2255 = vdwg.mxu0
        %2256 = vmatprep.subr.mxu0 0.0
        %v2257 = vand.u32 %v2035, 4294901760
        %v2258 = vsub.f32 %v2035, %v2257
        %v2259 = vand.u32 %v2258, 4294901760
        %v2260 = vsub.f32 %v2258, %v2259
        %v2261 = vand.u32 %v2260, 4294901760
        %2262 = vmatpush1.msra.mxu0 %v2261
        %2263 = vmatprep.subr.mxu0 0.0
        %v2264 = vand.u32 %v2034, 4294901760
        %v2265 = vsub.f32 %v2034, %v2264
        %v2266 = vand.u32 %v2265, 4294901760
        %v2267 = vsub.f32 %v2265, %v2266
        %v2268 = vand.u32 %v2267, 4294901760
        %2269 = vmatpush1.msra.mxu0 %v2268
        %2270 = vmatprep.subr.mxu0 0.0
        %v2271 = vand.u32 %v2033, 4294901760
        %v2272 = vsub.f32 %v2033, %v2271
        %v2273 = vand.u32 %v2272, 4294901760
        %v2274 = vsub.f32 %v2272, %v2273
        %v2275 = vand.u32 %v2274, 4294901760
        %2276 = vmatpush1.msra.mxu0 %v2275
        %2277 = vmatprep.subr.mxu0 0.0
        %v2278 = vand.u32 %v2032, 4294901760
        %v2279 = vsub.f32 %v2032, %v2278
        %v2280 = vand.u32 %v2279, 4294901760
        %v2281 = vsub.f32 %v2279, %v2280
        %v2282 = vand.u32 %v2281, 4294901760
        %2283 = vmatpush1.msra.mxu0 %v2282
        %2284 = vmatprep.subr.mxu0 0.0
        %v2285 = vand.u32 %v2031, 4294901760
        %v2286 = vsub.f32 %v2031, %v2285
        %v2287 = vand.u32 %v2286, 4294901760
        %v2288 = vsub.f32 %v2286, %v2287
        %v2289 = vand.u32 %v2288, 4294901760
        %2290 = vmatpush1.msra.mxu0 %v2289
        %2291 = vmatprep.subr.mxu0 0.0
        %v2292 = vand.u32 %v2030, 4294901760
        %v2293 = vsub.f32 %v2030, %v2292
        %v2294 = vand.u32 %v2293, 4294901760
        %v2295 = vsub.f32 %v2293, %v2294
        %v2296 = vand.u32 %v2295, 4294901760
        %2297 = vmatpush1.msra.mxu0 %v2296
        %2298 = vmatprep.subr.mxu0 0.0
        %v2299 = vand.u32 %v2029, 4294901760
        %v2300 = vsub.f32 %v2029, %v2299
        %v2301 = vand.u32 %v2300, 4294901760
        %v2302 = vsub.f32 %v2300, %v2301
        %v2303 = vand.u32 %v2302, 4294901760
        %2304 = vmatpush1.msra.mxu0 %v2303
        %2305 = vmatprep.subr.mxu0 0.0
        %v2306 = vand.u32 %v2028, 4294901760
        %v2307 = vsub.f32 %v2028, %v2306
        %v2308 = vand.u32 %v2307, 4294901760
        %v2309 = vsub.f32 %v2307, %v2308
        %v2310 = vand.u32 %v2309, 4294901760
        %2311 = vmatpush1.msra.mxu0 %v2310
        %2312 = vmatprep.subr.mxu0 0.0
        %v2313 = vand.u32 %v2027, 4294901760
        %v2314 = vsub.f32 %v2027, %v2313
        %v2315 = vand.u32 %v2314, 4294901760
        %v2316 = vsub.f32 %v2314, %v2315
        %v2317 = vand.u32 %v2316, 4294901760
        %2318 = vmatpush1.msra.mxu0 %v2317
        %2319 = vmatprep.subr.mxu0 0.0
        %v2320 = vand.u32 %v2026, 4294901760
        %v2321 = vsub.f32 %v2026, %v2320
        %v2322 = vand.u32 %v2321, 4294901760
        %v2323 = vsub.f32 %v2321, %v2322
        %v2324 = vand.u32 %v2323, 4294901760
        %2325 = vmatpush1.msra.mxu0 %v2324
        %2326 = vmatprep.subr.mxu0 0.0
        %v2327 = vand.u32 %v2025, 4294901760
        %v2328 = vsub.f32 %v2025, %v2327
        %v2329 = vand.u32 %v2328, 4294901760
        %v2330 = vsub.f32 %v2328, %v2329
        %v2331 = vand.u32 %v2330, 4294901760
        %2332 = vmatpush1.msra.mxu0 %v2331
        %2333 = vmatprep.subr.mxu0 0.0
        %v2334 = vand.u32 %v2024, 4294901760
        %v2335 = vsub.f32 %v2024, %v2334
        %v2336 = vand.u32 %v2335, 4294901760
        %v2337 = vsub.f32 %v2335, %v2336
        %v2338 = vand.u32 %v2337, 4294901760
        %2339 = vmatpush1.msra.mxu0 %v2338
        %2340 = vmatprep.subr.mxu0 0.0
        %v2341 = vand.u32 %v2023, 4294901760
        %v2342 = vsub.f32 %v2023, %v2341
        %v2343 = vand.u32 %v2342, 4294901760
        %v2344 = vsub.f32 %v2342, %v2343
        %v2345 = vand.u32 %v2344, 4294901760
        %2346 = vmatpush1.msra.mxu0 %v2345
        %2347 = vmatprep.subr.mxu0 0.0
        %v2348 = vand.u32 %v2022, 4294901760
        %v2349 = vsub.f32 %v2022, %v2348
        %v2350 = vand.u32 %v2349, 4294901760
        %v2351 = vsub.f32 %v2349, %v2350
        %v2352 = vand.u32 %v2351, 4294901760
        %2353 = vmatpush1.msra.mxu0 %v2352
        %2354 = vmatprep.subr.mxu0 0.0
        %v2355 = vand.u32 %v2021, 4294901760
        %v2356 = vsub.f32 %v2021, %v2355
        %v2357 = vand.u32 %v2356, 4294901760
        %v2358 = vsub.f32 %v2356, %v2357
        %v2359 = vand.u32 %v2358, 4294901760
        %2360 = vmatpush1.msra.mxu0 %v2359
        %2361 = vmatprep.subr.mxu0 0.0
        %v2362 = vand.u32 %v2020, 4294901760
        %v2363 = vsub.f32 %v2020, %v2362
        %v2364 = vand.u32 %v2363, 4294901760
        %v2365 = vsub.f32 %v2363, %v2364
        %v2366 = vand.u32 %v2365, 4294901760
        %2367 = vmatpush1.msra.mxu0 %v2366
        %2368 = vmatprep.subr.mxu0 0.0
        %2369 = vmatpush2.msra.mxu0 0.0
        %2370 = vmatprep.subr.mxu0 0.0
        %2371 = vmatpush2.msra.mxu0 0.0
        %2372 = vmatprep.subr.mxu0 0.0
        %2373 = vmatpush2.msra.mxu0 0.0
        %2374 = vmatprep.subr.mxu0 0.0
        %2375 = vmatpush2.msra.mxu0 0.0
        %2376 = vmatprep.subr.mxu0 0.0
        %2377 = vmatpush2.msra.mxu0 0.0
        %2378 = vmatprep.subr.mxu0 0.0
        %2379 = vmatpush2.msra.mxu0 0.0
        %2380 = vmatprep.subr.mxu0 0.0
        %2381 = vmatpush2.msra.mxu0 0.0
        %2382 = vmatprep.subr.mxu0 0.0
        %v2383 = vand.u32 %v2044, 4294901760
        %v2384 = vsub.f32 %v2044, %v2383
        %v2385 = vand.u32 %v2384, 4294901760
        %v2386 = vsub.f32 %v2384, %v2385
        %v2387 = vand.u32 %v2386, 4294901760
        %2388 = vmatpush2.msra.mxu0 %v2387
        %2389 = vmatprep.subr.mxu0 0.0
        %v2390 = vand.u32 %v2043, 4294901760
        %v2391 = vsub.f32 %v2043, %v2390
        %v2392 = vand.u32 %v2391, 4294901760
        %v2393 = vsub.f32 %v2391, %v2392
        %v2394 = vand.u32 %v2393, 4294901760
        %2395 = vmatpush2.msra.mxu0 %v2394
        %2396 = vmatprep.subr.mxu0 0.0
        %v2397 = vand.u32 %v2042, 4294901760
        %v2398 = vsub.f32 %v2042, %v2397
        %v2399 = vand.u32 %v2398, 4294901760
        %v2400 = vsub.f32 %v2398, %v2399
        %v2401 = vand.u32 %v2400, 4294901760
        %2402 = vmatpush2.msra.mxu0 %v2401
        %2403 = vmatprep.subr.mxu0 0.0
        %v2404 = vand.u32 %v2041, 4294901760
        %v2405 = vsub.f32 %v2041, %v2404
        %v2406 = vand.u32 %v2405, 4294901760
        %v2407 = vsub.f32 %v2405, %v2406
        %v2408 = vand.u32 %v2407, 4294901760
        %2409 = vmatpush2.msra.mxu0 %v2408
        %2410 = vmatprep.subr.mxu0 0.0
        %v2411 = vand.u32 %v2040, 4294901760
        %v2412 = vsub.f32 %v2040, %v2411
        %v2413 = vand.u32 %v2412, 4294901760
        %v2414 = vsub.f32 %v2412, %v2413
        %v2415 = vand.u32 %v2414, 4294901760
        %2416 = vmatpush2.msra.mxu0 %v2415
        %2417 = vmatprep.subr.mxu0 0.0
        %v2418 = vand.u32 %v2039, 4294901760
        %v2419 = vsub.f32 %v2039, %v2418
        %v2420 = vand.u32 %v2419, 4294901760
        %v2421 = vsub.f32 %v2419, %v2420
        %v2422 = vand.u32 %v2421, 4294901760
        %2423 = vmatpush2.msra.mxu0 %v2422
        %2424 = vmatprep.subr.mxu0 0.0
        %v2425 = vand.u32 %v2038, 4294901760
        %v2426 = vsub.f32 %v2038, %v2425
        %v2427 = vand.u32 %v2426, 4294901760
        %v2428 = vsub.f32 %v2426, %v2427
        %v2429 = vand.u32 %v2428, 4294901760
        %2430 = vmatpush2.msra.mxu0 %v2429
        %2431 = vmatprep.subr.mxu0 0.0
        %v2432 = vand.u32 %v2037, 4294901760
        %v2433 = vsub.f32 %v2037, %v2432
        %v2434 = vand.u32 %v2433, 4294901760
        %v2435 = vsub.f32 %v2433, %v2434
        %v2436 = vand.u32 %v2435, 4294901760
        %2437 = vmatpush2.msra.mxu0 %v2436
        %2438 = vmatprep.subr.mxu0 0.0
        %v2439 = vand.u32 %v2036, 4294901760
        %v2440 = vsub.f32 %v2036, %v2439
        %v2441 = vand.u32 %v2440, 4294901760
        %v2442 = vsub.f32 %v2440, %v2441
        %v2443 = vand.u32 %v2442, 4294901760
        %2444 = vmatpush2.msra.mxu0 %v2443
        %v2445 = vand.u32 %v2077, 4294901760
        %2446 = vmatprep.mubr.f32.mxu0 %v2445
        %v2447 = vand.u32 %v2010, 4294901760
        %2448 = vmatmul.mubr.f32.gmra.mxu0 %v2447
        %v2449 = vpop.f32.mrf.mxu0
        %v2450 = vadd.f32 %v2193, %v2449
        %v2451 = vpop.f32.mrf.mxu0
        %v2452 = vand.u32 %v2080, 4294901760
        %2453 = vmatprep.mubr.f32.mxu0 %v2452
        %v2454 = vand.u32 %v2012, 4294901760
        %2455 = vmatmul.mubr.f32.gmra.mxu0 %v2454
        %v2456 = vpop.f32.mrf.mxu0
        %v2457 = vadd.f32 %v2208, %v2456
        %v2458 = vpop.f32.mrf.mxu0
        %v2459 = vand.u32 %v2083, 4294901760
        %2460 = vmatprep.mubr.f32.mxu0 %v2459
        %v2461 = vand.u32 %v2014, 4294901760
        %2462 = vmatmul.mubr.f32.gmra.mxu0 %v2461
        %v2463 = vpop.f32.mrf.mxu0
        %v2464 = vadd.f32 %v2223, %v2463
        %v2465 = vpop.f32.mrf.mxu0
        %v2466 = vand.u32 %v2086, 4294901760
        %2467 = vmatprep.mubr.f32.mxu0 %v2466
        %v2468 = vand.u32 %v2016, 4294901760
        %2469 = vmatmul.mubr.f32.gmra.mxu0 %v2468
        %v2470 = vpop.f32.mrf.mxu0
        %v2471 = vadd.f32 %v2238, %v2470
        %v2472 = vpop.f32.mrf.mxu0
        %v2473 = vand.u32 %v2089, 4294901760
        %2474 = vmatprep.mubr.f32.mxu0 %v2473
        %v2475 = vand.u32 %v2018, 4294901760
        %2476 = vmatmul.mubr.f32.gmra.mxu0 %v2475
        %v2477 = vpop.f32.mrf.mxu0
        %v2478 = vadd.f32 %v2253, %v2477
        %v2479 = vpop.f32.mrf.mxu0
        %2480 = vdwg.mxu0
        %2481 = vmatprep.subr.mxu0 0.0
        %v2482 = vand.u32 %v2035, 4294901760
        %v2483 = vsub.f32 %v2035, %v2482
        %2484 = vmatpush1.msra.mxu0 %v2483
        %2485 = vmatprep.subr.mxu0 0.0
        %v2486 = vand.u32 %v2034, 4294901760
        %v2487 = vsub.f32 %v2034, %v2486
        %2488 = vmatpush1.msra.mxu0 %v2487
        %2489 = vmatprep.subr.mxu0 0.0
        %v2490 = vand.u32 %v2033, 4294901760
        %v2491 = vsub.f32 %v2033, %v2490
        %2492 = vmatpush1.msra.mxu0 %v2491
        %2493 = vmatprep.subr.mxu0 0.0
        %v2494 = vand.u32 %v2032, 4294901760
        %v2495 = vsub.f32 %v2032, %v2494
        %2496 = vmatpush1.msra.mxu0 %v2495
        %2497 = vmatprep.subr.mxu0 0.0
        %v2498 = vand.u32 %v2031, 4294901760
        %v2499 = vsub.f32 %v2031, %v2498
        %2500 = vmatpush1.msra.mxu0 %v2499
        %2501 = vmatprep.subr.mxu0 0.0
        %v2502 = vand.u32 %v2030, 4294901760
        %v2503 = vsub.f32 %v2030, %v2502
        %2504 = vmatpush1.msra.mxu0 %v2503
        %2505 = vmatprep.subr.mxu0 0.0
        %v2506 = vand.u32 %v2029, 4294901760
        %v2507 = vsub.f32 %v2029, %v2506
        %2508 = vmatpush1.msra.mxu0 %v2507
        %2509 = vmatprep.subr.mxu0 0.0
        %v2510 = vand.u32 %v2028, 4294901760
        %v2511 = vsub.f32 %v2028, %v2510
        %2512 = vmatpush1.msra.mxu0 %v2511
        %2513 = vmatprep.subr.mxu0 0.0
        %v2514 = vand.u32 %v2027, 4294901760
        %v2515 = vsub.f32 %v2027, %v2514
        %2516 = vmatpush1.msra.mxu0 %v2515
        %2517 = vmatprep.subr.mxu0 0.0
        %v2518 = vand.u32 %v2026, 4294901760
        %v2519 = vsub.f32 %v2026, %v2518
        %2520 = vmatpush1.msra.mxu0 %v2519
        %2521 = vmatprep.subr.mxu0 0.0
        %v2522 = vand.u32 %v2025, 4294901760
        %v2523 = vsub.f32 %v2025, %v2522
        %2524 = vmatpush1.msra.mxu0 %v2523
        %2525 = vmatprep.subr.mxu0 0.0
        %v2526 = vand.u32 %v2024, 4294901760
        %v2527 = vsub.f32 %v2024, %v2526
        %2528 = vmatpush1.msra.mxu0 %v2527
        %2529 = vmatprep.subr.mxu0 0.0
        %v2530 = vand.u32 %v2023, 4294901760
        %v2531 = vsub.f32 %v2023, %v2530
        %2532 = vmatpush1.msra.mxu0 %v2531
        %2533 = vmatprep.subr.mxu0 0.0
        %v2534 = vand.u32 %v2022, 4294901760
        %v2535 = vsub.f32 %v2022, %v2534
        %2536 = vmatpush1.msra.mxu0 %v2535
        %2537 = vmatprep.subr.mxu0 0.0
        %v2538 = vand.u32 %v2021, 4294901760
        %v2539 = vsub.f32 %v2021, %v2538
        %2540 = vmatpush1.msra.mxu0 %v2539
        %2541 = vmatprep.subr.mxu0 0.0
        %v2542 = vand.u32 %v2020, 4294901760
        %v2543 = vsub.f32 %v2020, %v2542
        %2544 = vmatpush1.msra.mxu0 %v2543
        %2545 = vmatprep.subr.mxu0 0.0
        %2546 = vmatpush2.msra.mxu0 0.0
        %2547 = vmatprep.subr.mxu0 0.0
        %2548 = vmatpush2.msra.mxu0 0.0
        %2549 = vmatprep.subr.mxu0 0.0
        %2550 = vmatpush2.msra.mxu0 0.0
        %2551 = vmatprep.subr.mxu0 0.0
        %2552 = vmatpush2.msra.mxu0 0.0
        %2553 = vmatprep.subr.mxu0 0.0
        %2554 = vmatpush2.msra.mxu0 0.0
        %2555 = vmatprep.subr.mxu0 0.0
        %2556 = vmatpush2.msra.mxu0 0.0
        %2557 = vmatprep.subr.mxu0 0.0
        %2558 = vmatpush2.msra.mxu0 0.0
        %2559 = vmatprep.subr.mxu0 0.0
        %v2560 = vand.u32 %v2044, 4294901760
        %v2561 = vsub.f32 %v2044, %v2560
        %2562 = vmatpush2.msra.mxu0 %v2561
        %2563 = vmatprep.subr.mxu0 0.0
        %v2564 = vand.u32 %v2043, 4294901760
        %v2565 = vsub.f32 %v2043, %v2564
        %2566 = vmatpush2.msra.mxu0 %v2565
        %2567 = vmatprep.subr.mxu0 0.0
        %v2568 = vand.u32 %v2042, 4294901760
        %v2569 = vsub.f32 %v2042, %v2568
        %2570 = vmatpush2.msra.mxu0 %v2569
        %2571 = vmatprep.subr.mxu0 0.0
        %v2572 = vand.u32 %v2041, 4294901760
        %v2573 = vsub.f32 %v2041, %v2572
        %2574 = vmatpush2.msra.mxu0 %v2573
        %2575 = vmatprep.subr.mxu0 0.0
        %v2576 = vand.u32 %v2040, 4294901760
        %v2577 = vsub.f32 %v2040, %v2576
        %2578 = vmatpush2.msra.mxu0 %v2577
        %2579 = vmatprep.subr.mxu0 0.0
        %v2580 = vand.u32 %v2039, 4294901760
        %v2581 = vsub.f32 %v2039, %v2580
        %2582 = vmatpush2.msra.mxu0 %v2581
        %2583 = vmatprep.subr.mxu0 0.0
        %v2584 = vand.u32 %v2038, 4294901760
        %v2585 = vsub.f32 %v2038, %v2584
        %2586 = vmatpush2.msra.mxu0 %v2585
        %2587 = vmatprep.subr.mxu0 0.0
        %v2588 = vand.u32 %v2037, 4294901760
        %v2589 = vsub.f32 %v2037, %v2588
        %2590 = vmatpush2.msra.mxu0 %v2589
        %2591 = vmatprep.subr.mxu0 0.0
        %v2592 = vand.u32 %v2036, 4294901760
        %v2593 = vsub.f32 %v2036, %v2592
        %2594 = vmatpush2.msra.mxu0 %v2593
        %v2595 = vand.u32 %v2077, 4294901760
        %v2596 = vsub.f32 %v2077, %v2595
        %2597 = vmatprep.mubr.f32.mxu0 %v2596
        %v2598 = vand.u32 %v2010, 4294901760
        %v2599 = vsub.f32 %v2010, %v2598
        %2600 = vmatmul.mubr.f32.gmra.mxu0 %v2599
        %v2601 = vpop.f32.mrf.mxu0
        %v2602 = vadd.f32 %v2450, %v2601
        %v2603 = vpop.f32.mrf.mxu0
        %v2604 = vand.u32 %v2080, 4294901760
        %v2605 = vsub.f32 %v2080, %v2604
        %2606 = vmatprep.mubr.f32.mxu0 %v2605
        %v2607 = vand.u32 %v2012, 4294901760
        %v2608 = vsub.f32 %v2012, %v2607
        %2609 = vmatmul.mubr.f32.gmra.mxu0 %v2608
        %v2610 = vpop.f32.mrf.mxu0
        %v2611 = vadd.f32 %v2457, %v2610
        %v2612 = vpop.f32.mrf.mxu0
        %v2613 = vand.u32 %v2083, 4294901760
        %v2614 = vsub.f32 %v2083, %v2613
        %2615 = vmatprep.mubr.f32.mxu0 %v2614
        %v2616 = vand.u32 %v2014, 4294901760
        %v2617 = vsub.f32 %v2014, %v2616
        %2618 = vmatmul.mubr.f32.gmra.mxu0 %v2617
        %v2619 = vpop.f32.mrf.mxu0
        %v2620 = vadd.f32 %v2464, %v2619
        %v2621 = vpop.f32.mrf.mxu0
        %v2622 = vand.u32 %v2086, 4294901760
        %v2623 = vsub.f32 %v2086, %v2622
        %2624 = vmatprep.mubr.f32.mxu0 %v2623
        %v2625 = vand.u32 %v2016, 4294901760
        %v2626 = vsub.f32 %v2016, %v2625
        %2627 = vmatmul.mubr.f32.gmra.mxu0 %v2626
        %v2628 = vpop.f32.mrf.mxu0
        %v2629 = vadd.f32 %v2471, %v2628
        %v2630 = vpop.f32.mrf.mxu0
        %v2631 = vand.u32 %v2089, 4294901760
        %v2632 = vsub.f32 %v2089, %v2631
        %2633 = vmatprep.mubr.f32.mxu0 %v2632
        %v2634 = vand.u32 %v2018, 4294901760
        %v2635 = vsub.f32 %v2018, %v2634
        %2636 = vmatmul.mubr.f32.gmra.mxu0 %v2635
        %v2637 = vpop.f32.mrf.mxu0
        %v2638 = vadd.f32 %v2478, %v2637
        %v2639 = vpop.f32.mrf.mxu0
        %2640 = vdwg.mxu0
        %2641 = vmatprep.subr.mxu0 0.0
        %v2642 = vand.u32 %v2035, 4294901760
        %2643 = vmatpush1.msra.mxu0 %v2642
        %2644 = vmatprep.subr.mxu0 0.0
        %v2645 = vand.u32 %v2034, 4294901760
        %2646 = vmatpush1.msra.mxu0 %v2645
        %2647 = vmatprep.subr.mxu0 0.0
        %v2648 = vand.u32 %v2033, 4294901760
        %2649 = vmatpush1.msra.mxu0 %v2648
        %2650 = vmatprep.subr.mxu0 0.0
        %v2651 = vand.u32 %v2032, 4294901760
        %2652 = vmatpush1.msra.mxu0 %v2651
        %2653 = vmatprep.subr.mxu0 0.0
        %v2654 = vand.u32 %v2031, 4294901760
        %2655 = vmatpush1.msra.mxu0 %v2654
        %2656 = vmatprep.subr.mxu0 0.0
        %v2657 = vand.u32 %v2030, 4294901760
        %2658 = vmatpush1.msra.mxu0 %v2657
        %2659 = vmatprep.subr.mxu0 0.0
        %v2660 = vand.u32 %v2029, 4294901760
        %2661 = vmatpush1.msra.mxu0 %v2660
        %2662 = vmatprep.subr.mxu0 0.0
        %v2663 = vand.u32 %v2028, 4294901760
        %2664 = vmatpush1.msra.mxu0 %v2663
        %2665 = vmatprep.subr.mxu0 0.0
        %v2666 = vand.u32 %v2027, 4294901760
        %2667 = vmatpush1.msra.mxu0 %v2666
        %2668 = vmatprep.subr.mxu0 0.0
        %v2669 = vand.u32 %v2026, 4294901760
        %2670 = vmatpush1.msra.mxu0 %v2669
        %2671 = vmatprep.subr.mxu0 0.0
        %v2672 = vand.u32 %v2025, 4294901760
        %2673 = vmatpush1.msra.mxu0 %v2672
        %2674 = vmatprep.subr.mxu0 0.0
        %v2675 = vand.u32 %v2024, 4294901760
        %2676 = vmatpush1.msra.mxu0 %v2675
        %2677 = vmatprep.subr.mxu0 0.0
        %v2678 = vand.u32 %v2023, 4294901760
        %2679 = vmatpush1.msra.mxu0 %v2678
        %2680 = vmatprep.subr.mxu0 0.0
        %v2681 = vand.u32 %v2022, 4294901760
        %2682 = vmatpush1.msra.mxu0 %v2681
        %2683 = vmatprep.subr.mxu0 0.0
        %v2684 = vand.u32 %v2021, 4294901760
        %2685 = vmatpush1.msra.mxu0 %v2684
        %2686 = vmatprep.subr.mxu0 0.0
        %v2687 = vand.u32 %v2020, 4294901760
        %2688 = vmatpush1.msra.mxu0 %v2687
        %2689 = vmatprep.subr.mxu0 0.0
        %2690 = vmatpush2.msra.mxu0 0.0
        %2691 = vmatprep.subr.mxu0 0.0
        %2692 = vmatpush2.msra.mxu0 0.0
        %2693 = vmatprep.subr.mxu0 0.0
        %2694 = vmatpush2.msra.mxu0 0.0
        %2695 = vmatprep.subr.mxu0 0.0
        %2696 = vmatpush2.msra.mxu0 0.0
        %2697 = vmatprep.subr.mxu0 0.0
        %2698 = vmatpush2.msra.mxu0 0.0
        %2699 = vmatprep.subr.mxu0 0.0
        %2700 = vmatpush2.msra.mxu0 0.0
        %2701 = vmatprep.subr.mxu0 0.0
        %2702 = vmatpush2.msra.mxu0 0.0
        %2703 = vmatprep.subr.mxu0 0.0
        %v2704 = vand.u32 %v2044, 4294901760
        %2705 = vmatpush2.msra.mxu0 %v2704
        %2706 = vmatprep.subr.mxu0 0.0
        %v2707 = vand.u32 %v2043, 4294901760
        %2708 = vmatpush2.msra.mxu0 %v2707
        %2709 = vmatprep.subr.mxu0 0.0
        %v2710 = vand.u32 %v2042, 4294901760
        %2711 = vmatpush2.msra.mxu0 %v2710
        %2712 = vmatprep.subr.mxu0 0.0
        %v2713 = vand.u32 %v2041, 4294901760
        %2714 = vmatpush2.msra.mxu0 %v2713
        %2715 = vmatprep.subr.mxu0 0.0
        %v2716 = vand.u32 %v2040, 4294901760
        %2717 = vmatpush2.msra.mxu0 %v2716
        %2718 = vmatprep.subr.mxu0 0.0
        %v2719 = vand.u32 %v2039, 4294901760
        %2720 = vmatpush2.msra.mxu0 %v2719
        %2721 = vmatprep.subr.mxu0 0.0
        %v2722 = vand.u32 %v2038, 4294901760
        %2723 = vmatpush2.msra.mxu0 %v2722
        %2724 = vmatprep.subr.mxu0 0.0
        %v2725 = vand.u32 %v2037, 4294901760
        %2726 = vmatpush2.msra.mxu0 %v2725
        %2727 = vmatprep.subr.mxu0 0.0
        %v2728 = vand.u32 %v2036, 4294901760
        %2729 = vmatpush2.msra.mxu0 %v2728
        %v2730 = vand.u32 %v2077, 4294901760
        %v2731 = vsub.f32 %v2077, %v2730
        %v2732 = vand.u32 %v2731, 4294901760
        %2733 = vmatprep.mubr.f32.mxu0 %v2732
        %v2734 = vand.u32 %v2010, 4294901760
        %v2735 = vsub.f32 %v2010, %v2734
        %v2736 = vand.u32 %v2735, 4294901760
        %2737 = vmatmul.mubr.f32.gmra.mxu0 %v2736
        %v2738 = vpop.f32.mrf.mxu0
        %v2739 = vadd.f32 %v2602, %v2738
        %v2740 = vpop.f32.mrf.mxu0
        %v2741 = vand.u32 %v2080, 4294901760
        %v2742 = vsub.f32 %v2080, %v2741
        %v2743 = vand.u32 %v2742, 4294901760
        %2744 = vmatprep.mubr.f32.mxu0 %v2743
        %v2745 = vand.u32 %v2012, 4294901760
        %v2746 = vsub.f32 %v2012, %v2745
        %v2747 = vand.u32 %v2746, 4294901760
        %2748 = vmatmul.mubr.f32.gmra.mxu0 %v2747
        %v2749 = vpop.f32.mrf.mxu0
        %v2750 = vadd.f32 %v2611, %v2749
        %v2751 = vpop.f32.mrf.mxu0
        %v2752 = vand.u32 %v2083, 4294901760
        %v2753 = vsub.f32 %v2083, %v2752
        %v2754 = vand.u32 %v2753, 4294901760
        %2755 = vmatprep.mubr.f32.mxu0 %v2754
        %v2756 = vand.u32 %v2014, 4294901760
        %v2757 = vsub.f32 %v2014, %v2756
        %v2758 = vand.u32 %v2757, 4294901760
        %2759 = vmatmul.mubr.f32.gmra.mxu0 %v2758
        %v2760 = vpop.f32.mrf.mxu0
        %v2761 = vadd.f32 %v2620, %v2760
        %v2762 = vpop.f32.mrf.mxu0
        %v2763 = vand.u32 %v2086, 4294901760
        %v2764 = vsub.f32 %v2086, %v2763
        %v2765 = vand.u32 %v2764, 4294901760
        %2766 = vmatprep.mubr.f32.mxu0 %v2765
        %v2767 = vand.u32 %v2016, 4294901760
        %v2768 = vsub.f32 %v2016, %v2767
        %v2769 = vand.u32 %v2768, 4294901760
        %2770 = vmatmul.mubr.f32.gmra.mxu0 %v2769
        %v2771 = vpop.f32.mrf.mxu0
        %v2772 = vadd.f32 %v2629, %v2771
        %v2773 = vpop.f32.mrf.mxu0
        %v2774 = vand.u32 %v2089, 4294901760
        %v2775 = vsub.f32 %v2089, %v2774
        %v2776 = vand.u32 %v2775, 4294901760
        %2777 = vmatprep.mubr.f32.mxu0 %v2776
        %v2778 = vand.u32 %v2018, 4294901760
        %v2779 = vsub.f32 %v2018, %v2778
        %v2780 = vand.u32 %v2779, 4294901760
        %2781 = vmatmul.mubr.f32.gmra.mxu0 %v2780
        %v2782 = vpop.f32.mrf.mxu0
        %v2783 = vadd.f32 %v2638, %v2782
        %v2784 = vpop.f32.mrf.mxu0
        %2785 = vdwg.mxu0
        %2786 = vmatprep.subr.mxu0 0.0
        %v2787 = vand.u32 %v2035, 4294901760
        %v2788 = vsub.f32 %v2035, %v2787
        %v2789 = vand.u32 %v2788, 4294901760
        %2790 = vmatpush1.msra.mxu0 %v2789
        %2791 = vmatprep.subr.mxu0 0.0
        %v2792 = vand.u32 %v2034, 4294901760
        %v2793 = vsub.f32 %v2034, %v2792
        %v2794 = vand.u32 %v2793, 4294901760
        %2795 = vmatpush1.msra.mxu0 %v2794
        %2796 = vmatprep.subr.mxu0 0.0
        %v2797 = vand.u32 %v2033, 4294901760
        %v2798 = vsub.f32 %v2033, %v2797
        %v2799 = vand.u32 %v2798, 4294901760
        %2800 = vmatpush1.msra.mxu0 %v2799
        %2801 = vmatprep.subr.mxu0 0.0
        %v2802 = vand.u32 %v2032, 4294901760
        %v2803 = vsub.f32 %v2032, %v2802
        %v2804 = vand.u32 %v2803, 4294901760
        %2805 = vmatpush1.msra.mxu0 %v2804
        %2806 = vmatprep.subr.mxu0 0.0
        %v2807 = vand.u32 %v2031, 4294901760
        %v2808 = vsub.f32 %v2031, %v2807
        %v2809 = vand.u32 %v2808, 4294901760
        %2810 = vmatpush1.msra.mxu0 %v2809
        %2811 = vmatprep.subr.mxu0 0.0
        %v2812 = vand.u32 %v2030, 4294901760
        %v2813 = vsub.f32 %v2030, %v2812
        %v2814 = vand.u32 %v2813, 4294901760
        %2815 = vmatpush1.msra.mxu0 %v2814
        %2816 = vmatprep.subr.mxu0 0.0
        %v2817 = vand.u32 %v2029, 4294901760
        %v2818 = vsub.f32 %v2029, %v2817
        %v2819 = vand.u32 %v2818, 4294901760
        %2820 = vmatpush1.msra.mxu0 %v2819
        %2821 = vmatprep.subr.mxu0 0.0
        %v2822 = vand.u32 %v2028, 4294901760
        %v2823 = vsub.f32 %v2028, %v2822
        %v2824 = vand.u32 %v2823, 4294901760
        %2825 = vmatpush1.msra.mxu0 %v2824
        %2826 = vmatprep.subr.mxu0 0.0
        %v2827 = vand.u32 %v2027, 4294901760
        %v2828 = vsub.f32 %v2027, %v2827
        %v2829 = vand.u32 %v2828, 4294901760
        %2830 = vmatpush1.msra.mxu0 %v2829
        %2831 = vmatprep.subr.mxu0 0.0
        %v2832 = vand.u32 %v2026, 4294901760
        %v2833 = vsub.f32 %v2026, %v2832
        %v2834 = vand.u32 %v2833, 4294901760
        %2835 = vmatpush1.msra.mxu0 %v2834
        %2836 = vmatprep.subr.mxu0 0.0
        %v2837 = vand.u32 %v2025, 4294901760
        %v2838 = vsub.f32 %v2025, %v2837
        %v2839 = vand.u32 %v2838, 4294901760
        %2840 = vmatpush1.msra.mxu0 %v2839
        %2841 = vmatprep.subr.mxu0 0.0
        %v2842 = vand.u32 %v2024, 4294901760
        %v2843 = vsub.f32 %v2024, %v2842
        %v2844 = vand.u32 %v2843, 4294901760
        %2845 = vmatpush1.msra.mxu0 %v2844
        %2846 = vmatprep.subr.mxu0 0.0
        %v2847 = vand.u32 %v2023, 4294901760
        %v2848 = vsub.f32 %v2023, %v2847
        %v2849 = vand.u32 %v2848, 4294901760
        %2850 = vmatpush1.msra.mxu0 %v2849
        %2851 = vmatprep.subr.mxu0 0.0
        %v2852 = vand.u32 %v2022, 4294901760
        %v2853 = vsub.f32 %v2022, %v2852
        %v2854 = vand.u32 %v2853, 4294901760
        %2855 = vmatpush1.msra.mxu0 %v2854
        %2856 = vmatprep.subr.mxu0 0.0
        %v2857 = vand.u32 %v2021, 4294901760
        %v2858 = vsub.f32 %v2021, %v2857
        %v2859 = vand.u32 %v2858, 4294901760
        %2860 = vmatpush1.msra.mxu0 %v2859
        %2861 = vmatprep.subr.mxu0 0.0
        %v2862 = vand.u32 %v2020, 4294901760
        %v2863 = vsub.f32 %v2020, %v2862
        %v2864 = vand.u32 %v2863, 4294901760
        %2865 = vmatpush1.msra.mxu0 %v2864
        %2866 = vmatprep.subr.mxu0 0.0
        %2867 = vmatpush2.msra.mxu0 0.0
        %2868 = vmatprep.subr.mxu0 0.0
        %2869 = vmatpush2.msra.mxu0 0.0
        %2870 = vmatprep.subr.mxu0 0.0
        %2871 = vmatpush2.msra.mxu0 0.0
        %2872 = vmatprep.subr.mxu0 0.0
        %2873 = vmatpush2.msra.mxu0 0.0
        %2874 = vmatprep.subr.mxu0 0.0
        %2875 = vmatpush2.msra.mxu0 0.0
        %2876 = vmatprep.subr.mxu0 0.0
        %2877 = vmatpush2.msra.mxu0 0.0
        %2878 = vmatprep.subr.mxu0 0.0
        %2879 = vmatpush2.msra.mxu0 0.0
        %2880 = vmatprep.subr.mxu0 0.0
        %v2881 = vand.u32 %v2044, 4294901760
        %v2882 = vsub.f32 %v2044, %v2881
        %v2883 = vand.u32 %v2882, 4294901760
        %2884 = vmatpush2.msra.mxu0 %v2883
        %2885 = vmatprep.subr.mxu0 0.0
        %v2886 = vand.u32 %v2043, 4294901760
        %v2887 = vsub.f32 %v2043, %v2886
        %v2888 = vand.u32 %v2887, 4294901760
        %2889 = vmatpush2.msra.mxu0 %v2888
        %2890 = vmatprep.subr.mxu0 0.0
        %v2891 = vand.u32 %v2042, 4294901760
        %v2892 = vsub.f32 %v2042, %v2891
        %v2893 = vand.u32 %v2892, 4294901760
        %2894 = vmatpush2.msra.mxu0 %v2893
        %2895 = vmatprep.subr.mxu0 0.0
        %v2896 = vand.u32 %v2041, 4294901760
        %v2897 = vsub.f32 %v2041, %v2896
        %v2898 = vand.u32 %v2897, 4294901760
        %2899 = vmatpush2.msra.mxu0 %v2898
        %2900 = vmatprep.subr.mxu0 0.0
        %v2901 = vand.u32 %v2040, 4294901760
        %v2902 = vsub.f32 %v2040, %v2901
        %v2903 = vand.u32 %v2902, 4294901760
        %2904 = vmatpush2.msra.mxu0 %v2903
        %2905 = vmatprep.subr.mxu0 0.0
        %v2906 = vand.u32 %v2039, 4294901760
        %v2907 = vsub.f32 %v2039, %v2906
        %v2908 = vand.u32 %v2907, 4294901760
        %2909 = vmatpush2.msra.mxu0 %v2908
        %2910 = vmatprep.subr.mxu0 0.0
        %v2911 = vand.u32 %v2038, 4294901760
        %v2912 = vsub.f32 %v2038, %v2911
        %v2913 = vand.u32 %v2912, 4294901760
        %2914 = vmatpush2.msra.mxu0 %v2913
        %2915 = vmatprep.subr.mxu0 0.0
        %v2916 = vand.u32 %v2037, 4294901760
        %v2917 = vsub.f32 %v2037, %v2916
        %v2918 = vand.u32 %v2917, 4294901760
        %2919 = vmatpush2.msra.mxu0 %v2918
        %2920 = vmatprep.subr.mxu0 0.0
        %v2921 = vand.u32 %v2036, 4294901760
        %v2922 = vsub.f32 %v2036, %v2921
        %v2923 = vand.u32 %v2922, 4294901760
        %2924 = vmatpush2.msra.mxu0 %v2923
        %v2925 = vand.u32 %v2077, 4294901760
        %2926 = vmatprep.mubr.f32.mxu0 %v2925
        %v2927 = vand.u32 %v2010, 4294901760
        %2928 = vmatmul.mubr.f32.gmra.mxu0 %v2927
        %v2929 = vpop.f32.mrf.mxu0
        %v2930 = vadd.f32 %v2739, %v2929
        %v2931 = vpop.f32.mrf.mxu0
        %v2932 = vand.u32 %v2080, 4294901760
        %2933 = vmatprep.mubr.f32.mxu0 %v2932
        %v2934 = vand.u32 %v2012, 4294901760
        %2935 = vmatmul.mubr.f32.gmra.mxu0 %v2934
        %v2936 = vpop.f32.mrf.mxu0
        %v2937 = vadd.f32 %v2750, %v2936
        %v2938 = vpop.f32.mrf.mxu0
        %v2939 = vand.u32 %v2083, 4294901760
        %2940 = vmatprep.mubr.f32.mxu0 %v2939
        %v2941 = vand.u32 %v2014, 4294901760
        %2942 = vmatmul.mubr.f32.gmra.mxu0 %v2941
        %v2943 = vpop.f32.mrf.mxu0
        %v2944 = vadd.f32 %v2761, %v2943
        %v2945 = vpop.f32.mrf.mxu0
        %v2946 = vand.u32 %v2086, 4294901760
        %2947 = vmatprep.mubr.f32.mxu0 %v2946
        %v2948 = vand.u32 %v2016, 4294901760
        %2949 = vmatmul.mubr.f32.gmra.mxu0 %v2948
        %v2950 = vpop.f32.mrf.mxu0
        %v2951 = vadd.f32 %v2772, %v2950
        %v2952 = vpop.f32.mrf.mxu0
        %v2953 = vand.u32 %v2089, 4294901760
        %2954 = vmatprep.mubr.f32.mxu0 %v2953
        %v2955 = vand.u32 %v2018, 4294901760
        %2956 = vmatmul.mubr.f32.gmra.mxu0 %v2955
        %v2957 = vpop.f32.mrf.mxu0
        %v2958 = vadd.f32 %v2783, %v2957
        %v2959 = vpop.f32.mrf.mxu0
        %2960 = vdwg.mxu0
        %2961 = vmatprep.subr.mxu0 0.0
        %v2962 = vand.u32 %v2035, 4294901760
        %2963 = vmatpush1.msra.mxu0 %v2962
        %2964 = vmatprep.subr.mxu0 0.0
        %v2965 = vand.u32 %v2034, 4294901760
        %2966 = vmatpush1.msra.mxu0 %v2965
        %2967 = vmatprep.subr.mxu0 0.0
        %v2968 = vand.u32 %v2033, 4294901760
        %2969 = vmatpush1.msra.mxu0 %v2968
        %2970 = vmatprep.subr.mxu0 0.0
        %v2971 = vand.u32 %v2032, 4294901760
        %2972 = vmatpush1.msra.mxu0 %v2971
        %2973 = vmatprep.subr.mxu0 0.0
        %v2974 = vand.u32 %v2031, 4294901760
        %2975 = vmatpush1.msra.mxu0 %v2974
        %2976 = vmatprep.subr.mxu0 0.0
        %v2977 = vand.u32 %v2030, 4294901760
        %2978 = vmatpush1.msra.mxu0 %v2977
        %2979 = vmatprep.subr.mxu0 0.0
        %v2980 = vand.u32 %v2029, 4294901760
        %2981 = vmatpush1.msra.mxu0 %v2980
        %2982 = vmatprep.subr.mxu0 0.0
        %v2983 = vand.u32 %v2028, 4294901760
        %2984 = vmatpush1.msra.mxu0 %v2983
        %2985 = vmatprep.subr.mxu0 0.0
        %v2986 = vand.u32 %v2027, 4294901760
        %2987 = vmatpush1.msra.mxu0 %v2986
        %2988 = vmatprep.subr.mxu0 0.0
        %v2989 = vand.u32 %v2026, 4294901760
        %2990 = vmatpush1.msra.mxu0 %v2989
        %2991 = vmatprep.subr.mxu0 0.0
        %v2992 = vand.u32 %v2025, 4294901760
        %2993 = vmatpush1.msra.mxu0 %v2992
        %2994 = vmatprep.subr.mxu0 0.0
        %v2995 = vand.u32 %v2024, 4294901760
        %2996 = vmatpush1.msra.mxu0 %v2995
        %2997 = vmatprep.subr.mxu0 0.0
        %v2998 = vand.u32 %v2023, 4294901760
        %2999 = vmatpush1.msra.mxu0 %v2998
        %3000 = vmatprep.subr.mxu0 0.0
        %v3001 = vand.u32 %v2022, 4294901760
        %3002 = vmatpush1.msra.mxu0 %v3001
        %3003 = vmatprep.subr.mxu0 0.0
        %v3004 = vand.u32 %v2021, 4294901760
        %3005 = vmatpush1.msra.mxu0 %v3004
        %3006 = vmatprep.subr.mxu0 0.0
        %v3007 = vand.u32 %v2020, 4294901760
        %3008 = vmatpush1.msra.mxu0 %v3007
        %3009 = vmatprep.subr.mxu0 0.0
        %3010 = vmatpush2.msra.mxu0 0.0
        %3011 = vmatprep.subr.mxu0 0.0
        %3012 = vmatpush2.msra.mxu0 0.0
        %3013 = vmatprep.subr.mxu0 0.0
        %3014 = vmatpush2.msra.mxu0 0.0
        %3015 = vmatprep.subr.mxu0 0.0
        %3016 = vmatpush2.msra.mxu0 0.0
        %3017 = vmatprep.subr.mxu0 0.0
        %3018 = vmatpush2.msra.mxu0 0.0
        %3019 = vmatprep.subr.mxu0 0.0
        %3020 = vmatpush2.msra.mxu0 0.0
        %3021 = vmatprep.subr.mxu0 0.0
        %3022 = vmatpush2.msra.mxu0 0.0
        %3023 = vmatprep.subr.mxu0 0.0
        %v3024 = vand.u32 %v2044, 4294901760
        %3025 = vmatpush2.msra.mxu0 %v3024
        %3026 = vmatprep.subr.mxu0 0.0
        %v3027 = vand.u32 %v2043, 4294901760
        %3028 = vmatpush2.msra.mxu0 %v3027
        %3029 = vmatprep.subr.mxu0 0.0
        %v3030 = vand.u32 %v2042, 4294901760
        %3031 = vmatpush2.msra.mxu0 %v3030
        %3032 = vmatprep.subr.mxu0 0.0
        %v3033 = vand.u32 %v2041, 4294901760
        %3034 = vmatpush2.msra.mxu0 %v3033
        %3035 = vmatprep.subr.mxu0 0.0
        %v3036 = vand.u32 %v2040, 4294901760
        %3037 = vmatpush2.msra.mxu0 %v3036
        %3038 = vmatprep.subr.mxu0 0.0
        %v3039 = vand.u32 %v2039, 4294901760
        %3040 = vmatpush2.msra.mxu0 %v3039
        %3041 = vmatprep.subr.mxu0 0.0
        %v3042 = vand.u32 %v2038, 4294901760
        %3043 = vmatpush2.msra.mxu0 %v3042
        %3044 = vmatprep.subr.mxu0 0.0
        %v3045 = vand.u32 %v2037, 4294901760
        %3046 = vmatpush2.msra.mxu0 %v3045
        %3047 = vmatprep.subr.mxu0 0.0
        %v3048 = vand.u32 %v2036, 4294901760
        %3049 = vmatpush2.msra.mxu0 %v3048
        %v3050 = vand.u32 %v2077, 4294901760
        %3051 = vmatprep.mubr.f32.mxu0 %v3050
        %v3052 = vand.u32 %v2010, 4294901760
        %3053 = vmatmul.mubr.f32.gmra.mxu0 %v3052
        %v3054 = vpop.f32.mrf.mxu0
        %v3055 = vadd.f32 %v2930, %v3054
        %v3056 = vpop.f32.mrf.mxu0
        %v3057 = vand.u32 %v2080, 4294901760
        %3058 = vmatprep.mubr.f32.mxu0 %v3057
        %v3059 = vand.u32 %v2012, 4294901760
        %3060 = vmatmul.mubr.f32.gmra.mxu0 %v3059
        %v3061 = vpop.f32.mrf.mxu0
        %v3062 = vadd.f32 %v2937, %v3061
        %v3063 = vpop.f32.mrf.mxu0
        %v3064 = vand.u32 %v2083, 4294901760
        %3065 = vmatprep.mubr.f32.mxu0 %v3064
        %v3066 = vand.u32 %v2014, 4294901760
        %3067 = vmatmul.mubr.f32.gmra.mxu0 %v3066
        %v3068 = vpop.f32.mrf.mxu0
        %v3069 = vadd.f32 %v2944, %v3068
        %v3070 = vpop.f32.mrf.mxu0
        %v3071 = vand.u32 %v2086, 4294901760
        %3072 = vmatprep.mubr.f32.mxu0 %v3071
        %v3073 = vand.u32 %v2016, 4294901760
        %3074 = vmatmul.mubr.f32.gmra.mxu0 %v3073
        %v3075 = vpop.f32.mrf.mxu0
        %v3076 = vadd.f32 %v2951, %v3075
        %v3077 = vpop.f32.mrf.mxu0
        %v3078 = vand.u32 %v2089, 4294901760
        %3079 = vmatprep.mubr.f32.mxu0 %v3078
        %v3080 = vand.u32 %v2018, 4294901760
        %3081 = vmatmul.mubr.f32.gmra.mxu0 %v3080
        %v3082 = vpop.f32.mrf.mxu0
        %v3083 = vadd.f32 %v2958, %v3082
        %v3084 = vpop.f32.mrf.mxu0
        %3085 = vdwg.mxu0
        %v3086 = vadd.s32 %v535, 4294967294
        %v3087 = vadd.s32 %v536, 4294967294
        %v3088 = vadd.s32 %v537, 4294967294
        %v3089 = vadd.s32 %v538, 4294967294
        %v3090 = vadd.s32 %v539, 4294967294
        %vm3091 = vcmp.ge.s32.totalorder %v3086, 0
        %vm3092 = vcmp.ge.s32.totalorder %v3087, 0
        %vm3093 = vcmp.ge.s32.totalorder %v3088, 0
        %vm3094 = vcmp.ge.s32.totalorder %v3089, 0
        %vm3095 = vcmp.ge.s32.totalorder %v3090, 0
        %vm3096 = vcmp.lt.s32.totalorder %v3086, 5
        %vm3097 = vcmp.lt.s32.totalorder %v3087, 5
        %vm3098 = vcmp.lt.s32.totalorder %v3088, 5
        %vm3099 = vcmp.lt.s32.totalorder %v3089, 5
        %vm3100 = vcmp.lt.s32.totalorder %v3090, 5
        %vm3101 = vmand %vm3091, %vm3096
        %vm3102 = vmand %vm3092, %vm3097
        %vm3103 = vmand %vm3093, %vm3098
        %vm3104 = vmand %vm3094, %vm3099
        %vm3105 = vmand %vm3095, %vm3100
        %v3107 = vrot.slane %v3083, 6
        %v3113 = vrot.slane %v3055, 6
        %v3114 = vrot.slane %v3062, 6
        %v3115 = vsel %vm1882, %v3113, %v3114
        %v3116 = vrot.slane %v3069, 6
        %v3117 = vsel %vm1882, %v3114, %v3116
        %v3118 = vrot.slane %v3076, 6
        %v3119 = vsel %vm1882, %v3116, %v3118
        %v3120 = vsel %vm1882, %v3118, %v3107
        %v3126 = vsel %vm1882, %v3107, %v3113
        %3128 = vrot.lane.b32.xlu0 %v3126, 2
        %v3129 = vpop.permute.xlu0 %3128
        %3130 = vrot.lane.b32.xlu0 %v3115, 2
        %v3131 = vpop.permute.xlu0 %3130
        %3132 = vrot.lane.b32.xlu0 %v3117, 2
        %v3133 = vpop.permute.xlu0 %3132
        %3134 = vrot.lane.b32.xlu0 %v3119, 2
        %v3135 = vpop.permute.xlu0 %3134
        %3136 = vrot.lane.b32.xlu0 %v3120, 2
        %v3137 = vpop.permute.xlu0 %3136
        %v3143 = vsel %vm3101, 1, 0
        %v3144 = vsel %vm3102, 1, 0
        %v3145 = vsel %vm3103, 1, 0
        %v3146 = vsel %vm3104, 1, 0
        %v3147 = vsel %vm3105, 1, 0
        %3148 = vset.pattern.permute.xlu0 0
        %3149 = vperm.xlu0 %3148, %v3143
        %v3150 = vpop.permute.xlu0 %3149
        %3151 = vset.pattern.permute.xlu0 0
        %3152 = vperm.xlu0 %3151, %v3144
        %v3153 = vpop.permute.xlu0 %3152
        %3154 = vset.pattern.permute.xlu0 0
        %3155 = vperm.xlu0 %3154, %v3145
        %v3156 = vpop.permute.xlu0 %3155
        %3157 = vset.pattern.permute.xlu0 0
        %3158 = vperm.xlu0 %3157, %v3146
        %v3159 = vpop.permute.xlu0 %3158
        %3160 = vset.pattern.permute.xlu0 0
        %3161 = vperm.xlu0 %3160, %v3147
        %v3162 = vpop.permute.xlu0 %3161
        %vm3163 = vcmp.eq.s32.totalorder %v3150, 1
        %vm3164 = vcmp.eq.s32.totalorder %v3153, 1
        %vm3165 = vcmp.eq.s32.totalorder %v3156, 1
        %vm3166 = vcmp.eq.s32.totalorder %v3159, 1
        %vm3167 = vcmp.eq.s32.totalorder %v3162, 1
        %vm3168 = vmand %vm3163, %vm1877
        %vm3169 = vmand %vm3164, %vm1877
        %vm3170 = vmand %vm3165, %vm1877
        %vm3171 = vmand %vm3166, %vm1877
        %vm3172 = vmand %vm3167, %vm1877
        %v3173 = vsel %vm3168, %v3129, 0.0
        %v3174 = vsel %vm3169, %v3131, 0.0
        %v3175 = vsel %vm3170, %v3133, 0.0
        %v3176 = vsel %vm3171, %v3135, 0.0
        %v3177 = vsel %vm3172, %v3137, 0.0
        %v3178 = vld [vmem:[%s8] sm:$0xff]
        %v3179 = vld [vmem:[%s8 + $0x8] sm:$0xff]
        %v3180 = vld [vmem:[%s8 + $0x10] sm:$0xff]
        %v3181 = vld [vmem:[%s8 + $0x18] sm:$0xff]
        %v3182 = vld [vmem:[%s8 + $0x20] sm:$0xff]
        %3184 = vset.pattern.permute.xlu0 0
        %3185 = vperm.xlu0 %3184, %v3178
        %v3186 = vpop.permute.xlu0 %3185
        %3189 = vset.pattern.permute.xlu0 0
        %3190 = vperm.xlu0 %3189, %v3179
        %v3191 = vpop.permute.xlu0 %3190
        %3194 = vset.pattern.permute.xlu0 0
        %3195 = vperm.xlu0 %3194, %v3180
        %v3196 = vpop.permute.xlu0 %3195
        %3199 = vset.pattern.permute.xlu0 0
        %3200 = vperm.xlu0 %3199, %v3181
        %v3201 = vpop.permute.xlu0 %3200
        %3204 = vset.pattern.permute.xlu0 0
        %3205 = vperm.xlu0 %3204, %v3182
        %v3206 = vpop.permute.xlu0 %3205
        %v3208 = vmul.f32 %v3173, %v3186
        %v3209 = vmul.f32 %v3174, %v3191
        %v3210 = vmul.f32 %v3175, %v3196
        %v3211 = vmul.f32 %v3176, %v3201
        %v3212 = vmul.f32 %v3177, %v3206
        %v3213 = vadd.f32 %v3208, 0.0
        %v3214 = vadd.f32 %v3209, 0.0
        %v3215 = vadd.f32 %v3210, 0.0
        %v3216 = vadd.f32 %v3211, 0.0
        %v3217 = vadd.f32 %v3212, 0.0
        %3218 = vrot.lane.b32.xlu0 %v3126, 1
        %v3219 = vpop.permute.xlu0 %3218
        %3220 = vrot.lane.b32.xlu0 %v3115, 1
        %v3221 = vpop.permute.xlu0 %3220
        %3222 = vrot.lane.b32.xlu0 %v3117, 1
        %v3223 = vpop.permute.xlu0 %3222
        %3224 = vrot.lane.b32.xlu0 %v3119, 1
        %v3225 = vpop.permute.xlu0 %3224
        %3226 = vrot.lane.b32.xlu0 %v3120, 1
        %v3227 = vpop.permute.xlu0 %3226
        %vm3233 = vmand %vm3163, %vm1909
        %vm3234 = vmand %vm3164, %vm1909
        %vm3235 = vmand %vm3165, %vm1909
        %vm3236 = vmand %vm3166, %vm1909
        %vm3237 = vmand %vm3167, %vm1909
        %v3238 = vsel %vm3233, %v3219, 0.0
        %v3239 = vsel %vm3234, %v3221, 0.0
        %v3240 = vsel %vm3235, %v3223, 0.0
        %v3241 = vsel %vm3236, %v3225, 0.0
        %v3242 = vsel %vm3237, %v3227, 0.0
        %s3243 = scalar_lea.vmem %s8, 40
        %v3244 = vld [vmem:[%s3243] sm:$0xff]
        %v3245 = vld [vmem:[%s3243 + $0x8] sm:$0xff]
        %v3246 = vld [vmem:[%s3243 + $0x10] sm:$0xff]
        %v3247 = vld [vmem:[%s3243 + $0x18] sm:$0xff]
        %v3248 = vld [vmem:[%s3243 + $0x20] sm:$0xff]
        %3250 = vset.pattern.permute.xlu0 0
        %3251 = vperm.xlu0 %3250, %v3244
        %v3252 = vpop.permute.xlu0 %3251
        %3255 = vset.pattern.permute.xlu0 0
        %3256 = vperm.xlu0 %3255, %v3245
        %v3257 = vpop.permute.xlu0 %3256
        %3260 = vset.pattern.permute.xlu0 0
        %3261 = vperm.xlu0 %3260, %v3246
        %v3262 = vpop.permute.xlu0 %3261
        %3265 = vset.pattern.permute.xlu0 0
        %3266 = vperm.xlu0 %3265, %v3247
        %v3267 = vpop.permute.xlu0 %3266
        %3270 = vset.pattern.permute.xlu0 0
        %3271 = vperm.xlu0 %3270, %v3248
        %v3272 = vpop.permute.xlu0 %3271
        %v3274 = vmul.f32 %v3238, %v3252
        %v3275 = vmul.f32 %v3239, %v3257
        %v3276 = vmul.f32 %v3240, %v3262
        %v3277 = vmul.f32 %v3241, %v3267
        %v3278 = vmul.f32 %v3242, %v3272
        %v3279 = vadd.f32 %v3213, %v3274
        %v3280 = vadd.f32 %v3214, %v3275
        %v3281 = vadd.f32 %v3215, %v3276
        %v3282 = vadd.f32 %v3216, %v3277
        %v3283 = vadd.f32 %v3217, %v3278
        %vm3284 = vmand %vm3163, %vm1934
        %vm3285 = vmand %vm3164, %vm1934
        %vm3286 = vmand %vm3165, %vm1934
        %vm3287 = vmand %vm3166, %vm1934
        %vm3288 = vmand %vm3167, %vm1934
        %v3289 = vsel %vm3284, %v3126, 0.0
        %v3290 = vsel %vm3285, %v3115, 0.0
        %v3291 = vsel %vm3286, %v3117, 0.0
        %v3292 = vsel %vm3287, %v3119, 0.0
        %v3293 = vsel %vm3288, %v3120, 0.0
        %s3294 = scalar_lea.vmem %s8, 80
        %v3295 = vld [vmem:[%s3294] sm:$0xff]
        %v3296 = vld [vmem:[%s3294 + $0x8] sm:$0xff]
        %v3297 = vld [vmem:[%s3294 + $0x10] sm:$0xff]
        %v3298 = vld [vmem:[%s3294 + $0x18] sm:$0xff]
        %v3299 = vld [vmem:[%s3294 + $0x20] sm:$0xff]
        %3301 = vset.pattern.permute.xlu0 0
        %3302 = vperm.xlu0 %3301, %v3295
        %v3303 = vpop.permute.xlu0 %3302
        %3306 = vset.pattern.permute.xlu0 0
        %3307 = vperm.xlu0 %3306, %v3296
        %v3308 = vpop.permute.xlu0 %3307
        %3311 = vset.pattern.permute.xlu0 0
        %3312 = vperm.xlu0 %3311, %v3297
        %v3313 = vpop.permute.xlu0 %3312
        %3316 = vset.pattern.permute.xlu0 0
        %3317 = vperm.xlu0 %3316, %v3298
        %v3318 = vpop.permute.xlu0 %3317
        %3321 = vset.pattern.permute.xlu0 0
        %3322 = vperm.xlu0 %3321, %v3299
        %v3323 = vpop.permute.xlu0 %3322
        %v3325 = vmul.f32 %v3289, %v3303
        %v3326 = vmul.f32 %v3290, %v3308
        %v3327 = vmul.f32 %v3291, %v3313
        %v3328 = vmul.f32 %v3292, %v3318
        %v3329 = vmul.f32 %v3293, %v3323
        %v3330 = vadd.f32 %v3279, %v3325
        %v3331 = vadd.f32 %v3280, %v3326
        %v3332 = vadd.f32 %v3281, %v3327
        %v3333 = vadd.f32 %v3282, %v3328
        %v3334 = vadd.f32 %v3283, %v3329
        %3335 = vrot.lane.b32.xlu0 %v3126, 127
        %v3336 = vpop.permute.xlu0 %3335
        %3337 = vrot.lane.b32.xlu0 %v3115, 127
        %v3338 = vpop.permute.xlu0 %3337
        %3339 = vrot.lane.b32.xlu0 %v3117, 127
        %v3340 = vpop.permute.xlu0 %3339
        %3341 = vrot.lane.b32.xlu0 %v3119, 127
        %v3342 = vpop.permute.xlu0 %3341
        %3343 = vrot.lane.b32.xlu0 %v3120, 127
        %v3344 = vpop.permute.xlu0 %3343
        %vm3350 = vmand %vm3163, %vm1962
        %vm3351 = vmand %vm3164, %vm1962
        %vm3352 = vmand %vm3165, %vm1962
        %vm3353 = vmand %vm3166, %vm1962
        %vm3354 = vmand %vm3167, %vm1962
        %v3355 = vsel %vm3350, %v3336, 0.0
        %v3356 = vsel %vm3351, %v3338, 0.0
        %v3357 = vsel %vm3352, %v3340, 0.0
        %v3358 = vsel %vm3353, %v3342, 0.0
        %v3359 = vsel %vm3354, %v3344, 0.0
        %s3360 = scalar_lea.vmem %s8, 120
        %v3361 = vld [vmem:[%s3360] sm:$0xff]
        %v3362 = vld [vmem:[%s3360 + $0x8] sm:$0xff]
        %v3363 = vld [vmem:[%s3360 + $0x10] sm:$0xff]
        %v3364 = vld [vmem:[%s3360 + $0x18] sm:$0xff]
        %v3365 = vld [vmem:[%s3360 + $0x20] sm:$0xff]
        %3367 = vset.pattern.permute.xlu0 0
        %3368 = vperm.xlu0 %3367, %v3361
        %v3369 = vpop.permute.xlu0 %3368
        %3372 = vset.pattern.permute.xlu0 0
        %3373 = vperm.xlu0 %3372, %v3362
        %v3374 = vpop.permute.xlu0 %3373
        %3377 = vset.pattern.permute.xlu0 0
        %3378 = vperm.xlu0 %3377, %v3363
        %v3379 = vpop.permute.xlu0 %3378
        %3382 = vset.pattern.permute.xlu0 0
        %3383 = vperm.xlu0 %3382, %v3364
        %v3384 = vpop.permute.xlu0 %3383
        %3387 = vset.pattern.permute.xlu0 0
        %3388 = vperm.xlu0 %3387, %v3365
        %v3389 = vpop.permute.xlu0 %3388
        %v3391 = vmul.f32 %v3355, %v3369
        %v3392 = vmul.f32 %v3356, %v3374
        %v3393 = vmul.f32 %v3357, %v3379
        %v3394 = vmul.f32 %v3358, %v3384
        %v3395 = vmul.f32 %v3359, %v3389
        %v3396 = vadd.f32 %v3330, %v3391
        %v3397 = vadd.f32 %v3331, %v3392
        %v3398 = vadd.f32 %v3332, %v3393
        %v3399 = vadd.f32 %v3333, %v3394
        %v3400 = vadd.f32 %v3334, %v3395
        %3401 = vrot.lane.b32.xlu0 %v3126, 126
        %v3402 = vpop.permute.xlu0 %3401
        %3403 = vrot.lane.b32.xlu0 %v3115, 126
        %v3404 = vpop.permute.xlu0 %3403
        %3405 = vrot.lane.b32.xlu0 %v3117, 126
        %v3406 = vpop.permute.xlu0 %3405
        %3407 = vrot.lane.b32.xlu0 %v3119, 126
        %v3408 = vpop.permute.xlu0 %3407
        %3409 = vrot.lane.b32.xlu0 %v3120, 126
        %v3410 = vpop.permute.xlu0 %3409
        %vm3416 = vmand %vm3163, %vm1990
        %vm3417 = vmand %vm3164, %vm1990
        %vm3418 = vmand %vm3165, %vm1990
        %vm3419 = vmand %vm3166, %vm1990
        %vm3420 = vmand %vm3167, %vm1990
        %v3421 = vsel %vm3416, %v3402, 0.0
        %v3422 = vsel %vm3417, %v3404, 0.0
        %v3423 = vsel %vm3418, %v3406, 0.0
        %v3424 = vsel %vm3419, %v3408, 0.0
        %v3425 = vsel %vm3420, %v3410, 0.0
        %s3426 = scalar_lea.vmem %s8, 160
        %v3427 = vld [vmem:[%s3426] sm:$0xff]
        %v3428 = vld [vmem:[%s3426 + $0x8] sm:$0xff]
        %v3429 = vld [vmem:[%s3426 + $0x10] sm:$0xff]
        %v3430 = vld [vmem:[%s3426 + $0x18] sm:$0xff]
        %v3431 = vld [vmem:[%s3426 + $0x20] sm:$0xff]
        %3433 = vset.pattern.permute.xlu0 0
        %3434 = vperm.xlu0 %3433, %v3427
        %v3435 = vpop.permute.xlu0 %3434
        %3438 = vset.pattern.permute.xlu0 0
        %3439 = vperm.xlu0 %3438, %v3428
        %v3440 = vpop.permute.xlu0 %3439
        %3443 = vset.pattern.permute.xlu0 0
        %3444 = vperm.xlu0 %3443, %v3429
        %v3445 = vpop.permute.xlu0 %3444
        %3448 = vset.pattern.permute.xlu0 0
        %3449 = vperm.xlu0 %3448, %v3430
        %v3450 = vpop.permute.xlu0 %3449
        %3453 = vset.pattern.permute.xlu0 0
        %3454 = vperm.xlu0 %3453, %v3431
        %v3455 = vpop.permute.xlu0 %3454
        %v3457 = vmul.f32 %v3421, %v3435
        %v3458 = vmul.f32 %v3422, %v3440
        %v3459 = vmul.f32 %v3423, %v3445
        %v3460 = vmul.f32 %v3424, %v3450
        %v3461 = vmul.f32 %v3425, %v3455
        %v3462 = vadd.f32 %v3396, %v3457
        %v3463 = vadd.f32 %v3397, %v3458
        %v3464 = vadd.f32 %v3398, %v3459
        %v3465 = vadd.f32 %v3399, %v3460
        %v3466 = vadd.f32 %v3400, %v3461
        %v3467 = vadd.s32 %v535, 4294967295
        %v3468 = vadd.s32 %v536, 4294967295
        %v3469 = vadd.s32 %v537, 4294967295
        %v3470 = vadd.s32 %v538, 4294967295
        %v3471 = vadd.s32 %v539, 4294967295
        %vm3472 = vcmp.ge.s32.totalorder %v3467, 0
        %vm3473 = vcmp.ge.s32.totalorder %v3468, 0
        %vm3474 = vcmp.ge.s32.totalorder %v3469, 0
        %vm3475 = vcmp.ge.s32.totalorder %v3470, 0
        %vm3476 = vcmp.ge.s32.totalorder %v3471, 0
        %vm3477 = vcmp.lt.s32.totalorder %v3467, 5
        %vm3478 = vcmp.lt.s32.totalorder %v3468, 5
        %vm3479 = vcmp.lt.s32.totalorder %v3469, 5
        %vm3480 = vcmp.lt.s32.totalorder %v3470, 5
        %vm3481 = vcmp.lt.s32.totalorder %v3471, 5
        %vm3482 = vmand %vm3472, %vm3477
        %vm3483 = vmand %vm3473, %vm3478
        %vm3484 = vmand %vm3474, %vm3479
        %vm3485 = vmand %vm3475, %vm3480
        %vm3486 = vmand %vm3476, %vm3481
        %v3487 = vrot.slane %v3083, 7
        %v3489 = vrot.slane %v3055, 7
        %v3490 = vrot.slane %v3062, 7
        %v3491 = vsel %vm1887, %v3489, %v3490
        %v3492 = vrot.slane %v3069, 7
        %v3493 = vsel %vm1887, %v3490, %v3492
        %v3494 = vrot.slane %v3076, 7
        %v3495 = vsel %vm1887, %v3492, %v3494
        %v3496 = vsel %vm1887, %v3494, %v3487
        %v3502 = vsel %vm1887, %v3487, %v3489
        %3504 = vrot.lane.b32.xlu0 %v3502, 2
        %v3505 = vpop.permute.xlu0 %3504
        %3506 = vrot.lane.b32.xlu0 %v3491, 2
        %v3507 = vpop.permute.xlu0 %3506
        %3508 = vrot.lane.b32.xlu0 %v3493, 2
        %v3509 = vpop.permute.xlu0 %3508
        %3510 = vrot.lane.b32.xlu0 %v3495, 2
        %v3511 = vpop.permute.xlu0 %3510
        %3512 = vrot.lane.b32.xlu0 %v3496, 2
        %v3513 = vpop.permute.xlu0 %3512
        %v3519 = vsel %vm3482, 1, 0
        %v3520 = vsel %vm3483, 1, 0
        %v3521 = vsel %vm3484, 1, 0
        %v3522 = vsel %vm3485, 1, 0
        %v3523 = vsel %vm3486, 1, 0
        %3524 = vset.pattern.permute.xlu0 0
        %3525 = vperm.xlu0 %3524, %v3519
        %v3526 = vpop.permute.xlu0 %3525
        %3527 = vset.pattern.permute.xlu0 0
        %3528 = vperm.xlu0 %3527, %v3520
        %v3529 = vpop.permute.xlu0 %3528
        %3530 = vset.pattern.permute.xlu0 0
        %3531 = vperm.xlu0 %3530, %v3521
        %v3532 = vpop.permute.xlu0 %3531
        %3533 = vset.pattern.permute.xlu0 0
        %3534 = vperm.xlu0 %3533, %v3522
        %v3535 = vpop.permute.xlu0 %3534
        %3536 = vset.pattern.permute.xlu0 0
        %3537 = vperm.xlu0 %3536, %v3523
        %v3538 = vpop.permute.xlu0 %3537
        %vm3539 = vcmp.eq.s32.totalorder %v3526, 1
        %vm3540 = vcmp.eq.s32.totalorder %v3529, 1
        %vm3541 = vcmp.eq.s32.totalorder %v3532, 1
        %vm3542 = vcmp.eq.s32.totalorder %v3535, 1
        %vm3543 = vcmp.eq.s32.totalorder %v3538, 1
        %vm3544 = vmand %vm3539, %vm1877
        %vm3545 = vmand %vm3540, %vm1877
        %vm3546 = vmand %vm3541, %vm1877
        %vm3547 = vmand %vm3542, %vm1877
        %vm3548 = vmand %vm3543, %vm1877
        %v3549 = vsel %vm3544, %v3505, 0.0
        %v3550 = vsel %vm3545, %v3507, 0.0
        %v3551 = vsel %vm3546, %v3509, 0.0
        %v3552 = vsel %vm3547, %v3511, 0.0
        %v3553 = vsel %vm3548, %v3513, 0.0
        %s3554 = scalar_lea.vmem %s8, 200
        %v3555 = vld [vmem:[%s3554] sm:$0xff]
        %v3556 = vld [vmem:[%s3554 + $0x8] sm:$0xff]
        %v3557 = vld [vmem:[%s3554 + $0x10] sm:$0xff]
        %v3558 = vld [vmem:[%s3554 + $0x18] sm:$0xff]
        %v3559 = vld [vmem:[%s3554 + $0x20] sm:$0xff]
        %3561 = vset.pattern.permute.xlu0 0
        %3562 = vperm.xlu0 %3561, %v3555
        %v3563 = vpop.permute.xlu0 %3562
        %3566 = vset.pattern.permute.xlu0 0
        %3567 = vperm.xlu0 %3566, %v3556
        %v3568 = vpop.permute.xlu0 %3567
        %3571 = vset.pattern.permute.xlu0 0
        %3572 = vperm.xlu0 %3571, %v3557
        %v3573 = vpop.permute.xlu0 %3572
        %3576 = vset.pattern.permute.xlu0 0
        %3577 = vperm.xlu0 %3576, %v3558
        %v3578 = vpop.permute.xlu0 %3577
        %3581 = vset.pattern.permute.xlu0 0
        %3582 = vperm.xlu0 %3581, %v3559
        %v3583 = vpop.permute.xlu0 %3582
        %v3585 = vmul.f32 %v3549, %v3563
        %v3586 = vmul.f32 %v3550, %v3568
        %v3587 = vmul.f32 %v3551, %v3573
        %v3588 = vmul.f32 %v3552, %v3578
        %v3589 = vmul.f32 %v3553, %v3583
        %v3590 = vadd.f32 %v3462, %v3585
        %v3591 = vadd.f32 %v3463, %v3586
        %v3592 = vadd.f32 %v3464, %v3587
        %v3593 = vadd.f32 %v3465, %v3588
        %v3594 = vadd.f32 %v3466, %v3589
        %3595 = vrot.lane.b32.xlu0 %v3502, 1
        %v3596 = vpop.permute.xlu0 %3595
        %3597 = vrot.lane.b32.xlu0 %v3491, 1
        %v3598 = vpop.permute.xlu0 %3597
        %3599 = vrot.lane.b32.xlu0 %v3493, 1
        %v3600 = vpop.permute.xlu0 %3599
        %3601 = vrot.lane.b32.xlu0 %v3495, 1
        %v3602 = vpop.permute.xlu0 %3601
        %3603 = vrot.lane.b32.xlu0 %v3496, 1
        %v3604 = vpop.permute.xlu0 %3603
        %vm3610 = vmand %vm3539, %vm1909
        %vm3611 = vmand %vm3540, %vm1909
        %vm3612 = vmand %vm3541, %vm1909
        %vm3613 = vmand %vm3542, %vm1909
        %vm3614 = vmand %vm3543, %vm1909
        %v3615 = vsel %vm3610, %v3596, 0.0
        %v3616 = vsel %vm3611, %v3598, 0.0
        %v3617 = vsel %vm3612, %v3600, 0.0
        %v3618 = vsel %vm3613, %v3602, 0.0
        %v3619 = vsel %vm3614, %v3604, 0.0
        %s3620 = scalar_lea.vmem %s8, 240
        %v3621 = vld [vmem:[%s3620] sm:$0xff]
        %v3622 = vld [vmem:[%s3620 + $0x8] sm:$0xff]
        %v3623 = vld [vmem:[%s3620 + $0x10] sm:$0xff]
        %v3624 = vld [vmem:[%s3620 + $0x18] sm:$0xff]
        %v3625 = vld [vmem:[%s3620 + $0x20] sm:$0xff]
        %3627 = vset.pattern.permute.xlu0 0
        %3628 = vperm.xlu0 %3627, %v3621
        %v3629 = vpop.permute.xlu0 %3628
        %3632 = vset.pattern.permute.xlu0 0
        %3633 = vperm.xlu0 %3632, %v3622
        %v3634 = vpop.permute.xlu0 %3633
        %3637 = vset.pattern.permute.xlu0 0
        %3638 = vperm.xlu0 %3637, %v3623
        %v3639 = vpop.permute.xlu0 %3638
        %3642 = vset.pattern.permute.xlu0 0
        %3643 = vperm.xlu0 %3642, %v3624
        %v3644 = vpop.permute.xlu0 %3643
        %3647 = vset.pattern.permute.xlu0 0
        %3648 = vperm.xlu0 %3647, %v3625
        %v3649 = vpop.permute.xlu0 %3648
        %v3651 = vmul.f32 %v3615, %v3629
        %v3652 = vmul.f32 %v3616, %v3634
        %v3653 = vmul.f32 %v3617, %v3639
        %v3654 = vmul.f32 %v3618, %v3644
        %v3655 = vmul.f32 %v3619, %v3649
        %v3656 = vadd.f32 %v3590, %v3651
        %v3657 = vadd.f32 %v3591, %v3652
        %v3658 = vadd.f32 %v3592, %v3653
        %v3659 = vadd.f32 %v3593, %v3654
        %v3660 = vadd.f32 %v3594, %v3655
        %vm3661 = vmand %vm3539, %vm1934
        %vm3662 = vmand %vm3540, %vm1934
        %vm3663 = vmand %vm3541, %vm1934
        %vm3664 = vmand %vm3542, %vm1934
        %vm3665 = vmand %vm3543, %vm1934
        %v3666 = vsel %vm3661, %v3502, 0.0
        %v3667 = vsel %vm3662, %v3491, 0.0
        %v3668 = vsel %vm3663, %v3493, 0.0
        %v3669 = vsel %vm3664, %v3495, 0.0
        %v3670 = vsel %vm3665, %v3496, 0.0
        %s3671 = scalar_lea.vmem %s8, 280
        %v3672 = vld [vmem:[%s3671] sm:$0xff]
        %v3673 = vld [vmem:[%s3671 + $0x8] sm:$0xff]
        %v3674 = vld [vmem:[%s3671 + $0x10] sm:$0xff]
        %v3675 = vld [vmem:[%s3671 + $0x18] sm:$0xff]
        %v3676 = vld [vmem:[%s3671 + $0x20] sm:$0xff]
        %3678 = vset.pattern.permute.xlu0 0
        %3679 = vperm.xlu0 %3678, %v3672
        %v3680 = vpop.permute.xlu0 %3679
        %3683 = vset.pattern.permute.xlu0 0
        %3684 = vperm.xlu0 %3683, %v3673
        %v3685 = vpop.permute.xlu0 %3684
        %3688 = vset.pattern.permute.xlu0 0
        %3689 = vperm.xlu0 %3688, %v3674
        %v3690 = vpop.permute.xlu0 %3689
        %3693 = vset.pattern.permute.xlu0 0
        %3694 = vperm.xlu0 %3693, %v3675
        %v3695 = vpop.permute.xlu0 %3694
        %3698 = vset.pattern.permute.xlu0 0
        %3699 = vperm.xlu0 %3698, %v3676
        %v3700 = vpop.permute.xlu0 %3699
        %v3702 = vmul.f32 %v3666, %v3680
        %v3703 = vmul.f32 %v3667, %v3685
        %v3704 = vmul.f32 %v3668, %v3690
        %v3705 = vmul.f32 %v3669, %v3695
        %v3706 = vmul.f32 %v3670, %v3700
        %v3707 = vadd.f32 %v3656, %v3702
        %v3708 = vadd.f32 %v3657, %v3703
        %v3709 = vadd.f32 %v3658, %v3704
        %v3710 = vadd.f32 %v3659, %v3705
        %v3711 = vadd.f32 %v3660, %v3706
        %3712 = vrot.lane.b32.xlu0 %v3502, 127
        %v3713 = vpop.permute.xlu0 %3712
        %3714 = vrot.lane.b32.xlu0 %v3491, 127
        %v3715 = vpop.permute.xlu0 %3714
        %3716 = vrot.lane.b32.xlu0 %v3493, 127
        %v3717 = vpop.permute.xlu0 %3716
        %3718 = vrot.lane.b32.xlu0 %v3495, 127
        %v3719 = vpop.permute.xlu0 %3718
        %3720 = vrot.lane.b32.xlu0 %v3496, 127
        %v3721 = vpop.permute.xlu0 %3720
        %vm3727 = vmand %vm3539, %vm1962
        %vm3728 = vmand %vm3540, %vm1962
        %vm3729 = vmand %vm3541, %vm1962
        %vm3730 = vmand %vm3542, %vm1962
        %vm3731 = vmand %vm3543, %vm1962
        %v3732 = vsel %vm3727, %v3713, 0.0
        %v3733 = vsel %vm3728, %v3715, 0.0
        %v3734 = vsel %vm3729, %v3717, 0.0
        %v3735 = vsel %vm3730, %v3719, 0.0
        %v3736 = vsel %vm3731, %v3721, 0.0
        %s3737 = scalar_lea.vmem %s8, 320
        %v3738 = vld [vmem:[%s3737] sm:$0xff]
        %v3739 = vld [vmem:[%s3737 + $0x8] sm:$0xff]
        %v3740 = vld [vmem:[%s3737 + $0x10] sm:$0xff]
        %v3741 = vld [vmem:[%s3737 + $0x18] sm:$0xff]
        %v3742 = vld [vmem:[%s3737 + $0x20] sm:$0xff]
        %3744 = vset.pattern.permute.xlu0 0
        %3745 = vperm.xlu0 %3744, %v3738
        %v3746 = vpop.permute.xlu0 %3745
        %3749 = vset.pattern.permute.xlu0 0
        %3750 = vperm.xlu0 %3749, %v3739
        %v3751 = vpop.permute.xlu0 %3750
        %3754 = vset.pattern.permute.xlu0 0
        %3755 = vperm.xlu0 %3754, %v3740
        %v3756 = vpop.permute.xlu0 %3755
        %3759 = vset.pattern.permute.xlu0 0
        %3760 = vperm.xlu0 %3759, %v3741
        %v3761 = vpop.permute.xlu0 %3760
        %3764 = vset.pattern.permute.xlu0 0
        %3765 = vperm.xlu0 %3764, %v3742
        %v3766 = vpop.permute.xlu0 %3765
        %v3768 = vmul.f32 %v3732, %v3746
        %v3769 = vmul.f32 %v3733, %v3751
        %v3770 = vmul.f32 %v3734, %v3756
        %v3771 = vmul.f32 %v3735, %v3761
        %v3772 = vmul.f32 %v3736, %v3766
        %v3773 = vadd.f32 %v3707, %v3768
        %v3774 = vadd.f32 %v3708, %v3769
        %v3775 = vadd.f32 %v3709, %v3770
        %v3776 = vadd.f32 %v3710, %v3771
        %v3777 = vadd.f32 %v3711, %v3772
        %3778 = vrot.lane.b32.xlu0 %v3502, 126
        %v3779 = vpop.permute.xlu0 %3778
        %3780 = vrot.lane.b32.xlu0 %v3491, 126
        %v3781 = vpop.permute.xlu0 %3780
        %3782 = vrot.lane.b32.xlu0 %v3493, 126
        %v3783 = vpop.permute.xlu0 %3782
        %3784 = vrot.lane.b32.xlu0 %v3495, 126
        %v3785 = vpop.permute.xlu0 %3784
        %3786 = vrot.lane.b32.xlu0 %v3496, 126
        %v3787 = vpop.permute.xlu0 %3786
        %vm3793 = vmand %vm3539, %vm1990
        %vm3794 = vmand %vm3540, %vm1990
        %vm3795 = vmand %vm3541, %vm1990
        %vm3796 = vmand %vm3542, %vm1990
        %vm3797 = vmand %vm3543, %vm1990
        %v3798 = vsel %vm3793, %v3779, 0.0
        %v3799 = vsel %vm3794, %v3781, 0.0
        %v3800 = vsel %vm3795, %v3783, 0.0
        %v3801 = vsel %vm3796, %v3785, 0.0
        %v3802 = vsel %vm3797, %v3787, 0.0
        %s3803 = scalar_lea.vmem %s8, 360
        %v3804 = vld [vmem:[%s3803] sm:$0xff]
        %v3805 = vld [vmem:[%s3803 + $0x8] sm:$0xff]
        %v3806 = vld [vmem:[%s3803 + $0x10] sm:$0xff]
        %v3807 = vld [vmem:[%s3803 + $0x18] sm:$0xff]
        %v3808 = vld [vmem:[%s3803 + $0x20] sm:$0xff]
        %3810 = vset.pattern.permute.xlu0 0
        %3811 = vperm.xlu0 %3810, %v3804
        %v3812 = vpop.permute.xlu0 %3811
        %3815 = vset.pattern.permute.xlu0 0
        %3816 = vperm.xlu0 %3815, %v3805
        %v3817 = vpop.permute.xlu0 %3816
        %3820 = vset.pattern.permute.xlu0 0
        %3821 = vperm.xlu0 %3820, %v3806
        %v3822 = vpop.permute.xlu0 %3821
        %3825 = vset.pattern.permute.xlu0 0
        %3826 = vperm.xlu0 %3825, %v3807
        %v3827 = vpop.permute.xlu0 %3826
        %3830 = vset.pattern.permute.xlu0 0
        %3831 = vperm.xlu0 %3830, %v3808
        %v3832 = vpop.permute.xlu0 %3831
        %v3834 = vmul.f32 %v3798, %v3812
        %v3835 = vmul.f32 %v3799, %v3817
        %v3836 = vmul.f32 %v3800, %v3822
        %v3837 = vmul.f32 %v3801, %v3827
        %v3838 = vmul.f32 %v3802, %v3832
        %v3839 = vadd.f32 %v3773, %v3834
        %v3840 = vadd.f32 %v3774, %v3835
        %v3841 = vadd.f32 %v3775, %v3836
        %v3842 = vadd.f32 %v3776, %v3837
        %v3843 = vadd.f32 %v3777, %v3838
        %vm3844 = vcmp.ge.s32.totalorder %v535, 0
        %vm3845 = vcmp.ge.s32.totalorder %v536, 0
        %vm3846 = vcmp.ge.s32.totalorder %v537, 0
        %vm3847 = vcmp.ge.s32.totalorder %v538, 0
        %vm3848 = vcmp.ge.s32.totalorder %v539, 0
        %vm3849 = vcmp.lt.s32.totalorder %v535, 5
        %vm3850 = vcmp.lt.s32.totalorder %v536, 5
        %vm3851 = vcmp.lt.s32.totalorder %v537, 5
        %vm3852 = vcmp.lt.s32.totalorder %v538, 5
        %vm3853 = vcmp.lt.s32.totalorder %v539, 5
        %vm3854 = vmand %vm3844, %vm3849
        %vm3855 = vmand %vm3845, %vm3850
        %vm3856 = vmand %vm3846, %vm3851
        %vm3857 = vmand %vm3847, %vm3852
        %vm3858 = vmand %vm3848, %vm3853
        %3859 = vrot.lane.b32.xlu0 %v3055, 2
        %v3860 = vpop.permute.xlu0 %3859
        %3861 = vrot.lane.b32.xlu0 %v3062, 2
        %v3862 = vpop.permute.xlu0 %3861
        %3863 = vrot.lane.b32.xlu0 %v3069, 2
        %v3864 = vpop.permute.xlu0 %3863
        %3865 = vrot.lane.b32.xlu0 %v3076, 2
        %v3866 = vpop.permute.xlu0 %3865
        %3867 = vrot.lane.b32.xlu0 %v3083, 2
        %v3868 = vpop.permute.xlu0 %3867
        %v3874 = vsel %vm3854, 1, 0
        %v3875 = vsel %vm3855, 1, 0
        %v3876 = vsel %vm3856, 1, 0
        %v3877 = vsel %vm3857, 1, 0
        %v3878 = vsel %vm3858, 1, 0
        %3879 = vset.pattern.permute.xlu0 0
        %3880 = vperm.xlu0 %3879, %v3874
        %v3881 = vpop.permute.xlu0 %3880
        %3882 = vset.pattern.permute.xlu0 0
        %3883 = vperm.xlu0 %3882, %v3875
        %v3884 = vpop.permute.xlu0 %3883
        %3885 = vset.pattern.permute.xlu0 0
        %3886 = vperm.xlu0 %3885, %v3876
        %v3887 = vpop.permute.xlu0 %3886
        %3888 = vset.pattern.permute.xlu0 0
        %3889 = vperm.xlu0 %3888, %v3877
        %v3890 = vpop.permute.xlu0 %3889
        %3891 = vset.pattern.permute.xlu0 0
        %3892 = vperm.xlu0 %3891, %v3878
        %v3893 = vpop.permute.xlu0 %3892
        %vm3894 = vcmp.eq.s32.totalorder %v3881, 1
        %vm3895 = vcmp.eq.s32.totalorder %v3884, 1
        %vm3896 = vcmp.eq.s32.totalorder %v3887, 1
        %vm3897 = vcmp.eq.s32.totalorder %v3890, 1
        %vm3898 = vcmp.eq.s32.totalorder %v3893, 1
        %vm3899 = vmand %vm3894, %vm1877
        %vm3900 = vmand %vm3895, %vm1877
        %vm3901 = vmand %vm3896, %vm1877
        %vm3902 = vmand %vm3897, %vm1877
        %vm3903 = vmand %vm3898, %vm1877
        %v3904 = vsel %vm3899, %v3860, 0.0
        %v3905 = vsel %vm3900, %v3862, 0.0
        %v3906 = vsel %vm3901, %v3864, 0.0
        %v3907 = vsel %vm3902, %v3866, 0.0
        %v3908 = vsel %vm3903, %v3868, 0.0
        %s3909 = scalar_lea.vmem %s8, 400
        %v3910 = vld [vmem:[%s3909] sm:$0xff]
        %v3911 = vld [vmem:[%s3909 + $0x8] sm:$0xff]
        %v3912 = vld [vmem:[%s3909 + $0x10] sm:$0xff]
        %v3913 = vld [vmem:[%s3909 + $0x18] sm:$0xff]
        %v3914 = vld [vmem:[%s3909 + $0x20] sm:$0xff]
        %3916 = vset.pattern.permute.xlu0 0
        %3917 = vperm.xlu0 %3916, %v3910
        %v3918 = vpop.permute.xlu0 %3917
        %3921 = vset.pattern.permute.xlu0 0
        %3922 = vperm.xlu0 %3921, %v3911
        %v3923 = vpop.permute.xlu0 %3922
        %3926 = vset.pattern.permute.xlu0 0
        %3927 = vperm.xlu0 %3926, %v3912
        %v3928 = vpop.permute.xlu0 %3927
        %3931 = vset.pattern.permute.xlu0 0
        %3932 = vperm.xlu0 %3931, %v3913
        %v3933 = vpop.permute.xlu0 %3932
        %3936 = vset.pattern.permute.xlu0 0
        %3937 = vperm.xlu0 %3936, %v3914
        %v3938 = vpop.permute.xlu0 %3937
        %v3940 = vmul.f32 %v3904, %v3918
        %v3941 = vmul.f32 %v3905, %v3923
        %v3942 = vmul.f32 %v3906, %v3928
        %v3943 = vmul.f32 %v3907, %v3933
        %v3944 = vmul.f32 %v3908, %v3938
        %v3945 = vadd.f32 %v3839, %v3940
        %v3946 = vadd.f32 %v3840, %v3941
        %v3947 = vadd.f32 %v3841, %v3942
        %v3948 = vadd.f32 %v3842, %v3943
        %v3949 = vadd.f32 %v3843, %v3944
        %3950 = vrot.lane.b32.xlu0 %v3055, 1
        %v3951 = vpop.permute.xlu0 %3950
        %3952 = vrot.lane.b32.xlu0 %v3062, 1
        %v3953 = vpop.permute.xlu0 %3952
        %3954 = vrot.lane.b32.xlu0 %v3069, 1
        %v3955 = vpop.permute.xlu0 %3954
        %3956 = vrot.lane.b32.xlu0 %v3076, 1
        %v3957 = vpop.permute.xlu0 %3956
        %3958 = vrot.lane.b32.xlu0 %v3083, 1
        %v3959 = vpop.permute.xlu0 %3958
        %vm3965 = vmand %vm3894, %vm1909
        %vm3966 = vmand %vm3895, %vm1909
        %vm3967 = vmand %vm3896, %vm1909
        %vm3968 = vmand %vm3897, %vm1909
        %vm3969 = vmand %vm3898, %vm1909
        %v3970 = vsel %vm3965, %v3951, 0.0
        %v3971 = vsel %vm3966, %v3953, 0.0
        %v3972 = vsel %vm3967, %v3955, 0.0
        %v3973 = vsel %vm3968, %v3957, 0.0
        %v3974 = vsel %vm3969, %v3959, 0.0
        %s3975 = scalar_lea.vmem %s8, 440
        %v3976 = vld [vmem:[%s3975] sm:$0xff]
        %v3977 = vld [vmem:[%s3975 + $0x8] sm:$0xff]
        %v3978 = vld [vmem:[%s3975 + $0x10] sm:$0xff]
        %v3979 = vld [vmem:[%s3975 + $0x18] sm:$0xff]
        %v3980 = vld [vmem:[%s3975 + $0x20] sm:$0xff]
        %3982 = vset.pattern.permute.xlu0 0
        %3983 = vperm.xlu0 %3982, %v3976
        %v3984 = vpop.permute.xlu0 %3983
        %3987 = vset.pattern.permute.xlu0 0
        %3988 = vperm.xlu0 %3987, %v3977
        %v3989 = vpop.permute.xlu0 %3988
        %3992 = vset.pattern.permute.xlu0 0
        %3993 = vperm.xlu0 %3992, %v3978
        %v3994 = vpop.permute.xlu0 %3993
        %3997 = vset.pattern.permute.xlu0 0
        %3998 = vperm.xlu0 %3997, %v3979
        %v3999 = vpop.permute.xlu0 %3998
        %4002 = vset.pattern.permute.xlu0 0
        %4003 = vperm.xlu0 %4002, %v3980
        %v4004 = vpop.permute.xlu0 %4003
        %v4006 = vmul.f32 %v3970, %v3984
        %v4007 = vmul.f32 %v3971, %v3989
        %v4008 = vmul.f32 %v3972, %v3994
        %v4009 = vmul.f32 %v3973, %v3999
        %v4010 = vmul.f32 %v3974, %v4004
        %v4011 = vadd.f32 %v3945, %v4006
        %v4012 = vadd.f32 %v3946, %v4007
        %v4013 = vadd.f32 %v3947, %v4008
        %v4014 = vadd.f32 %v3948, %v4009
        %v4015 = vadd.f32 %v3949, %v4010
        %vm4016 = vmand %vm3894, %vm1934
        %vm4017 = vmand %vm3895, %vm1934
        %vm4018 = vmand %vm3896, %vm1934
        %vm4019 = vmand %vm3897, %vm1934
        %vm4020 = vmand %vm3898, %vm1934
        %v4021 = vsel %vm4016, %v3055, 0.0
        %v4022 = vsel %vm4017, %v3062, 0.0
        %v4023 = vsel %vm4018, %v3069, 0.0
        %v4024 = vsel %vm4019, %v3076, 0.0
        %v4025 = vsel %vm4020, %v3083, 0.0
        %s4026 = scalar_lea.vmem %s8, 480
        %v4027 = vld [vmem:[%s4026] sm:$0xff]
        %v4028 = vld [vmem:[%s4026 + $0x8] sm:$0xff]
        %v4029 = vld [vmem:[%s4026 + $0x10] sm:$0xff]
        %v4030 = vld [vmem:[%s4026 + $0x18] sm:$0xff]
        %v4031 = vld [vmem:[%s4026 + $0x20] sm:$0xff]
        %4033 = vset.pattern.permute.xlu0 0
        %4034 = vperm.xlu0 %4033, %v4027
        %v4035 = vpop.permute.xlu0 %4034
        %4038 = vset.pattern.permute.xlu0 0
        %4039 = vperm.xlu0 %4038, %v4028
        %v4040 = vpop.permute.xlu0 %4039
        %4043 = vset.pattern.permute.xlu0 0
        %4044 = vperm.xlu0 %4043, %v4029
        %v4045 = vpop.permute.xlu0 %4044
        %4048 = vset.pattern.permute.xlu0 0
        %4049 = vperm.xlu0 %4048, %v4030
        %v4050 = vpop.permute.xlu0 %4049
        %4053 = vset.pattern.permute.xlu0 0
        %4054 = vperm.xlu0 %4053, %v4031
        %v4055 = vpop.permute.xlu0 %4054
        %v4057 = vmul.f32 %v4021, %v4035
        %v4058 = vmul.f32 %v4022, %v4040
        %v4059 = vmul.f32 %v4023, %v4045
        %v4060 = vmul.f32 %v4024, %v4050
        %v4061 = vmul.f32 %v4025, %v4055
        %v4062 = vadd.f32 %v4011, %v4057
        %v4063 = vadd.f32 %v4012, %v4058
        %v4064 = vadd.f32 %v4013, %v4059
        %v4065 = vadd.f32 %v4014, %v4060
        %v4066 = vadd.f32 %v4015, %v4061
        %4067 = vrot.lane.b32.xlu0 %v3055, 127
        %v4068 = vpop.permute.xlu0 %4067
        %4069 = vrot.lane.b32.xlu0 %v3062, 127
        %v4070 = vpop.permute.xlu0 %4069
        %4071 = vrot.lane.b32.xlu0 %v3069, 127
        %v4072 = vpop.permute.xlu0 %4071
        %4073 = vrot.lane.b32.xlu0 %v3076, 127
        %v4074 = vpop.permute.xlu0 %4073
        %4075 = vrot.lane.b32.xlu0 %v3083, 127
        %v4076 = vpop.permute.xlu0 %4075
        %vm4082 = vmand %vm3894, %vm1962
        %vm4083 = vmand %vm3895, %vm1962
        %vm4084 = vmand %vm3896, %vm1962
        %vm4085 = vmand %vm3897, %vm1962
        %vm4086 = vmand %vm3898, %vm1962
        %v4087 = vsel %vm4082, %v4068, 0.0
        %v4088 = vsel %vm4083, %v4070, 0.0
        %v4089 = vsel %vm4084, %v4072, 0.0
        %v4090 = vsel %vm4085, %v4074, 0.0
        %v4091 = vsel %vm4086, %v4076, 0.0
        %s4092 = scalar_lea.vmem %s8, 520
        %v4093 = vld [vmem:[%s4092] sm:$0xff]
        %v4094 = vld [vmem:[%s4092 + $0x8] sm:$0xff]
        %v4095 = vld [vmem:[%s4092 + $0x10] sm:$0xff]
        %v4096 = vld [vmem:[%s4092 + $0x18] sm:$0xff]
        %v4097 = vld [vmem:[%s4092 + $0x20] sm:$0xff]
        %4099 = vset.pattern.permute.xlu0 0
        %4100 = vperm.xlu0 %4099, %v4093
        %v4101 = vpop.permute.xlu0 %4100
        %4104 = vset.pattern.permute.xlu0 0
        %4105 = vperm.xlu0 %4104, %v4094
        %v4106 = vpop.permute.xlu0 %4105
        %4109 = vset.pattern.permute.xlu0 0
        %4110 = vperm.xlu0 %4109, %v4095
        %v4111 = vpop.permute.xlu0 %4110
        %4114 = vset.pattern.permute.xlu0 0
        %4115 = vperm.xlu0 %4114, %v4096
        %v4116 = vpop.permute.xlu0 %4115
        %4119 = vset.pattern.permute.xlu0 0
        %4120 = vperm.xlu0 %4119, %v4097
        %v4121 = vpop.permute.xlu0 %4120
        %v4123 = vmul.f32 %v4087, %v4101
        %v4124 = vmul.f32 %v4088, %v4106
        %v4125 = vmul.f32 %v4089, %v4111
        %v4126 = vmul.f32 %v4090, %v4116
        %v4127 = vmul.f32 %v4091, %v4121
        %v4128 = vadd.f32 %v4062, %v4123
        %v4129 = vadd.f32 %v4063, %v4124
        %v4130 = vadd.f32 %v4064, %v4125
        %v4131 = vadd.f32 %v4065, %v4126
        %v4132 = vadd.f32 %v4066, %v4127
        %4133 = vrot.lane.b32.xlu0 %v3055, 126
        %v4134 = vpop.permute.xlu0 %4133
        %4135 = vrot.lane.b32.xlu0 %v3062, 126
        %v4136 = vpop.permute.xlu0 %4135
        %4137 = vrot.lane.b32.xlu0 %v3069, 126
        %v4138 = vpop.permute.xlu0 %4137
        %4139 = vrot.lane.b32.xlu0 %v3076, 126
        %v4140 = vpop.permute.xlu0 %4139
        %4141 = vrot.lane.b32.xlu0 %v3083, 126
        %v4142 = vpop.permute.xlu0 %4141
        %vm4148 = vmand %vm3894, %vm1990
        %vm4149 = vmand %vm3895, %vm1990
        %vm4150 = vmand %vm3896, %vm1990
        %vm4151 = vmand %vm3897, %vm1990
        %vm4152 = vmand %vm3898, %vm1990
        %v4153 = vsel %vm4148, %v4134, 0.0
        %v4154 = vsel %vm4149, %v4136, 0.0
        %v4155 = vsel %vm4150, %v4138, 0.0
        %v4156 = vsel %vm4151, %v4140, 0.0
        %v4157 = vsel %vm4152, %v4142, 0.0
        %s4158 = scalar_lea.vmem %s8, 560
        %v4159 = vld [vmem:[%s4158] sm:$0xff]
        %v4160 = vld [vmem:[%s4158 + $0x8] sm:$0xff]
        %v4161 = vld [vmem:[%s4158 + $0x10] sm:$0xff]
        %v4162 = vld [vmem:[%s4158 + $0x18] sm:$0xff]
        %v4163 = vld [vmem:[%s4158 + $0x20] sm:$0xff]
        %4165 = vset.pattern.permute.xlu0 0
        %4166 = vperm.xlu0 %4165, %v4159
        %v4167 = vpop.permute.xlu0 %4166
        %4170 = vset.pattern.permute.xlu0 0
        %4171 = vperm.xlu0 %4170, %v4160
        %v4172 = vpop.permute.xlu0 %4171
        %4175 = vset.pattern.permute.xlu0 0
        %4176 = vperm.xlu0 %4175, %v4161
        %v4177 = vpop.permute.xlu0 %4176
        %4180 = vset.pattern.permute.xlu0 0
        %4181 = vperm.xlu0 %4180, %v4162
        %v4182 = vpop.permute.xlu0 %4181
        %4185 = vset.pattern.permute.xlu0 0
        %4186 = vperm.xlu0 %4185, %v4163
        %v4187 = vpop.permute.xlu0 %4186
        %v4189 = vmul.f32 %v4153, %v4167
        %v4190 = vmul.f32 %v4154, %v4172
        %v4191 = vmul.f32 %v4155, %v4177
        %v4192 = vmul.f32 %v4156, %v4182
        %v4193 = vmul.f32 %v4157, %v4187
        %v4194 = vadd.f32 %v4128, %v4189
        %v4195 = vadd.f32 %v4129, %v4190
        %v4196 = vadd.f32 %v4130, %v4191
        %v4197 = vadd.f32 %v4131, %v4192
        %v4198 = vadd.f32 %v4132, %v4193
        %v4199 = vadd.s32 %v535, 1
        %v4200 = vadd.s32 %v536, 1
        %v4201 = vadd.s32 %v537, 1
        %v4202 = vadd.s32 %v538, 1
        %v4203 = vadd.s32 %v539, 1
        %vm4204 = vcmp.ge.s32.totalorder %v4199, 0
        %vm4205 = vcmp.ge.s32.totalorder %v4200, 0
        %vm4206 = vcmp.ge.s32.totalorder %v4201, 0
        %vm4207 = vcmp.ge.s32.totalorder %v4202, 0
        %vm4208 = vcmp.ge.s32.totalorder %v4203, 0
        %vm4209 = vcmp.lt.s32.totalorder %v4199, 5
        %vm4210 = vcmp.lt.s32.totalorder %v4200, 5
        %vm4211 = vcmp.lt.s32.totalorder %v4201, 5
        %vm4212 = vcmp.lt.s32.totalorder %v4202, 5
        %vm4213 = vcmp.lt.s32.totalorder %v4203, 5
        %vm4214 = vmand %vm4204, %vm4209
        %vm4215 = vmand %vm4205, %vm4210
        %vm4216 = vmand %vm4206, %vm4211
        %vm4217 = vmand %vm4207, %vm4212
        %vm4218 = vmand %vm4208, %vm4213
        %v4219 = vrot.slane %v3055, 1
        %v4220 = vrot.slane %v3062, 1
        %v4221 = vsel %vm1893, %v4219, %v4220
        %v4222 = vrot.slane %v3069, 1
        %v4223 = vsel %vm1893, %v4220, %v4222
        %v4224 = vrot.slane %v3076, 1
        %v4225 = vsel %vm1893, %v4222, %v4224
        %v4226 = vrot.slane %v3083, 1
        %v4227 = vsel %vm1893, %v4224, %v4226
        %v4234 = vsel %vm1893, %v4226, %v4219
        %4236 = vrot.lane.b32.xlu0 %v4221, 2
        %v4237 = vpop.permute.xlu0 %4236
        %4238 = vrot.lane.b32.xlu0 %v4223, 2
        %v4239 = vpop.permute.xlu0 %4238
        %4240 = vrot.lane.b32.xlu0 %v4225, 2
        %v4241 = vpop.permute.xlu0 %4240
        %4242 = vrot.lane.b32.xlu0 %v4227, 2
        %v4243 = vpop.permute.xlu0 %4242
        %4244 = vrot.lane.b32.xlu0 %v4234, 2
        %v4245 = vpop.permute.xlu0 %4244
        %v4251 = vsel %vm4214, 1, 0
        %v4252 = vsel %vm4215, 1, 0
        %v4253 = vsel %vm4216, 1, 0
        %v4254 = vsel %vm4217, 1, 0
        %v4255 = vsel %vm4218, 1, 0
        %4256 = vset.pattern.permute.xlu0 0
        %4257 = vperm.xlu0 %4256, %v4251
        %v4258 = vpop.permute.xlu0 %4257
        %4259 = vset.pattern.permute.xlu0 0
        %4260 = vperm.xlu0 %4259, %v4252
        %v4261 = vpop.permute.xlu0 %4260
        %4262 = vset.pattern.permute.xlu0 0
        %4263 = vperm.xlu0 %4262, %v4253
        %v4264 = vpop.permute.xlu0 %4263
        %4265 = vset.pattern.permute.xlu0 0
        %4266 = vperm.xlu0 %4265, %v4254
        %v4267 = vpop.permute.xlu0 %4266
        %4268 = vset.pattern.permute.xlu0 0
        %4269 = vperm.xlu0 %4268, %v4255
        %v4270 = vpop.permute.xlu0 %4269
        %vm4271 = vcmp.eq.s32.totalorder %v4258, 1
        %vm4272 = vcmp.eq.s32.totalorder %v4261, 1
        %vm4273 = vcmp.eq.s32.totalorder %v4264, 1
        %vm4274 = vcmp.eq.s32.totalorder %v4267, 1
        %vm4275 = vcmp.eq.s32.totalorder %v4270, 1
        %vm4276 = vmand %vm4271, %vm1877
        %vm4277 = vmand %vm4272, %vm1877
        %vm4278 = vmand %vm4273, %vm1877
        %vm4279 = vmand %vm4274, %vm1877
        %vm4280 = vmand %vm4275, %vm1877
        %v4281 = vsel %vm4276, %v4237, 0.0
        %v4282 = vsel %vm4277, %v4239, 0.0
        %v4283 = vsel %vm4278, %v4241, 0.0
        %v4284 = vsel %vm4279, %v4243, 0.0
        %v4285 = vsel %vm4280, %v4245, 0.0
        %s4286 = scalar_lea.vmem %s8, 600
        %v4287 = vld [vmem:[%s4286] sm:$0xff]
        %v4288 = vld [vmem:[%s4286 + $0x8] sm:$0xff]
        %v4289 = vld [vmem:[%s4286 + $0x10] sm:$0xff]
        %v4290 = vld [vmem:[%s4286 + $0x18] sm:$0xff]
        %v4291 = vld [vmem:[%s4286 + $0x20] sm:$0xff]
        %4293 = vset.pattern.permute.xlu0 0
        %4294 = vperm.xlu0 %4293, %v4287
        %v4295 = vpop.permute.xlu0 %4294
        %4298 = vset.pattern.permute.xlu0 0
        %4299 = vperm.xlu0 %4298, %v4288
        %v4300 = vpop.permute.xlu0 %4299
        %4303 = vset.pattern.permute.xlu0 0
        %4304 = vperm.xlu0 %4303, %v4289
        %v4305 = vpop.permute.xlu0 %4304
        %4308 = vset.pattern.permute.xlu0 0
        %4309 = vperm.xlu0 %4308, %v4290
        %v4310 = vpop.permute.xlu0 %4309
        %4313 = vset.pattern.permute.xlu0 0
        %4314 = vperm.xlu0 %4313, %v4291
        %v4315 = vpop.permute.xlu0 %4314
        %v4317 = vmul.f32 %v4281, %v4295
        %v4318 = vmul.f32 %v4282, %v4300
        %v4319 = vmul.f32 %v4283, %v4305
        %v4320 = vmul.f32 %v4284, %v4310
        %v4321 = vmul.f32 %v4285, %v4315
        %v4322 = vadd.f32 %v4194, %v4317
        %v4323 = vadd.f32 %v4195, %v4318
        %v4324 = vadd.f32 %v4196, %v4319
        %v4325 = vadd.f32 %v4197, %v4320
        %v4326 = vadd.f32 %v4198, %v4321
        %4327 = vrot.lane.b32.xlu0 %v4221, 1
        %v4328 = vpop.permute.xlu0 %4327
        %4329 = vrot.lane.b32.xlu0 %v4223, 1
        %v4330 = vpop.permute.xlu0 %4329
        %4331 = vrot.lane.b32.xlu0 %v4225, 1
        %v4332 = vpop.permute.xlu0 %4331
        %4333 = vrot.lane.b32.xlu0 %v4227, 1
        %v4334 = vpop.permute.xlu0 %4333
        %4335 = vrot.lane.b32.xlu0 %v4234, 1
        %v4336 = vpop.permute.xlu0 %4335
        %vm4342 = vmand %vm4271, %vm1909
        %vm4343 = vmand %vm4272, %vm1909
        %vm4344 = vmand %vm4273, %vm1909
        %vm4345 = vmand %vm4274, %vm1909
        %vm4346 = vmand %vm4275, %vm1909
        %v4347 = vsel %vm4342, %v4328, 0.0
        %v4348 = vsel %vm4343, %v4330, 0.0
        %v4349 = vsel %vm4344, %v4332, 0.0
        %v4350 = vsel %vm4345, %v4334, 0.0
        %v4351 = vsel %vm4346, %v4336, 0.0
        %s4352 = scalar_lea.vmem %s8, 640
        %v4353 = vld [vmem:[%s4352] sm:$0xff]
        %v4354 = vld [vmem:[%s4352 + $0x8] sm:$0xff]
        %v4355 = vld [vmem:[%s4352 + $0x10] sm:$0xff]
        %v4356 = vld [vmem:[%s4352 + $0x18] sm:$0xff]
        %v4357 = vld [vmem:[%s4352 + $0x20] sm:$0xff]
        %4359 = vset.pattern.permute.xlu0 0
        %4360 = vperm.xlu0 %4359, %v4353
        %v4361 = vpop.permute.xlu0 %4360
        %4364 = vset.pattern.permute.xlu0 0
        %4365 = vperm.xlu0 %4364, %v4354
        %v4366 = vpop.permute.xlu0 %4365
        %4369 = vset.pattern.permute.xlu0 0
        %4370 = vperm.xlu0 %4369, %v4355
        %v4371 = vpop.permute.xlu0 %4370
        %4374 = vset.pattern.permute.xlu0 0
        %4375 = vperm.xlu0 %4374, %v4356
        %v4376 = vpop.permute.xlu0 %4375
        %4379 = vset.pattern.permute.xlu0 0
        %4380 = vperm.xlu0 %4379, %v4357
        %v4381 = vpop.permute.xlu0 %4380
        %v4383 = vmul.f32 %v4347, %v4361
        %v4384 = vmul.f32 %v4348, %v4366
        %v4385 = vmul.f32 %v4349, %v4371
        %v4386 = vmul.f32 %v4350, %v4376
        %v4387 = vmul.f32 %v4351, %v4381
        %v4388 = vadd.f32 %v4322, %v4383
        %v4389 = vadd.f32 %v4323, %v4384
        %v4390 = vadd.f32 %v4324, %v4385
        %v4391 = vadd.f32 %v4325, %v4386
        %v4392 = vadd.f32 %v4326, %v4387
        %vm4393 = vmand %vm4271, %vm1934
        %vm4394 = vmand %vm4272, %vm1934
        %vm4395 = vmand %vm4273, %vm1934
        %vm4396 = vmand %vm4274, %vm1934
        %vm4397 = vmand %vm4275, %vm1934
        %v4398 = vsel %vm4393, %v4221, 0.0
        %v4399 = vsel %vm4394, %v4223, 0.0
        %v4400 = vsel %vm4395, %v4225, 0.0
        %v4401 = vsel %vm4396, %v4227, 0.0
        %v4402 = vsel %vm4397, %v4234, 0.0
        %s4403 = scalar_lea.vmem %s8, 680
        %v4404 = vld [vmem:[%s4403] sm:$0xff]
        %v4405 = vld [vmem:[%s4403 + $0x8] sm:$0xff]
        %v4406 = vld [vmem:[%s4403 + $0x10] sm:$0xff]
        %v4407 = vld [vmem:[%s4403 + $0x18] sm:$0xff]
        %v4408 = vld [vmem:[%s4403 + $0x20] sm:$0xff]
        %4410 = vset.pattern.permute.xlu0 0
        %4411 = vperm.xlu0 %4410, %v4404
        %v4412 = vpop.permute.xlu0 %4411
        %4415 = vset.pattern.permute.xlu0 0
        %4416 = vperm.xlu0 %4415, %v4405
        %v4417 = vpop.permute.xlu0 %4416
        %4420 = vset.pattern.permute.xlu0 0
        %4421 = vperm.xlu0 %4420, %v4406
        %v4422 = vpop.permute.xlu0 %4421
        %4425 = vset.pattern.permute.xlu0 0
        %4426 = vperm.xlu0 %4425, %v4407
        %v4427 = vpop.permute.xlu0 %4426
        %4430 = vset.pattern.permute.xlu0 0
        %4431 = vperm.xlu0 %4430, %v4408
        %v4432 = vpop.permute.xlu0 %4431
        %v4434 = vmul.f32 %v4398, %v4412
        %v4435 = vmul.f32 %v4399, %v4417
        %v4436 = vmul.f32 %v4400, %v4422
        %v4437 = vmul.f32 %v4401, %v4427
        %v4438 = vmul.f32 %v4402, %v4432
        %v4439 = vadd.f32 %v4388, %v4434
        %v4440 = vadd.f32 %v4389, %v4435
        %v4441 = vadd.f32 %v4390, %v4436
        %v4442 = vadd.f32 %v4391, %v4437
        %v4443 = vadd.f32 %v4392, %v4438
        %4444 = vrot.lane.b32.xlu0 %v4221, 127
        %v4445 = vpop.permute.xlu0 %4444
        %4446 = vrot.lane.b32.xlu0 %v4223, 127
        %v4447 = vpop.permute.xlu0 %4446
        %4448 = vrot.lane.b32.xlu0 %v4225, 127
        %v4449 = vpop.permute.xlu0 %4448
        %4450 = vrot.lane.b32.xlu0 %v4227, 127
        %v4451 = vpop.permute.xlu0 %4450
        %4452 = vrot.lane.b32.xlu0 %v4234, 127
        %v4453 = vpop.permute.xlu0 %4452
        %vm4459 = vmand %vm4271, %vm1962
        %vm4460 = vmand %vm4272, %vm1962
        %vm4461 = vmand %vm4273, %vm1962
        %vm4462 = vmand %vm4274, %vm1962
        %vm4463 = vmand %vm4275, %vm1962
        %v4464 = vsel %vm4459, %v4445, 0.0
        %v4465 = vsel %vm4460, %v4447, 0.0
        %v4466 = vsel %vm4461, %v4449, 0.0
        %v4467 = vsel %vm4462, %v4451, 0.0
        %v4468 = vsel %vm4463, %v4453, 0.0
        %s4469 = scalar_lea.vmem %s8, 720
        %v4470 = vld [vmem:[%s4469] sm:$0xff]
        %v4471 = vld [vmem:[%s4469 + $0x8] sm:$0xff]
        %v4472 = vld [vmem:[%s4469 + $0x10] sm:$0xff]
        %v4473 = vld [vmem:[%s4469 + $0x18] sm:$0xff]
        %v4474 = vld [vmem:[%s4469 + $0x20] sm:$0xff]
        %4476 = vset.pattern.permute.xlu0 0
        %4477 = vperm.xlu0 %4476, %v4470
        %v4478 = vpop.permute.xlu0 %4477
        %4481 = vset.pattern.permute.xlu0 0
        %4482 = vperm.xlu0 %4481, %v4471
        %v4483 = vpop.permute.xlu0 %4482
        %4486 = vset.pattern.permute.xlu0 0
        %4487 = vperm.xlu0 %4486, %v4472
        %v4488 = vpop.permute.xlu0 %4487
        %4491 = vset.pattern.permute.xlu0 0
        %4492 = vperm.xlu0 %4491, %v4473
        %v4493 = vpop.permute.xlu0 %4492
        %4496 = vset.pattern.permute.xlu0 0
        %4497 = vperm.xlu0 %4496, %v4474
        %v4498 = vpop.permute.xlu0 %4497
        %v4500 = vmul.f32 %v4464, %v4478
        %v4501 = vmul.f32 %v4465, %v4483
        %v4502 = vmul.f32 %v4466, %v4488
        %v4503 = vmul.f32 %v4467, %v4493
        %v4504 = vmul.f32 %v4468, %v4498
        %v4505 = vadd.f32 %v4439, %v4500
        %v4506 = vadd.f32 %v4440, %v4501
        %v4507 = vadd.f32 %v4441, %v4502
        %v4508 = vadd.f32 %v4442, %v4503
        %v4509 = vadd.f32 %v4443, %v4504
        %4510 = vrot.lane.b32.xlu0 %v4221, 126
        %v4511 = vpop.permute.xlu0 %4510
        %4512 = vrot.lane.b32.xlu0 %v4223, 126
        %v4513 = vpop.permute.xlu0 %4512
        %4514 = vrot.lane.b32.xlu0 %v4225, 126
        %v4515 = vpop.permute.xlu0 %4514
        %4516 = vrot.lane.b32.xlu0 %v4227, 126
        %v4517 = vpop.permute.xlu0 %4516
        %4518 = vrot.lane.b32.xlu0 %v4234, 126
        %v4519 = vpop.permute.xlu0 %4518
        %vm4525 = vmand %vm4271, %vm1990
        %vm4526 = vmand %vm4272, %vm1990
        %vm4527 = vmand %vm4273, %vm1990
        %vm4528 = vmand %vm4274, %vm1990
        %vm4529 = vmand %vm4275, %vm1990
        %v4530 = vsel %vm4525, %v4511, 0.0
        %v4531 = vsel %vm4526, %v4513, 0.0
        %v4532 = vsel %vm4527, %v4515, 0.0
        %v4533 = vsel %vm4528, %v4517, 0.0
        %v4534 = vsel %vm4529, %v4519, 0.0
        %s4535 = scalar_lea.vmem %s8, 760
        %v4536 = vld [vmem:[%s4535] sm:$0xff]
        %v4537 = vld [vmem:[%s4535 + $0x8] sm:$0xff]
        %v4538 = vld [vmem:[%s4535 + $0x10] sm:$0xff]
        %v4539 = vld [vmem:[%s4535 + $0x18] sm:$0xff]
        %v4540 = vld [vmem:[%s4535 + $0x20] sm:$0xff]
        %4542 = vset.pattern.permute.xlu0 0
        %4543 = vperm.xlu0 %4542, %v4536
        %v4544 = vpop.permute.xlu0 %4543
        %4547 = vset.pattern.permute.xlu0 0
        %4548 = vperm.xlu0 %4547, %v4537
        %v4549 = vpop.permute.xlu0 %4548
        %4552 = vset.pattern.permute.xlu0 0
        %4553 = vperm.xlu0 %4552, %v4538
        %v4554 = vpop.permute.xlu0 %4553
        %4557 = vset.pattern.permute.xlu0 0
        %4558 = vperm.xlu0 %4557, %v4539
        %v4559 = vpop.permute.xlu0 %4558
        %4562 = vset.pattern.permute.xlu0 0
        %4563 = vperm.xlu0 %4562, %v4540
        %v4564 = vpop.permute.xlu0 %4563
        %v4566 = vmul.f32 %v4530, %v4544
        %v4567 = vmul.f32 %v4531, %v4549
        %v4568 = vmul.f32 %v4532, %v4554
        %v4569 = vmul.f32 %v4533, %v4559
        %v4570 = vmul.f32 %v4534, %v4564
        %v4571 = vadd.f32 %v4505, %v4566
        %v4572 = vadd.f32 %v4506, %v4567
        %v4573 = vadd.f32 %v4507, %v4568
        %v4574 = vadd.f32 %v4508, %v4569
        %v4575 = vadd.f32 %v4509, %v4570
        %v4576 = vadd.s32 %v535, 2
        %v4577 = vadd.s32 %v536, 2
        %v4578 = vadd.s32 %v537, 2
        %v4579 = vadd.s32 %v538, 2
        %v4580 = vadd.s32 %v539, 2
        %vm4581 = vcmp.ge.s32.totalorder %v4576, 0
        %vm4582 = vcmp.ge.s32.totalorder %v4577, 0
        %vm4583 = vcmp.ge.s32.totalorder %v4578, 0
        %vm4584 = vcmp.ge.s32.totalorder %v4579, 0
        %vm4585 = vcmp.ge.s32.totalorder %v4580, 0
        %vm4586 = vcmp.lt.s32.totalorder %v4576, 5
        %vm4587 = vcmp.lt.s32.totalorder %v4577, 5
        %vm4588 = vcmp.lt.s32.totalorder %v4578, 5
        %vm4589 = vcmp.lt.s32.totalorder %v4579, 5
        %vm4590 = vcmp.lt.s32.totalorder %v4580, 5
        %vm4591 = vmand %vm4581, %vm4586
        %vm4592 = vmand %vm4582, %vm4587
        %vm4593 = vmand %vm4583, %vm4588
        %vm4594 = vmand %vm4584, %vm4589
        %vm4595 = vmand %vm4585, %vm4590
        %v4596 = vrot.slane %v3055, 2
        %v4597 = vrot.slane %v3062, 2
        %v4598 = vsel %vm1898, %v4596, %v4597
        %v4599 = vrot.slane %v3069, 2
        %v4600 = vsel %vm1898, %v4597, %v4599
        %v4601 = vrot.slane %v3076, 2
        %v4602 = vsel %vm1898, %v4599, %v4601
        %v4603 = vrot.slane %v3083, 2
        %v4604 = vsel %vm1898, %v4601, %v4603
        %v4611 = vsel %vm1898, %v4603, %v4596
        %4613 = vrot.lane.b32.xlu0 %v4598, 2
        %v4614 = vpop.permute.xlu0 %4613
        %4615 = vrot.lane.b32.xlu0 %v4600, 2
        %v4616 = vpop.permute.xlu0 %4615
        %4617 = vrot.lane.b32.xlu0 %v4602, 2
        %v4618 = vpop.permute.xlu0 %4617
        %4619 = vrot.lane.b32.xlu0 %v4604, 2
        %v4620 = vpop.permute.xlu0 %4619
        %4621 = vrot.lane.b32.xlu0 %v4611, 2
        %v4622 = vpop.permute.xlu0 %4621
        %v4628 = vsel %vm4591, 1, 0
        %v4629 = vsel %vm4592, 1, 0
        %v4630 = vsel %vm4593, 1, 0
        %v4631 = vsel %vm4594, 1, 0
        %v4632 = vsel %vm4595, 1, 0
        %4633 = vset.pattern.permute.xlu0 0
        %4634 = vperm.xlu0 %4633, %v4628
        %v4635 = vpop.permute.xlu0 %4634
        %4636 = vset.pattern.permute.xlu0 0
        %4637 = vperm.xlu0 %4636, %v4629
        %v4638 = vpop.permute.xlu0 %4637
        %4639 = vset.pattern.permute.xlu0 0
        %4640 = vperm.xlu0 %4639, %v4630
        %v4641 = vpop.permute.xlu0 %4640
        %4642 = vset.pattern.permute.xlu0 0
        %4643 = vperm.xlu0 %4642, %v4631
        %v4644 = vpop.permute.xlu0 %4643
        %4645 = vset.pattern.permute.xlu0 0
        %4646 = vperm.xlu0 %4645, %v4632
        %v4647 = vpop.permute.xlu0 %4646
        %vm4648 = vcmp.eq.s32.totalorder %v4635, 1
        %vm4649 = vcmp.eq.s32.totalorder %v4638, 1
        %vm4650 = vcmp.eq.s32.totalorder %v4641, 1
        %vm4651 = vcmp.eq.s32.totalorder %v4644, 1
        %vm4652 = vcmp.eq.s32.totalorder %v4647, 1
        %vm4653 = vmand %vm4648, %vm1877
        %vm4654 = vmand %vm4649, %vm1877
        %vm4655 = vmand %vm4650, %vm1877
        %vm4656 = vmand %vm4651, %vm1877
        %vm4657 = vmand %vm4652, %vm1877
        %v4658 = vsel %vm4653, %v4614, 0.0
        %v4659 = vsel %vm4654, %v4616, 0.0
        %v4660 = vsel %vm4655, %v4618, 0.0
        %v4661 = vsel %vm4656, %v4620, 0.0
        %v4662 = vsel %vm4657, %v4622, 0.0
        %s4663 = scalar_lea.vmem %s8, 800
        %v4664 = vld [vmem:[%s4663] sm:$0xff]
        %v4665 = vld [vmem:[%s4663 + $0x8] sm:$0xff]
        %v4666 = vld [vmem:[%s4663 + $0x10] sm:$0xff]
        %v4667 = vld [vmem:[%s4663 + $0x18] sm:$0xff]
        %v4668 = vld [vmem:[%s4663 + $0x20] sm:$0xff]
        %4670 = vset.pattern.permute.xlu0 0
        %4671 = vperm.xlu0 %4670, %v4664
        %v4672 = vpop.permute.xlu0 %4671
        %4675 = vset.pattern.permute.xlu0 0
        %4676 = vperm.xlu0 %4675, %v4665
        %v4677 = vpop.permute.xlu0 %4676
        %4680 = vset.pattern.permute.xlu0 0
        %4681 = vperm.xlu0 %4680, %v4666
        %v4682 = vpop.permute.xlu0 %4681
        %4685 = vset.pattern.permute.xlu0 0
        %4686 = vperm.xlu0 %4685, %v4667
        %v4687 = vpop.permute.xlu0 %4686
        %4690 = vset.pattern.permute.xlu0 0
        %4691 = vperm.xlu0 %4690, %v4668
        %v4692 = vpop.permute.xlu0 %4691
        %v4694 = vmul.f32 %v4658, %v4672
        %v4695 = vmul.f32 %v4659, %v4677
        %v4696 = vmul.f32 %v4660, %v4682
        %v4697 = vmul.f32 %v4661, %v4687
        %v4698 = vmul.f32 %v4662, %v4692
        %v4699 = vadd.f32 %v4571, %v4694
        %v4700 = vadd.f32 %v4572, %v4695
        %v4701 = vadd.f32 %v4573, %v4696
        %v4702 = vadd.f32 %v4574, %v4697
        %v4703 = vadd.f32 %v4575, %v4698
        %4704 = vrot.lane.b32.xlu0 %v4598, 1
        %v4705 = vpop.permute.xlu0 %4704
        %4706 = vrot.lane.b32.xlu0 %v4600, 1
        %v4707 = vpop.permute.xlu0 %4706
        %4708 = vrot.lane.b32.xlu0 %v4602, 1
        %v4709 = vpop.permute.xlu0 %4708
        %4710 = vrot.lane.b32.xlu0 %v4604, 1
        %v4711 = vpop.permute.xlu0 %4710
        %4712 = vrot.lane.b32.xlu0 %v4611, 1
        %v4713 = vpop.permute.xlu0 %4712
        %vm4719 = vmand %vm4648, %vm1909
        %vm4720 = vmand %vm4649, %vm1909
        %vm4721 = vmand %vm4650, %vm1909
        %vm4722 = vmand %vm4651, %vm1909
        %vm4723 = vmand %vm4652, %vm1909
        %v4724 = vsel %vm4719, %v4705, 0.0
        %v4725 = vsel %vm4720, %v4707, 0.0
        %v4726 = vsel %vm4721, %v4709, 0.0
        %v4727 = vsel %vm4722, %v4711, 0.0
        %v4728 = vsel %vm4723, %v4713, 0.0
        %s4729 = scalar_lea.vmem %s8, 840
        %v4730 = vld [vmem:[%s4729] sm:$0xff]
        %v4731 = vld [vmem:[%s4729 + $0x8] sm:$0xff]
        %v4732 = vld [vmem:[%s4729 + $0x10] sm:$0xff]
        %v4733 = vld [vmem:[%s4729 + $0x18] sm:$0xff]
        %v4734 = vld [vmem:[%s4729 + $0x20] sm:$0xff]
        %4736 = vset.pattern.permute.xlu0 0
        %4737 = vperm.xlu0 %4736, %v4730
        %v4738 = vpop.permute.xlu0 %4737
        %4741 = vset.pattern.permute.xlu0 0
        %4742 = vperm.xlu0 %4741, %v4731
        %v4743 = vpop.permute.xlu0 %4742
        %4746 = vset.pattern.permute.xlu0 0
        %4747 = vperm.xlu0 %4746, %v4732
        %v4748 = vpop.permute.xlu0 %4747
        %4751 = vset.pattern.permute.xlu0 0
        %4752 = vperm.xlu0 %4751, %v4733
        %v4753 = vpop.permute.xlu0 %4752
        %4756 = vset.pattern.permute.xlu0 0
        %4757 = vperm.xlu0 %4756, %v4734
        %v4758 = vpop.permute.xlu0 %4757
        %v4760 = vmul.f32 %v4724, %v4738
        %v4761 = vmul.f32 %v4725, %v4743
        %v4762 = vmul.f32 %v4726, %v4748
        %v4763 = vmul.f32 %v4727, %v4753
        %v4764 = vmul.f32 %v4728, %v4758
        %v4765 = vadd.f32 %v4699, %v4760
        %v4766 = vadd.f32 %v4700, %v4761
        %v4767 = vadd.f32 %v4701, %v4762
        %v4768 = vadd.f32 %v4702, %v4763
        %v4769 = vadd.f32 %v4703, %v4764
        %vm4770 = vmand %vm4648, %vm1934
        %vm4771 = vmand %vm4649, %vm1934
        %vm4772 = vmand %vm4650, %vm1934
        %vm4773 = vmand %vm4651, %vm1934
        %vm4774 = vmand %vm4652, %vm1934
        %v4775 = vsel %vm4770, %v4598, 0.0
        %v4776 = vsel %vm4771, %v4600, 0.0
        %v4777 = vsel %vm4772, %v4602, 0.0
        %v4778 = vsel %vm4773, %v4604, 0.0
        %v4779 = vsel %vm4774, %v4611, 0.0
        %s4780 = scalar_lea.vmem %s8, 880
        %v4781 = vld [vmem:[%s4780] sm:$0xff]
        %v4782 = vld [vmem:[%s4780 + $0x8] sm:$0xff]
        %v4783 = vld [vmem:[%s4780 + $0x10] sm:$0xff]
        %v4784 = vld [vmem:[%s4780 + $0x18] sm:$0xff]
        %v4785 = vld [vmem:[%s4780 + $0x20] sm:$0xff]
        %4787 = vset.pattern.permute.xlu0 0
        %4788 = vperm.xlu0 %4787, %v4781
        %v4789 = vpop.permute.xlu0 %4788
        %4792 = vset.pattern.permute.xlu0 0
        %4793 = vperm.xlu0 %4792, %v4782
        %v4794 = vpop.permute.xlu0 %4793
        %4797 = vset.pattern.permute.xlu0 0
        %4798 = vperm.xlu0 %4797, %v4783
        %v4799 = vpop.permute.xlu0 %4798
        %4802 = vset.pattern.permute.xlu0 0
        %4803 = vperm.xlu0 %4802, %v4784
        %v4804 = vpop.permute.xlu0 %4803
        %4807 = vset.pattern.permute.xlu0 0
        %4808 = vperm.xlu0 %4807, %v4785
        %v4809 = vpop.permute.xlu0 %4808
        %v4811 = vmul.f32 %v4775, %v4789
        %v4812 = vmul.f32 %v4776, %v4794
        %v4813 = vmul.f32 %v4777, %v4799
        %v4814 = vmul.f32 %v4778, %v4804
        %v4815 = vmul.f32 %v4779, %v4809
        %v4816 = vadd.f32 %v4765, %v4811
        %v4817 = vadd.f32 %v4766, %v4812
        %v4818 = vadd.f32 %v4767, %v4813
        %v4819 = vadd.f32 %v4768, %v4814
        %v4820 = vadd.f32 %v4769, %v4815
        %4821 = vrot.lane.b32.xlu0 %v4598, 127
        %v4822 = vpop.permute.xlu0 %4821
        %4823 = vrot.lane.b32.xlu0 %v4600, 127
        %v4824 = vpop.permute.xlu0 %4823
        %4825 = vrot.lane.b32.xlu0 %v4602, 127
        %v4826 = vpop.permute.xlu0 %4825
        %4827 = vrot.lane.b32.xlu0 %v4604, 127
        %v4828 = vpop.permute.xlu0 %4827
        %4829 = vrot.lane.b32.xlu0 %v4611, 127
        %v4830 = vpop.permute.xlu0 %4829
        %vm4836 = vmand %vm4648, %vm1962
        %vm4837 = vmand %vm4649, %vm1962
        %vm4838 = vmand %vm4650, %vm1962
        %vm4839 = vmand %vm4651, %vm1962
        %vm4840 = vmand %vm4652, %vm1962
        %v4841 = vsel %vm4836, %v4822, 0.0
        %v4842 = vsel %vm4837, %v4824, 0.0
        %v4843 = vsel %vm4838, %v4826, 0.0
        %v4844 = vsel %vm4839, %v4828, 0.0
        %v4845 = vsel %vm4840, %v4830, 0.0
        %s4846 = scalar_lea.vmem %s8, 920
        %v4847 = vld [vmem:[%s4846] sm:$0xff]
        %v4848 = vld [vmem:[%s4846 + $0x8] sm:$0xff]
        %v4849 = vld [vmem:[%s4846 + $0x10] sm:$0xff]
        %v4850 = vld [vmem:[%s4846 + $0x18] sm:$0xff]
        %v4851 = vld [vmem:[%s4846 + $0x20] sm:$0xff]
        %4853 = vset.pattern.permute.xlu0 0
        %4854 = vperm.xlu0 %4853, %v4847
        %v4855 = vpop.permute.xlu0 %4854
        %4858 = vset.pattern.permute.xlu0 0
        %4859 = vperm.xlu0 %4858, %v4848
        %v4860 = vpop.permute.xlu0 %4859
        %4863 = vset.pattern.permute.xlu0 0
        %4864 = vperm.xlu0 %4863, %v4849
        %v4865 = vpop.permute.xlu0 %4864
        %4868 = vset.pattern.permute.xlu0 0
        %4869 = vperm.xlu0 %4868, %v4850
        %v4870 = vpop.permute.xlu0 %4869
        %4873 = vset.pattern.permute.xlu0 0
        %4874 = vperm.xlu0 %4873, %v4851
        %v4875 = vpop.permute.xlu0 %4874
        %v4877 = vmul.f32 %v4841, %v4855
        %v4878 = vmul.f32 %v4842, %v4860
        %v4879 = vmul.f32 %v4843, %v4865
        %v4880 = vmul.f32 %v4844, %v4870
        %v4881 = vmul.f32 %v4845, %v4875
        %v4882 = vadd.f32 %v4816, %v4877
        %v4883 = vadd.f32 %v4817, %v4878
        %v4884 = vadd.f32 %v4818, %v4879
        %v4885 = vadd.f32 %v4819, %v4880
        %v4886 = vadd.f32 %v4820, %v4881
        %4887 = vrot.lane.b32.xlu0 %v4598, 126
        %v4888 = vpop.permute.xlu0 %4887
        %4889 = vrot.lane.b32.xlu0 %v4600, 126
        %v4890 = vpop.permute.xlu0 %4889
        %4891 = vrot.lane.b32.xlu0 %v4602, 126
        %v4892 = vpop.permute.xlu0 %4891
        %4893 = vrot.lane.b32.xlu0 %v4604, 126
        %v4894 = vpop.permute.xlu0 %4893
        %4895 = vrot.lane.b32.xlu0 %v4611, 126
        %v4896 = vpop.permute.xlu0 %4895
        %vm4902 = vmand %vm4648, %vm1990
        %vm4903 = vmand %vm4649, %vm1990
        %vm4904 = vmand %vm4650, %vm1990
        %vm4905 = vmand %vm4651, %vm1990
        %vm4906 = vmand %vm4652, %vm1990
        %v4907 = vsel %vm4902, %v4888, 0.0
        %v4908 = vsel %vm4903, %v4890, 0.0
        %v4909 = vsel %vm4904, %v4892, 0.0
        %v4910 = vsel %vm4905, %v4894, 0.0
        %v4911 = vsel %vm4906, %v4896, 0.0
        %s4912 = scalar_lea.vmem %s8, 960
        %v4913 = vld [vmem:[%s4912] sm:$0xff]
        %v4914 = vld [vmem:[%s4912 + $0x8] sm:$0xff]
        %v4915 = vld [vmem:[%s4912 + $0x10] sm:$0xff]
        %v4916 = vld [vmem:[%s4912 + $0x18] sm:$0xff]
        %v4917 = vld [vmem:[%s4912 + $0x20] sm:$0xff]
        %4919 = vset.pattern.permute.xlu0 0
        %4920 = vperm.xlu0 %4919, %v4913
        %v4921 = vpop.permute.xlu0 %4920
        %4924 = vset.pattern.permute.xlu0 0
        %4925 = vperm.xlu0 %4924, %v4914
        %v4926 = vpop.permute.xlu0 %4925
        %4929 = vset.pattern.permute.xlu0 0
        %4930 = vperm.xlu0 %4929, %v4915
        %v4931 = vpop.permute.xlu0 %4930
        %4934 = vset.pattern.permute.xlu0 0
        %4935 = vperm.xlu0 %4934, %v4916
        %v4936 = vpop.permute.xlu0 %4935
        %4939 = vset.pattern.permute.xlu0 0
        %4940 = vperm.xlu0 %4939, %v4917
        %v4941 = vpop.permute.xlu0 %4940
        %v4943 = vmul.f32 %v4907, %v4921
        %v4944 = vmul.f32 %v4908, %v4926
        %v4945 = vmul.f32 %v4909, %v4931
        %v4946 = vmul.f32 %v4910, %v4936
        %v4947 = vmul.f32 %v4911, %v4941
        %v4948 = vadd.f32 %v4882, %v4943
        %v4949 = vadd.f32 %v4883, %v4944
        %v4950 = vadd.f32 %v4884, %v4945
        %v4951 = vadd.f32 %v4885, %v4946
        %v4952 = vadd.f32 %v4886, %v4947
        %v4953 = vld [vmem:[%s9] sm:$0xff]
        %v4954 = vld [vmem:[%s9 + $0x8] sm:$0xff]
        %v4955 = vld [vmem:[%s9 + $0x10] sm:$0xff]
        %v4956 = vld [vmem:[%s9 + $0x18] sm:$0xff]
        %v4957 = vld [vmem:[%s9 + $0x20] sm:$0xff]
        %4959 = vset.pattern.permute.xlu0 0
        %4960 = vperm.xlu0 %4959, %v4953
        %v4961 = vpop.permute.xlu0 %4960
        %4964 = vset.pattern.permute.xlu0 0
        %4965 = vperm.xlu0 %4964, %v4954
        %v4966 = vpop.permute.xlu0 %4965
        %4969 = vset.pattern.permute.xlu0 0
        %4970 = vperm.xlu0 %4969, %v4955
        %v4971 = vpop.permute.xlu0 %4970
        %4974 = vset.pattern.permute.xlu0 0
        %4975 = vperm.xlu0 %4974, %v4956
        %v4976 = vpop.permute.xlu0 %4975
        %4979 = vset.pattern.permute.xlu0 0
        %4980 = vperm.xlu0 %4979, %v4957
        %v4981 = vpop.permute.xlu0 %4980
        %v4983 = vadd.f32 %v4948, %v4961
        %v4984 = vadd.f32 %v4949, %v4966
        %v4985 = vadd.f32 %v4950, %v4971
        %v4986 = vadd.f32 %v4951, %v4976
        %v4987 = vadd.f32 %v4952, %v4981
        %v4988 = vmul.f32 %v4983, 0.5
        %v4989 = vmul.f32 %v4984, 0.5
        %v4990 = vmul.f32 %v4985, 0.5
        %v4991 = vmul.f32 %v4986, 0.5
        %v4992 = vmul.f32 %v4987, 0.5
        %v4993 = vmul.f32 %v4983, 0.70710677
        %v4994 = vmul.f32 %v4984, 0.70710677
        %v4995 = vmul.f32 %v4985, 0.70710677
        %v4996 = vmul.f32 %v4986, 0.70710677
        %v4997 = vmul.f32 %v4987, 0.70710677
        %vm4998 = vcmp.ge.f32.partialorder %v4993, 0.0
        %vm4999 = vcmp.ge.f32.partialorder %v4994, 0.0
        %vm5000 = vcmp.ge.f32.partialorder %v4995, 0.0
        %vm5001 = vcmp.ge.f32.partialorder %v4996, 0.0
        %vm5002 = vcmp.ge.f32.partialorder %v4997, 0.0
        %v5003 = vsel %vm4998, 1.0, -1.0
        %v5004 = vsel %vm4999, 1.0, -1.0
        %v5005 = vsel %vm5000, 1.0, -1.0
        %v5006 = vsel %vm5001, 1.0, -1.0
        %v5007 = vsel %vm5002, 1.0, -1.0
        %v5008 = vand.u32 2147483647, %v4993
        %v5009 = vand.u32 2147483647, %v4994
        %v5010 = vand.u32 2147483647, %v4995
        %v5011 = vand.u32 2147483647, %v4996
        %v5012 = vand.u32 2147483647, %v4997
        %v5013 = vmul.f32 %v5008, 0.3275911
        %v5014 = vmul.f32 %v5009, 0.3275911
        %v5015 = vmul.f32 %v5010, 0.3275911
        %v5016 = vmul.f32 %v5011, 0.3275911
        %v5017 = vmul.f32 %v5012, 0.3275911
        %v5018 = vadd.f32 %v5013, 1.0
        %v5019 = vadd.f32 %v5014, 1.0
        %v5020 = vadd.f32 %v5015, 1.0
        %v5021 = vadd.f32 %v5016, 1.0
        %v5022 = vadd.f32 %v5017, 1.0
        %v5023 = vrcp.pop %v5018
        %v5024 = vmul.f32 1.0, %v5023
        %v5025 = vrcp.pop %v5019
        %v5026 = vmul.f32 1.0, %v5025
        %v5027 = vrcp.pop %v5020
        %v5028 = vmul.f32 1.0, %v5027
        %v5029 = vrcp.pop %v5021
        %v5030 = vmul.f32 1.0, %v5029
        %v5031 = vrcp.pop %v5022
        %v5032 = vmul.f32 1.0, %v5031
        %v5033 = vmul.f32 %v5024, 1.0614054
        %v5034 = vmul.f32 %v5026, 1.0614054
        %v5035 = vmul.f32 %v5028, 1.0614054
        %v5036 = vmul.f32 %v5030, 1.0614054
        %v5037 = vmul.f32 %v5032, 1.0614054
        %v5038 = vadd.f32 %v5033, -1.4531521
        %v5039 = vadd.f32 %v5034, -1.4531521
        %v5040 = vadd.f32 %v5035, -1.4531521
        %v5041 = vadd.f32 %v5036, -1.4531521
        %v5042 = vadd.f32 %v5037, -1.4531521
        %v5043 = vmul.f32 %v5038, %v5024
        %v5044 = vmul.f32 %v5039, %v5026
        %v5045 = vmul.f32 %v5040, %v5028
        %v5046 = vmul.f32 %v5041, %v5030
        %v5047 = vmul.f32 %v5042, %v5032
        %v5048 = vadd.f32 %v5043, 1.4214138
        %v5049 = vadd.f32 %v5044, 1.4214138
        %v5050 = vadd.f32 %v5045, 1.4214138
        %v5051 = vadd.f32 %v5046, 1.4214138
        %v5052 = vadd.f32 %v5047, 1.4214138
        %v5053 = vmul.f32 %v5048, %v5024
        %v5054 = vmul.f32 %v5049, %v5026
        %v5055 = vmul.f32 %v5050, %v5028
        %v5056 = vmul.f32 %v5051, %v5030
        %v5057 = vmul.f32 %v5052, %v5032
        %v5058 = vadd.f32 %v5053, -0.28449672
        %v5059 = vadd.f32 %v5054, -0.28449672
        %v5060 = vadd.f32 %v5055, -0.28449672
        %v5061 = vadd.f32 %v5056, -0.28449672
        %v5062 = vadd.f32 %v5057, -0.28449672
        %v5063 = vmul.f32 %v5058, %v5024
        %v5064 = vmul.f32 %v5059, %v5026
        %v5065 = vmul.f32 %v5060, %v5028
        %v5066 = vmul.f32 %v5061, %v5030
        %v5067 = vmul.f32 %v5062, %v5032
        %v5068 = vadd.f32 %v5063, 0.2548296
        %v5069 = vadd.f32 %v5064, 0.2548296
        %v5070 = vadd.f32 %v5065, 0.2548296
        %v5071 = vadd.f32 %v5066, 0.2548296
        %v5072 = vadd.f32 %v5067, 0.2548296
        %v5073 = vmul.f32 %v5068, %v5024
        %v5074 = vmul.f32 %v5069, %v5026
        %v5075 = vmul.f32 %v5070, %v5028
        %v5076 = vmul.f32 %v5071, %v5030
        %v5077 = vmul.f32 %v5072, %v5032
        %v5078 = vsub.f32 0.0, %v5008
        %v5079 = vsub.f32 0.0, %v5009
        %v5080 = vsub.f32 0.0, %v5010
        %v5081 = vsub.f32 0.0, %v5011
        %v5082 = vsub.f32 0.0, %v5012
        %v5083 = vmul.f32 %v5078, %v5008
        %v5084 = vmul.f32 %v5079, %v5009
        %v5085 = vmul.f32 %v5080, %v5010
        %v5086 = vmul.f32 %v5081, %v5011
        %v5087 = vmul.f32 %v5082, %v5012
        %v5088 = vmul.f32 %v5083, 1.442695
        %v5089 = vpow.pop %v5088
        %v5090 = vmul.f32 %v5084, 1.442695
        %v5091 = vpow.pop %v5090
        %v5092 = vmul.f32 %v5085, 1.442695
        %v5093 = vpow.pop %v5092
        %v5094 = vmul.f32 %v5086, 1.442695
        %v5095 = vpow.pop %v5094
        %v5096 = vmul.f32 %v5087, 1.442695
        %v5097 = vpow.pop %v5096
        %v5098 = vmul.f32 %v5073, %v5089
        %v5099 = vmul.f32 %v5074, %v5091
        %v5100 = vmul.f32 %v5075, %v5093
        %v5101 = vmul.f32 %v5076, %v5095
        %v5102 = vmul.f32 %v5077, %v5097
        %v5103 = vsub.f32 1.0, %v5098
        %v5104 = vsub.f32 1.0, %v5099
        %v5105 = vsub.f32 1.0, %v5100
        %v5106 = vsub.f32 1.0, %v5101
        %v5107 = vsub.f32 1.0, %v5102
        %v5108 = vmul.f32 %v5003, %v5103
        %v5109 = vmul.f32 %v5004, %v5104
        %v5110 = vmul.f32 %v5005, %v5105
        %v5111 = vmul.f32 %v5006, %v5106
        %v5112 = vmul.f32 %v5007, %v5107
        %v5113 = vadd.f32 %v5108, 1.0
        %v5114 = vadd.f32 %v5109, 1.0
        %v5115 = vadd.f32 %v5110, 1.0
        %v5116 = vadd.f32 %v5111, 1.0
        %v5117 = vadd.f32 %v5112, 1.0
        %v5118 = vmul.f32 %v4988, %v5113
        %v5119 = vmul.f32 %v4989, %v5114
        %v5120 = vmul.f32 %v4990, %v5115
        %v5121 = vmul.f32 %v4991, %v5116
        %v5122 = vmul.f32 %v4992, %v5117
        %v5123 = vld [vmem:[%s10] sm:$0xff]
        %v5124 = vld [vmem:[%s10 + $0x8] sm:$0x1f]
        %v5125 = vld [vmem:[%s11] sm:$0xff]
        %v5126 = vld [vmem:[%s11 + $0x8] sm:$0x1f]
        %5128 = vset.pattern.permute.xlu0 0
        %5129 = vperm.xlu0 %5128, %v5125
        %v5130 = vpop.permute.xlu0 %5129
        %5133 = vset.pattern.permute.xlu0 0
        %5134 = vperm.xlu0 %5133, %v5126
        %v5135 = vpop.permute.xlu0 %5134
        %vm5137 = vcmask 326656
        %v5139 = vsel %vm5137, %v5123, 0
        %v5142 = vsel %vm5137, %v5124, 0
        %5144 = vmatprep.subr.mxu0 0.0
        %5145 = vmatpush1.msra.mxu0 0.0
        %5146 = vmatprep.subr.mxu0 0.0
        %5147 = vmatpush1.msra.mxu0 0.0
        %5148 = vmatprep.subr.mxu0 0.0
        %5149 = vmatpush1.msra.mxu0 0.0
        %5150 = vmatprep.subr.mxu0 0.0
        %5151 = vmatpush1.msra.mxu0 0.0
        %5152 = vmatprep.subr.mxu0 0.0
        %5153 = vmatpush1.msra.mxu0 0.0
        %5154 = vmatprep.subr.mxu0 0.0
        %5155 = vmatpush1.msra.mxu0 0.0
        %5156 = vmatprep.subr.mxu0 0.0
        %5157 = vmatpush1.msra.mxu0 0.0
        %5158 = vmatprep.subr.mxu0 0.0
        %5159 = vmatpush1.msra.mxu0 0.0
        %5160 = vmatprep.subr.mxu0 0.0
        %5161 = vmatpush1.msra.mxu0 0.0
        %5162 = vmatprep.subr.mxu0 0.0
        %5163 = vmatpush1.msra.mxu0 0.0
        %5164 = vmatprep.subr.mxu0 0.0
        %5165 = vmatpush1.msra.mxu0 0.0
        %5166 = vmatprep.subr.mxu0 0.0
        %v5167 = vand.u32 %v5122, 4294901760
        %5168 = vmatpush1.msra.mxu0 %v5167
        %5169 = vmatprep.subr.mxu0 0.0
        %v5170 = vand.u32 %v5121, 4294901760
        %5171 = vmatpush1.msra.mxu0 %v5170
        %5172 = vmatprep.subr.mxu0 0.0
        %v5173 = vand.u32 %v5120, 4294901760
        %5174 = vmatpush1.msra.mxu0 %v5173
        %5175 = vmatprep.subr.mxu0 0.0
        %v5176 = vand.u32 %v5119, 4294901760
        %5177 = vmatpush1.msra.mxu0 %v5176
        %5178 = vmatprep.subr.mxu0 0.0
        %v5179 = vand.u32 %v5118, 4294901760
        %5180 = vmatpush1.msra.mxu0 %v5179
        %5181 = vmatprep.subr.mxu0 0.0
        %5182 = vmatpush2.msra.mxu0 0.0
        %5183 = vmatprep.subr.mxu0 0.0
        %5184 = vmatpush2.msra.mxu0 0.0
        %5185 = vmatprep.subr.mxu0 0.0
        %5186 = vmatpush2.msra.mxu0 0.0
        %5187 = vmatprep.subr.mxu0 0.0
        %5188 = vmatpush2.msra.mxu0 0.0
        %5189 = vmatprep.subr.mxu0 0.0
        %5190 = vmatpush2.msra.mxu0 0.0
        %5191 = vmatprep.subr.mxu0 0.0
        %5192 = vmatpush2.msra.mxu0 0.0
        %5193 = vmatprep.subr.mxu0 0.0
        %5194 = vmatpush2.msra.mxu0 0.0
        %5195 = vmatprep.subr.mxu0 0.0
        %5196 = vmatpush2.msra.mxu0 0.0
        %5197 = vmatprep.subr.mxu0 0.0
        %5198 = vmatpush2.msra.mxu0 0.0
        %5199 = vmatprep.subr.mxu0 0.0
        %5200 = vmatpush2.msra.mxu0 0.0
        %5201 = vmatprep.subr.mxu0 0.0
        %5202 = vmatpush2.msra.mxu0 0.0
        %5203 = vmatprep.subr.mxu0 0.0
        %5204 = vmatpush2.msra.mxu0 0.0
        %5205 = vmatprep.subr.mxu0 0.0
        %5206 = vmatpush2.msra.mxu0 0.0
        %5207 = vmatprep.subr.mxu0 0.0
        %5208 = vmatpush2.msra.mxu0 0.0
        %5209 = vmatprep.subr.mxu0 0.0
        %5210 = vmatpush2.msra.mxu0 0.0
        %5211 = vmatprep.subr.mxu0 0.0
        %5212 = vmatpush2.msra.mxu0 0.0
        %5213 = vmatprep.mubr.f32.mxu0 0.0
        %v5214 = vand.u32 %v5139, 4294901760
        %v5215 = vsub.f32 %v5139, %v5214
        %v5216 = vand.u32 %v5215, 4294901760
        %v5217 = vsub.f32 %v5215, %v5216
        %v5218 = vand.u32 %v5217, 4294901760
        %5219 = vmatmul.mubr.f32.gmra.mxu0 %v5218
        %v5220 = vpop.f32.mrf.mxu0
        %v5221 = vadd.f32 %v5130, %v5220
        %v5222 = vpop.f32.mrf.mxu0
        %5223 = vmatprep.mubr.f32.mxu0 0.0
        %v5224 = vand.u32 %v5142, 4294901760
        %v5225 = vsub.f32 %v5142, %v5224
        %v5226 = vand.u32 %v5225, 4294901760
        %v5227 = vsub.f32 %v5225, %v5226
        %v5228 = vand.u32 %v5227, 4294901760
        %5229 = vmatmul.mubr.f32.gmra.mxu0 %v5228
        %v5230 = vpop.f32.mrf.mxu0
        %v5231 = vadd.f32 %v5135, %v5230
        %v5232 = vpop.f32.mrf.mxu0
        %5233 = vdwg.mxu0
        %5234 = vmatprep.subr.mxu0 0.0
        %5235 = vmatpush1.msra.mxu0 0.0
        %5236 = vmatprep.subr.mxu0 0.0
        %5237 = vmatpush1.msra.mxu0 0.0
        %5238 = vmatprep.subr.mxu0 0.0
        %5239 = vmatpush1.msra.mxu0 0.0
        %5240 = vmatprep.subr.mxu0 0.0
        %5241 = vmatpush1.msra.mxu0 0.0
        %5242 = vmatprep.subr.mxu0 0.0
        %5243 = vmatpush1.msra.mxu0 0.0
        %5244 = vmatprep.subr.mxu0 0.0
        %5245 = vmatpush1.msra.mxu0 0.0
        %5246 = vmatprep.subr.mxu0 0.0
        %5247 = vmatpush1.msra.mxu0 0.0
        %5248 = vmatprep.subr.mxu0 0.0
        %5249 = vmatpush1.msra.mxu0 0.0
        %5250 = vmatprep.subr.mxu0 0.0
        %5251 = vmatpush1.msra.mxu0 0.0
        %5252 = vmatprep.subr.mxu0 0.0
        %5253 = vmatpush1.msra.mxu0 0.0
        %5254 = vmatprep.subr.mxu0 0.0
        %5255 = vmatpush1.msra.mxu0 0.0
        %5256 = vmatprep.subr.mxu0 0.0
        %v5257 = vand.u32 %v5122, 4294901760
        %v5258 = vsub.f32 %v5122, %v5257
        %v5259 = vand.u32 %v5258, 4294901760
        %v5260 = vsub.f32 %v5258, %v5259
        %v5261 = vand.u32 %v5260, 4294901760
        %5262 = vmatpush1.msra.mxu0 %v5261
        %5263 = vmatprep.subr.mxu0 0.0
        %v5264 = vand.u32 %v5121, 4294901760
        %v5265 = vsub.f32 %v5121, %v5264
        %v5266 = vand.u32 %v5265, 4294901760
        %v5267 = vsub.f32 %v5265, %v5266
        %v5268 = vand.u32 %v5267, 4294901760
        %5269 = vmatpush1.msra.mxu0 %v5268
        %5270 = vmatprep.subr.mxu0 0.0
        %v5271 = vand.u32 %v5120, 4294901760
        %v5272 = vsub.f32 %v5120, %v5271
        %v5273 = vand.u32 %v5272, 4294901760
        %v5274 = vsub.f32 %v5272, %v5273
        %v5275 = vand.u32 %v5274, 4294901760
        %5276 = vmatpush1.msra.mxu0 %v5275
        %5277 = vmatprep.subr.mxu0 0.0
        %v5278 = vand.u32 %v5119, 4294901760
        %v5279 = vsub.f32 %v5119, %v5278
        %v5280 = vand.u32 %v5279, 4294901760
        %v5281 = vsub.f32 %v5279, %v5280
        %v5282 = vand.u32 %v5281, 4294901760
        %5283 = vmatpush1.msra.mxu0 %v5282
        %5284 = vmatprep.subr.mxu0 0.0
        %v5285 = vand.u32 %v5118, 4294901760
        %v5286 = vsub.f32 %v5118, %v5285
        %v5287 = vand.u32 %v5286, 4294901760
        %v5288 = vsub.f32 %v5286, %v5287
        %v5289 = vand.u32 %v5288, 4294901760
        %5290 = vmatpush1.msra.mxu0 %v5289
        %5291 = vmatprep.subr.mxu0 0.0
        %5292 = vmatpush2.msra.mxu0 0.0
        %5293 = vmatprep.subr.mxu0 0.0
        %5294 = vmatpush2.msra.mxu0 0.0
        %5295 = vmatprep.subr.mxu0 0.0
        %5296 = vmatpush2.msra.mxu0 0.0
        %5297 = vmatprep.subr.mxu0 0.0
        %5298 = vmatpush2.msra.mxu0 0.0
        %5299 = vmatprep.subr.mxu0 0.0
        %5300 = vmatpush2.msra.mxu0 0.0
        %5301 = vmatprep.subr.mxu0 0.0
        %5302 = vmatpush2.msra.mxu0 0.0
        %5303 = vmatprep.subr.mxu0 0.0
        %5304 = vmatpush2.msra.mxu0 0.0
        %5305 = vmatprep.subr.mxu0 0.0
        %5306 = vmatpush2.msra.mxu0 0.0
        %5307 = vmatprep.subr.mxu0 0.0
        %5308 = vmatpush2.msra.mxu0 0.0
        %5309 = vmatprep.subr.mxu0 0.0
        %5310 = vmatpush2.msra.mxu0 0.0
        %5311 = vmatprep.subr.mxu0 0.0
        %5312 = vmatpush2.msra.mxu0 0.0
        %5313 = vmatprep.subr.mxu0 0.0
        %5314 = vmatpush2.msra.mxu0 0.0
        %5315 = vmatprep.subr.mxu0 0.0
        %5316 = vmatpush2.msra.mxu0 0.0
        %5317 = vmatprep.subr.mxu0 0.0
        %5318 = vmatpush2.msra.mxu0 0.0
        %5319 = vmatprep.subr.mxu0 0.0
        %5320 = vmatpush2.msra.mxu0 0.0
        %5321 = vmatprep.subr.mxu0 0.0
        %5322 = vmatpush2.msra.mxu0 0.0
        %5323 = vmatprep.mubr.f32.mxu0 0.0
        %v5324 = vand.u32 %v5139, 4294901760
        %5325 = vmatmul.mubr.f32.gmra.mxu0 %v5324
        %v5326 = vpop.f32.mrf.mxu0
        %v5327 = vadd.f32 %v5221, %v5326
        %v5328 = vpop.f32.mrf.mxu0
        %5329 = vmatprep.mubr.f32.mxu0 0.0
        %v5330 = vand.u32 %v5142, 4294901760
        %5331 = vmatmul.mubr.f32.gmra.mxu0 %v5330
        %v5332 = vpop.f32.mrf.mxu0
        %v5333 = vadd.f32 %v5231, %v5332
        %v5334 = vpop.f32.mrf.mxu0
        %5335 = vdwg.mxu0
        %5336 = vmatprep.subr.mxu0 0.0
        %5337 = vmatpush1.msra.mxu0 0.0
        %5338 = vmatprep.subr.mxu0 0.0
        %5339 = vmatpush1.msra.mxu0 0.0
        %5340 = vmatprep.subr.mxu0 0.0
        %5341 = vmatpush1.msra.mxu0 0.0
        %5342 = vmatprep.subr.mxu0 0.0
        %5343 = vmatpush1.msra.mxu0 0.0
        %5344 = vmatprep.subr.mxu0 0.0
        %5345 = vmatpush1.msra.mxu0 0.0
        %5346 = vmatprep.subr.mxu0 0.0
        %5347 = vmatpush1.msra.mxu0 0.0
        %5348 = vmatprep.subr.mxu0 0.0
        %5349 = vmatpush1.msra.mxu0 0.0
        %5350 = vmatprep.subr.mxu0 0.0
        %5351 = vmatpush1.msra.mxu0 0.0
        %5352 = vmatprep.subr.mxu0 0.0
        %5353 = vmatpush1.msra.mxu0 0.0
        %5354 = vmatprep.subr.mxu0 0.0
        %5355 = vmatpush1.msra.mxu0 0.0
        %5356 = vmatprep.subr.mxu0 0.0
        %5357 = vmatpush1.msra.mxu0 0.0
        %5358 = vmatprep.subr.mxu0 0.0
        %v5359 = vand.u32 %v5122, 4294901760
        %v5360 = vsub.f32 %v5122, %v5359
        %5361 = vmatpush1.msra.mxu0 %v5360
        %5362 = vmatprep.subr.mxu0 0.0
        %v5363 = vand.u32 %v5121, 4294901760
        %v5364 = vsub.f32 %v5121, %v5363
        %5365 = vmatpush1.msra.mxu0 %v5364
        %5366 = vmatprep.subr.mxu0 0.0
        %v5367 = vand.u32 %v5120, 4294901760
        %v5368 = vsub.f32 %v5120, %v5367
        %5369 = vmatpush1.msra.mxu0 %v5368
        %5370 = vmatprep.subr.mxu0 0.0
        %v5371 = vand.u32 %v5119, 4294901760
        %v5372 = vsub.f32 %v5119, %v5371
        %5373 = vmatpush1.msra.mxu0 %v5372
        %5374 = vmatprep.subr.mxu0 0.0
        %v5375 = vand.u32 %v5118, 4294901760
        %v5376 = vsub.f32 %v5118, %v5375
        %5377 = vmatpush1.msra.mxu0 %v5376
        %5378 = vmatprep.subr.mxu0 0.0
        %5379 = vmatpush2.msra.mxu0 0.0
        %5380 = vmatprep.subr.mxu0 0.0
        %5381 = vmatpush2.msra.mxu0 0.0
        %5382 = vmatprep.subr.mxu0 0.0
        %5383 = vmatpush2.msra.mxu0 0.0
        %5384 = vmatprep.subr.mxu0 0.0
        %5385 = vmatpush2.msra.mxu0 0.0
        %5386 = vmatprep.subr.mxu0 0.0
        %5387 = vmatpush2.msra.mxu0 0.0
        %5388 = vmatprep.subr.mxu0 0.0
        %5389 = vmatpush2.msra.mxu0 0.0
        %5390 = vmatprep.subr.mxu0 0.0
        %5391 = vmatpush2.msra.mxu0 0.0
        %5392 = vmatprep.subr.mxu0 0.0
        %5393 = vmatpush2.msra.mxu0 0.0
        %5394 = vmatprep.subr.mxu0 0.0
        %5395 = vmatpush2.msra.mxu0 0.0
        %5396 = vmatprep.subr.mxu0 0.0
        %5397 = vmatpush2.msra.mxu0 0.0
        %5398 = vmatprep.subr.mxu0 0.0
        %5399 = vmatpush2.msra.mxu0 0.0
        %5400 = vmatprep.subr.mxu0 0.0
        %5401 = vmatpush2.msra.mxu0 0.0
        %5402 = vmatprep.subr.mxu0 0.0
        %5403 = vmatpush2.msra.mxu0 0.0
        %5404 = vmatprep.subr.mxu0 0.0
        %5405 = vmatpush2.msra.mxu0 0.0
        %5406 = vmatprep.subr.mxu0 0.0
        %5407 = vmatpush2.msra.mxu0 0.0
        %5408 = vmatprep.subr.mxu0 0.0
        %5409 = vmatpush2.msra.mxu0 0.0
        %5410 = vmatprep.mubr.f32.mxu0 0.0
        %v5411 = vand.u32 %v5139, 4294901760
        %v5412 = vsub.f32 %v5139, %v5411
        %5413 = vmatmul.mubr.f32.gmra.mxu0 %v5412
        %v5414 = vpop.f32.mrf.mxu0
        %v5415 = vadd.f32 %v5327, %v5414
        %v5416 = vpop.f32.mrf.mxu0
        %5417 = vmatprep.mubr.f32.mxu0 0.0
        %v5418 = vand.u32 %v5142, 4294901760
        %v5419 = vsub.f32 %v5142, %v5418
        %5420 = vmatmul.mubr.f32.gmra.mxu0 %v5419
        %v5421 = vpop.f32.mrf.mxu0
        %v5422 = vadd.f32 %v5333, %v5421
        %v5423 = vpop.f32.mrf.mxu0
        %5424 = vdwg.mxu0
        %5425 = vmatprep.subr.mxu0 0.0
        %5426 = vmatpush1.msra.mxu0 0.0
        %5427 = vmatprep.subr.mxu0 0.0
        %5428 = vmatpush1.msra.mxu0 0.0
        %5429 = vmatprep.subr.mxu0 0.0
        %5430 = vmatpush1.msra.mxu0 0.0
        %5431 = vmatprep.subr.mxu0 0.0
        %5432 = vmatpush1.msra.mxu0 0.0
        %5433 = vmatprep.subr.mxu0 0.0
        %5434 = vmatpush1.msra.mxu0 0.0
        %5435 = vmatprep.subr.mxu0 0.0
        %5436 = vmatpush1.msra.mxu0 0.0
        %5437 = vmatprep.subr.mxu0 0.0
        %5438 = vmatpush1.msra.mxu0 0.0
        %5439 = vmatprep.subr.mxu0 0.0
        %5440 = vmatpush1.msra.mxu0 0.0
        %5441 = vmatprep.subr.mxu0 0.0
        %5442 = vmatpush1.msra.mxu0 0.0
        %5443 = vmatprep.subr.mxu0 0.0
        %5444 = vmatpush1.msra.mxu0 0.0
        %5445 = vmatprep.subr.mxu0 0.0
        %5446 = vmatpush1.msra.mxu0 0.0
        %5447 = vmatprep.subr.mxu0 0.0
        %v5448 = vand.u32 %v5122, 4294901760
        %5449 = vmatpush1.msra.mxu0 %v5448
        %5450 = vmatprep.subr.mxu0 0.0
        %v5451 = vand.u32 %v5121, 4294901760
        %5452 = vmatpush1.msra.mxu0 %v5451
        %5453 = vmatprep.subr.mxu0 0.0
        %v5454 = vand.u32 %v5120, 4294901760
        %5455 = vmatpush1.msra.mxu0 %v5454
        %5456 = vmatprep.subr.mxu0 0.0
        %v5457 = vand.u32 %v5119, 4294901760
        %5458 = vmatpush1.msra.mxu0 %v5457
        %5459 = vmatprep.subr.mxu0 0.0
        %v5460 = vand.u32 %v5118, 4294901760
        %5461 = vmatpush1.msra.mxu0 %v5460
        %5462 = vmatprep.subr.mxu0 0.0
        %5463 = vmatpush2.msra.mxu0 0.0
        %5464 = vmatprep.subr.mxu0 0.0
        %5465 = vmatpush2.msra.mxu0 0.0
        %5466 = vmatprep.subr.mxu0 0.0
        %5467 = vmatpush2.msra.mxu0 0.0
        %5468 = vmatprep.subr.mxu0 0.0
        %5469 = vmatpush2.msra.mxu0 0.0
        %5470 = vmatprep.subr.mxu0 0.0
        %5471 = vmatpush2.msra.mxu0 0.0
        %5472 = vmatprep.subr.mxu0 0.0
        %5473 = vmatpush2.msra.mxu0 0.0
        %5474 = vmatprep.subr.mxu0 0.0
        %5475 = vmatpush2.msra.mxu0 0.0
        %5476 = vmatprep.subr.mxu0 0.0
        %5477 = vmatpush2.msra.mxu0 0.0
        %5478 = vmatprep.subr.mxu0 0.0
        %5479 = vmatpush2.msra.mxu0 0.0
        %5480 = vmatprep.subr.mxu0 0.0
        %5481 = vmatpush2.msra.mxu0 0.0
        %5482 = vmatprep.subr.mxu0 0.0
        %5483 = vmatpush2.msra.mxu0 0.0
        %5484 = vmatprep.subr.mxu0 0.0
        %5485 = vmatpush2.msra.mxu0 0.0
        %5486 = vmatprep.subr.mxu0 0.0
        %5487 = vmatpush2.msra.mxu0 0.0
        %5488 = vmatprep.subr.mxu0 0.0
        %5489 = vmatpush2.msra.mxu0 0.0
        %5490 = vmatprep.subr.mxu0 0.0
        %5491 = vmatpush2.msra.mxu0 0.0
        %5492 = vmatprep.subr.mxu0 0.0
        %5493 = vmatpush2.msra.mxu0 0.0
        %5494 = vmatprep.mubr.f32.mxu0 0.0
        %v5495 = vand.u32 %v5139, 4294901760
        %v5496 = vsub.f32 %v5139, %v5495
        %v5497 = vand.u32 %v5496, 4294901760
        %5498 = vmatmul.mubr.f32.gmra.mxu0 %v5497
        %v5499 = vpop.f32.mrf.mxu0
        %v5500 = vadd.f32 %v5415, %v5499
        %v5501 = vpop.f32.mrf.mxu0
        %5502 = vmatprep.mubr.f32.mxu0 0.0
        %v5503 = vand.u32 %v5142, 4294901760
        %v5504 = vsub.f32 %v5142, %v5503
        %v5505 = vand.u32 %v5504, 4294901760
        %5506 = vmatmul.mubr.f32.gmra.mxu0 %v5505
        %v5507 = vpop.f32.mrf.mxu0
        %v5508 = vadd.f32 %v5422, %v5507
        %v5509 = vpop.f32.mrf.mxu0
        %5510 = vdwg.mxu0
        %5511 = vmatprep.subr.mxu0 0.0
        %5512 = vmatpush1.msra.mxu0 0.0
        %5513 = vmatprep.subr.mxu0 0.0
        %5514 = vmatpush1.msra.mxu0 0.0
        %5515 = vmatprep.subr.mxu0 0.0
        %5516 = vmatpush1.msra.mxu0 0.0
        %5517 = vmatprep.subr.mxu0 0.0
        %5518 = vmatpush1.msra.mxu0 0.0
        %5519 = vmatprep.subr.mxu0 0.0
        %5520 = vmatpush1.msra.mxu0 0.0
        %5521 = vmatprep.subr.mxu0 0.0
        %5522 = vmatpush1.msra.mxu0 0.0
        %5523 = vmatprep.subr.mxu0 0.0
        %5524 = vmatpush1.msra.mxu0 0.0
        %5525 = vmatprep.subr.mxu0 0.0
        %5526 = vmatpush1.msra.mxu0 0.0
        %5527 = vmatprep.subr.mxu0 0.0
        %5528 = vmatpush1.msra.mxu0 0.0
        %5529 = vmatprep.subr.mxu0 0.0
        %5530 = vmatpush1.msra.mxu0 0.0
        %5531 = vmatprep.subr.mxu0 0.0
        %5532 = vmatpush1.msra.mxu0 0.0
        %5533 = vmatprep.subr.mxu0 0.0
        %v5534 = vand.u32 %v5122, 4294901760
        %v5535 = vsub.f32 %v5122, %v5534
        %v5536 = vand.u32 %v5535, 4294901760
        %5537 = vmatpush1.msra.mxu0 %v5536
        %5538 = vmatprep.subr.mxu0 0.0
        %v5539 = vand.u32 %v5121, 4294901760
        %v5540 = vsub.f32 %v5121, %v5539
        %v5541 = vand.u32 %v5540, 4294901760
        %5542 = vmatpush1.msra.mxu0 %v5541
        %5543 = vmatprep.subr.mxu0 0.0
        %v5544 = vand.u32 %v5120, 4294901760
        %v5545 = vsub.f32 %v5120, %v5544
        %v5546 = vand.u32 %v5545, 4294901760
        %5547 = vmatpush1.msra.mxu0 %v5546
        %5548 = vmatprep.subr.mxu0 0.0
        %v5549 = vand.u32 %v5119, 4294901760
        %v5550 = vsub.f32 %v5119, %v5549
        %v5551 = vand.u32 %v5550, 4294901760
        %5552 = vmatpush1.msra.mxu0 %v5551
        %5553 = vmatprep.subr.mxu0 0.0
        %v5554 = vand.u32 %v5118, 4294901760
        %v5555 = vsub.f32 %v5118, %v5554
        %v5556 = vand.u32 %v5555, 4294901760
        %5557 = vmatpush1.msra.mxu0 %v5556
        %5558 = vmatprep.subr.mxu0 0.0
        %5559 = vmatpush2.msra.mxu0 0.0
        %5560 = vmatprep.subr.mxu0 0.0
        %5561 = vmatpush2.msra.mxu0 0.0
        %5562 = vmatprep.subr.mxu0 0.0
        %5563 = vmatpush2.msra.mxu0 0.0
        %5564 = vmatprep.subr.mxu0 0.0
        %5565 = vmatpush2.msra.mxu0 0.0
        %5566 = vmatprep.subr.mxu0 0.0
        %5567 = vmatpush2.msra.mxu0 0.0
        %5568 = vmatprep.subr.mxu0 0.0
        %5569 = vmatpush2.msra.mxu0 0.0
        %5570 = vmatprep.subr.mxu0 0.0
        %5571 = vmatpush2.msra.mxu0 0.0
        %5572 = vmatprep.subr.mxu0 0.0
        %5573 = vmatpush2.msra.mxu0 0.0
        %5574 = vmatprep.subr.mxu0 0.0
        %5575 = vmatpush2.msra.mxu0 0.0
        %5576 = vmatprep.subr.mxu0 0.0
        %5577 = vmatpush2.msra.mxu0 0.0
        %5578 = vmatprep.subr.mxu0 0.0
        %5579 = vmatpush2.msra.mxu0 0.0
        %5580 = vmatprep.subr.mxu0 0.0
        %5581 = vmatpush2.msra.mxu0 0.0
        %5582 = vmatprep.subr.mxu0 0.0
        %5583 = vmatpush2.msra.mxu0 0.0
        %5584 = vmatprep.subr.mxu0 0.0
        %5585 = vmatpush2.msra.mxu0 0.0
        %5586 = vmatprep.subr.mxu0 0.0
        %5587 = vmatpush2.msra.mxu0 0.0
        %5588 = vmatprep.subr.mxu0 0.0
        %5589 = vmatpush2.msra.mxu0 0.0
        %5590 = vmatprep.mubr.f32.mxu0 0.0
        %v5591 = vand.u32 %v5139, 4294901760
        %5592 = vmatmul.mubr.f32.gmra.mxu0 %v5591
        %v5593 = vpop.f32.mrf.mxu0
        %v5594 = vadd.f32 %v5500, %v5593
        %v5595 = vpop.f32.mrf.mxu0
        %5596 = vmatprep.mubr.f32.mxu0 0.0
        %v5597 = vand.u32 %v5142, 4294901760
        %5598 = vmatmul.mubr.f32.gmra.mxu0 %v5597
        %v5599 = vpop.f32.mrf.mxu0
        %v5600 = vadd.f32 %v5508, %v5599
        %v5601 = vpop.f32.mrf.mxu0
        %5602 = vdwg.mxu0
        %5603 = vmatprep.subr.mxu0 0.0
        %5604 = vmatpush1.msra.mxu0 0.0
        %5605 = vmatprep.subr.mxu0 0.0
        %5606 = vmatpush1.msra.mxu0 0.0
        %5607 = vmatprep.subr.mxu0 0.0
        %5608 = vmatpush1.msra.mxu0 0.0
        %5609 = vmatprep.subr.mxu0 0.0
        %5610 = vmatpush1.msra.mxu0 0.0
        %5611 = vmatprep.subr.mxu0 0.0
        %5612 = vmatpush1.msra.mxu0 0.0
        %5613 = vmatprep.subr.mxu0 0.0
        %5614 = vmatpush1.msra.mxu0 0.0
        %5615 = vmatprep.subr.mxu0 0.0
        %5616 = vmatpush1.msra.mxu0 0.0
        %5617 = vmatprep.subr.mxu0 0.0
        %5618 = vmatpush1.msra.mxu0 0.0
        %5619 = vmatprep.subr.mxu0 0.0
        %5620 = vmatpush1.msra.mxu0 0.0
        %5621 = vmatprep.subr.mxu0 0.0
        %5622 = vmatpush1.msra.mxu0 0.0
        %5623 = vmatprep.subr.mxu0 0.0
        %5624 = vmatpush1.msra.mxu0 0.0
        %5625 = vmatprep.subr.mxu0 0.0
        %v5626 = vand.u32 %v5122, 4294901760
        %5627 = vmatpush1.msra.mxu0 %v5626
        %5628 = vmatprep.subr.mxu0 0.0
        %v5629 = vand.u32 %v5121, 4294901760
        %5630 = vmatpush1.msra.mxu0 %v5629
        %5631 = vmatprep.subr.mxu0 0.0
        %v5632 = vand.u32 %v5120, 4294901760
        %5633 = vmatpush1.msra.mxu0 %v5632
        %5634 = vmatprep.subr.mxu0 0.0
        %v5635 = vand.u32 %v5119, 4294901760
        %5636 = vmatpush1.msra.mxu0 %v5635
        %5637 = vmatprep.subr.mxu0 0.0
        %v5638 = vand.u32 %v5118, 4294901760
        %5639 = vmatpush1.msra.mxu0 %v5638
        %5640 = vmatprep.subr.mxu0 0.0
        %5641 = vmatpush2.msra.mxu0 0.0
        %5642 = vmatprep.subr.mxu0 0.0
        %5643 = vmatpush2.msra.mxu0 0.0
        %5644 = vmatprep.subr.mxu0 0.0
        %5645 = vmatpush2.msra.mxu0 0.0
        %5646 = vmatprep.subr.mxu0 0.0
        %5647 = vmatpush2.msra.mxu0 0.0
        %5648 = vmatprep.subr.mxu0 0.0
        %5649 = vmatpush2.msra.mxu0 0.0
        %5650 = vmatprep.subr.mxu0 0.0
        %5651 = vmatpush2.msra.mxu0 0.0
        %5652 = vmatprep.subr.mxu0 0.0
        %5653 = vmatpush2.msra.mxu0 0.0
        %5654 = vmatprep.subr.mxu0 0.0
        %5655 = vmatpush2.msra.mxu0 0.0
        %5656 = vmatprep.subr.mxu0 0.0
        %5657 = vmatpush2.msra.mxu0 0.0
        %5658 = vmatprep.subr.mxu0 0.0
        %5659 = vmatpush2.msra.mxu0 0.0
        %5660 = vmatprep.subr.mxu0 0.0
        %5661 = vmatpush2.msra.mxu0 0.0
        %5662 = vmatprep.subr.mxu0 0.0
        %5663 = vmatpush2.msra.mxu0 0.0
        %5664 = vmatprep.subr.mxu0 0.0
        %5665 = vmatpush2.msra.mxu0 0.0
        %5666 = vmatprep.subr.mxu0 0.0
        %5667 = vmatpush2.msra.mxu0 0.0
        %5668 = vmatprep.subr.mxu0 0.0
        %5669 = vmatpush2.msra.mxu0 0.0
        %5670 = vmatprep.subr.mxu0 0.0
        %5671 = vmatpush2.msra.mxu0 0.0
        %5672 = vmatprep.mubr.f32.mxu0 0.0
        %v5673 = vand.u32 %v5139, 4294901760
        %5674 = vmatmul.mubr.f32.gmra.mxu0 %v5673
        %v5675 = vpop.f32.mrf.mxu0
        %v5676 = vadd.f32 %v5594, %v5675
        %v5677 = vpop.f32.mrf.mxu0
        %5678 = vmatprep.mubr.f32.mxu0 0.0
        %v5679 = vand.u32 %v5142, 4294901760
        %5680 = vmatmul.mubr.f32.gmra.mxu0 %v5679
        %v5681 = vpop.f32.mrf.mxu0
        %v5682 = vadd.f32 %v5600, %v5681
        %v5683 = vpop.f32.mrf.mxu0
        %5684 = vdwg.mxu0
        %v5685 = vmul.f32 %v5676, 0.5
        %v5686 = vmul.f32 %v5682, 0.5
        %v5687 = vmul.f32 %v5676, 0.70710677
        %v5688 = vmul.f32 %v5682, 0.70710677
        %vm5689 = vcmp.ge.f32.partialorder %v5687, 0.0
        %vm5690 = vcmp.ge.f32.partialorder %v5688, 0.0
        %v5691 = vsel %vm5689, 1.0, -1.0
        %v5692 = vsel %vm5690, 1.0, -1.0
        %v5693 = vand.u32 2147483647, %v5687
        %v5694 = vand.u32 2147483647, %v5688
        %v5695 = vmul.f32 %v5693, 0.3275911
        %v5696 = vmul.f32 %v5694, 0.3275911
        %v5697 = vadd.f32 %v5695, 1.0
        %v5698 = vadd.f32 %v5696, 1.0
        %v5699 = vrcp.pop %v5697
        %v5700 = vmul.f32 1.0, %v5699
        %v5701 = vrcp.pop %v5698
        %v5702 = vmul.f32 1.0, %v5701
        %v5703 = vmul.f32 %v5700, 1.0614054
        %v5704 = vmul.f32 %v5702, 1.0614054
        %v5705 = vadd.f32 %v5703, -1.4531521
        %v5706 = vadd.f32 %v5704, -1.4531521
        %v5707 = vmul.f32 %v5705, %v5700
        %v5708 = vmul.f32 %v5706, %v5702
        %v5709 = vadd.f32 %v5707, 1.4214138
        %v5710 = vadd.f32 %v5708, 1.4214138
        %v5711 = vmul.f32 %v5709, %v5700
        %v5712 = vmul.f32 %v5710, %v5702
        %v5713 = vadd.f32 %v5711, -0.28449672
        %v5714 = vadd.f32 %v5712, -0.28449672
        %v5715 = vmul.f32 %v5713, %v5700
        %v5716 = vmul.f32 %v5714, %v5702
        %v5717 = vadd.f32 %v5715, 0.2548296
        %v5718 = vadd.f32 %v5716, 0.2548296
        %v5719 = vmul.f32 %v5717, %v5700
        %v5720 = vmul.f32 %v5718, %v5702
        %v5721 = vsub.f32 0.0, %v5693
        %v5722 = vsub.f32 0.0, %v5694
        %v5723 = vmul.f32 %v5721, %v5693
        %v5724 = vmul.f32 %v5722, %v5694
        %v5725 = vmul.f32 %v5723, 1.442695
        %v5726 = vpow.pop %v5725
        %v5727 = vmul.f32 %v5724, 1.442695
        %v5728 = vpow.pop %v5727
        %v5729 = vmul.f32 %v5719, %v5726
        %v5730 = vmul.f32 %v5720, %v5728
        %v5731 = vsub.f32 1.0, %v5729
        %v5732 = vsub.f32 1.0, %v5730
        %v5733 = vmul.f32 %v5691, %v5731
        %v5734 = vmul.f32 %v5692, %v5732
        %v5735 = vadd.f32 %v5733, 1.0
        %v5736 = vadd.f32 %v5734, 1.0
        %v5737 = vmul.f32 %v5685, %v5735
        %v5738 = vmul.f32 %v5686, %v5736
        %v5739 = vld [vmem:[%s12] sm:$0xf]
        %v5740 = vld [vmem:[%s13] sm:$0xf]
        %5742 = vset.pattern.permute.xlu0 0
        %5743 = vperm.xlu0 %5742, %v5740
        %v5744 = vpop.permute.xlu0 %5743
        %vm5746 = vcmask 105472
        %v5748 = vsel %vm5746, %v5739, 0
        %v5751 = vsel %vm1181, %v5738, 0
        %5753 = vmatprep.subr.mxu0 0.0
        %5754 = vmatpush1.msra.mxu0 0.0
        %5755 = vmatprep.subr.mxu0 0.0
        %5756 = vmatpush1.msra.mxu0 0.0
        %5757 = vmatprep.subr.mxu0 0.0
        %5758 = vmatpush1.msra.mxu0 0.0
        %5759 = vmatprep.subr.mxu0 0.0
        %5760 = vmatpush1.msra.mxu0 0.0
        %5761 = vmatprep.subr.mxu0 0.0
        %5762 = vmatpush1.msra.mxu0 0.0
        %5763 = vmatprep.subr.mxu0 0.0
        %5764 = vmatpush1.msra.mxu0 0.0
        %5765 = vmatprep.subr.mxu0 0.0
        %5766 = vmatpush1.msra.mxu0 0.0
        %5767 = vmatprep.subr.mxu0 0.0
        %5768 = vmatpush1.msra.mxu0 0.0
        %5769 = vmatprep.subr.mxu0 0.0
        %5770 = vmatpush1.msra.mxu0 0.0
        %5771 = vmatprep.subr.mxu0 0.0
        %5772 = vmatpush1.msra.mxu0 0.0
        %5773 = vmatprep.subr.mxu0 0.0
        %5774 = vmatpush1.msra.mxu0 0.0
        %5775 = vmatprep.subr.mxu0 0.0
        %5776 = vmatpush1.msra.mxu0 0.0
        %5777 = vmatprep.subr.mxu0 0.0
        %5778 = vmatpush1.msra.mxu0 0.0
        %5779 = vmatprep.subr.mxu0 0.0
        %5780 = vmatpush1.msra.mxu0 0.0
        %5781 = vmatprep.subr.mxu0 0.0
        %v5782 = vand.u32 %v5751, 4294901760
        %5783 = vmatpush1.msra.mxu0 %v5782
        %5784 = vmatprep.subr.mxu0 0.0
        %v5785 = vand.u32 %v5737, 4294901760
        %5786 = vmatpush1.msra.mxu0 %v5785
        %5787 = vmatprep.subr.mxu0 0.0
        %5788 = vmatpush2.msra.mxu0 0.0
        %5789 = vmatprep.subr.mxu0 0.0
        %5790 = vmatpush2.msra.mxu0 0.0
        %5791 = vmatprep.subr.mxu0 0.0
        %5792 = vmatpush2.msra.mxu0 0.0
        %5793 = vmatprep.subr.mxu0 0.0
        %5794 = vmatpush2.msra.mxu0 0.0
        %5795 = vmatprep.subr.mxu0 0.0
        %5796 = vmatpush2.msra.mxu0 0.0
        %5797 = vmatprep.subr.mxu0 0.0
        %5798 = vmatpush2.msra.mxu0 0.0
        %5799 = vmatprep.subr.mxu0 0.0
        %5800 = vmatpush2.msra.mxu0 0.0
        %5801 = vmatprep.subr.mxu0 0.0
        %5802 = vmatpush2.msra.mxu0 0.0
        %5803 = vmatprep.subr.mxu0 0.0
        %5804 = vmatpush2.msra.mxu0 0.0
        %5805 = vmatprep.subr.mxu0 0.0
        %5806 = vmatpush2.msra.mxu0 0.0
        %5807 = vmatprep.subr.mxu0 0.0
        %5808 = vmatpush2.msra.mxu0 0.0
        %5809 = vmatprep.subr.mxu0 0.0
        %5810 = vmatpush2.msra.mxu0 0.0
        %5811 = vmatprep.subr.mxu0 0.0
        %5812 = vmatpush2.msra.mxu0 0.0
        %5813 = vmatprep.subr.mxu0 0.0
        %5814 = vmatpush2.msra.mxu0 0.0
        %5815 = vmatprep.subr.mxu0 0.0
        %5816 = vmatpush2.msra.mxu0 0.0
        %5817 = vmatprep.subr.mxu0 0.0
        %5818 = vmatpush2.msra.mxu0 0.0
        %5819 = vmatprep.mubr.f32.mxu0 0.0
        %v5820 = vand.u32 %v5748, 4294901760
        %v5821 = vsub.f32 %v5748, %v5820
        %v5822 = vand.u32 %v5821, 4294901760
        %v5823 = vsub.f32 %v5821, %v5822
        %v5824 = vand.u32 %v5823, 4294901760
        %5825 = vmatmul.mubr.f32.gmra.mxu0 %v5824
        %v5826 = vpop.f32.mrf.mxu0
        %v5827 = vadd.f32 %v5744, %v5826
        %v5828 = vpop.f32.mrf.mxu0
        %5829 = vdwg.mxu0
        %5830 = vmatprep.subr.mxu0 0.0
        %5831 = vmatpush1.msra.mxu0 0.0
        %5832 = vmatprep.subr.mxu0 0.0
        %5833 = vmatpush1.msra.mxu0 0.0
        %5834 = vmatprep.subr.mxu0 0.0
        %5835 = vmatpush1.msra.mxu0 0.0
        %5836 = vmatprep.subr.mxu0 0.0
        %5837 = vmatpush1.msra.mxu0 0.0
        %5838 = vmatprep.subr.mxu0 0.0
        %5839 = vmatpush1.msra.mxu0 0.0
        %5840 = vmatprep.subr.mxu0 0.0
        %5841 = vmatpush1.msra.mxu0 0.0
        %5842 = vmatprep.subr.mxu0 0.0
        %5843 = vmatpush1.msra.mxu0 0.0
        %5844 = vmatprep.subr.mxu0 0.0
        %5845 = vmatpush1.msra.mxu0 0.0
        %5846 = vmatprep.subr.mxu0 0.0
        %5847 = vmatpush1.msra.mxu0 0.0
        %5848 = vmatprep.subr.mxu0 0.0
        %5849 = vmatpush1.msra.mxu0 0.0
        %5850 = vmatprep.subr.mxu0 0.0
        %5851 = vmatpush1.msra.mxu0 0.0
        %5852 = vmatprep.subr.mxu0 0.0
        %5853 = vmatpush1.msra.mxu0 0.0
        %5854 = vmatprep.subr.mxu0 0.0
        %5855 = vmatpush1.msra.mxu0 0.0
        %5856 = vmatprep.subr.mxu0 0.0
        %5857 = vmatpush1.msra.mxu0 0.0
        %5858 = vmatprep.subr.mxu0 0.0
        %v5859 = vand.u32 %v5751, 4294901760
        %v5860 = vsub.f32 %v5751, %v5859
        %v5861 = vand.u32 %v5860, 4294901760
        %v5862 = vsub.f32 %v5860, %v5861
        %v5863 = vand.u32 %v5862, 4294901760
        %5864 = vmatpush1.msra.mxu0 %v5863
        %5865 = vmatprep.subr.mxu0 0.0
        %v5866 = vand.u32 %v5737, 4294901760
        %v5867 = vsub.f32 %v5737, %v5866
        %v5868 = vand.u32 %v5867, 4294901760
        %v5869 = vsub.f32 %v5867, %v5868
        %v5870 = vand.u32 %v5869, 4294901760
        %5871 = vmatpush1.msra.mxu0 %v5870
        %5872 = vmatprep.subr.mxu0 0.0
        %5873 = vmatpush2.msra.mxu0 0.0
        %5874 = vmatprep.subr.mxu0 0.0
        %5875 = vmatpush2.msra.mxu0 0.0
        %5876 = vmatprep.subr.mxu0 0.0
        %5877 = vmatpush2.msra.mxu0 0.0
        %5878 = vmatprep.subr.mxu0 0.0
        %5879 = vmatpush2.msra.mxu0 0.0
        %5880 = vmatprep.subr.mxu0 0.0
        %5881 = vmatpush2.msra.mxu0 0.0
        %5882 = vmatprep.subr.mxu0 0.0
        %5883 = vmatpush2.msra.mxu0 0.0
        %5884 = vmatprep.subr.mxu0 0.0
        %5885 = vmatpush2.msra.mxu0 0.0
        %5886 = vmatprep.subr.mxu0 0.0
        %5887 = vmatpush2.msra.mxu0 0.0
        %5888 = vmatprep.subr.mxu0 0.0
        %5889 = vmatpush2.msra.mxu0 0.0
        %5890 = vmatprep.subr.mxu0 0.0
        %5891 = vmatpush2.msra.mxu0 0.0
        %5892 = vmatprep.subr.mxu0 0.0
        %5893 = vmatpush2.msra.mxu0 0.0
        %5894 = vmatprep.subr.mxu0 0.0
        %5895 = vmatpush2.msra.mxu0 0.0
        %5896 = vmatprep.subr.mxu0 0.0
        %5897 = vmatpush2.msra.mxu0 0.0
        %5898 = vmatprep.subr.mxu0 0.0
        %5899 = vmatpush2.msra.mxu0 0.0
        %5900 = vmatprep.subr.mxu0 0.0
        %5901 = vmatpush2.msra.mxu0 0.0
        %5902 = vmatprep.subr.mxu0 0.0
        %5903 = vmatpush2.msra.mxu0 0.0
        %5904 = vmatprep.mubr.f32.mxu0 0.0
        %v5905 = vand.u32 %v5748, 4294901760
        %5906 = vmatmul.mubr.f32.gmra.mxu0 %v5905
        %v5907 = vpop.f32.mrf.mxu0
        %v5908 = vadd.f32 %v5827, %v5907
        %v5909 = vpop.f32.mrf.mxu0
        %5910 = vdwg.mxu0
        %5911 = vmatprep.subr.mxu0 0.0
        %5912 = vmatpush1.msra.mxu0 0.0
        %5913 = vmatprep.subr.mxu0 0.0
        %5914 = vmatpush1.msra.mxu0 0.0
        %5915 = vmatprep.subr.mxu0 0.0
        %5916 = vmatpush1.msra.mxu0 0.0
        %5917 = vmatprep.subr.mxu0 0.0
        %5918 = vmatpush1.msra.mxu0 0.0
        %5919 = vmatprep.subr.mxu0 0.0
        %5920 = vmatpush1.msra.mxu0 0.0
        %5921 = vmatprep.subr.mxu0 0.0
        %5922 = vmatpush1.msra.mxu0 0.0
        %5923 = vmatprep.subr.mxu0 0.0
        %5924 = vmatpush1.msra.mxu0 0.0
        %5925 = vmatprep.subr.mxu0 0.0
        %5926 = vmatpush1.msra.mxu0 0.0
        %5927 = vmatprep.subr.mxu0 0.0
        %5928 = vmatpush1.msra.mxu0 0.0
        %5929 = vmatprep.subr.mxu0 0.0
        %5930 = vmatpush1.msra.mxu0 0.0
        %5931 = vmatprep.subr.mxu0 0.0
        %5932 = vmatpush1.msra.mxu0 0.0
        %5933 = vmatprep.subr.mxu0 0.0
        %5934 = vmatpush1.msra.mxu0 0.0
        %5935 = vmatprep.subr.mxu0 0.0
        %5936 = vmatpush1.msra.mxu0 0.0
        %5937 = vmatprep.subr.mxu0 0.0
        %5938 = vmatpush1.msra.mxu0 0.0
        %5939 = vmatprep.subr.mxu0 0.0
        %v5940 = vand.u32 %v5751, 4294901760
        %v5941 = vsub.f32 %v5751, %v5940
        %5942 = vmatpush1.msra.mxu0 %v5941
        %5943 = vmatprep.subr.mxu0 0.0
        %v5944 = vand.u32 %v5737, 4294901760
        %v5945 = vsub.f32 %v5737, %v5944
        %5946 = vmatpush1.msra.mxu0 %v5945
        %5947 = vmatprep.subr.mxu0 0.0
        %5948 = vmatpush2.msra.mxu0 0.0
        %5949 = vmatprep.subr.mxu0 0.0
        %5950 = vmatpush2.msra.mxu0 0.0
        %5951 = vmatprep.subr.mxu0 0.0
        %5952 = vmatpush2.msra.mxu0 0.0
        %5953 = vmatprep.subr.mxu0 0.0
        %5954 = vmatpush2.msra.mxu0 0.0
        %5955 = vmatprep.subr.mxu0 0.0
        %5956 = vmatpush2.msra.mxu0 0.0
        %5957 = vmatprep.subr.mxu0 0.0
        %5958 = vmatpush2.msra.mxu0 0.0
        %5959 = vmatprep.subr.mxu0 0.0
        %5960 = vmatpush2.msra.mxu0 0.0
        %5961 = vmatprep.subr.mxu0 0.0
        %5962 = vmatpush2.msra.mxu0 0.0
        %5963 = vmatprep.subr.mxu0 0.0
        %5964 = vmatpush2.msra.mxu0 0.0
        %5965 = vmatprep.subr.mxu0 0.0
        %5966 = vmatpush2.msra.mxu0 0.0
        %5967 = vmatprep.subr.mxu0 0.0
        %5968 = vmatpush2.msra.mxu0 0.0
        %5969 = vmatprep.subr.mxu0 0.0
        %5970 = vmatpush2.msra.mxu0 0.0
        %5971 = vmatprep.subr.mxu0 0.0
        %5972 = vmatpush2.msra.mxu0 0.0
        %5973 = vmatprep.subr.mxu0 0.0
        %5974 = vmatpush2.msra.mxu0 0.0
        %5975 = vmatprep.subr.mxu0 0.0
        %5976 = vmatpush2.msra.mxu0 0.0
        %5977 = vmatprep.subr.mxu0 0.0
        %5978 = vmatpush2.msra.mxu0 0.0
        %5979 = vmatprep.mubr.f32.mxu0 0.0
        %v5980 = vand.u32 %v5748, 4294901760
        %v5981 = vsub.f32 %v5748, %v5980
        %5982 = vmatmul.mubr.f32.gmra.mxu0 %v5981
        %v5983 = vpop.f32.mrf.mxu0
        %v5984 = vadd.f32 %v5908, %v5983
        %v5985 = vpop.f32.mrf.mxu0
        %5986 = vdwg.mxu0
        %5987 = vmatprep.subr.mxu0 0.0
        %5988 = vmatpush1.msra.mxu0 0.0
        %5989 = vmatprep.subr.mxu0 0.0
        %5990 = vmatpush1.msra.mxu0 0.0
        %5991 = vmatprep.subr.mxu0 0.0
        %5992 = vmatpush1.msra.mxu0 0.0
        %5993 = vmatprep.subr.mxu0 0.0
        %5994 = vmatpush1.msra.mxu0 0.0
        %5995 = vmatprep.subr.mxu0 0.0
        %5996 = vmatpush1.msra.mxu0 0.0
        %5997 = vmatprep.subr.mxu0 0.0
        %5998 = vmatpush1.msra.mxu0 0.0
        %5999 = vmatprep.subr.mxu0 0.0
        %6000 = vmatpush1.msra.mxu0 0.0
        %6001 = vmatprep.subr.mxu0 0.0
        %6002 = vmatpush1.msra.mxu0 0.0
        %6003 = vmatprep.subr.mxu0 0.0
        %6004 = vmatpush1.msra.mxu0 0.0
        %6005 = vmatprep.subr.mxu0 0.0
        %6006 = vmatpush1.msra.mxu0 0.0
        %6007 = vmatprep.subr.mxu0 0.0
        %6008 = vmatpush1.msra.mxu0 0.0
        %6009 = vmatprep.subr.mxu0 0.0
        %6010 = vmatpush1.msra.mxu0 0.0
        %6011 = vmatprep.subr.mxu0 0.0
        %6012 = vmatpush1.msra.mxu0 0.0
        %6013 = vmatprep.subr.mxu0 0.0
        %6014 = vmatpush1.msra.mxu0 0.0
        %6015 = vmatprep.subr.mxu0 0.0
        %v6016 = vand.u32 %v5751, 4294901760
        %6017 = vmatpush1.msra.mxu0 %v6016
        %6018 = vmatprep.subr.mxu0 0.0
        %v6019 = vand.u32 %v5737, 4294901760
        %6020 = vmatpush1.msra.mxu0 %v6019
        %6021 = vmatprep.subr.mxu0 0.0
        %6022 = vmatpush2.msra.mxu0 0.0
        %6023 = vmatprep.subr.mxu0 0.0
        %6024 = vmatpush2.msra.mxu0 0.0
        %6025 = vmatprep.subr.mxu0 0.0
        %6026 = vmatpush2.msra.mxu0 0.0
        %6027 = vmatprep.subr.mxu0 0.0
        %6028 = vmatpush2.msra.mxu0 0.0
        %6029 = vmatprep.subr.mxu0 0.0
        %6030 = vmatpush2.msra.mxu0 0.0
        %6031 = vmatprep.subr.mxu0 0.0
        %6032 = vmatpush2.msra.mxu0 0.0
        %6033 = vmatprep.subr.mxu0 0.0
        %6034 = vmatpush2.msra.mxu0 0.0
        %6035 = vmatprep.subr.mxu0 0.0
        %6036 = vmatpush2.msra.mxu0 0.0
        %6037 = vmatprep.subr.mxu0 0.0
        %6038 = vmatpush2.msra.mxu0 0.0
        %6039 = vmatprep.subr.mxu0 0.0
        %6040 = vmatpush2.msra.mxu0 0.0
        %6041 = vmatprep.subr.mxu0 0.0
        %6042 = vmatpush2.msra.mxu0 0.0
        %6043 = vmatprep.subr.mxu0 0.0
        %6044 = vmatpush2.msra.mxu0 0.0
        %6045 = vmatprep.subr.mxu0 0.0
        %6046 = vmatpush2.msra.mxu0 0.0
        %6047 = vmatprep.subr.mxu0 0.0
        %6048 = vmatpush2.msra.mxu0 0.0
        %6049 = vmatprep.subr.mxu0 0.0
        %6050 = vmatpush2.msra.mxu0 0.0
        %6051 = vmatprep.subr.mxu0 0.0
        %6052 = vmatpush2.msra.mxu0 0.0
        %6053 = vmatprep.mubr.f32.mxu0 0.0
        %v6054 = vand.u32 %v5748, 4294901760
        %v6055 = vsub.f32 %v5748, %v6054
        %v6056 = vand.u32 %v6055, 4294901760
        %6057 = vmatmul.mubr.f32.gmra.mxu0 %v6056
        %v6058 = vpop.f32.mrf.mxu0
        %v6059 = vadd.f32 %v5984, %v6058
        %v6060 = vpop.f32.mrf.mxu0
        %6061 = vdwg.mxu0
        %6062 = vmatprep.subr.mxu0 0.0
        %6063 = vmatpush1.msra.mxu0 0.0
        %6064 = vmatprep.subr.mxu0 0.0
        %6065 = vmatpush1.msra.mxu0 0.0
        %6066 = vmatprep.subr.mxu0 0.0
        %6067 = vmatpush1.msra.mxu0 0.0
        %6068 = vmatprep.subr.mxu0 0.0
        %6069 = vmatpush1.msra.mxu0 0.0
        %6070 = vmatprep.subr.mxu0 0.0
        %6071 = vmatpush1.msra.mxu0 0.0
        %6072 = vmatprep.subr.mxu0 0.0
        %6073 = vmatpush1.msra.mxu0 0.0
        %6074 = vmatprep.subr.mxu0 0.0
        %6075 = vmatpush1.msra.mxu0 0.0
        %6076 = vmatprep.subr.mxu0 0.0
        %6077 = vmatpush1.msra.mxu0 0.0
        %6078 = vmatprep.subr.mxu0 0.0
        %6079 = vmatpush1.msra.mxu0 0.0
        %6080 = vmatprep.subr.mxu0 0.0
        %6081 = vmatpush1.msra.mxu0 0.0
        %6082 = vmatprep.subr.mxu0 0.0
        %6083 = vmatpush1.msra.mxu0 0.0
        %6084 = vmatprep.subr.mxu0 0.0
        %6085 = vmatpush1.msra.mxu0 0.0
        %6086 = vmatprep.subr.mxu0 0.0
        %6087 = vmatpush1.msra.mxu0 0.0
        %6088 = vmatprep.subr.mxu0 0.0
        %6089 = vmatpush1.msra.mxu0 0.0
        %6090 = vmatprep.subr.mxu0 0.0
        %v6091 = vand.u32 %v5751, 4294901760
        %v6092 = vsub.f32 %v5751, %v6091
        %v6093 = vand.u32 %v6092, 4294901760
        %6094 = vmatpush1.msra.mxu0 %v6093
        %6095 = vmatprep.subr.mxu0 0.0
        %v6096 = vand.u32 %v5737, 4294901760
        %v6097 = vsub.f32 %v5737, %v6096
        %v6098 = vand.u32 %v6097, 4294901760
        %6099 = vmatpush1.msra.mxu0 %v6098
        %6100 = vmatprep.subr.mxu0 0.0
        %6101 = vmatpush2.msra.mxu0 0.0
        %6102 = vmatprep.subr.mxu0 0.0
        %6103 = vmatpush2.msra.mxu0 0.0
        %6104 = vmatprep.subr.mxu0 0.0
        %6105 = vmatpush2.msra.mxu0 0.0
        %6106 = vmatprep.subr.mxu0 0.0
        %6107 = vmatpush2.msra.mxu0 0.0
        %6108 = vmatprep.subr.mxu0 0.0
        %6109 = vmatpush2.msra.mxu0 0.0
        %6110 = vmatprep.subr.mxu0 0.0
        %6111 = vmatpush2.msra.mxu0 0.0
        %6112 = vmatprep.subr.mxu0 0.0
        %6113 = vmatpush2.msra.mxu0 0.0
        %6114 = vmatprep.subr.mxu0 0.0
        %6115 = vmatpush2.msra.mxu0 0.0
        %6116 = vmatprep.subr.mxu0 0.0
        %6117 = vmatpush2.msra.mxu0 0.0
        %6118 = vmatprep.subr.mxu0 0.0
        %6119 = vmatpush2.msra.mxu0 0.0
        %6120 = vmatprep.subr.mxu0 0.0
        %6121 = vmatpush2.msra.mxu0 0.0
        %6122 = vmatprep.subr.mxu0 0.0
        %6123 = vmatpush2.msra.mxu0 0.0
        %6124 = vmatprep.subr.mxu0 0.0
        %6125 = vmatpush2.msra.mxu0 0.0
        %6126 = vmatprep.subr.mxu0 0.0
        %6127 = vmatpush2.msra.mxu0 0.0
        %6128 = vmatprep.subr.mxu0 0.0
        %6129 = vmatpush2.msra.mxu0 0.0
        %6130 = vmatprep.subr.mxu0 0.0
        %6131 = vmatpush2.msra.mxu0 0.0
        %6132 = vmatprep.mubr.f32.mxu0 0.0
        %v6133 = vand.u32 %v5748, 4294901760
        %6134 = vmatmul.mubr.f32.gmra.mxu0 %v6133
        %v6135 = vpop.f32.mrf.mxu0
        %v6136 = vadd.f32 %v6059, %v6135
        %v6137 = vpop.f32.mrf.mxu0
        %6138 = vdwg.mxu0
        %6139 = vmatprep.subr.mxu0 0.0
        %6140 = vmatpush1.msra.mxu0 0.0
        %6141 = vmatprep.subr.mxu0 0.0
        %6142 = vmatpush1.msra.mxu0 0.0
        %6143 = vmatprep.subr.mxu0 0.0
        %6144 = vmatpush1.msra.mxu0 0.0
        %6145 = vmatprep.subr.mxu0 0.0
        %6146 = vmatpush1.msra.mxu0 0.0
        %6147 = vmatprep.subr.mxu0 0.0
        %6148 = vmatpush1.msra.mxu0 0.0
        %6149 = vmatprep.subr.mxu0 0.0
        %6150 = vmatpush1.msra.mxu0 0.0
        %6151 = vmatprep.subr.mxu0 0.0
        %6152 = vmatpush1.msra.mxu0 0.0
        %6153 = vmatprep.subr.mxu0 0.0
        %6154 = vmatpush1.msra.mxu0 0.0
        %6155 = vmatprep.subr.mxu0 0.0
        %6156 = vmatpush1.msra.mxu0 0.0
        %6157 = vmatprep.subr.mxu0 0.0
        %6158 = vmatpush1.msra.mxu0 0.0
        %6159 = vmatprep.subr.mxu0 0.0
        %6160 = vmatpush1.msra.mxu0 0.0
        %6161 = vmatprep.subr.mxu0 0.0
        %6162 = vmatpush1.msra.mxu0 0.0
        %6163 = vmatprep.subr.mxu0 0.0
        %6164 = vmatpush1.msra.mxu0 0.0
        %6165 = vmatprep.subr.mxu0 0.0
        %6166 = vmatpush1.msra.mxu0 0.0
        %6167 = vmatprep.subr.mxu0 0.0
        %v6168 = vand.u32 %v5751, 4294901760
        %6169 = vmatpush1.msra.mxu0 %v6168
        %6170 = vmatprep.subr.mxu0 0.0
        %v6171 = vand.u32 %v5737, 4294901760
        %6172 = vmatpush1.msra.mxu0 %v6171
        %6173 = vmatprep.subr.mxu0 0.0
        %6174 = vmatpush2.msra.mxu0 0.0
        %6175 = vmatprep.subr.mxu0 0.0
        %6176 = vmatpush2.msra.mxu0 0.0
        %6177 = vmatprep.subr.mxu0 0.0
        %6178 = vmatpush2.msra.mxu0 0.0
        %6179 = vmatprep.subr.mxu0 0.0
        %6180 = vmatpush2.msra.mxu0 0.0
        %6181 = vmatprep.subr.mxu0 0.0
        %6182 = vmatpush2.msra.mxu0 0.0
        %6183 = vmatprep.subr.mxu0 0.0
        %6184 = vmatpush2.msra.mxu0 0.0
        %6185 = vmatprep.subr.mxu0 0.0
        %6186 = vmatpush2.msra.mxu0 0.0
        %6187 = vmatprep.subr.mxu0 0.0
        %6188 = vmatpush2.msra.mxu0 0.0
        %6189 = vmatprep.subr.mxu0 0.0
        %6190 = vmatpush2.msra.mxu0 0.0
        %6191 = vmatprep.subr.mxu0 0.0
        %6192 = vmatpush2.msra.mxu0 0.0
        %6193 = vmatprep.subr.mxu0 0.0
        %6194 = vmatpush2.msra.mxu0 0.0
        %6195 = vmatprep.subr.mxu0 0.0
        %6196 = vmatpush2.msra.mxu0 0.0
        %6197 = vmatprep.subr.mxu0 0.0
        %6198 = vmatpush2.msra.mxu0 0.0
        %6199 = vmatprep.subr.mxu0 0.0
        %6200 = vmatpush2.msra.mxu0 0.0
        %6201 = vmatprep.subr.mxu0 0.0
        %6202 = vmatpush2.msra.mxu0 0.0
        %6203 = vmatprep.subr.mxu0 0.0
        %6204 = vmatpush2.msra.mxu0 0.0
        %6205 = vmatprep.mubr.f32.mxu0 0.0
        %v6206 = vand.u32 %v5748, 4294901760
        %6207 = vmatmul.mubr.f32.gmra.mxu0 %v6206
        %v6208 = vpop.f32.mrf.mxu0
        %v6209 = vadd.f32 %v6136, %v6208
        %v6210 = vpop.f32.mrf.mxu0
        %6211 = vdwg.mxu0
        %6212 = vmatprep.subr.mxu0 0.0
        %v6213 = vand.u32 %v533, 4294901760
        %6214 = vmatpush1.msra.mxu0 %v6213
        %6215 = vmatprep.subr.mxu0 0.0
        %v6216 = vand.u32 %v532, 4294901760
        %6217 = vmatpush1.msra.mxu0 %v6216
        %6218 = vmatprep.subr.mxu0 0.0
        %v6219 = vand.u32 %v531, 4294901760
        %6220 = vmatpush1.msra.mxu0 %v6219
        %6221 = vmatprep.subr.mxu0 0.0
        %v6222 = vand.u32 %v530, 4294901760
        %6223 = vmatpush1.msra.mxu0 %v6222
        %6224 = vmatprep.subr.mxu0 0.0
        %v6225 = vand.u32 %v529, 4294901760
        %6226 = vmatpush1.msra.mxu0 %v6225
        %6227 = vmatprep.subr.mxu0 0.0
        %v6228 = vand.u32 %v528, 4294901760
        %6229 = vmatpush1.msra.mxu0 %v6228
        %6230 = vmatprep.subr.mxu0 0.0
        %v6231 = vand.u32 %v527, 4294901760
        %6232 = vmatpush1.msra.mxu0 %v6231
        %6233 = vmatprep.subr.mxu0 0.0
        %v6234 = vand.u32 %v526, 4294901760
        %6235 = vmatpush1.msra.mxu0 %v6234
        %6236 = vmatprep.subr.mxu0 0.0
        %v6237 = vand.u32 %v525, 4294901760
        %6238 = vmatpush1.msra.mxu0 %v6237
        %6239 = vmatprep.subr.mxu0 0.0
        %v6240 = vand.u32 %v524, 4294901760
        %6241 = vmatpush1.msra.mxu0 %v6240
        %6242 = vmatprep.subr.mxu0 0.0
        %v6243 = vand.u32 %v523, 4294901760
        %6244 = vmatpush1.msra.mxu0 %v6243
        %6245 = vmatprep.subr.mxu0 0.0
        %v6246 = vand.u32 %v522, 4294901760
        %6247 = vmatpush1.msra.mxu0 %v6246
        %6248 = vmatprep.subr.mxu0 0.0
        %v6249 = vand.u32 %v521, 4294901760
        %6250 = vmatpush1.msra.mxu0 %v6249
        %6251 = vmatprep.subr.mxu0 0.0
        %v6252 = vand.u32 %v520, 4294901760
        %6253 = vmatpush1.msra.mxu0 %v6252
        %6254 = vmatprep.subr.mxu0 0.0
        %v6255 = vand.u32 %v519, 4294901760
        %6256 = vmatpush1.msra.mxu0 %v6255
        %6257 = vmatprep.subr.mxu0 0.0
        %v6258 = vand.u32 %v518, 4294901760
        %6259 = vmatpush1.msra.mxu0 %v6258
        %6260 = vmatprep.subr.mxu0 0.0
        %6261 = vmatpush2.msra.mxu0 0.0
        %6262 = vmatprep.subr.mxu0 0.0
        %6263 = vmatpush2.msra.mxu0 0.0
        %6264 = vmatprep.subr.mxu0 0.0
        %6265 = vmatpush2.msra.mxu0 0.0
        %6266 = vmatprep.subr.mxu0 0.0
        %6267 = vmatpush2.msra.mxu0 0.0
        %6268 = vmatprep.subr.mxu0 0.0
        %6269 = vmatpush2.msra.mxu0 0.0
        %6270 = vmatprep.subr.mxu0 0.0
        %6271 = vmatpush2.msra.mxu0 0.0
        %6272 = vmatprep.subr.mxu0 0.0
        %6273 = vmatpush2.msra.mxu0 0.0
        %6274 = vmatprep.subr.mxu0 0.0
        %6275 = vmatpush2.msra.mxu0 0.0
        %6276 = vmatprep.subr.mxu0 0.0
        %6277 = vmatpush2.msra.mxu0 0.0
        %6278 = vmatprep.subr.mxu0 0.0
        %6279 = vmatpush2.msra.mxu0 0.0
        %6280 = vmatprep.subr.mxu0 0.0
        %6281 = vmatpush2.msra.mxu0 0.0
        %6282 = vmatprep.subr.mxu0 0.0
        %6283 = vmatpush2.msra.mxu0 0.0
        %6284 = vmatprep.subr.mxu0 0.0
        %6285 = vmatpush2.msra.mxu0 0.0
        %6286 = vmatprep.subr.mxu0 0.0
        %6287 = vmatpush2.msra.mxu0 0.0
        %6288 = vmatprep.subr.mxu0 0.0
        %6289 = vmatpush2.msra.mxu0 0.0
        %6290 = vmatprep.subr.mxu0 0.0
        %6291 = vmatpush2.msra.mxu0 0.0
        %6292 = vmatprep.mubr.f32.mxu0 0.0
        %v6293 = vand.u32 %v6209, 4294901760
        %v6294 = vsub.f32 %v6209, %v6293
        %v6295 = vand.u32 %v6294, 4294901760
        %v6296 = vsub.f32 %v6294, %v6295
        %v6297 = vand.u32 %v6296, 4294901760
        %6298 = vmatmul.mubr.f32.gmra.mxu0 %v6297
        %v6299 = vpop.f32.mrf.mxu0
        %v6300 = vadd.f32 0.0, %v6299
        %v6301 = vpop.f32.mrf.mxu0
        %6302 = vdwg.mxu0
        %6303 = vmatprep.subr.mxu0 0.0
        %v6304 = vand.u32 %v533, 4294901760
        %v6305 = vsub.f32 %v533, %v6304
        %v6306 = vand.u32 %v6305, 4294901760
        %v6307 = vsub.f32 %v6305, %v6306
        %v6308 = vand.u32 %v6307, 4294901760
        %6309 = vmatpush1.msra.mxu0 %v6308
        %6310 = vmatprep.subr.mxu0 0.0
        %v6311 = vand.u32 %v532, 4294901760
        %v6312 = vsub.f32 %v532, %v6311
        %v6313 = vand.u32 %v6312, 4294901760
        %v6314 = vsub.f32 %v6312, %v6313
        %v6315 = vand.u32 %v6314, 4294901760
        %6316 = vmatpush1.msra.mxu0 %v6315
        %6317 = vmatprep.subr.mxu0 0.0
        %v6318 = vand.u32 %v531, 4294901760
        %v6319 = vsub.f32 %v531, %v6318
        %v6320 = vand.u32 %v6319, 4294901760
        %v6321 = vsub.f32 %v6319, %v6320
        %v6322 = vand.u32 %v6321, 4294901760
        %6323 = vmatpush1.msra.mxu0 %v6322
        %6324 = vmatprep.subr.mxu0 0.0
        %v6325 = vand.u32 %v530, 4294901760
        %v6326 = vsub.f32 %v530, %v6325
        %v6327 = vand.u32 %v6326, 4294901760
        %v6328 = vsub.f32 %v6326, %v6327
        %v6329 = vand.u32 %v6328, 4294901760
        %6330 = vmatpush1.msra.mxu0 %v6329
        %6331 = vmatprep.subr.mxu0 0.0
        %v6332 = vand.u32 %v529, 4294901760
        %v6333 = vsub.f32 %v529, %v6332
        %v6334 = vand.u32 %v6333, 4294901760
        %v6335 = vsub.f32 %v6333, %v6334
        %v6336 = vand.u32 %v6335, 4294901760
        %6337 = vmatpush1.msra.mxu0 %v6336
        %6338 = vmatprep.subr.mxu0 0.0
        %v6339 = vand.u32 %v528, 4294901760
        %v6340 = vsub.f32 %v528, %v6339
        %v6341 = vand.u32 %v6340, 4294901760
        %v6342 = vsub.f32 %v6340, %v6341
        %v6343 = vand.u32 %v6342, 4294901760
        %6344 = vmatpush1.msra.mxu0 %v6343
        %6345 = vmatprep.subr.mxu0 0.0
        %v6346 = vand.u32 %v527, 4294901760
        %v6347 = vsub.f32 %v527, %v6346
        %v6348 = vand.u32 %v6347, 4294901760
        %v6349 = vsub.f32 %v6347, %v6348
        %v6350 = vand.u32 %v6349, 4294901760
        %6351 = vmatpush1.msra.mxu0 %v6350
        %6352 = vmatprep.subr.mxu0 0.0
        %v6353 = vand.u32 %v526, 4294901760
        %v6354 = vsub.f32 %v526, %v6353
        %v6355 = vand.u32 %v6354, 4294901760
        %v6356 = vsub.f32 %v6354, %v6355
        %v6357 = vand.u32 %v6356, 4294901760
        %6358 = vmatpush1.msra.mxu0 %v6357
        %6359 = vmatprep.subr.mxu0 0.0
        %v6360 = vand.u32 %v525, 4294901760
        %v6361 = vsub.f32 %v525, %v6360
        %v6362 = vand.u32 %v6361, 4294901760
        %v6363 = vsub.f32 %v6361, %v6362
        %v6364 = vand.u32 %v6363, 4294901760
        %6365 = vmatpush1.msra.mxu0 %v6364
        %6366 = vmatprep.subr.mxu0 0.0
        %v6367 = vand.u32 %v524, 4294901760
        %v6368 = vsub.f32 %v524, %v6367
        %v6369 = vand.u32 %v6368, 4294901760
        %v6370 = vsub.f32 %v6368, %v6369
        %v6371 = vand.u32 %v6370, 4294901760
        %6372 = vmatpush1.msra.mxu0 %v6371
        %6373 = vmatprep.subr.mxu0 0.0
        %v6374 = vand.u32 %v523, 4294901760
        %v6375 = vsub.f32 %v523, %v6374
        %v6376 = vand.u32 %v6375, 4294901760
        %v6377 = vsub.f32 %v6375, %v6376
        %v6378 = vand.u32 %v6377, 4294901760
        %6379 = vmatpush1.msra.mxu0 %v6378
        %6380 = vmatprep.subr.mxu0 0.0
        %v6381 = vand.u32 %v522, 4294901760
        %v6382 = vsub.f32 %v522, %v6381
        %v6383 = vand.u32 %v6382, 4294901760
        %v6384 = vsub.f32 %v6382, %v6383
        %v6385 = vand.u32 %v6384, 4294901760
        %6386 = vmatpush1.msra.mxu0 %v6385
        %6387 = vmatprep.subr.mxu0 0.0
        %v6388 = vand.u32 %v521, 4294901760
        %v6389 = vsub.f32 %v521, %v6388
        %v6390 = vand.u32 %v6389, 4294901760
        %v6391 = vsub.f32 %v6389, %v6390
        %v6392 = vand.u32 %v6391, 4294901760
        %6393 = vmatpush1.msra.mxu0 %v6392
        %6394 = vmatprep.subr.mxu0 0.0
        %v6395 = vand.u32 %v520, 4294901760
        %v6396 = vsub.f32 %v520, %v6395
        %v6397 = vand.u32 %v6396, 4294901760
        %v6398 = vsub.f32 %v6396, %v6397
        %v6399 = vand.u32 %v6398, 4294901760
        %6400 = vmatpush1.msra.mxu0 %v6399
        %6401 = vmatprep.subr.mxu0 0.0
        %v6402 = vand.u32 %v519, 4294901760
        %v6403 = vsub.f32 %v519, %v6402
        %v6404 = vand.u32 %v6403, 4294901760
        %v6405 = vsub.f32 %v6403, %v6404
        %v6406 = vand.u32 %v6405, 4294901760
        %6407 = vmatpush1.msra.mxu0 %v6406
        %6408 = vmatprep.subr.mxu0 0.0
        %v6409 = vand.u32 %v518, 4294901760
        %v6410 = vsub.f32 %v518, %v6409
        %v6411 = vand.u32 %v6410, 4294901760
        %v6412 = vsub.f32 %v6410, %v6411
        %v6413 = vand.u32 %v6412, 4294901760
        %6414 = vmatpush1.msra.mxu0 %v6413
        %6415 = vmatprep.subr.mxu0 0.0
        %6416 = vmatpush2.msra.mxu0 0.0
        %6417 = vmatprep.subr.mxu0 0.0
        %6418 = vmatpush2.msra.mxu0 0.0
        %6419 = vmatprep.subr.mxu0 0.0
        %6420 = vmatpush2.msra.mxu0 0.0
        %6421 = vmatprep.subr.mxu0 0.0
        %6422 = vmatpush2.msra.mxu0 0.0
        %6423 = vmatprep.subr.mxu0 0.0
        %6424 = vmatpush2.msra.mxu0 0.0
        %6425 = vmatprep.subr.mxu0 0.0
        %6426 = vmatpush2.msra.mxu0 0.0
        %6427 = vmatprep.subr.mxu0 0.0
        %6428 = vmatpush2.msra.mxu0 0.0
        %6429 = vmatprep.subr.mxu0 0.0
        %6430 = vmatpush2.msra.mxu0 0.0
        %6431 = vmatprep.subr.mxu0 0.0
        %6432 = vmatpush2.msra.mxu0 0.0
        %6433 = vmatprep.subr.mxu0 0.0
        %6434 = vmatpush2.msra.mxu0 0.0
        %6435 = vmatprep.subr.mxu0 0.0
        %6436 = vmatpush2.msra.mxu0 0.0
        %6437 = vmatprep.subr.mxu0 0.0
        %6438 = vmatpush2.msra.mxu0 0.0
        %6439 = vmatprep.subr.mxu0 0.0
        %6440 = vmatpush2.msra.mxu0 0.0
        %6441 = vmatprep.subr.mxu0 0.0
        %6442 = vmatpush2.msra.mxu0 0.0
        %6443 = vmatprep.subr.mxu0 0.0
        %6444 = vmatpush2.msra.mxu0 0.0
        %6445 = vmatprep.subr.mxu0 0.0
        %6446 = vmatpush2.msra.mxu0 0.0
        %6447 = vmatprep.mubr.f32.mxu0 0.0
        %v6448 = vand.u32 %v6209, 4294901760
        %6449 = vmatmul.mubr.f32.gmra.mxu0 %v6448
        %v6450 = vpop.f32.mrf.mxu0
        %v6451 = vadd.f32 %v6300, %v6450
        %v6452 = vpop.f32.mrf.mxu0
        %6453 = vdwg.mxu0
        %6454 = vmatprep.subr.mxu0 0.0
        %v6455 = vand.u32 %v533, 4294901760
        %v6456 = vsub.f32 %v533, %v6455
        %6457 = vmatpush1.msra.mxu0 %v6456
        %6458 = vmatprep.subr.mxu0 0.0
        %v6459 = vand.u32 %v532, 4294901760
        %v6460 = vsub.f32 %v532, %v6459
        %6461 = vmatpush1.msra.mxu0 %v6460
        %6462 = vmatprep.subr.mxu0 0.0
        %v6463 = vand.u32 %v531, 4294901760
        %v6464 = vsub.f32 %v531, %v6463
        %6465 = vmatpush1.msra.mxu0 %v6464
        %6466 = vmatprep.subr.mxu0 0.0
        %v6467 = vand.u32 %v530, 4294901760
        %v6468 = vsub.f32 %v530, %v6467
        %6469 = vmatpush1.msra.mxu0 %v6468
        %6470 = vmatprep.subr.mxu0 0.0
        %v6471 = vand.u32 %v529, 4294901760
        %v6472 = vsub.f32 %v529, %v6471
        %6473 = vmatpush1.msra.mxu0 %v6472
        %6474 = vmatprep.subr.mxu0 0.0
        %v6475 = vand.u32 %v528, 4294901760
        %v6476 = vsub.f32 %v528, %v6475
        %6477 = vmatpush1.msra.mxu0 %v6476
        %6478 = vmatprep.subr.mxu0 0.0
        %v6479 = vand.u32 %v527, 4294901760
        %v6480 = vsub.f32 %v527, %v6479
        %6481 = vmatpush1.msra.mxu0 %v6480
        %6482 = vmatprep.subr.mxu0 0.0
        %v6483 = vand.u32 %v526, 4294901760
        %v6484 = vsub.f32 %v526, %v6483
        %6485 = vmatpush1.msra.mxu0 %v6484
        %6486 = vmatprep.subr.mxu0 0.0
        %v6487 = vand.u32 %v525, 4294901760
        %v6488 = vsub.f32 %v525, %v6487
        %6489 = vmatpush1.msra.mxu0 %v6488
        %6490 = vmatprep.subr.mxu0 0.0
        %v6491 = vand.u32 %v524, 4294901760
        %v6492 = vsub.f32 %v524, %v6491
        %6493 = vmatpush1.msra.mxu0 %v6492
        %6494 = vmatprep.subr.mxu0 0.0
        %v6495 = vand.u32 %v523, 4294901760
        %v6496 = vsub.f32 %v523, %v6495
        %6497 = vmatpush1.msra.mxu0 %v6496
        %6498 = vmatprep.subr.mxu0 0.0
        %v6499 = vand.u32 %v522, 4294901760
        %v6500 = vsub.f32 %v522, %v6499
        %6501 = vmatpush1.msra.mxu0 %v6500
        %6502 = vmatprep.subr.mxu0 0.0
        %v6503 = vand.u32 %v521, 4294901760
        %v6504 = vsub.f32 %v521, %v6503
        %6505 = vmatpush1.msra.mxu0 %v6504
        %6506 = vmatprep.subr.mxu0 0.0
        %v6507 = vand.u32 %v520, 4294901760
        %v6508 = vsub.f32 %v520, %v6507
        %6509 = vmatpush1.msra.mxu0 %v6508
        %6510 = vmatprep.subr.mxu0 0.0
        %v6511 = vand.u32 %v519, 4294901760
        %v6512 = vsub.f32 %v519, %v6511
        %6513 = vmatpush1.msra.mxu0 %v6512
        %6514 = vmatprep.subr.mxu0 0.0
        %v6515 = vand.u32 %v518, 4294901760
        %v6516 = vsub.f32 %v518, %v6515
        %6517 = vmatpush1.msra.mxu0 %v6516
        %6518 = vmatprep.subr.mxu0 0.0
        %6519 = vmatpush2.msra.mxu0 0.0
        %6520 = vmatprep.subr.mxu0 0.0
        %6521 = vmatpush2.msra.mxu0 0.0
        %6522 = vmatprep.subr.mxu0 0.0
        %6523 = vmatpush2.msra.mxu0 0.0
        %6524 = vmatprep.subr.mxu0 0.0
        %6525 = vmatpush2.msra.mxu0 0.0
        %6526 = vmatprep.subr.mxu0 0.0
        %6527 = vmatpush2.msra.mxu0 0.0
        %6528 = vmatprep.subr.mxu0 0.0
        %6529 = vmatpush2.msra.mxu0 0.0
        %6530 = vmatprep.subr.mxu0 0.0
        %6531 = vmatpush2.msra.mxu0 0.0
        %6532 = vmatprep.subr.mxu0 0.0
        %6533 = vmatpush2.msra.mxu0 0.0
        %6534 = vmatprep.subr.mxu0 0.0
        %6535 = vmatpush2.msra.mxu0 0.0
        %6536 = vmatprep.subr.mxu0 0.0
        %6537 = vmatpush2.msra.mxu0 0.0
        %6538 = vmatprep.subr.mxu0 0.0
        %6539 = vmatpush2.msra.mxu0 0.0
        %6540 = vmatprep.subr.mxu0 0.0
        %6541 = vmatpush2.msra.mxu0 0.0
        %6542 = vmatprep.subr.mxu0 0.0
        %6543 = vmatpush2.msra.mxu0 0.0
        %6544 = vmatprep.subr.mxu0 0.0
        %6545 = vmatpush2.msra.mxu0 0.0
        %6546 = vmatprep.subr.mxu0 0.0
        %6547 = vmatpush2.msra.mxu0 0.0
        %6548 = vmatprep.subr.mxu0 0.0
        %6549 = vmatpush2.msra.mxu0 0.0
        %6550 = vmatprep.mubr.f32.mxu0 0.0
        %v6551 = vand.u32 %v6209, 4294901760
        %v6552 = vsub.f32 %v6209, %v6551
        %6553 = vmatmul.mubr.f32.gmra.mxu0 %v6552
        %v6554 = vpop.f32.mrf.mxu0
        %v6555 = vadd.f32 %v6451, %v6554
        %v6556 = vpop.f32.mrf.mxu0
        %6557 = vdwg.mxu0
        %6558 = vmatprep.subr.mxu0 0.0
        %v6559 = vand.u32 %v533, 4294901760
        %6560 = vmatpush1.msra.mxu0 %v6559
        %6561 = vmatprep.subr.mxu0 0.0
        %v6562 = vand.u32 %v532, 4294901760
        %6563 = vmatpush1.msra.mxu0 %v6562
        %6564 = vmatprep.subr.mxu0 0.0
        %v6565 = vand.u32 %v531, 4294901760
        %6566 = vmatpush1.msra.mxu0 %v6565
        %6567 = vmatprep.subr.mxu0 0.0
        %v6568 = vand.u32 %v530, 4294901760
        %6569 = vmatpush1.msra.mxu0 %v6568
        %6570 = vmatprep.subr.mxu0 0.0
        %v6571 = vand.u32 %v529, 4294901760
        %6572 = vmatpush1.msra.mxu0 %v6571
        %6573 = vmatprep.subr.mxu0 0.0
        %v6574 = vand.u32 %v528, 4294901760
        %6575 = vmatpush1.msra.mxu0 %v6574
        %6576 = vmatprep.subr.mxu0 0.0
        %v6577 = vand.u32 %v527, 4294901760
        %6578 = vmatpush1.msra.mxu0 %v6577
        %6579 = vmatprep.subr.mxu0 0.0
        %v6580 = vand.u32 %v526, 4294901760
        %6581 = vmatpush1.msra.mxu0 %v6580
        %6582 = vmatprep.subr.mxu0 0.0
        %v6583 = vand.u32 %v525, 4294901760
        %6584 = vmatpush1.msra.mxu0 %v6583
        %6585 = vmatprep.subr.mxu0 0.0
        %v6586 = vand.u32 %v524, 4294901760
        %6587 = vmatpush1.msra.mxu0 %v6586
        %6588 = vmatprep.subr.mxu0 0.0
        %v6589 = vand.u32 %v523, 4294901760
        %6590 = vmatpush1.msra.mxu0 %v6589
        %6591 = vmatprep.subr.mxu0 0.0
        %v6592 = vand.u32 %v522, 4294901760
        %6593 = vmatpush1.msra.mxu0 %v6592
        %6594 = vmatprep.subr.mxu0 0.0
        %v6595 = vand.u32 %v521, 4294901760
        %6596 = vmatpush1.msra.mxu0 %v6595
        %6597 = vmatprep.subr.mxu0 0.0
        %v6598 = vand.u32 %v520, 4294901760
        %6599 = vmatpush1.msra.mxu0 %v6598
        %6600 = vmatprep.subr.mxu0 0.0
        %v6601 = vand.u32 %v519, 4294901760
        %6602 = vmatpush1.msra.mxu0 %v6601
        %6603 = vmatprep.subr.mxu0 0.0
        %v6604 = vand.u32 %v518, 4294901760
        %6605 = vmatpush1.msra.mxu0 %v6604
        %6606 = vmatprep.subr.mxu0 0.0
        %6607 = vmatpush2.msra.mxu0 0.0
        %6608 = vmatprep.subr.mxu0 0.0
        %6609 = vmatpush2.msra.mxu0 0.0
        %6610 = vmatprep.subr.mxu0 0.0
        %6611 = vmatpush2.msra.mxu0 0.0
        %6612 = vmatprep.subr.mxu0 0.0
        %6613 = vmatpush2.msra.mxu0 0.0
        %6614 = vmatprep.subr.mxu0 0.0
        %6615 = vmatpush2.msra.mxu0 0.0
        %6616 = vmatprep.subr.mxu0 0.0
        %6617 = vmatpush2.msra.mxu0 0.0
        %6618 = vmatprep.subr.mxu0 0.0
        %6619 = vmatpush2.msra.mxu0 0.0
        %6620 = vmatprep.subr.mxu0 0.0
        %6621 = vmatpush2.msra.mxu0 0.0
        %6622 = vmatprep.subr.mxu0 0.0
        %6623 = vmatpush2.msra.mxu0 0.0
        %6624 = vmatprep.subr.mxu0 0.0
        %6625 = vmatpush2.msra.mxu0 0.0
        %6626 = vmatprep.subr.mxu0 0.0
        %6627 = vmatpush2.msra.mxu0 0.0
        %6628 = vmatprep.subr.mxu0 0.0
        %6629 = vmatpush2.msra.mxu0 0.0
        %6630 = vmatprep.subr.mxu0 0.0
        %6631 = vmatpush2.msra.mxu0 0.0
        %6632 = vmatprep.subr.mxu0 0.0
        %6633 = vmatpush2.msra.mxu0 0.0
        %6634 = vmatprep.subr.mxu0 0.0
        %6635 = vmatpush2.msra.mxu0 0.0
        %6636 = vmatprep.subr.mxu0 0.0
        %6637 = vmatpush2.msra.mxu0 0.0
        %6638 = vmatprep.mubr.f32.mxu0 0.0
        %v6639 = vand.u32 %v6209, 4294901760
        %v6640 = vsub.f32 %v6209, %v6639
        %v6641 = vand.u32 %v6640, 4294901760
        %6642 = vmatmul.mubr.f32.gmra.mxu0 %v6641
        %v6643 = vpop.f32.mrf.mxu0
        %v6644 = vadd.f32 %v6555, %v6643
        %v6645 = vpop.f32.mrf.mxu0
        %6646 = vdwg.mxu0
        %6647 = vmatprep.subr.mxu0 0.0
        %v6648 = vand.u32 %v533, 4294901760
        %v6649 = vsub.f32 %v533, %v6648
        %v6650 = vand.u32 %v6649, 4294901760
        %6651 = vmatpush1.msra.mxu0 %v6650
        %6652 = vmatprep.subr.mxu0 0.0
        %v6653 = vand.u32 %v532, 4294901760
        %v6654 = vsub.f32 %v532, %v6653
        %v6655 = vand.u32 %v6654, 4294901760
        %6656 = vmatpush1.msra.mxu0 %v6655
        %6657 = vmatprep.subr.mxu0 0.0
        %v6658 = vand.u32 %v531, 4294901760
        %v6659 = vsub.f32 %v531, %v6658
        %v6660 = vand.u32 %v6659, 4294901760
        %6661 = vmatpush1.msra.mxu0 %v6660
        %6662 = vmatprep.subr.mxu0 0.0
        %v6663 = vand.u32 %v530, 4294901760
        %v6664 = vsub.f32 %v530, %v6663
        %v6665 = vand.u32 %v6664, 4294901760
        %6666 = vmatpush1.msra.mxu0 %v6665
        %6667 = vmatprep.subr.mxu0 0.0
        %v6668 = vand.u32 %v529, 4294901760
        %v6669 = vsub.f32 %v529, %v6668
        %v6670 = vand.u32 %v6669, 4294901760
        %6671 = vmatpush1.msra.mxu0 %v6670
        %6672 = vmatprep.subr.mxu0 0.0
        %v6673 = vand.u32 %v528, 4294901760
        %v6674 = vsub.f32 %v528, %v6673
        %v6675 = vand.u32 %v6674, 4294901760
        %6676 = vmatpush1.msra.mxu0 %v6675
        %6677 = vmatprep.subr.mxu0 0.0
        %v6678 = vand.u32 %v527, 4294901760
        %v6679 = vsub.f32 %v527, %v6678
        %v6680 = vand.u32 %v6679, 4294901760
        %6681 = vmatpush1.msra.mxu0 %v6680
        %6682 = vmatprep.subr.mxu0 0.0
        %v6683 = vand.u32 %v526, 4294901760
        %v6684 = vsub.f32 %v526, %v6683
        %v6685 = vand.u32 %v6684, 4294901760
        %6686 = vmatpush1.msra.mxu0 %v6685
        %6687 = vmatprep.subr.mxu0 0.0
        %v6688 = vand.u32 %v525, 4294901760
        %v6689 = vsub.f32 %v525, %v6688
        %v6690 = vand.u32 %v6689, 4294901760
        %6691 = vmatpush1.msra.mxu0 %v6690
        %6692 = vmatprep.subr.mxu0 0.0
        %v6693 = vand.u32 %v524, 4294901760
        %v6694 = vsub.f32 %v524, %v6693
        %v6695 = vand.u32 %v6694, 4294901760
        %6696 = vmatpush1.msra.mxu0 %v6695
        %6697 = vmatprep.subr.mxu0 0.0
        %v6698 = vand.u32 %v523, 4294901760
        %v6699 = vsub.f32 %v523, %v6698
        %v6700 = vand.u32 %v6699, 4294901760
        %6701 = vmatpush1.msra.mxu0 %v6700
        %6702 = vmatprep.subr.mxu0 0.0
        %v6703 = vand.u32 %v522, 4294901760
        %v6704 = vsub.f32 %v522, %v6703
        %v6705 = vand.u32 %v6704, 4294901760
        %6706 = vmatpush1.msra.mxu0 %v6705
        %6707 = vmatprep.subr.mxu0 0.0
        %v6708 = vand.u32 %v521, 4294901760
        %v6709 = vsub.f32 %v521, %v6708
        %v6710 = vand.u32 %v6709, 4294901760
        %6711 = vmatpush1.msra.mxu0 %v6710
        %6712 = vmatprep.subr.mxu0 0.0
        %v6713 = vand.u32 %v520, 4294901760
        %v6714 = vsub.f32 %v520, %v6713
        %v6715 = vand.u32 %v6714, 4294901760
        %6716 = vmatpush1.msra.mxu0 %v6715
        %6717 = vmatprep.subr.mxu0 0.0
        %v6718 = vand.u32 %v519, 4294901760
        %v6719 = vsub.f32 %v519, %v6718
        %v6720 = vand.u32 %v6719, 4294901760
        %6721 = vmatpush1.msra.mxu0 %v6720
        %6722 = vmatprep.subr.mxu0 0.0
        %v6723 = vand.u32 %v518, 4294901760
        %v6724 = vsub.f32 %v518, %v6723
        %v6725 = vand.u32 %v6724, 4294901760
        %6726 = vmatpush1.msra.mxu0 %v6725
        %6727 = vmatprep.subr.mxu0 0.0
        %6728 = vmatpush2.msra.mxu0 0.0
        %6729 = vmatprep.subr.mxu0 0.0
        %6730 = vmatpush2.msra.mxu0 0.0
        %6731 = vmatprep.subr.mxu0 0.0
        %6732 = vmatpush2.msra.mxu0 0.0
        %6733 = vmatprep.subr.mxu0 0.0
        %6734 = vmatpush2.msra.mxu0 0.0
        %6735 = vmatprep.subr.mxu0 0.0
        %6736 = vmatpush2.msra.mxu0 0.0
        %6737 = vmatprep.subr.mxu0 0.0
        %6738 = vmatpush2.msra.mxu0 0.0
        %6739 = vmatprep.subr.mxu0 0.0
        %6740 = vmatpush2.msra.mxu0 0.0
        %6741 = vmatprep.subr.mxu0 0.0
        %6742 = vmatpush2.msra.mxu0 0.0
        %6743 = vmatprep.subr.mxu0 0.0
        %6744 = vmatpush2.msra.mxu0 0.0
        %6745 = vmatprep.subr.mxu0 0.0
        %6746 = vmatpush2.msra.mxu0 0.0
        %6747 = vmatprep.subr.mxu0 0.0
        %6748 = vmatpush2.msra.mxu0 0.0
        %6749 = vmatprep.subr.mxu0 0.0
        %6750 = vmatpush2.msra.mxu0 0.0
        %6751 = vmatprep.subr.mxu0 0.0
        %6752 = vmatpush2.msra.mxu0 0.0
        %6753 = vmatprep.subr.mxu0 0.0
        %6754 = vmatpush2.msra.mxu0 0.0
        %6755 = vmatprep.subr.mxu0 0.0
        %6756 = vmatpush2.msra.mxu0 0.0
        %6757 = vmatprep.subr.mxu0 0.0
        %6758 = vmatpush2.msra.mxu0 0.0
        %6759 = vmatprep.mubr.f32.mxu0 0.0
        %v6760 = vand.u32 %v6209, 4294901760
        %6761 = vmatmul.mubr.f32.gmra.mxu0 %v6760
        %v6762 = vpop.f32.mrf.mxu0
        %v6763 = vadd.f32 %v6644, %v6762
        %v6764 = vpop.f32.mrf.mxu0
        %6765 = vdwg.mxu0
        %6766 = vmatprep.subr.mxu0 0.0
        %v6767 = vand.u32 %v533, 4294901760
        %6768 = vmatpush1.msra.mxu0 %v6767
        %6769 = vmatprep.subr.mxu0 0.0
        %v6770 = vand.u32 %v532, 4294901760
        %6771 = vmatpush1.msra.mxu0 %v6770
        %6772 = vmatprep.subr.mxu0 0.0
        %v6773 = vand.u32 %v531, 4294901760
        %6774 = vmatpush1.msra.mxu0 %v6773
        %6775 = vmatprep.subr.mxu0 0.0
        %v6776 = vand.u32 %v530, 4294901760
        %6777 = vmatpush1.msra.mxu0 %v6776
        %6778 = vmatprep.subr.mxu0 0.0
        %v6779 = vand.u32 %v529, 4294901760
        %6780 = vmatpush1.msra.mxu0 %v6779
        %6781 = vmatprep.subr.mxu0 0.0
        %v6782 = vand.u32 %v528, 4294901760
        %6783 = vmatpush1.msra.mxu0 %v6782
        %6784 = vmatprep.subr.mxu0 0.0
        %v6785 = vand.u32 %v527, 4294901760
        %6786 = vmatpush1.msra.mxu0 %v6785
        %6787 = vmatprep.subr.mxu0 0.0
        %v6788 = vand.u32 %v526, 4294901760
        %6789 = vmatpush1.msra.mxu0 %v6788
        %6790 = vmatprep.subr.mxu0 0.0
        %v6791 = vand.u32 %v525, 4294901760
        %6792 = vmatpush1.msra.mxu0 %v6791
        %6793 = vmatprep.subr.mxu0 0.0
        %v6794 = vand.u32 %v524, 4294901760
        %6795 = vmatpush1.msra.mxu0 %v6794
        %6796 = vmatprep.subr.mxu0 0.0
        %v6797 = vand.u32 %v523, 4294901760
        %6798 = vmatpush1.msra.mxu0 %v6797
        %6799 = vmatprep.subr.mxu0 0.0
        %v6800 = vand.u32 %v522, 4294901760
        %6801 = vmatpush1.msra.mxu0 %v6800
        %6802 = vmatprep.subr.mxu0 0.0
        %v6803 = vand.u32 %v521, 4294901760
        %6804 = vmatpush1.msra.mxu0 %v6803
        %6805 = vmatprep.subr.mxu0 0.0
        %v6806 = vand.u32 %v520, 4294901760
        %6807 = vmatpush1.msra.mxu0 %v6806
        %6808 = vmatprep.subr.mxu0 0.0
        %v6809 = vand.u32 %v519, 4294901760
        %6810 = vmatpush1.msra.mxu0 %v6809
        %6811 = vmatprep.subr.mxu0 0.0
        %v6812 = vand.u32 %v518, 4294901760
        %6813 = vmatpush1.msra.mxu0 %v6812
        %6814 = vmatprep.subr.mxu0 0.0
        %6815 = vmatpush2.msra.mxu0 0.0
        %6816 = vmatprep.subr.mxu0 0.0
        %6817 = vmatpush2.msra.mxu0 0.0
        %6818 = vmatprep.subr.mxu0 0.0
        %6819 = vmatpush2.msra.mxu0 0.0
        %6820 = vmatprep.subr.mxu0 0.0
        %6821 = vmatpush2.msra.mxu0 0.0
        %6822 = vmatprep.subr.mxu0 0.0
        %6823 = vmatpush2.msra.mxu0 0.0
        %6824 = vmatprep.subr.mxu0 0.0
        %6825 = vmatpush2.msra.mxu0 0.0
        %6826 = vmatprep.subr.mxu0 0.0
        %6827 = vmatpush2.msra.mxu0 0.0
        %6828 = vmatprep.subr.mxu0 0.0
        %6829 = vmatpush2.msra.mxu0 0.0
        %6830 = vmatprep.subr.mxu0 0.0
        %6831 = vmatpush2.msra.mxu0 0.0
        %6832 = vmatprep.subr.mxu0 0.0
        %6833 = vmatpush2.msra.mxu0 0.0
        %6834 = vmatprep.subr.mxu0 0.0
        %6835 = vmatpush2.msra.mxu0 0.0
        %6836 = vmatprep.subr.mxu0 0.0
        %6837 = vmatpush2.msra.mxu0 0.0
        %6838 = vmatprep.subr.mxu0 0.0
        %6839 = vmatpush2.msra.mxu0 0.0
        %6840 = vmatprep.subr.mxu0 0.0
        %6841 = vmatpush2.msra.mxu0 0.0
        %6842 = vmatprep.subr.mxu0 0.0
        %6843 = vmatpush2.msra.mxu0 0.0
        %6844 = vmatprep.subr.mxu0 0.0
        %6845 = vmatpush2.msra.mxu0 0.0
        %6846 = vmatprep.mubr.f32.mxu0 0.0
        %v6847 = vand.u32 %v6209, 4294901760
        %6848 = vmatmul.mubr.f32.gmra.mxu0 %v6847
        %v6849 = vpop.f32.mrf.mxu0
        %v6850 = vadd.f32 %v6763, %v6849
        %v6851 = vpop.f32.mrf.mxu0
        %6852 = vdwg.mxu0
        %vm6853 = vcmask 1043456
        %v6854 = vsel %vm6853, %v6850, 0.0
        %v6855 = vrot.slane %v6854, 4
        %v6856 = vadd.f32 %v6854, %v6855
        %v6857 = vrot.slane %v6856, 2
        %v6858 = vadd.f32 %v6856, %v6857
        %v6859 = vrot.slane %v6858, 1
        %v6860 = vadd.f32 %v6858, %v6859
        %v6861 = vmul.f32 %v6860, 0.015625
        %v6862 = vsub.f32 %v6209, %v6861
        %v6863 = vmul.f32 %v6862, %v6862
        %6864 = vmatprep.subr.mxu0 0.0
        %v6865 = vand.u32 %v533, 4294901760
        %6866 = vmatpush1.msra.mxu0 %v6865
        %6867 = vmatprep.subr.mxu0 0.0
        %v6868 = vand.u32 %v532, 4294901760
        %6869 = vmatpush1.msra.mxu0 %v6868
        %6870 = vmatprep.subr.mxu0 0.0
        %v6871 = vand.u32 %v531, 4294901760
        %6872 = vmatpush1.msra.mxu0 %v6871
        %6873 = vmatprep.subr.mxu0 0.0
        %v6874 = vand.u32 %v530, 4294901760
        %6875 = vmatpush1.msra.mxu0 %v6874
        %6876 = vmatprep.subr.mxu0 0.0
        %v6877 = vand.u32 %v529, 4294901760
        %6878 = vmatpush1.msra.mxu0 %v6877
        %6879 = vmatprep.subr.mxu0 0.0
        %v6880 = vand.u32 %v528, 4294901760
        %6881 = vmatpush1.msra.mxu0 %v6880
        %6882 = vmatprep.subr.mxu0 0.0
        %v6883 = vand.u32 %v527, 4294901760
        %6884 = vmatpush1.msra.mxu0 %v6883
        %6885 = vmatprep.subr.mxu0 0.0
        %v6886 = vand.u32 %v526, 4294901760
        %6887 = vmatpush1.msra.mxu0 %v6886
        %6888 = vmatprep.subr.mxu0 0.0
        %v6889 = vand.u32 %v525, 4294901760
        %6890 = vmatpush1.msra.mxu0 %v6889
        %6891 = vmatprep.subr.mxu0 0.0
        %v6892 = vand.u32 %v524, 4294901760
        %6893 = vmatpush1.msra.mxu0 %v6892
        %6894 = vmatprep.subr.mxu0 0.0
        %v6895 = vand.u32 %v523, 4294901760
        %6896 = vmatpush1.msra.mxu0 %v6895
        %6897 = vmatprep.subr.mxu0 0.0
        %v6898 = vand.u32 %v522, 4294901760
        %6899 = vmatpush1.msra.mxu0 %v6898
        %6900 = vmatprep.subr.mxu0 0.0
        %v6901 = vand.u32 %v521, 4294901760
        %6902 = vmatpush1.msra.mxu0 %v6901
        %6903 = vmatprep.subr.mxu0 0.0
        %v6904 = vand.u32 %v520, 4294901760
        %6905 = vmatpush1.msra.mxu0 %v6904
        %6906 = vmatprep.subr.mxu0 0.0
        %v6907 = vand.u32 %v519, 4294901760
        %6908 = vmatpush1.msra.mxu0 %v6907
        %6909 = vmatprep.subr.mxu0 0.0
        %v6910 = vand.u32 %v518, 4294901760
        %6911 = vmatpush1.msra.mxu0 %v6910
        %6912 = vmatprep.subr.mxu0 0.0
        %6913 = vmatpush2.msra.mxu0 0.0
        %6914 = vmatprep.subr.mxu0 0.0
        %6915 = vmatpush2.msra.mxu0 0.0
        %6916 = vmatprep.subr.mxu0 0.0
        %6917 = vmatpush2.msra.mxu0 0.0
        %6918 = vmatprep.subr.mxu0 0.0
        %6919 = vmatpush2.msra.mxu0 0.0
        %6920 = vmatprep.subr.mxu0 0.0
        %6921 = vmatpush2.msra.mxu0 0.0
        %6922 = vmatprep.subr.mxu0 0.0
        %6923 = vmatpush2.msra.mxu0 0.0
        %6924 = vmatprep.subr.mxu0 0.0
        %6925 = vmatpush2.msra.mxu0 0.0
        %6926 = vmatprep.subr.mxu0 0.0
        %6927 = vmatpush2.msra.mxu0 0.0
        %6928 = vmatprep.subr.mxu0 0.0
        %6929 = vmatpush2.msra.mxu0 0.0
        %6930 = vmatprep.subr.mxu0 0.0
        %6931 = vmatpush2.msra.mxu0 0.0
        %6932 = vmatprep.subr.mxu0 0.0
        %6933 = vmatpush2.msra.mxu0 0.0
        %6934 = vmatprep.subr.mxu0 0.0
        %6935 = vmatpush2.msra.mxu0 0.0
        %6936 = vmatprep.subr.mxu0 0.0
        %6937 = vmatpush2.msra.mxu0 0.0
        %6938 = vmatprep.subr.mxu0 0.0
        %6939 = vmatpush2.msra.mxu0 0.0
        %6940 = vmatprep.subr.mxu0 0.0
        %6941 = vmatpush2.msra.mxu0 0.0
        %6942 = vmatprep.subr.mxu0 0.0
        %6943 = vmatpush2.msra.mxu0 0.0
        %6944 = vmatprep.mubr.f32.mxu0 0.0
        %v6945 = vand.u32 %v6863, 4294901760
        %v6946 = vsub.f32 %v6863, %v6945
        %v6947 = vand.u32 %v6946, 4294901760
        %v6948 = vsub.f32 %v6946, %v6947
        %v6949 = vand.u32 %v6948, 4294901760
        %6950 = vmatmul.mubr.f32.gmra.mxu0 %v6949
        %v6951 = vpop.f32.mrf.mxu0
        %v6952 = vadd.f32 0.0, %v6951
        %v6953 = vpop.f32.mrf.mxu0
        %6954 = vdwg.mxu0
        %6955 = vmatprep.subr.mxu0 0.0
        %v6956 = vand.u32 %v533, 4294901760
        %v6957 = vsub.f32 %v533, %v6956
        %v6958 = vand.u32 %v6957, 4294901760
        %v6959 = vsub.f32 %v6957, %v6958
        %v6960 = vand.u32 %v6959, 4294901760
        %6961 = vmatpush1.msra.mxu0 %v6960
        %6962 = vmatprep.subr.mxu0 0.0
        %v6963 = vand.u32 %v532, 4294901760
        %v6964 = vsub.f32 %v532, %v6963
        %v6965 = vand.u32 %v6964, 4294901760
        %v6966 = vsub.f32 %v6964, %v6965
        %v6967 = vand.u32 %v6966, 4294901760
        %6968 = vmatpush1.msra.mxu0 %v6967
        %6969 = vmatprep.subr.mxu0 0.0
        %v6970 = vand.u32 %v531, 4294901760
        %v6971 = vsub.f32 %v531, %v6970
        %v6972 = vand.u32 %v6971, 4294901760
        %v6973 = vsub.f32 %v6971, %v6972
        %v6974 = vand.u32 %v6973, 4294901760
        %6975 = vmatpush1.msra.mxu0 %v6974
        %6976 = vmatprep.subr.mxu0 0.0
        %v6977 = vand.u32 %v530, 4294901760
        %v6978 = vsub.f32 %v530, %v6977
        %v6979 = vand.u32 %v6978, 4294901760
        %v6980 = vsub.f32 %v6978, %v6979
        %v6981 = vand.u32 %v6980, 4294901760
        %6982 = vmatpush1.msra.mxu0 %v6981
        %6983 = vmatprep.subr.mxu0 0.0
        %v6984 = vand.u32 %v529, 4294901760
        %v6985 = vsub.f32 %v529, %v6984
        %v6986 = vand.u32 %v6985, 4294901760
        %v6987 = vsub.f32 %v6985, %v6986
        %v6988 = vand.u32 %v6987, 4294901760
        %6989 = vmatpush1.msra.mxu0 %v6988
        %6990 = vmatprep.subr.mxu0 0.0
        %v6991 = vand.u32 %v528, 4294901760
        %v6992 = vsub.f32 %v528, %v6991
        %v6993 = vand.u32 %v6992, 4294901760
        %v6994 = vsub.f32 %v6992, %v6993
        %v6995 = vand.u32 %v6994, 4294901760
        %6996 = vmatpush1.msra.mxu0 %v6995
        %6997 = vmatprep.subr.mxu0 0.0
        %v6998 = vand.u32 %v527, 4294901760
        %v6999 = vsub.f32 %v527, %v6998
        %v7000 = vand.u32 %v6999, 4294901760
        %v7001 = vsub.f32 %v6999, %v7000
        %v7002 = vand.u32 %v7001, 4294901760
        %7003 = vmatpush1.msra.mxu0 %v7002
        %7004 = vmatprep.subr.mxu0 0.0
        %v7005 = vand.u32 %v526, 4294901760
        %v7006 = vsub.f32 %v526, %v7005
        %v7007 = vand.u32 %v7006, 4294901760
        %v7008 = vsub.f32 %v7006, %v7007
        %v7009 = vand.u32 %v7008, 4294901760
        %7010 = vmatpush1.msra.mxu0 %v7009
        %7011 = vmatprep.subr.mxu0 0.0
        %v7012 = vand.u32 %v525, 4294901760
        %v7013 = vsub.f32 %v525, %v7012
        %v7014 = vand.u32 %v7013, 4294901760
        %v7015 = vsub.f32 %v7013, %v7014
        %v7016 = vand.u32 %v7015, 4294901760
        %7017 = vmatpush1.msra.mxu0 %v7016
        %7018 = vmatprep.subr.mxu0 0.0
        %v7019 = vand.u32 %v524, 4294901760
        %v7020 = vsub.f32 %v524, %v7019
        %v7021 = vand.u32 %v7020, 4294901760
        %v7022 = vsub.f32 %v7020, %v7021
        %v7023 = vand.u32 %v7022, 4294901760
        %7024 = vmatpush1.msra.mxu0 %v7023
        %7025 = vmatprep.subr.mxu0 0.0
        %v7026 = vand.u32 %v523, 4294901760
        %v7027 = vsub.f32 %v523, %v7026
        %v7028 = vand.u32 %v7027, 4294901760
        %v7029 = vsub.f32 %v7027, %v7028
        %v7030 = vand.u32 %v7029, 4294901760
        %7031 = vmatpush1.msra.mxu0 %v7030
        %7032 = vmatprep.subr.mxu0 0.0
        %v7033 = vand.u32 %v522, 4294901760
        %v7034 = vsub.f32 %v522, %v7033
        %v7035 = vand.u32 %v7034, 4294901760
        %v7036 = vsub.f32 %v7034, %v7035
        %v7037 = vand.u32 %v7036, 4294901760
        %7038 = vmatpush1.msra.mxu0 %v7037
        %7039 = vmatprep.subr.mxu0 0.0
        %v7040 = vand.u32 %v521, 4294901760
        %v7041 = vsub.f32 %v521, %v7040
        %v7042 = vand.u32 %v7041, 4294901760
        %v7043 = vsub.f32 %v7041, %v7042
        %v7044 = vand.u32 %v7043, 4294901760
        %7045 = vmatpush1.msra.mxu0 %v7044
        %7046 = vmatprep.subr.mxu0 0.0
        %v7047 = vand.u32 %v520, 4294901760
        %v7048 = vsub.f32 %v520, %v7047
        %v7049 = vand.u32 %v7048, 4294901760
        %v7050 = vsub.f32 %v7048, %v7049
        %v7051 = vand.u32 %v7050, 4294901760
        %7052 = vmatpush1.msra.mxu0 %v7051
        %7053 = vmatprep.subr.mxu0 0.0
        %v7054 = vand.u32 %v519, 4294901760
        %v7055 = vsub.f32 %v519, %v7054
        %v7056 = vand.u32 %v7055, 4294901760
        %v7057 = vsub.f32 %v7055, %v7056
        %v7058 = vand.u32 %v7057, 4294901760
        %7059 = vmatpush1.msra.mxu0 %v7058
        %7060 = vmatprep.subr.mxu0 0.0
        %v7061 = vand.u32 %v518, 4294901760
        %v7062 = vsub.f32 %v518, %v7061
        %v7063 = vand.u32 %v7062, 4294901760
        %v7064 = vsub.f32 %v7062, %v7063
        %v7065 = vand.u32 %v7064, 4294901760
        %7066 = vmatpush1.msra.mxu0 %v7065
        %7067 = vmatprep.subr.mxu0 0.0
        %7068 = vmatpush2.msra.mxu0 0.0
        %7069 = vmatprep.subr.mxu0 0.0
        %7070 = vmatpush2.msra.mxu0 0.0
        %7071 = vmatprep.subr.mxu0 0.0
        %7072 = vmatpush2.msra.mxu0 0.0
        %7073 = vmatprep.subr.mxu0 0.0
        %7074 = vmatpush2.msra.mxu0 0.0
        %7075 = vmatprep.subr.mxu0 0.0
        %7076 = vmatpush2.msra.mxu0 0.0
        %7077 = vmatprep.subr.mxu0 0.0
        %7078 = vmatpush2.msra.mxu0 0.0
        %7079 = vmatprep.subr.mxu0 0.0
        %7080 = vmatpush2.msra.mxu0 0.0
        %7081 = vmatprep.subr.mxu0 0.0
        %7082 = vmatpush2.msra.mxu0 0.0
        %7083 = vmatprep.subr.mxu0 0.0
        %7084 = vmatpush2.msra.mxu0 0.0
        %7085 = vmatprep.subr.mxu0 0.0
        %7086 = vmatpush2.msra.mxu0 0.0
        %7087 = vmatprep.subr.mxu0 0.0
        %7088 = vmatpush2.msra.mxu0 0.0
        %7089 = vmatprep.subr.mxu0 0.0
        %7090 = vmatpush2.msra.mxu0 0.0
        %7091 = vmatprep.subr.mxu0 0.0
        %7092 = vmatpush2.msra.mxu0 0.0
        %7093 = vmatprep.subr.mxu0 0.0
        %7094 = vmatpush2.msra.mxu0 0.0
        %7095 = vmatprep.subr.mxu0 0.0
        %7096 = vmatpush2.msra.mxu0 0.0
        %7097 = vmatprep.subr.mxu0 0.0
        %7098 = vmatpush2.msra.mxu0 0.0
        %7099 = vmatprep.mubr.f32.mxu0 0.0
        %v7100 = vand.u32 %v6863, 4294901760
        %7101 = vmatmul.mubr.f32.gmra.mxu0 %v7100
        %v7102 = vpop.f32.mrf.mxu0
        %v7103 = vadd.f32 %v6952, %v7102
        %v7104 = vpop.f32.mrf.mxu0
        %7105 = vdwg.mxu0
        %7106 = vmatprep.subr.mxu0 0.0
        %v7107 = vand.u32 %v533, 4294901760
        %v7108 = vsub.f32 %v533, %v7107
        %7109 = vmatpush1.msra.mxu0 %v7108
        %7110 = vmatprep.subr.mxu0 0.0
        %v7111 = vand.u32 %v532, 4294901760
        %v7112 = vsub.f32 %v532, %v7111
        %7113 = vmatpush1.msra.mxu0 %v7112
        %7114 = vmatprep.subr.mxu0 0.0
        %v7115 = vand.u32 %v531, 4294901760
        %v7116 = vsub.f32 %v531, %v7115
        %7117 = vmatpush1.msra.mxu0 %v7116
        %7118 = vmatprep.subr.mxu0 0.0
        %v7119 = vand.u32 %v530, 4294901760
        %v7120 = vsub.f32 %v530, %v7119
        %7121 = vmatpush1.msra.mxu0 %v7120
        %7122 = vmatprep.subr.mxu0 0.0
        %v7123 = vand.u32 %v529, 4294901760
        %v7124 = vsub.f32 %v529, %v7123
        %7125 = vmatpush1.msra.mxu0 %v7124
        %7126 = vmatprep.subr.mxu0 0.0
        %v7127 = vand.u32 %v528, 4294901760
        %v7128 = vsub.f32 %v528, %v7127
        %7129 = vmatpush1.msra.mxu0 %v7128
        %7130 = vmatprep.subr.mxu0 0.0
        %v7131 = vand.u32 %v527, 4294901760
        %v7132 = vsub.f32 %v527, %v7131
        %7133 = vmatpush1.msra.mxu0 %v7132
        %7134 = vmatprep.subr.mxu0 0.0
        %v7135 = vand.u32 %v526, 4294901760
        %v7136 = vsub.f32 %v526, %v7135
        %7137 = vmatpush1.msra.mxu0 %v7136
        %7138 = vmatprep.subr.mxu0 0.0
        %v7139 = vand.u32 %v525, 4294901760
        %v7140 = vsub.f32 %v525, %v7139
        %7141 = vmatpush1.msra.mxu0 %v7140
        %7142 = vmatprep.subr.mxu0 0.0
        %v7143 = vand.u32 %v524, 4294901760
        %v7144 = vsub.f32 %v524, %v7143
        %7145 = vmatpush1.msra.mxu0 %v7144
        %7146 = vmatprep.subr.mxu0 0.0
        %v7147 = vand.u32 %v523, 4294901760
        %v7148 = vsub.f32 %v523, %v7147
        %7149 = vmatpush1.msra.mxu0 %v7148
        %7150 = vmatprep.subr.mxu0 0.0
        %v7151 = vand.u32 %v522, 4294901760
        %v7152 = vsub.f32 %v522, %v7151
        %7153 = vmatpush1.msra.mxu0 %v7152
        %7154 = vmatprep.subr.mxu0 0.0
        %v7155 = vand.u32 %v521, 4294901760
        %v7156 = vsub.f32 %v521, %v7155
        %7157 = vmatpush1.msra.mxu0 %v7156
        %7158 = vmatprep.subr.mxu0 0.0
        %v7159 = vand.u32 %v520, 4294901760
        %v7160 = vsub.f32 %v520, %v7159
        %7161 = vmatpush1.msra.mxu0 %v7160
        %7162 = vmatprep.subr.mxu0 0.0
        %v7163 = vand.u32 %v519, 4294901760
        %v7164 = vsub.f32 %v519, %v7163
        %7165 = vmatpush1.msra.mxu0 %v7164
        %7166 = vmatprep.subr.mxu0 0.0
        %v7167 = vand.u32 %v518, 4294901760
        %v7168 = vsub.f32 %v518, %v7167
        %7169 = vmatpush1.msra.mxu0 %v7168
        %7170 = vmatprep.subr.mxu0 0.0
        %7171 = vmatpush2.msra.mxu0 0.0
        %7172 = vmatprep.subr.mxu0 0.0
        %7173 = vmatpush2.msra.mxu0 0.0
        %7174 = vmatprep.subr.mxu0 0.0
        %7175 = vmatpush2.msra.mxu0 0.0
        %7176 = vmatprep.subr.mxu0 0.0
        %7177 = vmatpush2.msra.mxu0 0.0
        %7178 = vmatprep.subr.mxu0 0.0
        %7179 = vmatpush2.msra.mxu0 0.0
        %7180 = vmatprep.subr.mxu0 0.0
        %7181 = vmatpush2.msra.mxu0 0.0
        %7182 = vmatprep.subr.mxu0 0.0
        %7183 = vmatpush2.msra.mxu0 0.0
        %7184 = vmatprep.subr.mxu0 0.0
        %7185 = vmatpush2.msra.mxu0 0.0
        %7186 = vmatprep.subr.mxu0 0.0
        %7187 = vmatpush2.msra.mxu0 0.0
        %7188 = vmatprep.subr.mxu0 0.0
        %7189 = vmatpush2.msra.mxu0 0.0
        %7190 = vmatprep.subr.mxu0 0.0
        %7191 = vmatpush2.msra.mxu0 0.0
        %7192 = vmatprep.subr.mxu0 0.0
        %7193 = vmatpush2.msra.mxu0 0.0
        %7194 = vmatprep.subr.mxu0 0.0
        %7195 = vmatpush2.msra.mxu0 0.0
        %7196 = vmatprep.subr.mxu0 0.0
        %7197 = vmatpush2.msra.mxu0 0.0
        %7198 = vmatprep.subr.mxu0 0.0
        %7199 = vmatpush2.msra.mxu0 0.0
        %7200 = vmatprep.subr.mxu0 0.0
        %7201 = vmatpush2.msra.mxu0 0.0
        %7202 = vmatprep.mubr.f32.mxu0 0.0
        %v7203 = vand.u32 %v6863, 4294901760
        %v7204 = vsub.f32 %v6863, %v7203
        %7205 = vmatmul.mubr.f32.gmra.mxu0 %v7204
        %v7206 = vpop.f32.mrf.mxu0
        %v7207 = vadd.f32 %v7103, %v7206
        %v7208 = vpop.f32.mrf.mxu0
        %7209 = vdwg.mxu0
        %7210 = vmatprep.subr.mxu0 0.0
        %v7211 = vand.u32 %v533, 4294901760
        %7212 = vmatpush1.msra.mxu0 %v7211
        %7213 = vmatprep.subr.mxu0 0.0
        %v7214 = vand.u32 %v532, 4294901760
        %7215 = vmatpush1.msra.mxu0 %v7214
        %7216 = vmatprep.subr.mxu0 0.0
        %v7217 = vand.u32 %v531, 4294901760
        %7218 = vmatpush1.msra.mxu0 %v7217
        %7219 = vmatprep.subr.mxu0 0.0
        %v7220 = vand.u32 %v530, 4294901760
        %7221 = vmatpush1.msra.mxu0 %v7220
        %7222 = vmatprep.subr.mxu0 0.0
        %v7223 = vand.u32 %v529, 4294901760
        %7224 = vmatpush1.msra.mxu0 %v7223
        %7225 = vmatprep.subr.mxu0 0.0
        %v7226 = vand.u32 %v528, 4294901760
        %7227 = vmatpush1.msra.mxu0 %v7226
        %7228 = vmatprep.subr.mxu0 0.0
        %v7229 = vand.u32 %v527, 4294901760
        %7230 = vmatpush1.msra.mxu0 %v7229
        %7231 = vmatprep.subr.mxu0 0.0
        %v7232 = vand.u32 %v526, 4294901760
        %7233 = vmatpush1.msra.mxu0 %v7232
        %7234 = vmatprep.subr.mxu0 0.0
        %v7235 = vand.u32 %v525, 4294901760
        %7236 = vmatpush1.msra.mxu0 %v7235
        %7237 = vmatprep.subr.mxu0 0.0
        %v7238 = vand.u32 %v524, 4294901760
        %7239 = vmatpush1.msra.mxu0 %v7238
        %7240 = vmatprep.subr.mxu0 0.0
        %v7241 = vand.u32 %v523, 4294901760
        %7242 = vmatpush1.msra.mxu0 %v7241
        %7243 = vmatprep.subr.mxu0 0.0
        %v7244 = vand.u32 %v522, 4294901760
        %7245 = vmatpush1.msra.mxu0 %v7244
        %7246 = vmatprep.subr.mxu0 0.0
        %v7247 = vand.u32 %v521, 4294901760
        %7248 = vmatpush1.msra.mxu0 %v7247
        %7249 = vmatprep.subr.mxu0 0.0
        %v7250 = vand.u32 %v520, 4294901760
        %7251 = vmatpush1.msra.mxu0 %v7250
        %7252 = vmatprep.subr.mxu0 0.0
        %v7253 = vand.u32 %v519, 4294901760
        %7254 = vmatpush1.msra.mxu0 %v7253
        %7255 = vmatprep.subr.mxu0 0.0
        %v7256 = vand.u32 %v518, 4294901760
        %7257 = vmatpush1.msra.mxu0 %v7256
        %7258 = vmatprep.subr.mxu0 0.0
        %7259 = vmatpush2.msra.mxu0 0.0
        %7260 = vmatprep.subr.mxu0 0.0
        %7261 = vmatpush2.msra.mxu0 0.0
        %7262 = vmatprep.subr.mxu0 0.0
        %7263 = vmatpush2.msra.mxu0 0.0
        %7264 = vmatprep.subr.mxu0 0.0
        %7265 = vmatpush2.msra.mxu0 0.0
        %7266 = vmatprep.subr.mxu0 0.0
        %7267 = vmatpush2.msra.mxu0 0.0
        %7268 = vmatprep.subr.mxu0 0.0
        %7269 = vmatpush2.msra.mxu0 0.0
        %7270 = vmatprep.subr.mxu0 0.0
        %7271 = vmatpush2.msra.mxu0 0.0
        %7272 = vmatprep.subr.mxu0 0.0
        %7273 = vmatpush2.msra.mxu0 0.0
        %7274 = vmatprep.subr.mxu0 0.0
        %7275 = vmatpush2.msra.mxu0 0.0
        %7276 = vmatprep.subr.mxu0 0.0
        %7277 = vmatpush2.msra.mxu0 0.0
        %7278 = vmatprep.subr.mxu0 0.0
        %7279 = vmatpush2.msra.mxu0 0.0
        %7280 = vmatprep.subr.mxu0 0.0
        %7281 = vmatpush2.msra.mxu0 0.0
        %7282 = vmatprep.subr.mxu0 0.0
        %7283 = vmatpush2.msra.mxu0 0.0
        %7284 = vmatprep.subr.mxu0 0.0
        %7285 = vmatpush2.msra.mxu0 0.0
        %7286 = vmatprep.subr.mxu0 0.0
        %7287 = vmatpush2.msra.mxu0 0.0
        %7288 = vmatprep.subr.mxu0 0.0
        %7289 = vmatpush2.msra.mxu0 0.0
        %7290 = vmatprep.mubr.f32.mxu0 0.0
        %v7291 = vand.u32 %v6863, 4294901760
        %v7292 = vsub.f32 %v6863, %v7291
        %v7293 = vand.u32 %v7292, 4294901760
        %7294 = vmatmul.mubr.f32.gmra.mxu0 %v7293
        %v7295 = vpop.f32.mrf.mxu0
        %v7296 = vadd.f32 %v7207, %v7295
        %v7297 = vpop.f32.mrf.mxu0
        %7298 = vdwg.mxu0
        %7299 = vmatprep.subr.mxu0 0.0
        %v7300 = vand.u32 %v533, 4294901760
        %v7301 = vsub.f32 %v533, %v7300
        %v7302 = vand.u32 %v7301, 4294901760
        %7303 = vmatpush1.msra.mxu0 %v7302
        %7304 = vmatprep.subr.mxu0 0.0
        %v7305 = vand.u32 %v532, 4294901760
        %v7306 = vsub.f32 %v532, %v7305
        %v7307 = vand.u32 %v7306, 4294901760
        %7308 = vmatpush1.msra.mxu0 %v7307
        %7309 = vmatprep.subr.mxu0 0.0
        %v7310 = vand.u32 %v531, 4294901760
        %v7311 = vsub.f32 %v531, %v7310
        %v7312 = vand.u32 %v7311, 4294901760
        %7313 = vmatpush1.msra.mxu0 %v7312
        %7314 = vmatprep.subr.mxu0 0.0
        %v7315 = vand.u32 %v530, 4294901760
        %v7316 = vsub.f32 %v530, %v7315
        %v7317 = vand.u32 %v7316, 4294901760
        %7318 = vmatpush1.msra.mxu0 %v7317
        %7319 = vmatprep.subr.mxu0 0.0
        %v7320 = vand.u32 %v529, 4294901760
        %v7321 = vsub.f32 %v529, %v7320
        %v7322 = vand.u32 %v7321, 4294901760
        %7323 = vmatpush1.msra.mxu0 %v7322
        %7324 = vmatprep.subr.mxu0 0.0
        %v7325 = vand.u32 %v528, 4294901760
        %v7326 = vsub.f32 %v528, %v7325
        %v7327 = vand.u32 %v7326, 4294901760
        %7328 = vmatpush1.msra.mxu0 %v7327
        %7329 = vmatprep.subr.mxu0 0.0
        %v7330 = vand.u32 %v527, 4294901760
        %v7331 = vsub.f32 %v527, %v7330
        %v7332 = vand.u32 %v7331, 4294901760
        %7333 = vmatpush1.msra.mxu0 %v7332
        %7334 = vmatprep.subr.mxu0 0.0
        %v7335 = vand.u32 %v526, 4294901760
        %v7336 = vsub.f32 %v526, %v7335
        %v7337 = vand.u32 %v7336, 4294901760
        %7338 = vmatpush1.msra.mxu0 %v7337
        %7339 = vmatprep.subr.mxu0 0.0
        %v7340 = vand.u32 %v525, 4294901760
        %v7341 = vsub.f32 %v525, %v7340
        %v7342 = vand.u32 %v7341, 4294901760
        %7343 = vmatpush1.msra.mxu0 %v7342
        %7344 = vmatprep.subr.mxu0 0.0
        %v7345 = vand.u32 %v524, 4294901760
        %v7346 = vsub.f32 %v524, %v7345
        %v7347 = vand.u32 %v7346, 4294901760
        %7348 = vmatpush1.msra.mxu0 %v7347
        %7349 = vmatprep.subr.mxu0 0.0
        %v7350 = vand.u32 %v523, 4294901760
        %v7351 = vsub.f32 %v523, %v7350
        %v7352 = vand.u32 %v7351, 4294901760
        %7353 = vmatpush1.msra.mxu0 %v7352
        %7354 = vmatprep.subr.mxu0 0.0
        %v7355 = vand.u32 %v522, 4294901760
        %v7356 = vsub.f32 %v522, %v7355
        %v7357 = vand.u32 %v7356, 4294901760
        %7358 = vmatpush1.msra.mxu0 %v7357
        %7359 = vmatprep.subr.mxu0 0.0
        %v7360 = vand.u32 %v521, 4294901760
        %v7361 = vsub.f32 %v521, %v7360
        %v7362 = vand.u32 %v7361, 4294901760
        %7363 = vmatpush1.msra.mxu0 %v7362
        %7364 = vmatprep.subr.mxu0 0.0
        %v7365 = vand.u32 %v520, 4294901760
        %v7366 = vsub.f32 %v520, %v7365
        %v7367 = vand.u32 %v7366, 4294901760
        %7368 = vmatpush1.msra.mxu0 %v7367
        %7369 = vmatprep.subr.mxu0 0.0
        %v7370 = vand.u32 %v519, 4294901760
        %v7371 = vsub.f32 %v519, %v7370
        %v7372 = vand.u32 %v7371, 4294901760
        %7373 = vmatpush1.msra.mxu0 %v7372
        %7374 = vmatprep.subr.mxu0 0.0
        %v7375 = vand.u32 %v518, 4294901760
        %v7376 = vsub.f32 %v518, %v7375
        %v7377 = vand.u32 %v7376, 4294901760
        %7378 = vmatpush1.msra.mxu0 %v7377
        %7379 = vmatprep.subr.mxu0 0.0
        %7380 = vmatpush2.msra.mxu0 0.0
        %7381 = vmatprep.subr.mxu0 0.0
        %7382 = vmatpush2.msra.mxu0 0.0
        %7383 = vmatprep.subr.mxu0 0.0
        %7384 = vmatpush2.msra.mxu0 0.0
        %7385 = vmatprep.subr.mxu0 0.0
        %7386 = vmatpush2.msra.mxu0 0.0
        %7387 = vmatprep.subr.mxu0 0.0
        %7388 = vmatpush2.msra.mxu0 0.0
        %7389 = vmatprep.subr.mxu0 0.0
        %7390 = vmatpush2.msra.mxu0 0.0
        %7391 = vmatprep.subr.mxu0 0.0
        %7392 = vmatpush2.msra.mxu0 0.0
        %7393 = vmatprep.subr.mxu0 0.0
        %7394 = vmatpush2.msra.mxu0 0.0
        %7395 = vmatprep.subr.mxu0 0.0
        %7396 = vmatpush2.msra.mxu0 0.0
        %7397 = vmatprep.subr.mxu0 0.0
        %7398 = vmatpush2.msra.mxu0 0.0
        %7399 = vmatprep.subr.mxu0 0.0
        %7400 = vmatpush2.msra.mxu0 0.0
        %7401 = vmatprep.subr.mxu0 0.0
        %7402 = vmatpush2.msra.mxu0 0.0
        %7403 = vmatprep.subr.mxu0 0.0
        %7404 = vmatpush2.msra.mxu0 0.0
        %7405 = vmatprep.subr.mxu0 0.0
        %7406 = vmatpush2.msra.mxu0 0.0
        %7407 = vmatprep.subr.mxu0 0.0
        %7408 = vmatpush2.msra.mxu0 0.0
        %7409 = vmatprep.subr.mxu0 0.0
        %7410 = vmatpush2.msra.mxu0 0.0
        %7411 = vmatprep.mubr.f32.mxu0 0.0
        %v7412 = vand.u32 %v6863, 4294901760
        %7413 = vmatmul.mubr.f32.gmra.mxu0 %v7412
        %v7414 = vpop.f32.mrf.mxu0
        %v7415 = vadd.f32 %v7296, %v7414
        %v7416 = vpop.f32.mrf.mxu0
        %7417 = vdwg.mxu0
        %7418 = vmatprep.subr.mxu0 0.0
        %v7419 = vand.u32 %v533, 4294901760
        %7420 = vmatpush1.msra.mxu0 %v7419
        %7421 = vmatprep.subr.mxu0 0.0
        %v7422 = vand.u32 %v532, 4294901760
        %7423 = vmatpush1.msra.mxu0 %v7422
        %7424 = vmatprep.subr.mxu0 0.0
        %v7425 = vand.u32 %v531, 4294901760
        %7426 = vmatpush1.msra.mxu0 %v7425
        %7427 = vmatprep.subr.mxu0 0.0
        %v7428 = vand.u32 %v530, 4294901760
        %7429 = vmatpush1.msra.mxu0 %v7428
        %7430 = vmatprep.subr.mxu0 0.0
        %v7431 = vand.u32 %v529, 4294901760
        %7432 = vmatpush1.msra.mxu0 %v7431
        %7433 = vmatprep.subr.mxu0 0.0
        %v7434 = vand.u32 %v528, 4294901760
        %7435 = vmatpush1.msra.mxu0 %v7434
        %7436 = vmatprep.subr.mxu0 0.0
        %v7437 = vand.u32 %v527, 4294901760
        %7438 = vmatpush1.msra.mxu0 %v7437
        %7439 = vmatprep.subr.mxu0 0.0
        %v7440 = vand.u32 %v526, 4294901760
        %7441 = vmatpush1.msra.mxu0 %v7440
        %7442 = vmatprep.subr.mxu0 0.0
        %v7443 = vand.u32 %v525, 4294901760
        %7444 = vmatpush1.msra.mxu0 %v7443
        %7445 = vmatprep.subr.mxu0 0.0
        %v7446 = vand.u32 %v524, 4294901760
        %7447 = vmatpush1.msra.mxu0 %v7446
        %7448 = vmatprep.subr.mxu0 0.0
        %v7449 = vand.u32 %v523, 4294901760
        %7450 = vmatpush1.msra.mxu0 %v7449
        %7451 = vmatprep.subr.mxu0 0.0
        %v7452 = vand.u32 %v522, 4294901760
        %7453 = vmatpush1.msra.mxu0 %v7452
        %7454 = vmatprep.subr.mxu0 0.0
        %v7455 = vand.u32 %v521, 4294901760
        %7456 = vmatpush1.msra.mxu0 %v7455
        %7457 = vmatprep.subr.mxu0 0.0
        %v7458 = vand.u32 %v520, 4294901760
        %7459 = vmatpush1.msra.mxu0 %v7458
        %7460 = vmatprep.subr.mxu0 0.0
        %v7461 = vand.u32 %v519, 4294901760
        %7462 = vmatpush1.msra.mxu0 %v7461
        %7463 = vmatprep.subr.mxu0 0.0
        %v7464 = vand.u32 %v518, 4294901760
        %7465 = vmatpush1.msra.mxu0 %v7464
        %7466 = vmatprep.subr.mxu0 0.0
        %7467 = vmatpush2.msra.mxu0 0.0
        %7468 = vmatprep.subr.mxu0 0.0
        %7469 = vmatpush2.msra.mxu0 0.0
        %7470 = vmatprep.subr.mxu0 0.0
        %7471 = vmatpush2.msra.mxu0 0.0
        %7472 = vmatprep.subr.mxu0 0.0
        %7473 = vmatpush2.msra.mxu0 0.0
        %7474 = vmatprep.subr.mxu0 0.0
        %7475 = vmatpush2.msra.mxu0 0.0
        %7476 = vmatprep.subr.mxu0 0.0
        %7477 = vmatpush2.msra.mxu0 0.0
        %7478 = vmatprep.subr.mxu0 0.0
        %7479 = vmatpush2.msra.mxu0 0.0
        %7480 = vmatprep.subr.mxu0 0.0
        %7481 = vmatpush2.msra.mxu0 0.0
        %7482 = vmatprep.subr.mxu0 0.0
        %7483 = vmatpush2.msra.mxu0 0.0
        %7484 = vmatprep.subr.mxu0 0.0
        %7485 = vmatpush2.msra.mxu0 0.0
        %7486 = vmatprep.subr.mxu0 0.0
        %7487 = vmatpush2.msra.mxu0 0.0
        %7488 = vmatprep.subr.mxu0 0.0
        %7489 = vmatpush2.msra.mxu0 0.0
        %7490 = vmatprep.subr.mxu0 0.0
        %7491 = vmatpush2.msra.mxu0 0.0
        %7492 = vmatprep.subr.mxu0 0.0
        %7493 = vmatpush2.msra.mxu0 0.0
        %7494 = vmatprep.subr.mxu0 0.0
        %7495 = vmatpush2.msra.mxu0 0.0
        %7496 = vmatprep.subr.mxu0 0.0
        %7497 = vmatpush2.msra.mxu0 0.0
        %7498 = vmatprep.mubr.f32.mxu0 0.0
        %v7499 = vand.u32 %v6863, 4294901760
        %7500 = vmatmul.mubr.f32.gmra.mxu0 %v7499
        %v7501 = vpop.f32.mrf.mxu0
        %v7502 = vadd.f32 %v7415, %v7501
        %v7503 = vpop.f32.mrf.mxu0
        %7504 = vdwg.mxu0
        %v7505 = vsel %vm6853, %v7502, 0.0
        %v7506 = vrot.slane %v7505, 4
        %v7507 = vadd.f32 %v7505, %v7506
        %v7508 = vrot.slane %v7507, 2
        %v7509 = vadd.f32 %v7507, %v7508
        %v7510 = vrot.slane %v7509, 1
        %v7511 = vadd.f32 %v7509, %v7510
        %v7512 = vmul.f32 %v7511, 0.015625
        %v7513 = vadd.f32 %v7512, 1e-05
        %v7514 = vrsqrt.pop %v7513
        %v7515 = vmul.f32 %v6862, %v7514
        %v7516 = vld [vmem:[%s14] sm:$0xf]
        %v7517 = vmul.f32 %v7515, %v7516
        %v7518 = vld [vmem:[%s15] sm:$0xf]
        %v7519 = vadd.f32 %v7517, %v7518
        %7520 = vst [vmem:[%s512] sm:$0xf] %v7519
        %s7521 = sand.u32 %s379, 1
        %s7522 = scalar_lea.sflag [#allocation4], %s7521
        %s7523 = sand.u32 %s379, 1
        %s7524 = smul.addr %s7523, 4
        %s7525 = scalar_lea.vmem [#allocation3], %s7524
        // Predicated region
        $region85: #{tpu_custom_call.1} parent=83 // pred_check
          %p7526 = pneg %p389
        $region86: #{tpu_custom_call.1} parent=83 // pred_check_branch
          %7528 = sbr.rel (%p7526) target = $region88
        $region87: #{tpu_custom_call.1} parent=83 // pred_region
          %s7530 = ssub.s32 64, 64
          %7531 = vsyncadd %s7522, %s7530
          %s7532 = smul.addr %s30, 64
          %s7533 = scalar_lea.hbm %s16, %s7532
          %s7535 = sshll.u32 %s7525, 4
          %s7536 = int_to_ptr.vmem [resolvable:$true] %s7535
          %7538 = dma.vmem_to_hbm [thread:$0]  %s7536, 64, %s7533, %s7522
        $region88: #{tpu_custom_call.1} parent=83 // pred_fallthru
          _
      $region84: #{tpu_custom_call.1} parent=5 // pred_fallthru
        _
      %p7539 = scmp.le.s32.totalorder 2, %s25
      // Predicated region
      $region89: #{tpu_custom_call.1} parent=5 // pred_check
        %p7540 = pneg %p7539
      $region90: #{tpu_custom_call.1} parent=5 // pred_check_branch
        %7542 = sbr.rel (%p7540) target = $region92
      $region91: #{tpu_custom_call.1} parent=5 // pred_region
        %s7543 = ssub.s32 %s25, 2
        // Predicated region
        $region93: #{tpu_custom_call.1} parent=91 // pred_check
          %p7544 = pneg %p395
        $region94: #{tpu_custom_call.1} parent=91 // pred_check_branch
          %7546 = sbr.rel (%p7544) target = $region96
        $region95: #{tpu_custom_call.1} parent=91 // pred_region
          %s7547 = sand.u32 %s380, 1
          %s7548 = scalar_lea.sflag [#allocation4], %s7547
          %s7549 = sand.u32 %s380, 1
          %s7550 = smul.addr %s7549, 4
          %s7551 = scalar_lea.vmem [#allocation3], %s7550
          %7552 = dma.done %s7548, 64
        $region96: #{tpu_custom_call.1} parent=91 // pred_fallthru
          _
      $region92: #{tpu_custom_call.1} parent=5 // pred_fallthru
        _
    $region6: #{tpu_custom_call.1} parent=1 // loop_footer
      %s29 = sadd.s32 1, %s25
    $region7: #{tpu_custom_call.1} parent=1 // loop_footer_branch
      %24 = sbr.rel target = $region3
    $region8: #{tpu_custom_call.1} parent=1 // loop_exit
      _
    %7553 = vsyncpa [#allocation4], 1
    %s7554 = scalar_lea.sflag [#allocation4], 1
    %7555 = vsyncpa %s7554, 1

</llo_original>
